<compile_context>
chip_gen: v7x
topology: tpu7x:2x2x1
jax: 0.10.0
libtpu: 0.0.40
codegen_flags: <defaults>
</compile_context>

<pallas_src>
import numpy as np
import jax
import jax.numpy as jnp
from jax import lax
from jax.experimental import pallas as pl
from jax.experimental.pallas import tpu as pltpu


KERNEL_SIZES = (5, 3, 3)
POOL = 2
N_FEAT = 64          # fc output features
F_PAD = 128          # lane-dense padded output width


def _banded_conv_pool_matrix(w, w_in, phase):
    """(w_in*C_in, w_pool*C_out) banded matrix: one MaxPool phase of Conv2d(1,K).

    Input lanes are (t*C_in + ci) for input width t; output lanes are
    (u*C_out + co) for pooled width u.  Entry = w[co, ci, t - (2u+phase)] when
    that tap lies in [0, K), else 0.  Pooled width = (w_in-K+1)//2, matching
    MaxPool2d floor (ceil_mode=False) behaviour.
    """
    w = np.asarray(w, np.float32)
    c_out, c_in, k = w.shape
    w_pool = (w_in - k + 1) // POOL
    rows, cols = w_in * c_in, w_pool * c_out

    t = np.arange(rows) // c_in
    ci = np.arange(rows) % c_in
    u = np.arange(cols) // c_out
    co = np.arange(cols) % c_out

    tap = t[:, None] - (POOL * u[None, :] + phase)            # (rows, cols)
    valid = (tap >= 0) & (tap < k)
    dense = w[np.broadcast_to(co[None, :], tap.shape),
              np.broadcast_to(ci[:, None], tap.shape),
              np.clip(tap, 0, k - 1)]
    return np.where(valid, dense, 0.0).astype(np.float32)


def prepare_operands(params, height, width):
    """Build all constant kernel operands once (numpy), return device arrays."""
    k1, k2, k3 = KERNEL_SIZES
    p1 = (width - k1 + 1) // POOL
    p2 = (p1 - k2 + 1) // POOL
    p3 = (p2 - k3 + 1) // POOL

    ops = {
        "w1e": _banded_conv_pool_matrix(params["w1"], width, 0),   # (W,     p1*16)
        "w1o": _banded_conv_pool_matrix(params["w1"], width, 1),
        "w2e": _banded_conv_pool_matrix(params["w2"], p1, 0),      # (p1*16, p2*32)
        "w2o": _banded_conv_pool_matrix(params["w2"], p1, 1),
        "w3e": _banded_conv_pool_matrix(params["w3"], p2, 0),      # (p2*32, p3*64)
        "w3o": _banded_conv_pool_matrix(params["w3"], p2, 1),
        "b1": np.tile(np.asarray(params["b1"], np.float32), p1)[None, :],
        "b2": np.tile(np.asarray(params["b2"], np.float32), p2)[None, :],
        "b3": np.tile(np.asarray(params["b3"], np.float32), p3)[None, :],
    }
    # fc folded with Flatten(2)+mean(2): tiled over p3, pre-scaled by 1/(H*p3),
    # zero-padded 64 -> 128 output lanes for an unmasked lane-dense store.
    fcw = np.tile(np.asarray(params["fc_w"], np.float32).T, (p3, 1)) / float(height * p3)
    fcw_pad = np.zeros((p3 * N_FEAT, F_PAD), np.float32)
    fcw_pad[:, :N_FEAT] = fcw
    fcb_pad = np.zeros((1, F_PAD), np.float32)
    fcb_pad[0, :N_FEAT] = np.asarray(params["fc_b"], np.float32)
    ops["fcw"] = fcw_pad
    ops["fcb"] = fcb_pad
    return {k: jnp.asarray(v) for k, v in ops.items()}


def _pick_batch_tile(batch):
    """Return (bt, padded_batch). bt*21 rows per tile; grid >= 2 when B allows."""
    if batch <= 8:
        return batch, batch                       # single whole-batch tile
    for bt in (64, 32, 16, 8):                    # largest tile with >= 2 tiles
        n_tiles = -(-batch // bt)
        if n_tiles >= 2:
            return bt, n_tiles * bt
    return 8, -(-batch // 8) * 8


def _kernel(x_ref, seg_ref, w1e_ref, w1o_ref, b1_ref, w2e_ref, w2o_ref, b2_ref,
            w3e_ref, w3o_ref, b3_ref, fcw_ref, fcb_ref, o_ref):
    f32 = jnp.float32
    xr = x_ref[...]                                               # (nt, W)
    # block 1: even/odd conv phases as matmuls; max = MaxPool(1,2); + bias/ReLU
    a = jnp.maximum(jnp.dot(xr, w1e_ref[...], preferred_element_type=f32),
                    jnp.dot(xr, w1o_ref[...], preferred_element_type=f32))
    a = jnp.maximum(a + b1_ref[...], 0.0)                         # (nt, p1*16)
    # block 2
    a = jnp.maximum(jnp.dot(a, w2e_ref[...], preferred_element_type=f32),
                    jnp.dot(a, w2o_ref[...], preferred_element_type=f32))
    a = jnp.maximum(a + b2_ref[...], 0.0)                         # (nt, p2*32)
    # block 3
    a = jnp.maximum(jnp.dot(a, w3e_ref[...], preferred_element_type=f32),
                    jnp.dot(a, w3o_ref[...], preferred_element_type=f32))
    a = jnp.maximum(a + b3_ref[...], 0.0)                         # (nt, p3*64)
    # Flatten(2)+mean(2): per-batch segment-sum as a single MXU matmul, then
    # the (pre-scaled, lane-padded) fc on bt rows only; one unmasked store.
    pooled = jnp.dot(seg_ref[...], a, preferred_element_type=f32)      # (bt, p3*64)
    o_ref[...] = (jnp.dot(pooled, fcw_ref[...], preferred_element_type=f32)
                  + fcb_ref[...])                                       # (bt, 128)


def _cnn_forward_impl(x, ops, *, single_buffer_weights=True):
    """x: (B, H, W) float32 -> (B, 64) float32, matching CNNModel.forward."""
    B, H, W = x.shape
    bt, pb = _pick_batch_tile(B)
    nt = bt * H

    x_pad = x.astype(jnp.float32)
    if pb != B:
        x_pad = jnp.pad(x_pad, ((0, pb - B), (0, 0), (0, 0)))
    x_rows = x_pad.reshape(pb * H, W)

    # 0/1 segment-sum matrix: row j sums the H rows of batch j within a tile.
    seg = jnp.asarray(
        (np.arange(nt)[None, :] // H == np.arange(bt)[:, None]).astype(np.float32))

    operands = (x_rows, seg, ops["w1e"], ops["w1o"], ops["b1"],
                ops["w2e"], ops["w2o"], ops["b2"],
                ops["w3e"], ops["w3o"], ops["b3"], ops["fcw"], ops["fcb"])

    if single_buffer_weights:
        # Constant index_map across the grid -> keep resident, single buffer.
        resident = lambda a: pl.BlockSpec(a.shape, lambda i: (0, 0),
                                          pipeline_mode=pl.Buffered(1))
    else:
        resident = lambda a: pl.BlockSpec(a.shape, lambda i: (0, 0))
    in_specs = ([pl.BlockSpec((nt, W), lambda i: (i, 0))]
                + [resident(a) for a in operands[1:]])

    p3c = ops["fcw"].shape[0]                                     # p3 * 64
    conv_macs_per_row = 2 * (ops["w1e"].size + ops["w2e"].size + ops["w3e"].size)
    cost = pl.CostEstimate(
        flops=int(2 * (pb * H) * conv_macs_per_row        # six conv matmuls
                  + 2 * pb * nt * p3c                     # segment-sum matmuls
                  + 2 * pb * p3c * F_PAD),                # fc matmuls
        transcendentals=0,
        bytes_accessed=int(4 * (x_rows.size + pb * F_PAD + seg.size
                                + sum(int(v.size) for v in ops.values()))))

    out_pad = pl.pallas_call(
        _kernel,
        out_shape=jax.ShapeDtypeStruct((pb, F_PAD), jnp.float32),
        grid=(pb // bt,),
        in_specs=in_specs,
        out_specs=pl.BlockSpec((bt, F_PAD), lambda i: (i, 0)),
        compiler_params=pltpu.CompilerParams(dimension_semantics=("parallel",)),
        cost_estimate=cost,
    )(*operands)
    return out_pad[:B, :N_FEAT]


cnn_forward = jax.jit(_cnn_forward_impl, static_argnames=("single_buffer_weights",))


def init_params(key):
    ks = jax.random.split(key, 8)

    def u(k, shape, fan_in):
        b = 1.0 / np.sqrt(fan_in)
        return jax.random.uniform(k, shape, jnp.float32, -b, b)

    return {
        "w1": u(ks[0], (16, 1, 5), 1 * 5),
        "b1": u(ks[1], (16,), 1 * 5),
        "w2": u(ks[2], (32, 16, 3), 16 * 3),
        "b2": u(ks[3], (32,), 16 * 3),
        "w3": u(ks[4], (64, 32, 3), 32 * 3),
        "b3": u(ks[5], (64,), 32 * 3),
        "fc_w": u(ks[6], (64, 64), 64),
        "fc_b": u(ks[7], (64,), 64),
    }


def reference_forward(x, params):
    """Pure-JAX/XLA reference, mirroring the PyTorch NCHW forward (HIGHEST precision)."""
    y = x[:, None, :, :].astype(jnp.float32)                 # unsqueeze(1): (B, 1, H, W)
    for wn, bn in (("w1", "b1"), ("w2", "b2"), ("w3", "b3")):
        w = params[wn][:, :, None, :]                        # (O, I, 1, K)
        y = lax.conv_general_dilated(y, w, window_strides=(1, 1), padding="VALID",
                                     dimension_numbers=("NCHW", "OIHW", "NCHW"),
                                     precision=lax.Precision.HIGHEST)
        y = y + params[bn][None, :, None, None]
        y = jnp.maximum(y, 0.0)
        y = lax.reduce_window(y, -jnp.inf, lax.max,
                              window_dimensions=(1, 1, 1, POOL),
                              window_strides=(1, 1, 1, POOL), padding="VALID")
    y = y.reshape(y.shape[0], y.shape[1], -1).mean(axis=2)   # Flatten(2) + mean(dim=2)
    return (jnp.dot(y, params["fc_w"].T, precision=lax.Precision.HIGHEST)
            + params["fc_b"])                                # fc; output_unit is dead code


if __name__ == "__main__":
    key = jax.random.PRNGKey(0)
    kx, kp = jax.random.split(key)
    # Input (B, H, W): H = 21 matches the module's n_channels (the (1,k) conv
    # kernels slide only along W); W = 64 -> widths 30 / 14 / 6 after the blocks.
    x = jax.random.normal(kx, (2, 21, 64), jnp.float32)
    params = init_params(kp)
    ops = prepare_operands(params, height=x.shape[1], width=x.shape[2])

    try:
        out = jax.block_until_ready(cnn_forward(x, ops, single_buffer_weights=True))
    except Exception:
        # Fallback for Pallas builds that reject pipeline_mode on top-level
        # BlockSpecs; identical kernel, default double-buffered weights.
        out = jax.block_until_ready(cnn_forward(x, ops, single_buffer_weights=False))
    assert out.shape == (2, 64), out.shape

    ref = reference_forward(x, params)
    np.testing.assert_allclose(np.asarray(out), np.asarray(ref), rtol=1e-4, atol=1e-5)
    print("KERNEL_OK")
</pallas_src>

<mosaic_0001>
module attributes {stable_mosaic.version = 11 : i64} {
  func.func @_kernel(%arg0: i32, %arg1: memref<42x64xf32, #tpu.memory_space<vmem>>, %arg2: memref<2x42xf32, #tpu.memory_space<vmem>>, %arg3: memref<64x480xf32, #tpu.memory_space<vmem>>, %arg4: memref<64x480xf32, #tpu.memory_space<vmem>>, %arg5: memref<1x480xf32, #tpu.memory_space<vmem>>, %arg6: memref<480x448xf32, #tpu.memory_space<vmem>>, %arg7: memref<480x448xf32, #tpu.memory_space<vmem>>, %arg8: memref<1x448xf32, #tpu.memory_space<vmem>>, %arg9: memref<448x384xf32, #tpu.memory_space<vmem>>, %arg10: memref<448x384xf32, #tpu.memory_space<vmem>>, %arg11: memref<1x384xf32, #tpu.memory_space<vmem>>, %arg12: memref<384x128xf32, #tpu.memory_space<vmem>>, %arg13: memref<1x128xf32, #tpu.memory_space<vmem>>, %arg14: memref<2x128xf32, #tpu.memory_space<vmem>>) attributes {dimension_semantics = [#tpu.dimension_semantics<parallel>], iteration_bounds = array<i64: 1>, scalar_prefetch = 0 : i64, scratch_operands = 0 : i64, tpu.core_type = #tpu.core_type<tc>, window_params = [{transform_indices = @transform_0, window_bounds = array<i64: 42, 64>}, {pipeline_mode = #tpu.pipeline_mode<synchronous>, transform_indices = @transform_1, window_bounds = array<i64: 2, 42>}, {pipeline_mode = #tpu.pipeline_mode<synchronous>, transform_indices = @transform_2, window_bounds = array<i64: 64, 480>}, {pipeline_mode = #tpu.pipeline_mode<synchronous>, transform_indices = @transform_3, window_bounds = array<i64: 64, 480>}, {pipeline_mode = #tpu.pipeline_mode<synchronous>, transform_indices = @transform_4, window_bounds = array<i64: 1, 480>}, {pipeline_mode = #tpu.pipeline_mode<synchronous>, transform_indices = @transform_5, window_bounds = array<i64: 480, 448>}, {pipeline_mode = #tpu.pipeline_mode<synchronous>, transform_indices = @transform_6, window_bounds = array<i64: 480, 448>}, {pipeline_mode = #tpu.pipeline_mode<synchronous>, transform_indices = @transform_7, window_bounds = array<i64: 1, 448>}, {pipeline_mode = #tpu.pipeline_mode<synchronous>, transform_indices = @transform_8, window_bounds = array<i64: 448, 384>}, {pipeline_mode = #tpu.pipeline_mode<synchronous>, transform_indices = @transform_9, window_bounds = array<i64: 448, 384>}, {pipeline_mode = #tpu.pipeline_mode<synchronous>, transform_indices = @transform_10, window_bounds = array<i64: 1, 384>}, {pipeline_mode = #tpu.pipeline_mode<synchronous>, transform_indices = @transform_11, window_bounds = array<i64: 384, 128>}, {pipeline_mode = #tpu.pipeline_mode<synchronous>, transform_indices = @transform_12, window_bounds = array<i64: 1, 128>}, {transform_indices = @transform_13, window_bounds = array<i64: 2, 128>}]} {
    %c0 = arith.constant 0 : index
    %c0_0 = arith.constant 0 : index
    %0 = vector.load %arg1[%c0, %c0_0] : memref<42x64xf32, #tpu.memory_space<vmem>>, vector<42x64xf32>
    %c0_1 = arith.constant 0 : index
    %c0_2 = arith.constant 0 : index
    %1 = vector.load %arg3[%c0_1, %c0_2] : memref<64x480xf32, #tpu.memory_space<vmem>>, vector<64x480xf32>
    %cst = arith.constant dense<0.000000e+00> : vector<42x480xf32>
    %2 = tpu.matmul %0, %1, %cst {dimension_numbers = #tpu.dot_dimension_numbers<[1], [0], [0], [1], [0, 0, 1, 1], [], []>} : vector<42x64xf32>, vector<64x480xf32>, vector<42x480xf32> -> vector<42x480xf32>
    %c0_3 = arith.constant 0 : index
    %c0_4 = arith.constant 0 : index
    %3 = vector.load %arg4[%c0_3, %c0_4] : memref<64x480xf32, #tpu.memory_space<vmem>>, vector<64x480xf32>
    %cst_5 = arith.constant dense<0.000000e+00> : vector<42x480xf32>
    %4 = tpu.matmul %0, %3, %cst_5 {dimension_numbers = #tpu.dot_dimension_numbers<[1], [0], [0], [1], [0, 0, 1, 1], [], []>} : vector<42x64xf32>, vector<64x480xf32>, vector<42x480xf32> -> vector<42x480xf32>
    %5 = arith.maximumf %2, %4 : vector<42x480xf32>
    %c0_6 = arith.constant 0 : index
    %c0_7 = arith.constant 0 : index
    %6 = vector.load %arg5[%c0_6, %c0_7] : memref<1x480xf32, #tpu.memory_space<vmem>>, vector<1x480xf32>
    %7 = vector.broadcast %6 : vector<1x480xf32> to vector<42x480xf32>
    %8 = arith.addf %5, %7 : vector<42x480xf32>
    %cst_8 = arith.constant 0.000000e+00 : f32
    %9 = vector.broadcast %cst_8 : f32 to vector<42x480xf32>
    %10 = arith.maximumf %8, %9 : vector<42x480xf32>
    %c0_9 = arith.constant 0 : index
    %c0_10 = arith.constant 0 : index
    %11 = vector.load %arg6[%c0_9, %c0_10] : memref<480x448xf32, #tpu.memory_space<vmem>>, vector<480x448xf32>
    %cst_11 = arith.constant dense<0.000000e+00> : vector<42x448xf32>
    %12 = tpu.matmul %10, %11, %cst_11 {dimension_numbers = #tpu.dot_dimension_numbers<[1], [0], [0], [1], [0, 0, 1, 1], [], []>} : vector<42x480xf32>, vector<480x448xf32>, vector<42x448xf32> -> vector<42x448xf32>
    %c0_12 = arith.constant 0 : index
    %c0_13 = arith.constant 0 : index
    %13 = vector.load %arg7[%c0_12, %c0_13] : memref<480x448xf32, #tpu.memory_space<vmem>>, vector<480x448xf32>
    %cst_14 = arith.constant dense<0.000000e+00> : vector<42x448xf32>
    %14 = tpu.matmul %10, %13, %cst_14 {dimension_numbers = #tpu.dot_dimension_numbers<[1], [0], [0], [1], [0, 0, 1, 1], [], []>} : vector<42x480xf32>, vector<480x448xf32>, vector<42x448xf32> -> vector<42x448xf32>
    %15 = arith.maximumf %12, %14 : vector<42x448xf32>
    %c0_15 = arith.constant 0 : index
    %c0_16 = arith.constant 0 : index
    %16 = vector.load %arg8[%c0_15, %c0_16] : memref<1x448xf32, #tpu.memory_space<vmem>>, vector<1x448xf32>
    %17 = vector.broadcast %16 : vector<1x448xf32> to vector<42x448xf32>
    %18 = arith.addf %15, %17 : vector<42x448xf32>
    %cst_17 = arith.constant 0.000000e+00 : f32
    %19 = vector.broadcast %cst_17 : f32 to vector<42x448xf32>
    %20 = arith.maximumf %18, %19 : vector<42x448xf32>
    %c0_18 = arith.constant 0 : index
    %c0_19 = arith.constant 0 : index
    %21 = vector.load %arg9[%c0_18, %c0_19] : memref<448x384xf32, #tpu.memory_space<vmem>>, vector<448x384xf32>
    %cst_20 = arith.constant dense<0.000000e+00> : vector<42x384xf32>
    %22 = tpu.matmul %20, %21, %cst_20 {dimension_numbers = #tpu.dot_dimension_numbers<[1], [0], [0], [1], [0, 0, 1, 1], [], []>} : vector<42x448xf32>, vector<448x384xf32>, vector<42x384xf32> -> vector<42x384xf32>
    %c0_21 = arith.constant 0 : index
    %c0_22 = arith.constant 0 : index
    %23 = vector.load %arg10[%c0_21, %c0_22] : memref<448x384xf32, #tpu.memory_space<vmem>>, vector<448x384xf32>
    %cst_23 = arith.constant dense<0.000000e+00> : vector<42x384xf32>
    %24 = tpu.matmul %20, %23, %cst_23 {dimension_numbers = #tpu.dot_dimension_numbers<[1], [0], [0], [1], [0, 0, 1, 1], [], []>} : vector<42x448xf32>, vector<448x384xf32>, vector<42x384xf32> -> vector<42x384xf32>
    %25 = arith.maximumf %22, %24 : vector<42x384xf32>
    %c0_24 = arith.constant 0 : index
    %c0_25 = arith.constant 0 : index
    %26 = vector.load %arg11[%c0_24, %c0_25] : memref<1x384xf32, #tpu.memory_space<vmem>>, vector<1x384xf32>
    %27 = vector.broadcast %26 : vector<1x384xf32> to vector<42x384xf32>
    %28 = arith.addf %25, %27 : vector<42x384xf32>
    %cst_26 = arith.constant 0.000000e+00 : f32
    %29 = vector.broadcast %cst_26 : f32 to vector<42x384xf32>
    %30 = arith.maximumf %28, %29 : vector<42x384xf32>
    %c0_27 = arith.constant 0 : index
    %c0_28 = arith.constant 0 : index
    %31 = vector.load %arg2[%c0_27, %c0_28] : memref<2x42xf32, #tpu.memory_space<vmem>>, vector<2x42xf32>
    %cst_29 = arith.constant dense<0.000000e+00> : vector<2x384xf32>
    %32 = tpu.matmul %31, %30, %cst_29 {dimension_numbers = #tpu.dot_dimension_numbers<[1], [0], [0], [1], [0, 0, 1, 1], [], []>} : vector<2x42xf32>, vector<42x384xf32>, vector<2x384xf32> -> vector<2x384xf32>
    %c0_30 = arith.constant 0 : index
    %c0_31 = arith.constant 0 : index
    %33 = vector.load %arg12[%c0_30, %c0_31] : memref<384x128xf32, #tpu.memory_space<vmem>>, vector<384x128xf32>
    %cst_32 = arith.constant dense<0.000000e+00> : vector<2x128xf32>
    %34 = tpu.matmul %32, %33, %cst_32 {dimension_numbers = #tpu.dot_dimension_numbers<[1], [0], [0], [1], [0, 0, 1, 1], [], []>} : vector<2x384xf32>, vector<384x128xf32>, vector<2x128xf32> -> vector<2x128xf32>
    %c0_33 = arith.constant 0 : index
    %c0_34 = arith.constant 0 : index
    %35 = vector.load %arg13[%c0_33, %c0_34] : memref<1x128xf32, #tpu.memory_space<vmem>>, vector<1x128xf32>
    %36 = vector.broadcast %35 : vector<1x128xf32> to vector<2x128xf32>
    %37 = arith.addf %34, %36 : vector<2x128xf32>
    %c0_35 = arith.constant 0 : index
    %c0_36 = arith.constant 0 : index
    %38 = vector.load %arg14[%c0_35, %c0_36] : memref<2x128xf32, #tpu.memory_space<vmem>>, vector<2x128xf32>
    tpu.vector_store %arg14[%c0_35, %c0_36], %37 {strides = array<i32>} : memref<2x128xf32, #tpu.memory_space<vmem>>, vector<2x128xf32>,
    return
  }
  func.func @transform_0(%arg0: i32) -> (i32, i32) {
    %c0_i32 = arith.constant 0 : i32
    %c0_i32_0 = arith.constant 0 : i32
    return %arg0, %c0_i32 : i32, i32
  }
  func.func @transform_1(%arg0: i32) -> (i32, i32) {
    %c0_i32 = arith.constant 0 : i32
    %c0_i32_0 = arith.constant 0 : i32
    %c0_i32_1 = arith.constant 0 : i32
    return %c0_i32, %c0_i32_0 : i32, i32
  }
  func.func @transform_2(%arg0: i32) -> (i32, i32) {
    %c0_i32 = arith.constant 0 : i32
    %c0_i32_0 = arith.constant 0 : i32
    %c0_i32_1 = arith.constant 0 : i32
    return %c0_i32, %c0_i32_0 : i32, i32
  }
  func.func @transform_3(%arg0: i32) -> (i32, i32) {
    %c0_i32 = arith.constant 0 : i32
    %c0_i32_0 = arith.constant 0 : i32
    %c0_i32_1 = arith.constant 0 : i32
    return %c0_i32, %c0_i32_0 : i32, i32
  }
  func.func @transform_4(%arg0: i32) -> (i32, i32) {
    %c0_i32 = arith.constant 0 : i32
    %c0_i32_0 = arith.constant 0 : i32
    %c0_i32_1 = arith.constant 0 : i32
    return %c0_i32, %c0_i32_0 : i32, i32
  }
  func.func @transform_5(%arg0: i32) -> (i32, i32) {
    %c0_i32 = arith.constant 0 : i32
    %c0_i32_0 = arith.constant 0 : i32
    %c0_i32_1 = arith.constant 0 : i32
    return %c0_i32, %c0_i32_0 : i32, i32
  }
  func.func @transform_6(%arg0: i32) -> (i32, i32) {
    %c0_i32 = arith.constant 0 : i32
    %c0_i32_0 = arith.constant 0 : i32
    %c0_i32_1 = arith.constant 0 : i32
    return %c0_i32, %c0_i32_0 : i32, i32
  }
  func.func @transform_7(%arg0: i32) -> (i32, i32) {
    %c0_i32 = arith.constant 0 : i32
    %c0_i32_0 = arith.constant 0 : i32
    %c0_i32_1 = arith.constant 0 : i32
    return %c0_i32, %c0_i32_0 : i32, i32
  }
  func.func @transform_8(%arg0: i32) -> (i32, i32) {
    %c0_i32 = arith.constant 0 : i32
    %c0_i32_0 = arith.constant 0 : i32
    %c0_i32_1 = arith.constant 0 : i32
    return %c0_i32, %c0_i32_0 : i32, i32
  }
  func.func @transform_9(%arg0: i32) -> (i32, i32) {
    %c0_i32 = arith.constant 0 : i32
    %c0_i32_0 = arith.constant 0 : i32
    %c0_i32_1 = arith.constant 0 : i32
    return %c0_i32, %c0_i32_0 : i32, i32
  }
  func.func @transform_10(%arg0: i32) -> (i32, i32) {
    %c0_i32 = arith.constant 0 : i32
    %c0_i32_0 = arith.constant 0 : i32
    %c0_i32_1 = arith.constant 0 : i32
    return %c0_i32, %c0_i32_0 : i32, i32
  }
  func.func @transform_11(%arg0: i32) -> (i32, i32) {
    %c0_i32 = arith.constant 0 : i32
    %c0_i32_0 = arith.constant 0 : i32
    %c0_i32_1 = arith.constant 0 : i32
    return %c0_i32, %c0_i32_0 : i32, i32
  }
  func.func @transform_12(%arg0: i32) -> (i32, i32) {
    %c0_i32 = arith.constant 0 : i32
    %c0_i32_0 = arith.constant 0 : i32
    %c0_i32_1 = arith.constant 0 : i32
    return %c0_i32, %c0_i32_0 : i32, i32
  }
  func.func @transform_13(%arg0: i32) -> (i32, i32) {
    %c0_i32 = arith.constant 0 : i32
    %c0_i32_0 = arith.constant 0 : i32
    return %arg0, %c0_i32 : i32, i32
  }
}

module attributes {stable_mosaic.version = 11 : i64} {
  func.func @_kernel(%arg0: i32, %arg1: memref<42x64xf32, #tpu.memory_space<vmem>>, %arg2: memref<2x42xf32, #tpu.memory_space<vmem>>, %arg3: memref<64x480xf32, #tpu.memory_space<vmem>>, %arg4: memref<64x480xf32, #tpu.memory_space<vmem>>, %arg5: memref<1x480xf32, #tpu.memory_space<vmem>>, %arg6: memref<480x448xf32, #tpu.memory_space<vmem>>, %arg7: memref<480x448xf32, #tpu.memory_space<vmem>>, %arg8: memref<1x448xf32, #tpu.memory_space<vmem>>, %arg9: memref<448x384xf32, #tpu.memory_space<vmem>>, %arg10: memref<448x384xf32, #tpu.memory_space<vmem>>, %arg11: memref<1x384xf32, #tpu.memory_space<vmem>>, %arg12: memref<384x128xf32, #tpu.memory_space<vmem>>, %arg13: memref<1x128xf32, #tpu.memory_space<vmem>>, %arg14: memref<2x128xf32, #tpu.memory_space<vmem>>) attributes {dimension_semantics = [#tpu.dimension_semantics<parallel>], iteration_bounds = array<i64: 1>, scalar_prefetch = 0 : i64, scratch_operands = 0 : i64, tpu.core_type = #tpu.core_type<tc>, window_params = [{transform_indices = @transform_0, window_bounds = array<i64: 42, 64>}, {pipeline_mode = #tpu.pipeline_mode<synchronous>, transform_indices = @transform_1, window_bounds = array<i64: 2, 42>}, {pipeline_mode = #tpu.pipeline_mode<synchronous>, transform_indices = @transform_2, window_bounds = array<i64: 64, 480>}, {pipeline_mode = #tpu.pipeline_mode<synchronous>, transform_indices = @transform_3, window_bounds = array<i64: 64, 480>}, {pipeline_mode = #tpu.pipeline_mode<synchronous>, transform_indices = @transform_4, window_bounds = array<i64: 1, 480>}, {pipeline_mode = #tpu.pipeline_mode<synchronous>, transform_indices = @transform_5, window_bounds = array<i64: 480, 448>}, {pipeline_mode = #tpu.pipeline_mode<synchronous>, transform_indices = @transform_6, window_bounds = array<i64: 480, 448>}, {pipeline_mode = #tpu.pipeline_mode<synchronous>, transform_indices = @transform_7, window_bounds = array<i64: 1, 448>}, {pipeline_mode = #tpu.pipeline_mode<synchronous>, transform_indices = @transform_8, window_bounds = array<i64: 448, 384>}, {pipeline_mode = #tpu.pipeline_mode<synchronous>, transform_indices = @transform_9, window_bounds = array<i64: 448, 384>}, {pipeline_mode = #tpu.pipeline_mode<synchronous>, transform_indices = @transform_10, window_bounds = array<i64: 1, 384>}, {pipeline_mode = #tpu.pipeline_mode<synchronous>, transform_indices = @transform_11, window_bounds = array<i64: 384, 128>}, {pipeline_mode = #tpu.pipeline_mode<synchronous>, transform_indices = @transform_12, window_bounds = array<i64: 1, 128>}, {transform_indices = @transform_13, window_bounds = array<i64: 2, 128>}]} {
    %c0 = arith.constant 0 : index
    %c0_0 = arith.constant 0 : index
    %0 = vector.load %arg1[%c0, %c0_0] : memref<42x64xf32, #tpu.memory_space<vmem>>, vector<42x64xf32>
    %c0_1 = arith.constant 0 : index
    %c0_2 = arith.constant 0 : index
    %1 = vector.load %arg3[%c0_1, %c0_2] : memref<64x480xf32, #tpu.memory_space<vmem>>, vector<64x480xf32>
    %cst = arith.constant dense<0.000000e+00> : vector<42x480xf32>
    %2 = tpu.matmul %0, %1, %cst {dimension_numbers = #tpu.dot_dimension_numbers<[1], [0], [0], [1], [0, 0, 1, 1], [], []>} : vector<42x64xf32>, vector<64x480xf32>, vector<42x480xf32> -> vector<42x480xf32>
    %c0_3 = arith.constant 0 : index
    %c0_4 = arith.constant 0 : index
    %3 = vector.load %arg4[%c0_3, %c0_4] : memref<64x480xf32, #tpu.memory_space<vmem>>, vector<64x480xf32>
    %cst_5 = arith.constant dense<0.000000e+00> : vector<42x480xf32>
    %4 = tpu.matmul %0, %3, %cst_5 {dimension_numbers = #tpu.dot_dimension_numbers<[1], [0], [0], [1], [0, 0, 1, 1], [], []>} : vector<42x64xf32>, vector<64x480xf32>, vector<42x480xf32> -> vector<42x480xf32>
    %5 = arith.maximumf %2, %4 : vector<42x480xf32>
    %c0_6 = arith.constant 0 : index
    %c0_7 = arith.constant 0 : index
    %6 = vector.load %arg5[%c0_6, %c0_7] : memref<1x480xf32, #tpu.memory_space<vmem>>, vector<1x480xf32>
    %7 = vector.broadcast %6 : vector<1x480xf32> to vector<42x480xf32>
    %8 = arith.addf %5, %7 : vector<42x480xf32>
    %cst_8 = arith.constant 0.000000e+00 : f32
    %9 = vector.broadcast %cst_8 : f32 to vector<42x480xf32>
    %10 = arith.maximumf %8, %9 : vector<42x480xf32>
    %c0_9 = arith.constant 0 : index
    %c0_10 = arith.constant 0 : index
    %11 = vector.load %arg6[%c0_9, %c0_10] : memref<480x448xf32, #tpu.memory_space<vmem>>, vector<480x448xf32>
    %cst_11 = arith.constant dense<0.000000e+00> : vector<42x448xf32>
    %12 = tpu.matmul %10, %11, %cst_11 {dimension_numbers = #tpu.dot_dimension_numbers<[1], [0], [0], [1], [0, 0, 1, 1], [], []>} : vector<42x480xf32>, vector<480x448xf32>, vector<42x448xf32> -> vector<42x448xf32>
    %c0_12 = arith.constant 0 : index
    %c0_13 = arith.constant 0 : index
    %13 = vector.load %arg7[%c0_12, %c0_13] : memref<480x448xf32, #tpu.memory_space<vmem>>, vector<480x448xf32>
    %cst_14 = arith.constant dense<0.000000e+00> : vector<42x448xf32>
    %14 = tpu.matmul %10, %13, %cst_14 {dimension_numbers = #tpu.dot_dimension_numbers<[1], [0], [0], [1], [0, 0, 1, 1], [], []>} : vector<42x480xf32>, vector<480x448xf32>, vector<42x448xf32> -> vector<42x448xf32>
    %15 = arith.maximumf %12, %14 : vector<42x448xf32>
    %c0_15 = arith.constant 0 : index
    %c0_16 = arith.constant 0 : index
    %16 = vector.load %arg8[%c0_15, %c0_16] : memref<1x448xf32, #tpu.memory_space<vmem>>, vector<1x448xf32>
    %17 = vector.broadcast %16 : vector<1x448xf32> to vector<42x448xf32>
    %18 = arith.addf %15, %17 : vector<42x448xf32>
    %cst_17 = arith.constant 0.000000e+00 : f32
    %19 = vector.broadcast %cst_17 : f32 to vector<42x448xf32>
    %20 = arith.maximumf %18, %19 : vector<42x448xf32>
    %c0_18 = arith.constant 0 : index
    %c0_19 = arith.constant 0 : index
    %21 = vector.load %arg9[%c0_18, %c0_19] : memref<448x384xf32, #tpu.memory_space<vmem>>, vector<448x384xf32>
    %cst_20 = arith.constant dense<0.000000e+00> : vector<42x384xf32>
    %22 = tpu.matmul %20, %21, %cst_20 {dimension_numbers = #tpu.dot_dimension_numbers<[1], [0], [0], [1], [0, 0, 1, 1], [], []>} : vector<42x448xf32>, vector<448x384xf32>, vector<42x384xf32> -> vector<42x384xf32>
    %c0_21 = arith.constant 0 : index
    %c0_22 = arith.constant 0 : index
    %23 = vector.load %arg10[%c0_21, %c0_22] : memref<448x384xf32, #tpu.memory_space<vmem>>, vector<448x384xf32>
    %cst_23 = arith.constant dense<0.000000e+00> : vector<42x384xf32>
    %24 = tpu.matmul %20, %23, %cst_23 {dimension_numbers = #tpu.dot_dimension_numbers<[1], [0], [0], [1], [0, 0, 1, 1], [], []>} : vector<42x448xf32>, vector<448x384xf32>, vector<42x384xf32> -> vector<42x384xf32>
    %25 = arith.maximumf %22, %24 : vector<42x384xf32>
    %c0_24 = arith.constant 0 : index
    %c0_25 = arith.constant 0 : index
    %26 = vector.load %arg11[%c0_24, %c0_25] : memref<1x384xf32, #tpu.memory_space<vmem>>, vector<1x384xf32>
    %27 = vector.broadcast %26 : vector<1x384xf32> to vector<42x384xf32>
    %28 = arith.addf %25, %27 : vector<42x384xf32>
    %cst_26 = arith.constant 0.000000e+00 : f32
    %29 = vector.broadcast %cst_26 : f32 to vector<42x384xf32>
    %30 = arith.maximumf %28, %29 : vector<42x384xf32>
    %c0_27 = arith.constant 0 : index
    %c0_28 = arith.constant 0 : index
    %31 = vector.load %arg2[%c0_27, %c0_28] : memref<2x42xf32, #tpu.memory_space<vmem>>, vector<2x42xf32>
    %cst_29 = arith.constant dense<0.000000e+00> : vector<2x384xf32>
    %32 = tpu.matmul %31, %30, %cst_29 {dimension_numbers = #tpu.dot_dimension_numbers<[1], [0], [0], [1], [0, 0, 1, 1], [], []>} : vector<2x42xf32>, vector<42x384xf32>, vector<2x384xf32> -> vector<2x384xf32>
    %c0_30 = arith.constant 0 : index
    %c0_31 = arith.constant 0 : index
    %33 = vector.load %arg12[%c0_30, %c0_31] : memref<384x128xf32, #tpu.memory_space<vmem>>, vector<384x128xf32>
    %cst_32 = arith.constant dense<0.000000e+00> : vector<2x128xf32>
    %34 = tpu.matmul %32, %33, %cst_32 {dimension_numbers = #tpu.dot_dimension_numbers<[1], [0], [0], [1], [0, 0, 1, 1], [], []>} : vector<2x384xf32>, vector<384x128xf32>, vector<2x128xf32> -> vector<2x128xf32>
    %c0_33 = arith.constant 0 : index
    %c0_34 = arith.constant 0 : index
    %35 = vector.load %arg13[%c0_33, %c0_34] : memref<1x128xf32, #tpu.memory_space<vmem>>, vector<1x128xf32>
    %36 = vector.broadcast %35 : vector<1x128xf32> to vector<2x128xf32>
    %37 = arith.addf %34, %36 : vector<2x128xf32>
    %c0_35 = arith.constant 0 : index
    %c0_36 = arith.constant 0 : index
    %38 = vector.load %arg14[%c0_35, %c0_36] : memref<2x128xf32, #tpu.memory_space<vmem>>, vector<2x128xf32>
    tpu.vector_store %arg14[%c0_35, %c0_36], %37 {strides = array<i32>} : memref<2x128xf32, #tpu.memory_space<vmem>>, vector<2x128xf32>,
    return
  }
  func.func @transform_0(%arg0: i32) -> (i32, i32) {
    %c0_i32 = arith.constant 0 : i32
    %c0_i32_0 = arith.constant 0 : i32
    return %arg0, %c0_i32 : i32, i32
  }
  func.func @transform_1(%arg0: i32) -> (i32, i32) {
    %c0_i32 = arith.constant 0 : i32
    %c0_i32_0 = arith.constant 0 : i32
    %c0_i32_1 = arith.constant 0 : i32
    return %c0_i32, %c0_i32_0 : i32, i32
  }
  func.func @transform_2(%arg0: i32) -> (i32, i32) {
    %c0_i32 = arith.constant 0 : i32
    %c0_i32_0 = arith.constant 0 : i32
    %c0_i32_1 = arith.constant 0 : i32
    return %c0_i32, %c0_i32_0 : i32, i32
  }
  func.func @transform_3(%arg0: i32) -> (i32, i32) {
    %c0_i32 = arith.constant 0 : i32
    %c0_i32_0 = arith.constant 0 : i32
    %c0_i32_1 = arith.constant 0 : i32
    return %c0_i32, %c0_i32_0 : i32, i32
  }
  func.func @transform_4(%arg0: i32) -> (i32, i32) {
    %c0_i32 = arith.constant 0 : i32
    %c0_i32_0 = arith.constant 0 : i32
    %c0_i32_1 = arith.constant 0 : i32
    return %c0_i32, %c0_i32_0 : i32, i32
  }
  func.func @transform_5(%arg0: i32) -> (i32, i32) {
    %c0_i32 = arith.constant 0 : i32
    %c0_i32_0 = arith.constant 0 : i32
    %c0_i32_1 = arith.constant 0 : i32
    return %c0_i32, %c0_i32_0 : i32, i32
  }
  func.func @transform_6(%arg0: i32) -> (i32, i32) {
    %c0_i32 = arith.constant 0 : i32
    %c0_i32_0 = arith.constant 0 : i32
    %c0_i32_1 = arith.constant 0 : i32
    return %c0_i32, %c0_i32_0 : i32, i32
  }
  func.func @transform_7(%arg0: i32) -> (i32, i32) {
    %c0_i32 = arith.constant 0 : i32
    %c0_i32_0 = arith.constant 0 : i32
    %c0_i32_1 = arith.constant 0 : i32
    return %c0_i32, %c0_i32_0 : i32, i32
  }
  func.func @transform_8(%arg0: i32) -> (i32, i32) {
    %c0_i32 = arith.constant 0 : i32
    %c0_i32_0 = arith.constant 0 : i32
    %c0_i32_1 = arith.constant 0 : i32
    return %c0_i32, %c0_i32_0 : i32, i32
  }
  func.func @transform_9(%arg0: i32) -> (i32, i32) {
    %c0_i32 = arith.constant 0 : i32
    %c0_i32_0 = arith.constant 0 : i32
    %c0_i32_1 = arith.constant 0 : i32
    return %c0_i32, %c0_i32_0 : i32, i32
  }
  func.func @transform_10(%arg0: i32) -> (i32, i32) {
    %c0_i32 = arith.constant 0 : i32
    %c0_i32_0 = arith.constant 0 : i32
    %c0_i32_1 = arith.constant 0 : i32
    return %c0_i32, %c0_i32_0 : i32, i32
  }
  func.func @transform_11(%arg0: i32) -> (i32, i32) {
    %c0_i32 = arith.constant 0 : i32
    %c0_i32_0 = arith.constant 0 : i32
    %c0_i32_1 = arith.constant 0 : i32
    return %c0_i32, %c0_i32_0 : i32, i32
  }
  func.func @transform_12(%arg0: i32) -> (i32, i32) {
    %c0_i32 = arith.constant 0 : i32
    %c0_i32_0 = arith.constant 0 : i32
    %c0_i32_1 = arith.constant 0 : i32
    return %c0_i32, %c0_i32_0 : i32, i32
  }
  func.func @transform_13(%arg0: i32) -> (i32, i32) {
    %c0_i32 = arith.constant 0 : i32
    %c0_i32_0 = arith.constant 0 : i32
    return %arg0, %c0_i32 : i32, i32
  }
}

</mosaic_0001>

<llo_original>
// kernel: _cnn_forward_impl.1
$region0: #{_cnn_forward_impl.1}
  #allocation0 [shape = 'u32[]', space=smem, size = 0x4, offset = 0x4, fixed_abs, tag = 'smem constant byte address 0x4 - core index']
  #allocation1 [shape = 'u32[144,128]{1,0:T(1,128)}', space=vmem, size = 0x12000, scoped, tag = 'internal scratch']
  %s0 = inlined_call_operand.vmem [shape: f32[42,64], index: 0, kind: input, shape index: {}]
  %s1 = inlined_call_operand.vmem [shape: f32[2,42], index: 1, kind: input, shape index: {}]
  %s2 = inlined_call_operand.vmem [shape: f32[64,480], index: 2, kind: input, shape index: {}]
  %s3 = inlined_call_operand.vmem [shape: f32[64,480], index: 3, kind: input, shape index: {}]
  %s4 = inlined_call_operand.vmem [shape: f32[1,480], index: 4, kind: input, shape index: {}]
  %s5 = inlined_call_operand.vmem [shape: f32[480,448], index: 5, kind: input, shape index: {}]
  %s6 = inlined_call_operand.vmem [shape: f32[480,448], index: 6, kind: input, shape index: {}]
  %s7 = inlined_call_operand.vmem [shape: f32[1,448], index: 7, kind: input, shape index: {}]
  %s8 = inlined_call_operand.vmem [shape: f32[448,384], index: 8, kind: input, shape index: {}]
  %s9 = inlined_call_operand.vmem [shape: f32[448,384], index: 9, kind: input, shape index: {}]
  %s10 = inlined_call_operand.vmem [shape: f32[1,384], index: 10, kind: input, shape index: {}]
  %s11 = inlined_call_operand.vmem [shape: f32[384,128], index: 11, kind: input, shape index: {}]
  %s12 = inlined_call_operand.vmem [shape: f32[1,128], index: 12, kind: input, shape index: {}]
  %s13 = inlined_call_operand.hbm [shape: f32[2,128], index: 13, kind: output, shape index: {}]
  %s14 = sld [smem:[#allocation0]]
  $region62: #{_cnn_forward_impl.1} parent=0
    _
  %s16 = ssub.s32 1, %s14
  %s17 = scalar_select 0, %s16, %s14
  $region1: #{_cnn_forward_impl.1} parent=0
    #allocation2 [shape = 'u8[1024]{0}', space=vmem, size = 0x400, scoped, tag = 'output window, operand 0, single buffered']
    #allocation3 [shape = 's32[1]{0}', space=sflag, size = 0x4, scoped, tag = 'scoped memory for _cnn_forward_impl.1']
    %18 = vsyncpa [#allocation3], 0
    // Predicated region
    $region2: #{_cnn_forward_impl.1} parent=1 // pred_check
      _
    $region3: #{_cnn_forward_impl.1} parent=1 // pred_check_branch
      %20 = sbr.rel (0) target = $region5
    $region4: #{_cnn_forward_impl.1} parent=1 // pred_region
      _
    $region5: #{_cnn_forward_impl.1} parent=1 // pred_fallthru
      _
    // Predicated region
    $region6: #{_cnn_forward_impl.1} parent=1 // pred_check
      _
    $region7: #{_cnn_forward_impl.1} parent=1 // pred_check_branch
      %22 = sbr.rel (0) target = $region9
    $region8: #{_cnn_forward_impl.1} parent=1 // pred_region
      _
    $region9: #{_cnn_forward_impl.1} parent=1 // pred_fallthru
      _
    // Predicated region
    $region10: #{_cnn_forward_impl.1} parent=1 // pred_check
      _
    $region11: #{_cnn_forward_impl.1} parent=1 // pred_check_branch
      %24 = sbr.rel (0) target = $region13
    $region12: #{_cnn_forward_impl.1} parent=1 // pred_region
      _
    $region13: #{_cnn_forward_impl.1} parent=1 // pred_fallthru
      _
    // Predicated region
    $region14: #{_cnn_forward_impl.1} parent=1 // pred_check
      _
    $region15: #{_cnn_forward_impl.1} parent=1 // pred_check_branch
      %26 = sbr.rel (0) target = $region17
    $region16: #{_cnn_forward_impl.1} parent=1 // pred_region
      _
    $region17: #{_cnn_forward_impl.1} parent=1 // pred_fallthru
      _
    // Predicated region
    $region18: #{_cnn_forward_impl.1} parent=1 // pred_check
      _
    $region19: #{_cnn_forward_impl.1} parent=1 // pred_check_branch
      %28 = sbr.rel (0) target = $region21
    $region20: #{_cnn_forward_impl.1} parent=1 // pred_region
      _
    $region21: #{_cnn_forward_impl.1} parent=1 // pred_fallthru
      _
    // Predicated region
    $region22: #{_cnn_forward_impl.1} parent=1 // pred_check
      _
    $region23: #{_cnn_forward_impl.1} parent=1 // pred_check_branch
      %30 = sbr.rel (0) target = $region25
    $region24: #{_cnn_forward_impl.1} parent=1 // pred_region
      _
    $region25: #{_cnn_forward_impl.1} parent=1 // pred_fallthru
      _
    // Predicated region
    $region26: #{_cnn_forward_impl.1} parent=1 // pred_check
      _
    $region27: #{_cnn_forward_impl.1} parent=1 // pred_check_branch
      %32 = sbr.rel (0) target = $region29
    $region28: #{_cnn_forward_impl.1} parent=1 // pred_region
      _
    $region29: #{_cnn_forward_impl.1} parent=1 // pred_fallthru
      _
    // Predicated region
    $region30: #{_cnn_forward_impl.1} parent=1 // pred_check
      _
    $region31: #{_cnn_forward_impl.1} parent=1 // pred_check_branch
      %34 = sbr.rel (0) target = $region33
    $region32: #{_cnn_forward_impl.1} parent=1 // pred_region
      _
    $region33: #{_cnn_forward_impl.1} parent=1 // pred_fallthru
      _
    // Predicated region
    $region34: #{_cnn_forward_impl.1} parent=1 // pred_check
      _
    $region35: #{_cnn_forward_impl.1} parent=1 // pred_check_branch
      %36 = sbr.rel (0) target = $region37
    $region36: #{_cnn_forward_impl.1} parent=1 // pred_region
      _
    $region37: #{_cnn_forward_impl.1} parent=1 // pred_fallthru
      _
    // Predicated region
    $region38: #{_cnn_forward_impl.1} parent=1 // pred_check
      _
    $region39: #{_cnn_forward_impl.1} parent=1 // pred_check_branch
      %38 = sbr.rel (0) target = $region41
    $region40: #{_cnn_forward_impl.1} parent=1 // pred_region
      _
    $region41: #{_cnn_forward_impl.1} parent=1 // pred_fallthru
      _
    // Predicated region
    $region42: #{_cnn_forward_impl.1} parent=1 // pred_check
      _
    $region43: #{_cnn_forward_impl.1} parent=1 // pred_check_branch
      %40 = sbr.rel (0) target = $region45
    $region44: #{_cnn_forward_impl.1} parent=1 // pred_region
      _
    $region45: #{_cnn_forward_impl.1} parent=1 // pred_fallthru
      _
    // Predicated region
    $region46: #{_cnn_forward_impl.1} parent=1 // pred_check
      _
    $region47: #{_cnn_forward_impl.1} parent=1 // pred_check_branch
      %42 = sbr.rel (0) target = $region49
    $region48: #{_cnn_forward_impl.1} parent=1 // pred_region
      _
    $region49: #{_cnn_forward_impl.1} parent=1 // pred_fallthru
      _
    // Predicated region
    $region50: #{_cnn_forward_impl.1} parent=1 // pred_check
      _
    $region51: #{_cnn_forward_impl.1} parent=1 // pred_check_branch
      %44 = sbr.rel (0) target = $region53
    $region52: #{_cnn_forward_impl.1} parent=1 // pred_region
      _
    $region53: #{_cnn_forward_impl.1} parent=1 // pred_fallthru
      _
    %v45 = vld [vmem:[%s0] sm:$0xff]
    %v46 = vld [vmem:[%s0 + $0x8] sm:$0xff]
    %v47 = vld [vmem:[%s0 + $0x10] sm:$0xff]
    %v48 = vld [vmem:[%s0 + $0x18] sm:$0xff]
    %v49 = vld [vmem:[%s0 + $0x20] sm:$0xff]
    %v50 = vld [vmem:[%s0 + $0x28] sm:$0x3]
    %v51 = vld [vmem:[%s2] sm:$0xff]
    %v52 = vld [vmem:[%s2 + $0x8] sm:$0xff]
    %v53 = vld [vmem:[%s2 + $0x10] sm:$0xff]
    %v54 = vld [vmem:[%s2 + $0x18] sm:$0xff]
    %v55 = vld [vmem:[%s2 + $0x20] sm:$0xff]
    %v56 = vld [vmem:[%s2 + $0x28] sm:$0xff]
    %v57 = vld [vmem:[%s2 + $0x30] sm:$0xff]
    %v58 = vld [vmem:[%s2 + $0x38] sm:$0xff]
    %v59 = vld [vmem:[%s2 + $0x40] sm:$0xff]
    %v60 = vld [vmem:[%s2 + $0x48] sm:$0xff]
    %v61 = vld [vmem:[%s2 + $0x50] sm:$0xff]
    %v62 = vld [vmem:[%s2 + $0x58] sm:$0xff]
    %v63 = vld [vmem:[%s2 + $0x60] sm:$0xff]
    %v64 = vld [vmem:[%s2 + $0x68] sm:$0xff]
    %v65 = vld [vmem:[%s2 + $0x70] sm:$0xff]
    %v66 = vld [vmem:[%s2 + $0x78] sm:$0xff]
    %v67 = vld [vmem:[%s2 + $0x80] sm:$0xff]
    %v68 = vld [vmem:[%s2 + $0x88] sm:$0xff]
    %v69 = vld [vmem:[%s2 + $0x90] sm:$0xff]
    %v70 = vld [vmem:[%s2 + $0x98] sm:$0xff]
    %v71 = vld [vmem:[%s2 + $0xa0] sm:$0xff]
    %v72 = vld [vmem:[%s2 + $0xa8] sm:$0xff]
    %v73 = vld [vmem:[%s2 + $0xb0] sm:$0xff]
    %v74 = vld [vmem:[%s2 + $0xb8] sm:$0xff]
    %v75 = vld [vmem:[%s2 + $0xc0] sm:$0xff]
    %v76 = vld [vmem:[%s2 + $0xc8] sm:$0xff]
    %v77 = vld [vmem:[%s2 + $0xd0] sm:$0xff]
    %v78 = vld [vmem:[%s2 + $0xd8] sm:$0xff]
    %v79 = vld [vmem:[%s2 + $0xe0] sm:$0xff]
    %v80 = vld [vmem:[%s2 + $0xe8] sm:$0xff]
    %v81 = vld [vmem:[%s2 + $0xf0] sm:$0xff]
    %v82 = vld [vmem:[%s2 + $0xf8] sm:$0xff]
    %vm83 = vcmask 523264
    %v85 = vsel %vm83, %v45, 0
    %v88 = vsel %vm83, %v46, 0
    %v91 = vsel %vm83, %v47, 0
    %v94 = vsel %vm83, %v48, 0
    %v97 = vsel %vm83, %v49, 0
    %v100 = vsel %vm83, %v50, 0
    %102 = vmatprep.subr.mxu0 %v52
    %103 = vmatpush1.msra.mxu0 %v51
    %104 = vmatprep.subr.mxu0 %v56
    %105 = vmatpush1.msra.mxu0 %v55
    %106 = vmatprep.subr.mxu0 %v60
    %107 = vmatpush1.msra.mxu0 %v59
    %108 = vmatprep.subr.mxu0 %v64
    %109 = vmatpush1.msra.mxu0 %v63
    %110 = vmatprep.subr.mxu0 %v68
    %111 = vmatpush1.msra.mxu0 %v67
    %112 = vmatprep.subr.mxu0 %v72
    %113 = vmatpush1.msra.mxu0 %v71
    %114 = vmatprep.subr.mxu0 %v76
    %115 = vmatpush1.msra.mxu0 %v75
    %116 = vmatprep.subr.mxu0 %v80
    %117 = vmatpush1.msra.mxu0 %v79
    %118 = vmatprep.subr.mxu0 0.0
    %119 = vmatpush1.msra.mxu0 0.0
    %120 = vmatprep.subr.mxu0 0.0
    %121 = vmatpush1.msra.mxu0 0.0
    %122 = vmatprep.subr.mxu0 0.0
    %123 = vmatpush1.msra.mxu0 0.0
    %124 = vmatprep.subr.mxu0 0.0
    %125 = vmatpush1.msra.mxu0 0.0
    %126 = vmatprep.subr.mxu0 0.0
    %127 = vmatpush1.msra.mxu0 0.0
    %128 = vmatprep.subr.mxu0 0.0
    %129 = vmatpush1.msra.mxu0 0.0
    %130 = vmatprep.subr.mxu0 0.0
    %131 = vmatpush1.msra.mxu0 0.0
    %132 = vmatprep.subr.mxu0 0.0
    %133 = vmatpush1.msra.mxu0 0.0
    %134 = vmatprep.subr.mxu0 0.0
    %135 = vmatpush1.msra.mxu0 0.0
    %136 = vmatprep.subr.mxu0 0.0
    %137 = vmatpush1.msra.mxu0 0.0
    %138 = vmatprep.subr.mxu0 0.0
    %139 = vmatpush1.msra.mxu0 0.0
    %140 = vmatprep.subr.mxu0 0.0
    %141 = vmatpush1.msra.mxu0 0.0
    %142 = vmatprep.subr.mxu0 0.0
    %143 = vmatpush1.msra.mxu0 0.0
    %144 = vmatprep.subr.mxu0 0.0
    %145 = vmatpush1.msra.mxu0 0.0
    %146 = vmatprep.subr.mxu0 0.0
    %147 = vmatpush1.msra.mxu0 0.0
    %148 = vmatprep.subr.mxu0 0.0
    %149 = vmatpush1.msra.mxu0 0.0
    %150 = vmatprep.subr.mxu0 0.0
    %151 = vmatpush1.msra.mxu0 0.0
    %152 = vmatprep.subr.mxu0 0.0
    %153 = vmatpush1.msra.mxu0 0.0
    %154 = vmatprep.subr.mxu0 0.0
    %155 = vmatpush1.msra.mxu0 0.0
    %156 = vmatprep.subr.mxu0 0.0
    %157 = vmatpush1.msra.mxu0 0.0
    %158 = vmatprep.subr.mxu0 0.0
    %159 = vmatpush1.msra.mxu0 0.0
    %160 = vmatprep.subr.mxu0 0.0
    %161 = vmatpush1.msra.mxu0 0.0
    %162 = vmatprep.subr.mxu0 0.0
    %163 = vmatpush1.msra.mxu0 0.0
    %164 = vmatprep.subr.mxu0 0.0
    %165 = vmatpush1.msra.mxu0 0.0
    %166 = vmatprep.mubr.f32.mxu0 0.0
    %167 = vmatmul.mubr.f32.gmra.mrb[0].mxu0 %v85
    %v168 = vpop.f32.mrb[0].mxu0
    %v169 = vadd.f32 0.0, %v168
    %v170 = vpop.f32.mrb[0].mxu0
    %v171 = vadd.f32 0.0, %v170
    %172 = vmatprep.mubr.f32.mxu0 0.0
    %173 = vmatmul.mubr.f32.gmra.mrb[0].mxu0 %v88
    %v174 = vpop.f32.mrb[0].mxu0
    %v175 = vadd.f32 0.0, %v174
    %v176 = vpop.f32.mrb[0].mxu0
    %v177 = vadd.f32 0.0, %v176
    %178 = vmatprep.mubr.f32.mxu0 0.0
    %179 = vmatmul.mubr.f32.gmra.mrb[0].mxu0 %v91
    %v180 = vpop.f32.mrb[0].mxu0
    %v181 = vadd.f32 0.0, %v180
    %v182 = vpop.f32.mrb[0].mxu0
    %v183 = vadd.f32 0.0, %v182
    %184 = vmatprep.mubr.f32.mxu0 0.0
    %185 = vmatmul.mubr.f32.gmra.mrb[0].mxu0 %v94
    %v186 = vpop.f32.mrb[0].mxu0
    %v187 = vadd.f32 0.0, %v186
    %v188 = vpop.f32.mrb[0].mxu0
    %v189 = vadd.f32 0.0, %v188
    %190 = vmatprep.mubr.f32.mxu0 0.0
    %191 = vmatmul.mubr.f32.gmra.mrb[0].mxu0 %v97
    %v192 = vpop.f32.mrb[0].mxu0
    %v193 = vadd.f32 0.0, %v192
    %v194 = vpop.f32.mrb[0].mxu0
    %v195 = vadd.f32 0.0, %v194
    %196 = vmatprep.mubr.f32.mxu0 0.0
    %197 = vmatmul.mubr.f32.gmra.mrb[0].mxu0 %v100
    %v198 = vpop.f32.mrb[0].mxu0
    %v199 = vadd.f32 0.0, %v198
    %v200 = vpop.f32.mrb[0].mxu0
    %v201 = vadd.f32 0.0, %v200
    %202 = vdwg.mxu0
    %203 = vmatprep.subr.mxu0 %v54
    %204 = vmatpush1.msra.mxu0 %v53
    %205 = vmatprep.subr.mxu0 %v58
    %206 = vmatpush1.msra.mxu0 %v57
    %207 = vmatprep.subr.mxu0 %v62
    %208 = vmatpush1.msra.mxu0 %v61
    %209 = vmatprep.subr.mxu0 %v66
    %210 = vmatpush1.msra.mxu0 %v65
    %211 = vmatprep.subr.mxu0 %v70
    %212 = vmatpush1.msra.mxu0 %v69
    %213 = vmatprep.subr.mxu0 %v74
    %214 = vmatpush1.msra.mxu0 %v73
    %215 = vmatprep.subr.mxu0 %v78
    %216 = vmatpush1.msra.mxu0 %v77
    %217 = vmatprep.subr.mxu0 %v82
    %218 = vmatpush1.msra.mxu0 %v81
    %219 = vmatprep.subr.mxu0 0.0
    %220 = vmatpush1.msra.mxu0 0.0
    %221 = vmatprep.subr.mxu0 0.0
    %222 = vmatpush1.msra.mxu0 0.0
    %223 = vmatprep.subr.mxu0 0.0
    %224 = vmatpush1.msra.mxu0 0.0
    %225 = vmatprep.subr.mxu0 0.0
    %226 = vmatpush1.msra.mxu0 0.0
    %227 = vmatprep.subr.mxu0 0.0
    %228 = vmatpush1.msra.mxu0 0.0
    %229 = vmatprep.subr.mxu0 0.0
    %230 = vmatpush1.msra.mxu0 0.0
    %231 = vmatprep.subr.mxu0 0.0
    %232 = vmatpush1.msra.mxu0 0.0
    %233 = vmatprep.subr.mxu0 0.0
    %234 = vmatpush1.msra.mxu0 0.0
    %235 = vmatprep.subr.mxu0 0.0
    %236 = vmatpush1.msra.mxu0 0.0
    %237 = vmatprep.subr.mxu0 0.0
    %238 = vmatpush1.msra.mxu0 0.0
    %239 = vmatprep.subr.mxu0 0.0
    %240 = vmatpush1.msra.mxu0 0.0
    %241 = vmatprep.subr.mxu0 0.0
    %242 = vmatpush1.msra.mxu0 0.0
    %243 = vmatprep.subr.mxu0 0.0
    %244 = vmatpush1.msra.mxu0 0.0
    %245 = vmatprep.subr.mxu0 0.0
    %246 = vmatpush1.msra.mxu0 0.0
    %247 = vmatprep.subr.mxu0 0.0
    %248 = vmatpush1.msra.mxu0 0.0
    %249 = vmatprep.subr.mxu0 0.0
    %250 = vmatpush1.msra.mxu0 0.0
    %251 = vmatprep.subr.mxu0 0.0
    %252 = vmatpush1.msra.mxu0 0.0
    %253 = vmatprep.subr.mxu0 0.0
    %254 = vmatpush1.msra.mxu0 0.0
    %255 = vmatprep.subr.mxu0 0.0
    %256 = vmatpush1.msra.mxu0 0.0
    %257 = vmatprep.subr.mxu0 0.0
    %258 = vmatpush1.msra.mxu0 0.0
    %259 = vmatprep.subr.mxu0 0.0
    %260 = vmatpush1.msra.mxu0 0.0
    %261 = vmatprep.subr.mxu0 0.0
    %262 = vmatpush1.msra.mxu0 0.0
    %263 = vmatprep.subr.mxu0 0.0
    %264 = vmatpush1.msra.mxu0 0.0
    %265 = vmatprep.subr.mxu0 0.0
    %266 = vmatpush1.msra.mxu0 0.0
    %267 = vmatprep.mubr.f32.mxu0 0.0
    %268 = vmatmul.mubr.f32.gmra.mrb[0].mxu0 %v85
    %v269 = vpop.f32.mrb[0].mxu0
    %v270 = vadd.f32 0.0, %v269
    %v271 = vpop.f32.mrb[0].mxu0
    %v272 = vadd.f32 0.0, %v271
    %273 = vmatprep.mubr.f32.mxu0 0.0
    %274 = vmatmul.mubr.f32.gmra.mrb[0].mxu0 %v88
    %v275 = vpop.f32.mrb[0].mxu0
    %v276 = vadd.f32 0.0, %v275
    %v277 = vpop.f32.mrb[0].mxu0
    %v278 = vadd.f32 0.0, %v277
    %279 = vmatprep.mubr.f32.mxu0 0.0
    %280 = vmatmul.mubr.f32.gmra.mrb[0].mxu0 %v91
    %v281 = vpop.f32.mrb[0].mxu0
    %v282 = vadd.f32 0.0, %v281
    %v283 = vpop.f32.mrb[0].mxu0
    %v284 = vadd.f32 0.0, %v283
    %285 = vmatprep.mubr.f32.mxu0 0.0
    %286 = vmatmul.mubr.f32.gmra.mrb[0].mxu0 %v94
    %v287 = vpop.f32.mrb[0].mxu0
    %v288 = vadd.f32 0.0, %v287
    %v289 = vpop.f32.mrb[0].mxu0
    %v290 = vadd.f32 0.0, %v289
    %291 = vmatprep.mubr.f32.mxu0 0.0
    %292 = vmatmul.mubr.f32.gmra.mrb[0].mxu0 %v97
    %v293 = vpop.f32.mrb[0].mxu0
    %v294 = vadd.f32 0.0, %v293
    %v295 = vpop.f32.mrb[0].mxu0
    %v296 = vadd.f32 0.0, %v295
    %297 = vmatprep.mubr.f32.mxu0 0.0
    %298 = vmatmul.mubr.f32.gmra.mrb[0].mxu0 %v100
    %v299 = vpop.f32.mrb[0].mxu0
    %v300 = vadd.f32 0.0, %v299
    %v301 = vpop.f32.mrb[0].mxu0
    %v302 = vadd.f32 0.0, %v301
    %303 = vdwg.mxu0
    %v304 = vld [vmem:[%s3] sm:$0xff]
    %v305 = vld [vmem:[%s3 + $0x8] sm:$0xff]
    %v306 = vld [vmem:[%s3 + $0x10] sm:$0xff]
    %v307 = vld [vmem:[%s3 + $0x18] sm:$0xff]
    %v308 = vld [vmem:[%s3 + $0x20] sm:$0xff]
    %v309 = vld [vmem:[%s3 + $0x28] sm:$0xff]
    %v310 = vld [vmem:[%s3 + $0x30] sm:$0xff]
    %v311 = vld [vmem:[%s3 + $0x38] sm:$0xff]
    %v312 = vld [vmem:[%s3 + $0x40] sm:$0xff]
    %v313 = vld [vmem:[%s3 + $0x48] sm:$0xff]
    %v314 = vld [vmem:[%s3 + $0x50] sm:$0xff]
    %v315 = vld [vmem:[%s3 + $0x58] sm:$0xff]
    %v316 = vld [vmem:[%s3 + $0x60] sm:$0xff]
    %v317 = vld [vmem:[%s3 + $0x68] sm:$0xff]
    %v318 = vld [vmem:[%s3 + $0x70] sm:$0xff]
    %v319 = vld [vmem:[%s3 + $0x78] sm:$0xff]
    %v320 = vld [vmem:[%s3 + $0x80] sm:$0xff]
    %v321 = vld [vmem:[%s3 + $0x88] sm:$0xff]
    %v322 = vld [vmem:[%s3 + $0x90] sm:$0xff]
    %v323 = vld [vmem:[%s3 + $0x98] sm:$0xff]
    %v324 = vld [vmem:[%s3 + $0xa0] sm:$0xff]
    %v325 = vld [vmem:[%s3 + $0xa8] sm:$0xff]
    %v326 = vld [vmem:[%s3 + $0xb0] sm:$0xff]
    %v327 = vld [vmem:[%s3 + $0xb8] sm:$0xff]
    %v328 = vld [vmem:[%s3 + $0xc0] sm:$0xff]
    %v329 = vld [vmem:[%s3 + $0xc8] sm:$0xff]
    %v330 = vld [vmem:[%s3 + $0xd0] sm:$0xff]
    %v331 = vld [vmem:[%s3 + $0xd8] sm:$0xff]
    %v332 = vld [vmem:[%s3 + $0xe0] sm:$0xff]
    %v333 = vld [vmem:[%s3 + $0xe8] sm:$0xff]
    %v334 = vld [vmem:[%s3 + $0xf0] sm:$0xff]
    %v335 = vld [vmem:[%s3 + $0xf8] sm:$0xff]
    %336 = vmatprep.subr.mxu0 %v305
    %337 = vmatpush1.msra.mxu0 %v304
    %338 = vmatprep.subr.mxu0 %v309
    %339 = vmatpush1.msra.mxu0 %v308
    %340 = vmatprep.subr.mxu0 %v313
    %341 = vmatpush1.msra.mxu0 %v312
    %342 = vmatprep.subr.mxu0 %v317
    %343 = vmatpush1.msra.mxu0 %v316
    %344 = vmatprep.subr.mxu0 %v321
    %345 = vmatpush1.msra.mxu0 %v320
    %346 = vmatprep.subr.mxu0 %v325
    %347 = vmatpush1.msra.mxu0 %v324
    %348 = vmatprep.subr.mxu0 %v329
    %349 = vmatpush1.msra.mxu0 %v328
    %350 = vmatprep.subr.mxu0 %v333
    %351 = vmatpush1.msra.mxu0 %v332
    %352 = vmatprep.subr.mxu0 0.0
    %353 = vmatpush1.msra.mxu0 0.0
    %354 = vmatprep.subr.mxu0 0.0
    %355 = vmatpush1.msra.mxu0 0.0
    %356 = vmatprep.subr.mxu0 0.0
    %357 = vmatpush1.msra.mxu0 0.0
    %358 = vmatprep.subr.mxu0 0.0
    %359 = vmatpush1.msra.mxu0 0.0
    %360 = vmatprep.subr.mxu0 0.0
    %361 = vmatpush1.msra.mxu0 0.0
    %362 = vmatprep.subr.mxu0 0.0
    %363 = vmatpush1.msra.mxu0 0.0
    %364 = vmatprep.subr.mxu0 0.0
    %365 = vmatpush1.msra.mxu0 0.0
    %366 = vmatprep.subr.mxu0 0.0
    %367 = vmatpush1.msra.mxu0 0.0
    %368 = vmatprep.subr.mxu0 0.0
    %369 = vmatpush1.msra.mxu0 0.0
    %370 = vmatprep.subr.mxu0 0.0
    %371 = vmatpush1.msra.mxu0 0.0
    %372 = vmatprep.subr.mxu0 0.0
    %373 = vmatpush1.msra.mxu0 0.0
    %374 = vmatprep.subr.mxu0 0.0
    %375 = vmatpush1.msra.mxu0 0.0
    %376 = vmatprep.subr.mxu0 0.0
    %377 = vmatpush1.msra.mxu0 0.0
    %378 = vmatprep.subr.mxu0 0.0
    %379 = vmatpush1.msra.mxu0 0.0
    %380 = vmatprep.subr.mxu0 0.0
    %381 = vmatpush1.msra.mxu0 0.0
    %382 = vmatprep.subr.mxu0 0.0
    %383 = vmatpush1.msra.mxu0 0.0
    %384 = vmatprep.subr.mxu0 0.0
    %385 = vmatpush1.msra.mxu0 0.0
    %386 = vmatprep.subr.mxu0 0.0
    %387 = vmatpush1.msra.mxu0 0.0
    %388 = vmatprep.subr.mxu0 0.0
    %389 = vmatpush1.msra.mxu0 0.0
    %390 = vmatprep.subr.mxu0 0.0
    %391 = vmatpush1.msra.mxu0 0.0
    %392 = vmatprep.subr.mxu0 0.0
    %393 = vmatpush1.msra.mxu0 0.0
    %394 = vmatprep.subr.mxu0 0.0
    %395 = vmatpush1.msra.mxu0 0.0
    %396 = vmatprep.subr.mxu0 0.0
    %397 = vmatpush1.msra.mxu0 0.0
    %398 = vmatprep.subr.mxu0 0.0
    %399 = vmatpush1.msra.mxu0 0.0
    %400 = vmatprep.mubr.f32.mxu0 0.0
    %401 = vmatmul.mubr.f32.gmra.mrb[0].mxu0 %v85
    %v402 = vpop.f32.mrb[0].mxu0
    %v403 = vadd.f32 0.0, %v402
    %v404 = vpop.f32.mrb[0].mxu0
    %v405 = vadd.f32 0.0, %v404
    %406 = vmatprep.mubr.f32.mxu0 0.0
    %407 = vmatmul.mubr.f32.gmra.mrb[0].mxu0 %v88
    %v408 = vpop.f32.mrb[0].mxu0
    %v409 = vadd.f32 0.0, %v408
    %v410 = vpop.f32.mrb[0].mxu0
    %v411 = vadd.f32 0.0, %v410
    %412 = vmatprep.mubr.f32.mxu0 0.0
    %413 = vmatmul.mubr.f32.gmra.mrb[0].mxu0 %v91
    %v414 = vpop.f32.mrb[0].mxu0
    %v415 = vadd.f32 0.0, %v414
    %v416 = vpop.f32.mrb[0].mxu0
    %v417 = vadd.f32 0.0, %v416
    %418 = vmatprep.mubr.f32.mxu0 0.0
    %419 = vmatmul.mubr.f32.gmra.mrb[0].mxu0 %v94
    %v420 = vpop.f32.mrb[0].mxu0
    %v421 = vadd.f32 0.0, %v420
    %v422 = vpop.f32.mrb[0].mxu0
    %v423 = vadd.f32 0.0, %v422
    %424 = vmatprep.mubr.f32.mxu0 0.0
    %425 = vmatmul.mubr.f32.gmra.mrb[0].mxu0 %v97
    %v426 = vpop.f32.mrb[0].mxu0
    %v427 = vadd.f32 0.0, %v426
    %v428 = vpop.f32.mrb[0].mxu0
    %v429 = vadd.f32 0.0, %v428
    %430 = vmatprep.mubr.f32.mxu0 0.0
    %431 = vmatmul.mubr.f32.gmra.mrb[0].mxu0 %v100
    %v432 = vpop.f32.mrb[0].mxu0
    %v433 = vadd.f32 0.0, %v432
    %v434 = vpop.f32.mrb[0].mxu0
    %v435 = vadd.f32 0.0, %v434
    %436 = vdwg.mxu0
    %437 = vmatprep.subr.mxu0 %v307
    %438 = vmatpush1.msra.mxu0 %v306
    %439 = vmatprep.subr.mxu0 %v311
    %440 = vmatpush1.msra.mxu0 %v310
    %441 = vmatprep.subr.mxu0 %v315
    %442 = vmatpush1.msra.mxu0 %v314
    %443 = vmatprep.subr.mxu0 %v319
    %444 = vmatpush1.msra.mxu0 %v318
    %445 = vmatprep.subr.mxu0 %v323
    %446 = vmatpush1.msra.mxu0 %v322
    %447 = vmatprep.subr.mxu0 %v327
    %448 = vmatpush1.msra.mxu0 %v326
    %449 = vmatprep.subr.mxu0 %v331
    %450 = vmatpush1.msra.mxu0 %v330
    %451 = vmatprep.subr.mxu0 %v335
    %452 = vmatpush1.msra.mxu0 %v334
    %453 = vmatprep.subr.mxu0 0.0
    %454 = vmatpush1.msra.mxu0 0.0
    %455 = vmatprep.subr.mxu0 0.0
    %456 = vmatpush1.msra.mxu0 0.0
    %457 = vmatprep.subr.mxu0 0.0
    %458 = vmatpush1.msra.mxu0 0.0
    %459 = vmatprep.subr.mxu0 0.0
    %460 = vmatpush1.msra.mxu0 0.0
    %461 = vmatprep.subr.mxu0 0.0
    %462 = vmatpush1.msra.mxu0 0.0
    %463 = vmatprep.subr.mxu0 0.0
    %464 = vmatpush1.msra.mxu0 0.0
    %465 = vmatprep.subr.mxu0 0.0
    %466 = vmatpush1.msra.mxu0 0.0
    %467 = vmatprep.subr.mxu0 0.0
    %468 = vmatpush1.msra.mxu0 0.0
    %469 = vmatprep.subr.mxu0 0.0
    %470 = vmatpush1.msra.mxu0 0.0
    %471 = vmatprep.subr.mxu0 0.0
    %472 = vmatpush1.msra.mxu0 0.0
    %473 = vmatprep.subr.mxu0 0.0
    %474 = vmatpush1.msra.mxu0 0.0
    %475 = vmatprep.subr.mxu0 0.0
    %476 = vmatpush1.msra.mxu0 0.0
    %477 = vmatprep.subr.mxu0 0.0
    %478 = vmatpush1.msra.mxu0 0.0
    %479 = vmatprep.subr.mxu0 0.0
    %480 = vmatpush1.msra.mxu0 0.0
    %481 = vmatprep.subr.mxu0 0.0
    %482 = vmatpush1.msra.mxu0 0.0
    %483 = vmatprep.subr.mxu0 0.0
    %484 = vmatpush1.msra.mxu0 0.0
    %485 = vmatprep.subr.mxu0 0.0
    %486 = vmatpush1.msra.mxu0 0.0
    %487 = vmatprep.subr.mxu0 0.0
    %488 = vmatpush1.msra.mxu0 0.0
    %489 = vmatprep.subr.mxu0 0.0
    %490 = vmatpush1.msra.mxu0 0.0
    %491 = vmatprep.subr.mxu0 0.0
    %492 = vmatpush1.msra.mxu0 0.0
    %493 = vmatprep.subr.mxu0 0.0
    %494 = vmatpush1.msra.mxu0 0.0
    %495 = vmatprep.subr.mxu0 0.0
    %496 = vmatpush1.msra.mxu0 0.0
    %497 = vmatprep.subr.mxu0 0.0
    %498 = vmatpush1.msra.mxu0 0.0
    %499 = vmatprep.subr.mxu0 0.0
    %500 = vmatpush1.msra.mxu0 0.0
    %501 = vmatprep.mubr.f32.mxu0 0.0
    %502 = vmatmul.mubr.f32.gmra.mrb[0].mxu0 %v85
    %v503 = vpop.f32.mrb[0].mxu0
    %v504 = vadd.f32 0.0, %v503
    %v505 = vpop.f32.mrb[0].mxu0
    %v506 = vadd.f32 0.0, %v505
    %507 = vmatprep.mubr.f32.mxu0 0.0
    %508 = vmatmul.mubr.f32.gmra.mrb[0].mxu0 %v88
    %v509 = vpop.f32.mrb[0].mxu0
    %v510 = vadd.f32 0.0, %v509
    %v511 = vpop.f32.mrb[0].mxu0
    %v512 = vadd.f32 0.0, %v511
    %513 = vmatprep.mubr.f32.mxu0 0.0
    %514 = vmatmul.mubr.f32.gmra.mrb[0].mxu0 %v91
    %v515 = vpop.f32.mrb[0].mxu0
    %v516 = vadd.f32 0.0, %v515
    %v517 = vpop.f32.mrb[0].mxu0
    %v518 = vadd.f32 0.0, %v517
    %519 = vmatprep.mubr.f32.mxu0 0.0
    %520 = vmatmul.mubr.f32.gmra.mrb[0].mxu0 %v94
    %v521 = vpop.f32.mrb[0].mxu0
    %v522 = vadd.f32 0.0, %v521
    %v523 = vpop.f32.mrb[0].mxu0
    %v524 = vadd.f32 0.0, %v523
    %525 = vmatprep.mubr.f32.mxu0 0.0
    %526 = vmatmul.mubr.f32.gmra.mrb[0].mxu0 %v97
    %v527 = vpop.f32.mrb[0].mxu0
    %v528 = vadd.f32 0.0, %v527
    %v529 = vpop.f32.mrb[0].mxu0
    %v530 = vadd.f32 0.0, %v529
    %531 = vmatprep.mubr.f32.mxu0 0.0
    %532 = vmatmul.mubr.f32.gmra.mrb[0].mxu0 %v100
    %v533 = vpop.f32.mrb[0].mxu0
    %v534 = vadd.f32 0.0, %v533
    %v535 = vpop.f32.mrb[0].mxu0
    %v536 = vadd.f32 0.0, %v535
    %537 = vdwg.mxu0
    %v538 = vmax.f32 %v169, %v403
    %v539 = vmax.f32 %v171, %v405
    %v540 = vmax.f32 %v270, %v504
    %v541 = vmax.f32 %v272, %v506
    %v542 = vmax.f32 %v175, %v409
    %v543 = vmax.f32 %v177, %v411
    %v544 = vmax.f32 %v276, %v510
    %v545 = vmax.f32 %v278, %v512
    %v546 = vmax.f32 %v181, %v415
    %v547 = vmax.f32 %v183, %v417
    %v548 = vmax.f32 %v282, %v516
    %v549 = vmax.f32 %v284, %v518
    %v550 = vmax.f32 %v187, %v421
    %v551 = vmax.f32 %v189, %v423
    %v552 = vmax.f32 %v288, %v522
    %v553 = vmax.f32 %v290, %v524
    %v554 = vmax.f32 %v193, %v427
    %v555 = vmax.f32 %v195, %v429
    %v556 = vmax.f32 %v294, %v528
    %v557 = vmax.f32 %v296, %v530
    %v558 = vmax.f32 %v199, %v433
    %v559 = vmax.f32 %v201, %v435
    %v560 = vmax.f32 %v300, %v534
    %v561 = vmax.f32 %v302, %v536
    %v562 = vld [vmem:[%s4] sm:$0xf]
    %v564 = vlaneseq
    %v565 = vshrl.u32 %v564, 7
    %v566 = vsub.s32 0, %v565
    %v567 = vrot.slane %v562, %v566
    %v568 = vlaneseq
    %v569 = vshrl.u32 %v568, 7
    %v570 = vsub.s32 1, %v569
    %v571 = vrot.slane %v562, %v570
    %v572 = vlaneseq
    %v573 = vshrl.u32 %v572, 7
    %v574 = vsub.s32 2, %v573
    %v575 = vrot.slane %v562, %v574
    %v576 = vlaneseq
    %v577 = vshrl.u32 %v576, 7
    %v578 = vsub.s32 3, %v577
    %v579 = vrot.slane %v562, %v578
    %v584 = vadd.f32 %v538, %v567
    %v585 = vadd.f32 %v539, %v571
    %v586 = vadd.f32 %v540, %v575
    %v587 = vadd.f32 %v541, %v579
    %v588 = vadd.f32 %v542, %v567
    %v589 = vadd.f32 %v543, %v571
    %v590 = vadd.f32 %v544, %v575
    %v591 = vadd.f32 %v545, %v579
    %v592 = vadd.f32 %v546, %v567
    %v593 = vadd.f32 %v547, %v571
    %v594 = vadd.f32 %v548, %v575
    %v595 = vadd.f32 %v549, %v579
    %v596 = vadd.f32 %v550, %v567
    %v597 = vadd.f32 %v551, %v571
    %v598 = vadd.f32 %v552, %v575
    %v599 = vadd.f32 %v553, %v579
    %v600 = vadd.f32 %v554, %v567
    %v601 = vadd.f32 %v555, %v571
    %v602 = vadd.f32 %v556, %v575
    %v603 = vadd.f32 %v557, %v579
    %v604 = vadd.f32 %v558, %v567
    %v605 = vadd.f32 %v559, %v571
    %v606 = vadd.f32 %v560, %v575
    %v607 = vadd.f32 %v561, %v579
    %v608 = vmax.f32 %v584, 0.0
    %v609 = vmax.f32 %v585, 0.0
    %v610 = vmax.f32 %v586, 0.0
    %v611 = vmax.f32 %v587, 0.0
    %v612 = vmax.f32 %v588, 0.0
    %v613 = vmax.f32 %v589, 0.0
    %v614 = vmax.f32 %v590, 0.0
    %v615 = vmax.f32 %v591, 0.0
    %v616 = vmax.f32 %v592, 0.0
    %v617 = vmax.f32 %v593, 0.0
    %v618 = vmax.f32 %v594, 0.0
    %v619 = vmax.f32 %v595, 0.0
    %v620 = vmax.f32 %v596, 0.0
    %v621 = vmax.f32 %v597, 0.0
    %v622 = vmax.f32 %v598, 0.0
    %v623 = vmax.f32 %v599, 0.0
    %v624 = vmax.f32 %v600, 0.0
    %v625 = vmax.f32 %v601, 0.0
    %v626 = vmax.f32 %v602, 0.0
    %v627 = vmax.f32 %v603, 0.0
    %v628 = vmax.f32 %v604, 0.0
    %v629 = vmax.f32 %v605, 0.0
    %v630 = vmax.f32 %v606, 0.0
    %v631 = vmax.f32 %v607, 0.0
    %v632 = vld [vmem:[%s5] sm:$0xff]
    %v633 = vld [vmem:[%s5 + $0x8] sm:$0xff]
    %v634 = vld [vmem:[%s5 + $0x10] sm:$0xff]
    %v635 = vld [vmem:[%s5 + $0x18] sm:$0xff]
    %v636 = vld [vmem:[%s5 + $0x20] sm:$0xff]
    %v637 = vld [vmem:[%s5 + $0x28] sm:$0xff]
    %v638 = vld [vmem:[%s5 + $0x30] sm:$0xff]
    %v639 = vld [vmem:[%s5 + $0x38] sm:$0xff]
    %v640 = vld [vmem:[%s5 + $0x40] sm:$0xff]
    %v641 = vld [vmem:[%s5 + $0x48] sm:$0xff]
    %v642 = vld [vmem:[%s5 + $0x50] sm:$0xff]
    %v643 = vld [vmem:[%s5 + $0x58] sm:$0xff]
    %v644 = vld [vmem:[%s5 + $0x60] sm:$0xff]
    %v645 = vld [vmem:[%s5 + $0x68] sm:$0xff]
    %v646 = vld [vmem:[%s5 + $0x70] sm:$0xff]
    %v647 = vld [vmem:[%s5 + $0x78] sm:$0xff]
    %v648 = vld [vmem:[%s5 + $0x80] sm:$0xff]
    %v649 = vld [vmem:[%s5 + $0x88] sm:$0xff]
    %v650 = vld [vmem:[%s5 + $0x90] sm:$0xff]
    %v651 = vld [vmem:[%s5 + $0x98] sm:$0xff]
    %v652 = vld [vmem:[%s5 + $0xa0] sm:$0xff]
    %v653 = vld [vmem:[%s5 + $0xa8] sm:$0xff]
    %v654 = vld [vmem:[%s5 + $0xb0] sm:$0xff]
    %v655 = vld [vmem:[%s5 + $0xb8] sm:$0xff]
    %v656 = vld [vmem:[%s5 + $0xc0] sm:$0xff]
    %v657 = vld [vmem:[%s5 + $0xc8] sm:$0xff]
    %v658 = vld [vmem:[%s5 + $0xd0] sm:$0xff]
    %v659 = vld [vmem:[%s5 + $0xd8] sm:$0xff]
    %v660 = vld [vmem:[%s5 + $0xe0] sm:$0xff]
    %v661 = vld [vmem:[%s5 + $0xe8] sm:$0xff]
    %v662 = vld [vmem:[%s5 + $0xf0] sm:$0xff]
    %v663 = vld [vmem:[%s5 + $0xf8] sm:$0xff]
    %v664 = vld [vmem:[%s5 + $0x100] sm:$0xff]
    %v665 = vld [vmem:[%s5 + $0x108] sm:$0xff]
    %v666 = vld [vmem:[%s5 + $0x110] sm:$0xff]
    %v667 = vld [vmem:[%s5 + $0x118] sm:$0xff]
    %v668 = vld [vmem:[%s5 + $0x120] sm:$0xff]
    %v669 = vld [vmem:[%s5 + $0x128] sm:$0xff]
    %v670 = vld [vmem:[%s5 + $0x130] sm:$0xff]
    %v671 = vld [vmem:[%s5 + $0x138] sm:$0xff]
    %v672 = vld [vmem:[%s5 + $0x140] sm:$0xff]
    %v673 = vld [vmem:[%s5 + $0x148] sm:$0xff]
    %v674 = vld [vmem:[%s5 + $0x150] sm:$0xff]
    %v675 = vld [vmem:[%s5 + $0x158] sm:$0xff]
    %v676 = vld [vmem:[%s5 + $0x160] sm:$0xff]
    %v677 = vld [vmem:[%s5 + $0x168] sm:$0xff]
    %v678 = vld [vmem:[%s5 + $0x170] sm:$0xff]
    %v679 = vld [vmem:[%s5 + $0x178] sm:$0xff]
    %v680 = vld [vmem:[%s5 + $0x180] sm:$0xff]
    %v681 = vld [vmem:[%s5 + $0x188] sm:$0xff]
    %v682 = vld [vmem:[%s5 + $0x190] sm:$0xff]
    %v683 = vld [vmem:[%s5 + $0x198] sm:$0xff]
    %v684 = vld [vmem:[%s5 + $0x1a0] sm:$0xff]
    %v685 = vld [vmem:[%s5 + $0x1a8] sm:$0xff]
    %v686 = vld [vmem:[%s5 + $0x1b0] sm:$0xff]
    %v687 = vld [vmem:[%s5 + $0x1b8] sm:$0xff]
    %v688 = vld [vmem:[%s5 + $0x1c0] sm:$0xff]
    %v689 = vld [vmem:[%s5 + $0x1c8] sm:$0xff]
    %v690 = vld [vmem:[%s5 + $0x1d0] sm:$0xff]
    %v691 = vld [vmem:[%s5 + $0x1d8] sm:$0xff]
    %v692 = vld [vmem:[%s5 + $0x1e0] sm:$0xff]
    %v693 = vld [vmem:[%s5 + $0x1e8] sm:$0xff]
    %v694 = vld [vmem:[%s5 + $0x1f0] sm:$0xff]
    %v695 = vld [vmem:[%s5 + $0x1f8] sm:$0xff]
    %v696 = vld [vmem:[%s5 + $0x200] sm:$0xff]
    %v697 = vld [vmem:[%s5 + $0x208] sm:$0xff]
    %v698 = vld [vmem:[%s5 + $0x210] sm:$0xff]
    %v699 = vld [vmem:[%s5 + $0x218] sm:$0xff]
    %v700 = vld [vmem:[%s5 + $0x220] sm:$0xff]
    %v701 = vld [vmem:[%s5 + $0x228] sm:$0xff]
    %v702 = vld [vmem:[%s5 + $0x230] sm:$0xff]
    %v703 = vld [vmem:[%s5 + $0x238] sm:$0xff]
    %v704 = vld [vmem:[%s5 + $0x240] sm:$0xff]
    %v705 = vld [vmem:[%s5 + $0x248] sm:$0xff]
    %v706 = vld [vmem:[%s5 + $0x250] sm:$0xff]
    %v707 = vld [vmem:[%s5 + $0x258] sm:$0xff]
    %v708 = vld [vmem:[%s5 + $0x260] sm:$0xff]
    %v709 = vld [vmem:[%s5 + $0x268] sm:$0xff]
    %v710 = vld [vmem:[%s5 + $0x270] sm:$0xff]
    %v711 = vld [vmem:[%s5 + $0x278] sm:$0xff]
    %v712 = vld [vmem:[%s5 + $0x280] sm:$0xff]
    %v713 = vld [vmem:[%s5 + $0x288] sm:$0xff]
    %v714 = vld [vmem:[%s5 + $0x290] sm:$0xff]
    %v715 = vld [vmem:[%s5 + $0x298] sm:$0xff]
    %v716 = vld [vmem:[%s5 + $0x2a0] sm:$0xff]
    %v717 = vld [vmem:[%s5 + $0x2a8] sm:$0xff]
    %v718 = vld [vmem:[%s5 + $0x2b0] sm:$0xff]
    %v719 = vld [vmem:[%s5 + $0x2b8] sm:$0xff]
    %v720 = vld [vmem:[%s5 + $0x2c0] sm:$0xff]
    %v721 = vld [vmem:[%s5 + $0x2c8] sm:$0xff]
    %v722 = vld [vmem:[%s5 + $0x2d0] sm:$0xff]
    %v723 = vld [vmem:[%s5 + $0x2d8] sm:$0xff]
    %v724 = vld [vmem:[%s5 + $0x2e0] sm:$0xff]
    %v725 = vld [vmem:[%s5 + $0x2e8] sm:$0xff]
    %v726 = vld [vmem:[%s5 + $0x2f0] sm:$0xff]
    %v727 = vld [vmem:[%s5 + $0x2f8] sm:$0xff]
    %v728 = vld [vmem:[%s5 + $0x300] sm:$0xff]
    %v729 = vld [vmem:[%s5 + $0x308] sm:$0xff]
    %v730 = vld [vmem:[%s5 + $0x310] sm:$0xff]
    %v731 = vld [vmem:[%s5 + $0x318] sm:$0xff]
    %v732 = vld [vmem:[%s5 + $0x320] sm:$0xff]
    %v733 = vld [vmem:[%s5 + $0x328] sm:$0xff]
    %v734 = vld [vmem:[%s5 + $0x330] sm:$0xff]
    %v735 = vld [vmem:[%s5 + $0x338] sm:$0xff]
    %v736 = vld [vmem:[%s5 + $0x340] sm:$0xff]
    %v737 = vld [vmem:[%s5 + $0x348] sm:$0xff]
    %v738 = vld [vmem:[%s5 + $0x350] sm:$0xff]
    %v739 = vld [vmem:[%s5 + $0x358] sm:$0xff]
    %v740 = vld [vmem:[%s5 + $0x360] sm:$0xff]
    %v741 = vld [vmem:[%s5 + $0x368] sm:$0xff]
    %v742 = vld [vmem:[%s5 + $0x370] sm:$0xff]
    %v743 = vld [vmem:[%s5 + $0x378] sm:$0xff]
    %v744 = vld [vmem:[%s5 + $0x380] sm:$0xff]
    %v745 = vld [vmem:[%s5 + $0x388] sm:$0xff]
    %v746 = vld [vmem:[%s5 + $0x390] sm:$0xff]
    %v747 = vld [vmem:[%s5 + $0x398] sm:$0xff]
    %v748 = vld [vmem:[%s5 + $0x3a0] sm:$0xff]
    %v749 = vld [vmem:[%s5 + $0x3a8] sm:$0xff]
    %v750 = vld [vmem:[%s5 + $0x3b0] sm:$0xff]
    %v751 = vld [vmem:[%s5 + $0x3b8] sm:$0xff]
    %v752 = vld [vmem:[%s5 + $0x3c0] sm:$0xff]
    %v753 = vld [vmem:[%s5 + $0x3c8] sm:$0xff]
    %v754 = vld [vmem:[%s5 + $0x3d0] sm:$0xff]
    %v755 = vld [vmem:[%s5 + $0x3d8] sm:$0xff]
    %v756 = vld [vmem:[%s5 + $0x3e0] sm:$0xff]
    %v757 = vld [vmem:[%s5 + $0x3e8] sm:$0xff]
    %v758 = vld [vmem:[%s5 + $0x3f0] sm:$0xff]
    %v759 = vld [vmem:[%s5 + $0x3f8] sm:$0xff]
    %v760 = vld [vmem:[%s5 + $0x400] sm:$0xff]
    %v761 = vld [vmem:[%s5 + $0x408] sm:$0xff]
    %v762 = vld [vmem:[%s5 + $0x410] sm:$0xff]
    %v763 = vld [vmem:[%s5 + $0x418] sm:$0xff]
    %v764 = vld [vmem:[%s5 + $0x420] sm:$0xff]
    %v765 = vld [vmem:[%s5 + $0x428] sm:$0xff]
    %v766 = vld [vmem:[%s5 + $0x430] sm:$0xff]
    %v767 = vld [vmem:[%s5 + $0x438] sm:$0xff]
    %v768 = vld [vmem:[%s5 + $0x440] sm:$0xff]
    %v769 = vld [vmem:[%s5 + $0x448] sm:$0xff]
    %v770 = vld [vmem:[%s5 + $0x450] sm:$0xff]
    %v771 = vld [vmem:[%s5 + $0x458] sm:$0xff]
    %v772 = vld [vmem:[%s5 + $0x460] sm:$0xff]
    %v773 = vld [vmem:[%s5 + $0x468] sm:$0xff]
    %v774 = vld [vmem:[%s5 + $0x470] sm:$0xff]
    %v775 = vld [vmem:[%s5 + $0x478] sm:$0xff]
    %v776 = vld [vmem:[%s5 + $0x480] sm:$0xff]
    %v777 = vld [vmem:[%s5 + $0x488] sm:$0xff]
    %v778 = vld [vmem:[%s5 + $0x490] sm:$0xff]
    %v779 = vld [vmem:[%s5 + $0x498] sm:$0xff]
    %v780 = vld [vmem:[%s5 + $0x4a0] sm:$0xff]
    %v781 = vld [vmem:[%s5 + $0x4a8] sm:$0xff]
    %v782 = vld [vmem:[%s5 + $0x4b0] sm:$0xff]
    %v783 = vld [vmem:[%s5 + $0x4b8] sm:$0xff]
    %v784 = vld [vmem:[%s5 + $0x4c0] sm:$0xff]
    %v785 = vld [vmem:[%s5 + $0x4c8] sm:$0xff]
    %v786 = vld [vmem:[%s5 + $0x4d0] sm:$0xff]
    %v787 = vld [vmem:[%s5 + $0x4d8] sm:$0xff]
    %v788 = vld [vmem:[%s5 + $0x4e0] sm:$0xff]
    %v789 = vld [vmem:[%s5 + $0x4e8] sm:$0xff]
    %v790 = vld [vmem:[%s5 + $0x4f0] sm:$0xff]
    %v791 = vld [vmem:[%s5 + $0x4f8] sm:$0xff]
    %v792 = vld [vmem:[%s5 + $0x500] sm:$0xff]
    %v793 = vld [vmem:[%s5 + $0x508] sm:$0xff]
    %v794 = vld [vmem:[%s5 + $0x510] sm:$0xff]
    %v795 = vld [vmem:[%s5 + $0x518] sm:$0xff]
    %v796 = vld [vmem:[%s5 + $0x520] sm:$0xff]
    %v797 = vld [vmem:[%s5 + $0x528] sm:$0xff]
    %v798 = vld [vmem:[%s5 + $0x530] sm:$0xff]
    %v799 = vld [vmem:[%s5 + $0x538] sm:$0xff]
    %v800 = vld [vmem:[%s5 + $0x540] sm:$0xff]
    %v801 = vld [vmem:[%s5 + $0x548] sm:$0xff]
    %v802 = vld [vmem:[%s5 + $0x550] sm:$0xff]
    %v803 = vld [vmem:[%s5 + $0x558] sm:$0xff]
    %v804 = vld [vmem:[%s5 + $0x560] sm:$0xff]
    %v805 = vld [vmem:[%s5 + $0x568] sm:$0xff]
    %v806 = vld [vmem:[%s5 + $0x570] sm:$0xff]
    %v807 = vld [vmem:[%s5 + $0x578] sm:$0xff]
    %v808 = vld [vmem:[%s5 + $0x580] sm:$0xff]
    %v809 = vld [vmem:[%s5 + $0x588] sm:$0xff]
    %v810 = vld [vmem:[%s5 + $0x590] sm:$0xff]
    %v811 = vld [vmem:[%s5 + $0x598] sm:$0xff]
    %v812 = vld [vmem:[%s5 + $0x5a0] sm:$0xff]
    %v813 = vld [vmem:[%s5 + $0x5a8] sm:$0xff]
    %v814 = vld [vmem:[%s5 + $0x5b0] sm:$0xff]
    %v815 = vld [vmem:[%s5 + $0x5b8] sm:$0xff]
    %v816 = vld [vmem:[%s5 + $0x5c0] sm:$0xff]
    %v817 = vld [vmem:[%s5 + $0x5c8] sm:$0xff]
    %v818 = vld [vmem:[%s5 + $0x5d0] sm:$0xff]
    %v819 = vld [vmem:[%s5 + $0x5d8] sm:$0xff]
    %v820 = vld [vmem:[%s5 + $0x5e0] sm:$0xff]
    %v821 = vld [vmem:[%s5 + $0x5e8] sm:$0xff]
    %v822 = vld [vmem:[%s5 + $0x5f0] sm:$0xff]
    %v823 = vld [vmem:[%s5 + $0x5f8] sm:$0xff]
    %v824 = vld [vmem:[%s5 + $0x600] sm:$0xff]
    %v825 = vld [vmem:[%s5 + $0x608] sm:$0xff]
    %v826 = vld [vmem:[%s5 + $0x610] sm:$0xff]
    %v827 = vld [vmem:[%s5 + $0x618] sm:$0xff]
    %v828 = vld [vmem:[%s5 + $0x620] sm:$0xff]
    %v829 = vld [vmem:[%s5 + $0x628] sm:$0xff]
    %v830 = vld [vmem:[%s5 + $0x630] sm:$0xff]
    %v831 = vld [vmem:[%s5 + $0x638] sm:$0xff]
    %v832 = vld [vmem:[%s5 + $0x640] sm:$0xff]
    %v833 = vld [vmem:[%s5 + $0x648] sm:$0xff]
    %v834 = vld [vmem:[%s5 + $0x650] sm:$0xff]
    %v835 = vld [vmem:[%s5 + $0x658] sm:$0xff]
    %v836 = vld [vmem:[%s5 + $0x660] sm:$0xff]
    %v837 = vld [vmem:[%s5 + $0x668] sm:$0xff]
    %v838 = vld [vmem:[%s5 + $0x670] sm:$0xff]
    %v839 = vld [vmem:[%s5 + $0x678] sm:$0xff]
    %v840 = vld [vmem:[%s5 + $0x680] sm:$0xff]
    %v841 = vld [vmem:[%s5 + $0x688] sm:$0xff]
    %v842 = vld [vmem:[%s5 + $0x690] sm:$0xff]
    %v843 = vld [vmem:[%s5 + $0x698] sm:$0xff]
    %v844 = vld [vmem:[%s5 + $0x6a0] sm:$0xff]
    %v845 = vld [vmem:[%s5 + $0x6a8] sm:$0xff]
    %v846 = vld [vmem:[%s5 + $0x6b0] sm:$0xff]
    %v847 = vld [vmem:[%s5 + $0x6b8] sm:$0xff]
    %v848 = vld [vmem:[%s5 + $0x6c0] sm:$0xff]
    %v849 = vld [vmem:[%s5 + $0x6c8] sm:$0xff]
    %v850 = vld [vmem:[%s5 + $0x6d0] sm:$0xff]
    %v851 = vld [vmem:[%s5 + $0x6d8] sm:$0xff]
    %v852 = vld [vmem:[%s5 + $0x6e0] sm:$0xff]
    %v853 = vld [vmem:[%s5 + $0x6e8] sm:$0xff]
    %v854 = vld [vmem:[%s5 + $0x6f0] sm:$0xff]
    %v855 = vld [vmem:[%s5 + $0x6f8] sm:$0xff]
    %v856 = vld [vmem:[%s5 + $0x700] sm:$0xff]
    %v857 = vld [vmem:[%s5 + $0x708] sm:$0xff]
    %v858 = vld [vmem:[%s5 + $0x710] sm:$0xff]
    %v859 = vld [vmem:[%s5 + $0x718] sm:$0xff]
    %v860 = vld [vmem:[%s5 + $0x720] sm:$0xff]
    %v861 = vld [vmem:[%s5 + $0x728] sm:$0xff]
    %v862 = vld [vmem:[%s5 + $0x730] sm:$0xff]
    %v863 = vld [vmem:[%s5 + $0x738] sm:$0xff]
    %v864 = vld [vmem:[%s5 + $0x740] sm:$0xff]
    %v865 = vld [vmem:[%s5 + $0x748] sm:$0xff]
    %v866 = vld [vmem:[%s5 + $0x750] sm:$0xff]
    %v867 = vld [vmem:[%s5 + $0x758] sm:$0xff]
    %v868 = vld [vmem:[%s5 + $0x760] sm:$0xff]
    %v869 = vld [vmem:[%s5 + $0x768] sm:$0xff]
    %v870 = vld [vmem:[%s5 + $0x770] sm:$0xff]
    %v871 = vld [vmem:[%s5 + $0x778] sm:$0xff]
    %vm872 = vcmask 785408
    %v874 = vsel %vm872, %v611, 0
    %v877 = vsel %vm872, %v615, 0
    %v880 = vsel %vm872, %v619, 0
    %v883 = vsel %vm872, %v623, 0
    %v886 = vsel %vm872, %v627, 0
    %v889 = vsel %vm872, %v631, 0
    %891 = vmatprep.subr.mxu0 %v633
    %892 = vmatpush1.msra.mxu0 %v632
    %893 = vmatprep.subr.mxu0 %v637
    %894 = vmatpush1.msra.mxu0 %v636
    %895 = vmatprep.subr.mxu0 %v641
    %896 = vmatpush1.msra.mxu0 %v640
    %897 = vmatprep.subr.mxu0 %v645
    %898 = vmatpush1.msra.mxu0 %v644
    %899 = vmatprep.subr.mxu0 %v649
    %900 = vmatpush1.msra.mxu0 %v648
    %901 = vmatprep.subr.mxu0 %v653
    %902 = vmatpush1.msra.mxu0 %v652
    %903 = vmatprep.subr.mxu0 %v657
    %904 = vmatpush1.msra.mxu0 %v656
    %905 = vmatprep.subr.mxu0 %v661
    %906 = vmatpush1.msra.mxu0 %v660
    %907 = vmatprep.subr.mxu0 %v665
    %908 = vmatpush1.msra.mxu0 %v664
    %909 = vmatprep.subr.mxu0 %v669
    %910 = vmatpush1.msra.mxu0 %v668
    %911 = vmatprep.subr.mxu0 %v673
    %912 = vmatpush1.msra.mxu0 %v672
    %913 = vmatprep.subr.mxu0 %v677
    %914 = vmatpush1.msra.mxu0 %v676
    %915 = vmatprep.subr.mxu0 %v681
    %916 = vmatpush1.msra.mxu0 %v680
    %917 = vmatprep.subr.mxu0 %v685
    %918 = vmatpush1.msra.mxu0 %v684
    %919 = vmatprep.subr.mxu0 %v689
    %920 = vmatpush1.msra.mxu0 %v688
    %921 = vmatprep.subr.mxu0 %v693
    %922 = vmatpush1.msra.mxu0 %v692
    %923 = vmatprep.subr.mxu0 %v697
    %924 = vmatpush1.msra.mxu0 %v696
    %925 = vmatprep.subr.mxu0 %v701
    %926 = vmatpush1.msra.mxu0 %v700
    %927 = vmatprep.subr.mxu0 %v705
    %928 = vmatpush1.msra.mxu0 %v704
    %929 = vmatprep.subr.mxu0 %v709
    %930 = vmatpush1.msra.mxu0 %v708
    %931 = vmatprep.subr.mxu0 %v713
    %932 = vmatpush1.msra.mxu0 %v712
    %933 = vmatprep.subr.mxu0 %v717
    %934 = vmatpush1.msra.mxu0 %v716
    %935 = vmatprep.subr.mxu0 %v721
    %936 = vmatpush1.msra.mxu0 %v720
    %937 = vmatprep.subr.mxu0 %v725
    %938 = vmatpush1.msra.mxu0 %v724
    %939 = vmatprep.subr.mxu0 %v729
    %940 = vmatpush1.msra.mxu0 %v728
    %941 = vmatprep.subr.mxu0 %v733
    %942 = vmatpush1.msra.mxu0 %v732
    %943 = vmatprep.subr.mxu0 %v737
    %944 = vmatpush1.msra.mxu0 %v736
    %945 = vmatprep.subr.mxu0 %v741
    %946 = vmatpush1.msra.mxu0 %v740
    %947 = vmatprep.subr.mxu0 %v745
    %948 = vmatpush1.msra.mxu0 %v744
    %949 = vmatprep.subr.mxu0 %v749
    %950 = vmatpush1.msra.mxu0 %v748
    %951 = vmatprep.subr.mxu0 %v753
    %952 = vmatpush1.msra.mxu0 %v752
    %953 = vmatprep.subr.mxu0 %v757
    %954 = vmatpush1.msra.mxu0 %v756
    %955 = vmatprep.mubr.f32.mxu0 %v609
    %956 = vmatmul.mubr.f32.gmra.mrb[0].mxu0 %v608
    %v957 = vpop.f32.mrb[0].mxu0
    %v958 = vadd.f32 0.0, %v957
    %v959 = vpop.f32.mrb[0].mxu0
    %v960 = vadd.f32 0.0, %v959
    %961 = vmatprep.mubr.f32.mxu0 %v613
    %962 = vmatmul.mubr.f32.gmra.mrb[0].mxu0 %v612
    %v963 = vpop.f32.mrb[0].mxu0
    %v964 = vadd.f32 0.0, %v963
    %v965 = vpop.f32.mrb[0].mxu0
    %v966 = vadd.f32 0.0, %v965
    %967 = vmatprep.mubr.f32.mxu0 %v617
    %968 = vmatmul.mubr.f32.gmra.mrb[0].mxu0 %v616
    %v969 = vpop.f32.mrb[0].mxu0
    %v970 = vadd.f32 0.0, %v969
    %v971 = vpop.f32.mrb[0].mxu0
    %v972 = vadd.f32 0.0, %v971
    %973 = vmatprep.mubr.f32.mxu0 %v621
    %974 = vmatmul.mubr.f32.gmra.mrb[0].mxu0 %v620
    %v975 = vpop.f32.mrb[0].mxu0
    %v976 = vadd.f32 0.0, %v975
    %v977 = vpop.f32.mrb[0].mxu0
    %v978 = vadd.f32 0.0, %v977
    %979 = vmatprep.mubr.f32.mxu0 %v625
    %980 = vmatmul.mubr.f32.gmra.mrb[0].mxu0 %v624
    %v981 = vpop.f32.mrb[0].mxu0
    %v982 = vadd.f32 0.0, %v981
    %v983 = vpop.f32.mrb[0].mxu0
    %v984 = vadd.f32 0.0, %v983
    %985 = vmatprep.mubr.f32.mxu0 %v629
    %986 = vmatmul.mubr.f32.gmra.mrb[0].mxu0 %v628
    %v987 = vpop.f32.mrb[0].mxu0
    %v988 = vadd.f32 0.0, %v987
    %v989 = vpop.f32.mrb[0].mxu0
    %v990 = vadd.f32 0.0, %v989
    %991 = vdwg.mxu0
    %992 = vmatprep.subr.mxu0 %v761
    %993 = vmatpush1.msra.mxu0 %v760
    %994 = vmatprep.subr.mxu0 %v765
    %995 = vmatpush1.msra.mxu0 %v764
    %996 = vmatprep.subr.mxu0 %v769
    %997 = vmatpush1.msra.mxu0 %v768
    %998 = vmatprep.subr.mxu0 %v773
    %999 = vmatpush1.msra.mxu0 %v772
    %1000 = vmatprep.subr.mxu0 %v777
    %1001 = vmatpush1.msra.mxu0 %v776
    %1002 = vmatprep.subr.mxu0 %v781
    %1003 = vmatpush1.msra.mxu0 %v780
    %1004 = vmatprep.subr.mxu0 %v785
    %1005 = vmatpush1.msra.mxu0 %v784
    %1006 = vmatprep.subr.mxu0 %v789
    %1007 = vmatpush1.msra.mxu0 %v788
    %1008 = vmatprep.subr.mxu0 %v793
    %1009 = vmatpush1.msra.mxu0 %v792
    %1010 = vmatprep.subr.mxu0 %v797
    %1011 = vmatpush1.msra.mxu0 %v796
    %1012 = vmatprep.subr.mxu0 %v801
    %1013 = vmatpush1.msra.mxu0 %v800
    %1014 = vmatprep.subr.mxu0 %v805
    %1015 = vmatpush1.msra.mxu0 %v804
    %1016 = vmatprep.subr.mxu0 %v809
    %1017 = vmatpush1.msra.mxu0 %v808
    %1018 = vmatprep.subr.mxu0 %v813
    %1019 = vmatpush1.msra.mxu0 %v812
    %1020 = vmatprep.subr.mxu0 %v817
    %1021 = vmatpush1.msra.mxu0 %v816
    %1022 = vmatprep.subr.mxu0 %v821
    %1023 = vmatpush1.msra.mxu0 %v820
    %1024 = vmatprep.subr.mxu0 %v825
    %1025 = vmatpush1.msra.mxu0 %v824
    %1026 = vmatprep.subr.mxu0 %v829
    %1027 = vmatpush1.msra.mxu0 %v828
    %1028 = vmatprep.subr.mxu0 %v833
    %1029 = vmatpush1.msra.mxu0 %v832
    %1030 = vmatprep.subr.mxu0 %v837
    %1031 = vmatpush1.msra.mxu0 %v836
    %1032 = vmatprep.subr.mxu0 %v841
    %1033 = vmatpush1.msra.mxu0 %v840
    %1034 = vmatprep.subr.mxu0 %v845
    %1035 = vmatpush1.msra.mxu0 %v844
    %1036 = vmatprep.subr.mxu0 %v849
    %1037 = vmatpush1.msra.mxu0 %v848
    %1038 = vmatprep.subr.mxu0 %v853
    %1039 = vmatpush1.msra.mxu0 %v852
    %1040 = vmatprep.subr.mxu0 %v857
    %1041 = vmatpush1.msra.mxu0 %v856
    %1042 = vmatprep.subr.mxu0 %v861
    %1043 = vmatpush1.msra.mxu0 %v860
    %1044 = vmatprep.subr.mxu0 %v865
    %1045 = vmatpush1.msra.mxu0 %v864
    %1046 = vmatprep.subr.mxu0 %v869
    %1047 = vmatpush1.msra.mxu0 %v868
    %1048 = vmatprep.subr.mxu0 0.0
    %1049 = vmatpush1.msra.mxu0 0.0
    %1050 = vmatprep.subr.mxu0 0.0
    %1051 = vmatpush1.msra.mxu0 0.0
    %1052 = vmatprep.subr.mxu0 0.0
    %1053 = vmatpush1.msra.mxu0 0.0
    %1054 = vmatprep.subr.mxu0 0.0
    %1055 = vmatpush1.msra.mxu0 0.0
    %1056 = vmatprep.mubr.f32.mxu0 %v874
    %1057 = vmatmul.mubr.f32.gmra.mrb[0].mxu0 %v610
    %v1058 = vpop.f32.mrb[0].mxu0
    %v1059 = vadd.f32 %v958, %v1058
    %v1060 = vpop.f32.mrb[0].mxu0
    %v1061 = vadd.f32 %v960, %v1060
    %1062 = vmatprep.mubr.f32.mxu0 %v877
    %1063 = vmatmul.mubr.f32.gmra.mrb[0].mxu0 %v614
    %v1064 = vpop.f32.mrb[0].mxu0
    %v1065 = vadd.f32 %v964, %v1064
    %v1066 = vpop.f32.mrb[0].mxu0
    %v1067 = vadd.f32 %v966, %v1066
    %1068 = vmatprep.mubr.f32.mxu0 %v880
    %1069 = vmatmul.mubr.f32.gmra.mrb[0].mxu0 %v618
    %v1070 = vpop.f32.mrb[0].mxu0
    %v1071 = vadd.f32 %v970, %v1070
    %v1072 = vpop.f32.mrb[0].mxu0
    %v1073 = vadd.f32 %v972, %v1072
    %1074 = vmatprep.mubr.f32.mxu0 %v883
    %1075 = vmatmul.mubr.f32.gmra.mrb[0].mxu0 %v622
    %v1076 = vpop.f32.mrb[0].mxu0
    %v1077 = vadd.f32 %v976, %v1076
    %v1078 = vpop.f32.mrb[0].mxu0
    %v1079 = vadd.f32 %v978, %v1078
    %1080 = vmatprep.mubr.f32.mxu0 %v886
    %1081 = vmatmul.mubr.f32.gmra.mrb[0].mxu0 %v626
    %v1082 = vpop.f32.mrb[0].mxu0
    %v1083 = vadd.f32 %v982, %v1082
    %v1084 = vpop.f32.mrb[0].mxu0
    %v1085 = vadd.f32 %v984, %v1084
    %1086 = vmatprep.mubr.f32.mxu0 %v889
    %1087 = vmatmul.mubr.f32.gmra.mrb[0].mxu0 %v630
    %v1088 = vpop.f32.mrb[0].mxu0
    %v1089 = vadd.f32 %v988, %v1088
    %v1090 = vpop.f32.mrb[0].mxu0
    %v1091 = vadd.f32 %v990, %v1090
    %1092 = vdwg.mxu0
    %1093 = vmatprep.subr.mxu0 %v635
    %1094 = vmatpush1.msra.mxu0 %v634
    %1095 = vmatprep.subr.mxu0 %v639
    %1096 = vmatpush1.msra.mxu0 %v638
    %1097 = vmatprep.subr.mxu0 %v643
    %1098 = vmatpush1.msra.mxu0 %v642
    %1099 = vmatprep.subr.mxu0 %v647
    %1100 = vmatpush1.msra.mxu0 %v646
    %1101 = vmatprep.subr.mxu0 %v651
    %1102 = vmatpush1.msra.mxu0 %v650
    %1103 = vmatprep.subr.mxu0 %v655
    %1104 = vmatpush1.msra.mxu0 %v654
    %1105 = vmatprep.subr.mxu0 %v659
    %1106 = vmatpush1.msra.mxu0 %v658
    %1107 = vmatprep.subr.mxu0 %v663
    %1108 = vmatpush1.msra.mxu0 %v662
    %1109 = vmatprep.subr.mxu0 %v667
    %1110 = vmatpush1.msra.mxu0 %v666
    %1111 = vmatprep.subr.mxu0 %v671
    %1112 = vmatpush1.msra.mxu0 %v670
    %1113 = vmatprep.subr.mxu0 %v675
    %1114 = vmatpush1.msra.mxu0 %v674
    %1115 = vmatprep.subr.mxu0 %v679
    %1116 = vmatpush1.msra.mxu0 %v678
    %1117 = vmatprep.subr.mxu0 %v683
    %1118 = vmatpush1.msra.mxu0 %v682
    %1119 = vmatprep.subr.mxu0 %v687
    %1120 = vmatpush1.msra.mxu0 %v686
    %1121 = vmatprep.subr.mxu0 %v691
    %1122 = vmatpush1.msra.mxu0 %v690
    %1123 = vmatprep.subr.mxu0 %v695
    %1124 = vmatpush1.msra.mxu0 %v694
    %1125 = vmatprep.subr.mxu0 %v699
    %1126 = vmatpush1.msra.mxu0 %v698
    %1127 = vmatprep.subr.mxu0 %v703
    %1128 = vmatpush1.msra.mxu0 %v702
    %1129 = vmatprep.subr.mxu0 %v707
    %1130 = vmatpush1.msra.mxu0 %v706
    %1131 = vmatprep.subr.mxu0 %v711
    %1132 = vmatpush1.msra.mxu0 %v710
    %1133 = vmatprep.subr.mxu0 %v715
    %1134 = vmatpush1.msra.mxu0 %v714
    %1135 = vmatprep.subr.mxu0 %v719
    %1136 = vmatpush1.msra.mxu0 %v718
    %1137 = vmatprep.subr.mxu0 %v723
    %1138 = vmatpush1.msra.mxu0 %v722
    %1139 = vmatprep.subr.mxu0 %v727
    %1140 = vmatpush1.msra.mxu0 %v726
    %1141 = vmatprep.subr.mxu0 %v731
    %1142 = vmatpush1.msra.mxu0 %v730
    %1143 = vmatprep.subr.mxu0 %v735
    %1144 = vmatpush1.msra.mxu0 %v734
    %1145 = vmatprep.subr.mxu0 %v739
    %1146 = vmatpush1.msra.mxu0 %v738
    %1147 = vmatprep.subr.mxu0 %v743
    %1148 = vmatpush1.msra.mxu0 %v742
    %1149 = vmatprep.subr.mxu0 %v747
    %1150 = vmatpush1.msra.mxu0 %v746
    %1151 = vmatprep.subr.mxu0 %v751
    %1152 = vmatpush1.msra.mxu0 %v750
    %1153 = vmatprep.subr.mxu0 %v755
    %1154 = vmatpush1.msra.mxu0 %v754
    %1155 = vmatprep.subr.mxu0 %v759
    %1156 = vmatpush1.msra.mxu0 %v758
    %1157 = vmatprep.mubr.f32.mxu0 %v609
    %1158 = vmatmul.mubr.f32.gmra.mrb[0].mxu0 %v608
    %v1159 = vpop.f32.mrb[0].mxu0
    %v1160 = vadd.f32 0.0, %v1159
    %v1161 = vpop.f32.mrb[0].mxu0
    %v1162 = vadd.f32 0.0, %v1161
    %1163 = vmatprep.mubr.f32.mxu0 %v613
    %1164 = vmatmul.mubr.f32.gmra.mrb[0].mxu0 %v612
    %v1165 = vpop.f32.mrb[0].mxu0
    %v1166 = vadd.f32 0.0, %v1165
    %v1167 = vpop.f32.mrb[0].mxu0
    %v1168 = vadd.f32 0.0, %v1167
    %1169 = vmatprep.mubr.f32.mxu0 %v617
    %1170 = vmatmul.mubr.f32.gmra.mrb[0].mxu0 %v616
    %v1171 = vpop.f32.mrb[0].mxu0
    %v1172 = vadd.f32 0.0, %v1171
    %v1173 = vpop.f32.mrb[0].mxu0
    %v1174 = vadd.f32 0.0, %v1173
    %1175 = vmatprep.mubr.f32.mxu0 %v621
    %1176 = vmatmul.mubr.f32.gmra.mrb[0].mxu0 %v620
    %v1177 = vpop.f32.mrb[0].mxu0
    %v1178 = vadd.f32 0.0, %v1177
    %v1179 = vpop.f32.mrb[0].mxu0
    %v1180 = vadd.f32 0.0, %v1179
    %1181 = vmatprep.mubr.f32.mxu0 %v625
    %1182 = vmatmul.mubr.f32.gmra.mrb[0].mxu0 %v624
    %v1183 = vpop.f32.mrb[0].mxu0
    %v1184 = vadd.f32 0.0, %v1183
    %v1185 = vpop.f32.mrb[0].mxu0
    %v1186 = vadd.f32 0.0, %v1185
    %1187 = vmatprep.mubr.f32.mxu0 %v629
    %1188 = vmatmul.mubr.f32.gmra.mrb[0].mxu0 %v628
    %v1189 = vpop.f32.mrb[0].mxu0
    %v1190 = vadd.f32 0.0, %v1189
    %v1191 = vpop.f32.mrb[0].mxu0
    %v1192 = vadd.f32 0.0, %v1191
    %1193 = vdwg.mxu0
    %1194 = vmatprep.subr.mxu0 %v763
    %1195 = vmatpush1.msra.mxu0 %v762
    %1196 = vmatprep.subr.mxu0 %v767
    %1197 = vmatpush1.msra.mxu0 %v766
    %1198 = vmatprep.subr.mxu0 %v771
    %1199 = vmatpush1.msra.mxu0 %v770
    %1200 = vmatprep.subr.mxu0 %v775
    %1201 = vmatpush1.msra.mxu0 %v774
    %1202 = vmatprep.subr.mxu0 %v779
    %1203 = vmatpush1.msra.mxu0 %v778
    %1204 = vmatprep.subr.mxu0 %v783
    %1205 = vmatpush1.msra.mxu0 %v782
    %1206 = vmatprep.subr.mxu0 %v787
    %1207 = vmatpush1.msra.mxu0 %v786
    %1208 = vmatprep.subr.mxu0 %v791
    %1209 = vmatpush1.msra.mxu0 %v790
    %1210 = vmatprep.subr.mxu0 %v795
    %1211 = vmatpush1.msra.mxu0 %v794
    %1212 = vmatprep.subr.mxu0 %v799
    %1213 = vmatpush1.msra.mxu0 %v798
    %1214 = vmatprep.subr.mxu0 %v803
    %1215 = vmatpush1.msra.mxu0 %v802
    %1216 = vmatprep.subr.mxu0 %v807
    %1217 = vmatpush1.msra.mxu0 %v806
    %1218 = vmatprep.subr.mxu0 %v811
    %1219 = vmatpush1.msra.mxu0 %v810
    %1220 = vmatprep.subr.mxu0 %v815
    %1221 = vmatpush1.msra.mxu0 %v814
    %1222 = vmatprep.subr.mxu0 %v819
    %1223 = vmatpush1.msra.mxu0 %v818
    %1224 = vmatprep.subr.mxu0 %v823
    %1225 = vmatpush1.msra.mxu0 %v822
    %1226 = vmatprep.subr.mxu0 %v827
    %1227 = vmatpush1.msra.mxu0 %v826
    %1228 = vmatprep.subr.mxu0 %v831
    %1229 = vmatpush1.msra.mxu0 %v830
    %1230 = vmatprep.subr.mxu0 %v835
    %1231 = vmatpush1.msra.mxu0 %v834
    %1232 = vmatprep.subr.mxu0 %v839
    %1233 = vmatpush1.msra.mxu0 %v838
    %1234 = vmatprep.subr.mxu0 %v843
    %1235 = vmatpush1.msra.mxu0 %v842
    %1236 = vmatprep.subr.mxu0 %v847
    %1237 = vmatpush1.msra.mxu0 %v846
    %1238 = vmatprep.subr.mxu0 %v851
    %1239 = vmatpush1.msra.mxu0 %v850
    %1240 = vmatprep.subr.mxu0 %v855
    %1241 = vmatpush1.msra.mxu0 %v854
    %1242 = vmatprep.subr.mxu0 %v859
    %1243 = vmatpush1.msra.mxu0 %v858
    %1244 = vmatprep.subr.mxu0 %v863
    %1245 = vmatpush1.msra.mxu0 %v862
    %1246 = vmatprep.subr.mxu0 %v867
    %1247 = vmatpush1.msra.mxu0 %v866
    %1248 = vmatprep.subr.mxu0 %v871
    %1249 = vmatpush1.msra.mxu0 %v870
    %1250 = vmatprep.subr.mxu0 0.0
    %1251 = vmatpush1.msra.mxu0 0.0
    %1252 = vmatprep.subr.mxu0 0.0
    %1253 = vmatpush1.msra.mxu0 0.0
    %1254 = vmatprep.subr.mxu0 0.0
    %1255 = vmatpush1.msra.mxu0 0.0
    %1256 = vmatprep.subr.mxu0 0.0
    %1257 = vmatpush1.msra.mxu0 0.0
    %1258 = vmatprep.mubr.f32.mxu0 %v874
    %1259 = vmatmul.mubr.f32.gmra.mrb[0].mxu0 %v610
    %v1260 = vpop.f32.mrb[0].mxu0
    %v1261 = vadd.f32 %v1160, %v1260
    %v1262 = vpop.f32.mrb[0].mxu0
    %v1263 = vadd.f32 %v1162, %v1262
    %1264 = vmatprep.mubr.f32.mxu0 %v877
    %1265 = vmatmul.mubr.f32.gmra.mrb[0].mxu0 %v614
    %v1266 = vpop.f32.mrb[0].mxu0
    %v1267 = vadd.f32 %v1166, %v1266
    %v1268 = vpop.f32.mrb[0].mxu0
    %v1269 = vadd.f32 %v1168, %v1268
    %1270 = vmatprep.mubr.f32.mxu0 %v880
    %1271 = vmatmul.mubr.f32.gmra.mrb[0].mxu0 %v618
    %v1272 = vpop.f32.mrb[0].mxu0
    %v1273 = vadd.f32 %v1172, %v1272
    %v1274 = vpop.f32.mrb[0].mxu0
    %v1275 = vadd.f32 %v1174, %v1274
    %1276 = vmatprep.mubr.f32.mxu0 %v883
    %1277 = vmatmul.mubr.f32.gmra.mrb[0].mxu0 %v622
    %v1278 = vpop.f32.mrb[0].mxu0
    %v1279 = vadd.f32 %v1178, %v1278
    %v1280 = vpop.f32.mrb[0].mxu0
    %v1281 = vadd.f32 %v1180, %v1280
    %1282 = vmatprep.mubr.f32.mxu0 %v886
    %1283 = vmatmul.mubr.f32.gmra.mrb[0].mxu0 %v626
    %v1284 = vpop.f32.mrb[0].mxu0
    %v1285 = vadd.f32 %v1184, %v1284
    %v1286 = vpop.f32.mrb[0].mxu0
    %v1287 = vadd.f32 %v1186, %v1286
    %1288 = vmatprep.mubr.f32.mxu0 %v889
    %1289 = vmatmul.mubr.f32.gmra.mrb[0].mxu0 %v630
    %v1290 = vpop.f32.mrb[0].mxu0
    %v1291 = vadd.f32 %v1190, %v1290
    %v1292 = vpop.f32.mrb[0].mxu0
    %v1293 = vadd.f32 %v1192, %v1292
    %1294 = vdwg.mxu0
    %v1295 = vld [vmem:[%s6] sm:$0xff]
    %v1296 = vld [vmem:[%s6 + $0x8] sm:$0xff]
    %v1297 = vld [vmem:[%s6 + $0x10] sm:$0xff]
    %v1298 = vld [vmem:[%s6 + $0x18] sm:$0xff]
    %v1299 = vld [vmem:[%s6 + $0x20] sm:$0xff]
    %v1300 = vld [vmem:[%s6 + $0x28] sm:$0xff]
    %v1301 = vld [vmem:[%s6 + $0x30] sm:$0xff]
    %v1302 = vld [vmem:[%s6 + $0x38] sm:$0xff]
    %v1303 = vld [vmem:[%s6 + $0x40] sm:$0xff]
    %v1304 = vld [vmem:[%s6 + $0x48] sm:$0xff]
    %v1305 = vld [vmem:[%s6 + $0x50] sm:$0xff]
    %v1306 = vld [vmem:[%s6 + $0x58] sm:$0xff]
    %v1307 = vld [vmem:[%s6 + $0x60] sm:$0xff]
    %v1308 = vld [vmem:[%s6 + $0x68] sm:$0xff]
    %v1309 = vld [vmem:[%s6 + $0x70] sm:$0xff]
    %v1310 = vld [vmem:[%s6 + $0x78] sm:$0xff]
    %v1311 = vld [vmem:[%s6 + $0x80] sm:$0xff]
    %v1312 = vld [vmem:[%s6 + $0x88] sm:$0xff]
    %v1313 = vld [vmem:[%s6 + $0x90] sm:$0xff]
    %v1314 = vld [vmem:[%s6 + $0x98] sm:$0xff]
    %v1315 = vld [vmem:[%s6 + $0xa0] sm:$0xff]
    %v1316 = vld [vmem:[%s6 + $0xa8] sm:$0xff]
    %v1317 = vld [vmem:[%s6 + $0xb0] sm:$0xff]
    %v1318 = vld [vmem:[%s6 + $0xb8] sm:$0xff]
    %v1319 = vld [vmem:[%s6 + $0xc0] sm:$0xff]
    %v1320 = vld [vmem:[%s6 + $0xc8] sm:$0xff]
    %v1321 = vld [vmem:[%s6 + $0xd0] sm:$0xff]
    %v1322 = vld [vmem:[%s6 + $0xd8] sm:$0xff]
    %v1323 = vld [vmem:[%s6 + $0xe0] sm:$0xff]
    %v1324 = vld [vmem:[%s6 + $0xe8] sm:$0xff]
    %v1325 = vld [vmem:[%s6 + $0xf0] sm:$0xff]
    %v1326 = vld [vmem:[%s6 + $0xf8] sm:$0xff]
    %v1327 = vld [vmem:[%s6 + $0x100] sm:$0xff]
    %v1328 = vld [vmem:[%s6 + $0x108] sm:$0xff]
    %v1329 = vld [vmem:[%s6 + $0x110] sm:$0xff]
    %v1330 = vld [vmem:[%s6 + $0x118] sm:$0xff]
    %v1331 = vld [vmem:[%s6 + $0x120] sm:$0xff]
    %v1332 = vld [vmem:[%s6 + $0x128] sm:$0xff]
    %v1333 = vld [vmem:[%s6 + $0x130] sm:$0xff]
    %v1334 = vld [vmem:[%s6 + $0x138] sm:$0xff]
    %v1335 = vld [vmem:[%s6 + $0x140] sm:$0xff]
    %v1336 = vld [vmem:[%s6 + $0x148] sm:$0xff]
    %v1337 = vld [vmem:[%s6 + $0x150] sm:$0xff]
    %v1338 = vld [vmem:[%s6 + $0x158] sm:$0xff]
    %v1339 = vld [vmem:[%s6 + $0x160] sm:$0xff]
    %v1340 = vld [vmem:[%s6 + $0x168] sm:$0xff]
    %v1341 = vld [vmem:[%s6 + $0x170] sm:$0xff]
    %v1342 = vld [vmem:[%s6 + $0x178] sm:$0xff]
    %v1343 = vld [vmem:[%s6 + $0x180] sm:$0xff]
    %v1344 = vld [vmem:[%s6 + $0x188] sm:$0xff]
    %v1345 = vld [vmem:[%s6 + $0x190] sm:$0xff]
    %v1346 = vld [vmem:[%s6 + $0x198] sm:$0xff]
    %v1347 = vld [vmem:[%s6 + $0x1a0] sm:$0xff]
    %v1348 = vld [vmem:[%s6 + $0x1a8] sm:$0xff]
    %v1349 = vld [vmem:[%s6 + $0x1b0] sm:$0xff]
    %v1350 = vld [vmem:[%s6 + $0x1b8] sm:$0xff]
    %v1351 = vld [vmem:[%s6 + $0x1c0] sm:$0xff]
    %v1352 = vld [vmem:[%s6 + $0x1c8] sm:$0xff]
    %v1353 = vld [vmem:[%s6 + $0x1d0] sm:$0xff]
    %v1354 = vld [vmem:[%s6 + $0x1d8] sm:$0xff]
    %v1355 = vld [vmem:[%s6 + $0x1e0] sm:$0xff]
    %v1356 = vld [vmem:[%s6 + $0x1e8] sm:$0xff]
    %v1357 = vld [vmem:[%s6 + $0x1f0] sm:$0xff]
    %v1358 = vld [vmem:[%s6 + $0x1f8] sm:$0xff]
    %v1359 = vld [vmem:[%s6 + $0x200] sm:$0xff]
    %v1360 = vld [vmem:[%s6 + $0x208] sm:$0xff]
    %v1361 = vld [vmem:[%s6 + $0x210] sm:$0xff]
    %v1362 = vld [vmem:[%s6 + $0x218] sm:$0xff]
    %v1363 = vld [vmem:[%s6 + $0x220] sm:$0xff]
    %v1364 = vld [vmem:[%s6 + $0x228] sm:$0xff]
    %v1365 = vld [vmem:[%s6 + $0x230] sm:$0xff]
    %v1366 = vld [vmem:[%s6 + $0x238] sm:$0xff]
    %v1367 = vld [vmem:[%s6 + $0x240] sm:$0xff]
    %v1368 = vld [vmem:[%s6 + $0x248] sm:$0xff]
    %v1369 = vld [vmem:[%s6 + $0x250] sm:$0xff]
    %v1370 = vld [vmem:[%s6 + $0x258] sm:$0xff]
    %v1371 = vld [vmem:[%s6 + $0x260] sm:$0xff]
    %v1372 = vld [vmem:[%s6 + $0x268] sm:$0xff]
    %v1373 = vld [vmem:[%s6 + $0x270] sm:$0xff]
    %v1374 = vld [vmem:[%s6 + $0x278] sm:$0xff]
    %v1375 = vld [vmem:[%s6 + $0x280] sm:$0xff]
    %v1376 = vld [vmem:[%s6 + $0x288] sm:$0xff]
    %v1377 = vld [vmem:[%s6 + $0x290] sm:$0xff]
    %v1378 = vld [vmem:[%s6 + $0x298] sm:$0xff]
    %v1379 = vld [vmem:[%s6 + $0x2a0] sm:$0xff]
    %v1380 = vld [vmem:[%s6 + $0x2a8] sm:$0xff]
    %v1381 = vld [vmem:[%s6 + $0x2b0] sm:$0xff]
    %v1382 = vld [vmem:[%s6 + $0x2b8] sm:$0xff]
    %v1383 = vld [vmem:[%s6 + $0x2c0] sm:$0xff]
    %v1384 = vld [vmem:[%s6 + $0x2c8] sm:$0xff]
    %v1385 = vld [vmem:[%s6 + $0x2d0] sm:$0xff]
    %v1386 = vld [vmem:[%s6 + $0x2d8] sm:$0xff]
    %v1387 = vld [vmem:[%s6 + $0x2e0] sm:$0xff]
    %v1388 = vld [vmem:[%s6 + $0x2e8] sm:$0xff]
    %v1389 = vld [vmem:[%s6 + $0x2f0] sm:$0xff]
    %v1390 = vld [vmem:[%s6 + $0x2f8] sm:$0xff]
    %v1391 = vld [vmem:[%s6 + $0x300] sm:$0xff]
    %v1392 = vld [vmem:[%s6 + $0x308] sm:$0xff]
    %v1393 = vld [vmem:[%s6 + $0x310] sm:$0xff]
    %v1394 = vld [vmem:[%s6 + $0x318] sm:$0xff]
    %v1395 = vld [vmem:[%s6 + $0x320] sm:$0xff]
    %v1396 = vld [vmem:[%s6 + $0x328] sm:$0xff]
    %v1397 = vld [vmem:[%s6 + $0x330] sm:$0xff]
    %v1398 = vld [vmem:[%s6 + $0x338] sm:$0xff]
    %v1399 = vld [vmem:[%s6 + $0x340] sm:$0xff]
    %v1400 = vld [vmem:[%s6 + $0x348] sm:$0xff]
    %v1401 = vld [vmem:[%s6 + $0x350] sm:$0xff]
    %v1402 = vld [vmem:[%s6 + $0x358] sm:$0xff]
    %v1403 = vld [vmem:[%s6 + $0x360] sm:$0xff]
    %v1404 = vld [vmem:[%s6 + $0x368] sm:$0xff]
    %v1405 = vld [vmem:[%s6 + $0x370] sm:$0xff]
    %v1406 = vld [vmem:[%s6 + $0x378] sm:$0xff]
    %v1407 = vld [vmem:[%s6 + $0x380] sm:$0xff]
    %v1408 = vld [vmem:[%s6 + $0x388] sm:$0xff]
    %v1409 = vld [vmem:[%s6 + $0x390] sm:$0xff]
    %v1410 = vld [vmem:[%s6 + $0x398] sm:$0xff]
    %v1411 = vld [vmem:[%s6 + $0x3a0] sm:$0xff]
    %v1412 = vld [vmem:[%s6 + $0x3a8] sm:$0xff]
    %v1413 = vld [vmem:[%s6 + $0x3b0] sm:$0xff]
    %v1414 = vld [vmem:[%s6 + $0x3b8] sm:$0xff]
    %v1415 = vld [vmem:[%s6 + $0x3c0] sm:$0xff]
    %v1416 = vld [vmem:[%s6 + $0x3c8] sm:$0xff]
    %v1417 = vld [vmem:[%s6 + $0x3d0] sm:$0xff]
    %v1418 = vld [vmem:[%s6 + $0x3d8] sm:$0xff]
    %v1419 = vld [vmem:[%s6 + $0x3e0] sm:$0xff]
    %v1420 = vld [vmem:[%s6 + $0x3e8] sm:$0xff]
    %v1421 = vld [vmem:[%s6 + $0x3f0] sm:$0xff]
    %v1422 = vld [vmem:[%s6 + $0x3f8] sm:$0xff]
    %v1423 = vld [vmem:[%s6 + $0x400] sm:$0xff]
    %v1424 = vld [vmem:[%s6 + $0x408] sm:$0xff]
    %v1425 = vld [vmem:[%s6 + $0x410] sm:$0xff]
    %v1426 = vld [vmem:[%s6 + $0x418] sm:$0xff]
    %v1427 = vld [vmem:[%s6 + $0x420] sm:$0xff]
    %v1428 = vld [vmem:[%s6 + $0x428] sm:$0xff]
    %v1429 = vld [vmem:[%s6 + $0x430] sm:$0xff]
    %v1430 = vld [vmem:[%s6 + $0x438] sm:$0xff]
    %v1431 = vld [vmem:[%s6 + $0x440] sm:$0xff]
    %v1432 = vld [vmem:[%s6 + $0x448] sm:$0xff]
    %v1433 = vld [vmem:[%s6 + $0x450] sm:$0xff]
    %v1434 = vld [vmem:[%s6 + $0x458] sm:$0xff]
    %v1435 = vld [vmem:[%s6 + $0x460] sm:$0xff]
    %v1436 = vld [vmem:[%s6 + $0x468] sm:$0xff]
    %v1437 = vld [vmem:[%s6 + $0x470] sm:$0xff]
    %v1438 = vld [vmem:[%s6 + $0x478] sm:$0xff]
    %v1439 = vld [vmem:[%s6 + $0x480] sm:$0xff]
    %v1440 = vld [vmem:[%s6 + $0x488] sm:$0xff]
    %v1441 = vld [vmem:[%s6 + $0x490] sm:$0xff]
    %v1442 = vld [vmem:[%s6 + $0x498] sm:$0xff]
    %v1443 = vld [vmem:[%s6 + $0x4a0] sm:$0xff]
    %v1444 = vld [vmem:[%s6 + $0x4a8] sm:$0xff]
    %v1445 = vld [vmem:[%s6 + $0x4b0] sm:$0xff]
    %v1446 = vld [vmem:[%s6 + $0x4b8] sm:$0xff]
    %v1447 = vld [vmem:[%s6 + $0x4c0] sm:$0xff]
    %v1448 = vld [vmem:[%s6 + $0x4c8] sm:$0xff]
    %v1449 = vld [vmem:[%s6 + $0x4d0] sm:$0xff]
    %v1450 = vld [vmem:[%s6 + $0x4d8] sm:$0xff]
    %v1451 = vld [vmem:[%s6 + $0x4e0] sm:$0xff]
    %v1452 = vld [vmem:[%s6 + $0x4e8] sm:$0xff]
    %v1453 = vld [vmem:[%s6 + $0x4f0] sm:$0xff]
    %v1454 = vld [vmem:[%s6 + $0x4f8] sm:$0xff]
    %v1455 = vld [vmem:[%s6 + $0x500] sm:$0xff]
    %v1456 = vld [vmem:[%s6 + $0x508] sm:$0xff]
    %v1457 = vld [vmem:[%s6 + $0x510] sm:$0xff]
    %v1458 = vld [vmem:[%s6 + $0x518] sm:$0xff]
    %v1459 = vld [vmem:[%s6 + $0x520] sm:$0xff]
    %v1460 = vld [vmem:[%s6 + $0x528] sm:$0xff]
    %v1461 = vld [vmem:[%s6 + $0x530] sm:$0xff]
    %v1462 = vld [vmem:[%s6 + $0x538] sm:$0xff]
    %v1463 = vld [vmem:[%s6 + $0x540] sm:$0xff]
    %v1464 = vld [vmem:[%s6 + $0x548] sm:$0xff]
    %v1465 = vld [vmem:[%s6 + $0x550] sm:$0xff]
    %v1466 = vld [vmem:[%s6 + $0x558] sm:$0xff]
    %v1467 = vld [vmem:[%s6 + $0x560] sm:$0xff]
    %v1468 = vld [vmem:[%s6 + $0x568] sm:$0xff]
    %v1469 = vld [vmem:[%s6 + $0x570] sm:$0xff]
    %v1470 = vld [vmem:[%s6 + $0x578] sm:$0xff]
    %v1471 = vld [vmem:[%s6 + $0x580] sm:$0xff]
    %v1472 = vld [vmem:[%s6 + $0x588] sm:$0xff]
    %v1473 = vld [vmem:[%s6 + $0x590] sm:$0xff]
    %v1474 = vld [vmem:[%s6 + $0x598] sm:$0xff]
    %v1475 = vld [vmem:[%s6 + $0x5a0] sm:$0xff]
    %v1476 = vld [vmem:[%s6 + $0x5a8] sm:$0xff]
    %v1477 = vld [vmem:[%s6 + $0x5b0] sm:$0xff]
    %v1478 = vld [vmem:[%s6 + $0x5b8] sm:$0xff]
    %v1479 = vld [vmem:[%s6 + $0x5c0] sm:$0xff]
    %v1480 = vld [vmem:[%s6 + $0x5c8] sm:$0xff]
    %v1481 = vld [vmem:[%s6 + $0x5d0] sm:$0xff]
    %v1482 = vld [vmem:[%s6 + $0x5d8] sm:$0xff]
    %v1483 = vld [vmem:[%s6 + $0x5e0] sm:$0xff]
    %v1484 = vld [vmem:[%s6 + $0x5e8] sm:$0xff]
    %v1485 = vld [vmem:[%s6 + $0x5f0] sm:$0xff]
    %v1486 = vld [vmem:[%s6 + $0x5f8] sm:$0xff]
    %v1487 = vld [vmem:[%s6 + $0x600] sm:$0xff]
    %v1488 = vld [vmem:[%s6 + $0x608] sm:$0xff]
    %v1489 = vld [vmem:[%s6 + $0x610] sm:$0xff]
    %v1490 = vld [vmem:[%s6 + $0x618] sm:$0xff]
    %v1491 = vld [vmem:[%s6 + $0x620] sm:$0xff]
    %v1492 = vld [vmem:[%s6 + $0x628] sm:$0xff]
    %v1493 = vld [vmem:[%s6 + $0x630] sm:$0xff]
    %v1494 = vld [vmem:[%s6 + $0x638] sm:$0xff]
    %v1495 = vld [vmem:[%s6 + $0x640] sm:$0xff]
    %v1496 = vld [vmem:[%s6 + $0x648] sm:$0xff]
    %v1497 = vld [vmem:[%s6 + $0x650] sm:$0xff]
    %v1498 = vld [vmem:[%s6 + $0x658] sm:$0xff]
    %v1499 = vld [vmem:[%s6 + $0x660] sm:$0xff]
    %v1500 = vld [vmem:[%s6 + $0x668] sm:$0xff]
    %v1501 = vld [vmem:[%s6 + $0x670] sm:$0xff]
    %v1502 = vld [vmem:[%s6 + $0x678] sm:$0xff]
    %v1503 = vld [vmem:[%s6 + $0x680] sm:$0xff]
    %v1504 = vld [vmem:[%s6 + $0x688] sm:$0xff]
    %v1505 = vld [vmem:[%s6 + $0x690] sm:$0xff]
    %v1506 = vld [vmem:[%s6 + $0x698] sm:$0xff]
    %v1507 = vld [vmem:[%s6 + $0x6a0] sm:$0xff]
    %v1508 = vld [vmem:[%s6 + $0x6a8] sm:$0xff]
    %v1509 = vld [vmem:[%s6 + $0x6b0] sm:$0xff]
    %v1510 = vld [vmem:[%s6 + $0x6b8] sm:$0xff]
    %v1511 = vld [vmem:[%s6 + $0x6c0] sm:$0xff]
    %v1512 = vld [vmem:[%s6 + $0x6c8] sm:$0xff]
    %v1513 = vld [vmem:[%s6 + $0x6d0] sm:$0xff]
    %v1514 = vld [vmem:[%s6 + $0x6d8] sm:$0xff]
    %v1515 = vld [vmem:[%s6 + $0x6e0] sm:$0xff]
    %v1516 = vld [vmem:[%s6 + $0x6e8] sm:$0xff]
    %v1517 = vld [vmem:[%s6 + $0x6f0] sm:$0xff]
    %v1518 = vld [vmem:[%s6 + $0x6f8] sm:$0xff]
    %v1519 = vld [vmem:[%s6 + $0x700] sm:$0xff]
    %v1520 = vld [vmem:[%s6 + $0x708] sm:$0xff]
    %v1521 = vld [vmem:[%s6 + $0x710] sm:$0xff]
    %v1522 = vld [vmem:[%s6 + $0x718] sm:$0xff]
    %v1523 = vld [vmem:[%s6 + $0x720] sm:$0xff]
    %v1524 = vld [vmem:[%s6 + $0x728] sm:$0xff]
    %v1525 = vld [vmem:[%s6 + $0x730] sm:$0xff]
    %v1526 = vld [vmem:[%s6 + $0x738] sm:$0xff]
    %v1527 = vld [vmem:[%s6 + $0x740] sm:$0xff]
    %v1528 = vld [vmem:[%s6 + $0x748] sm:$0xff]
    %v1529 = vld [vmem:[%s6 + $0x750] sm:$0xff]
    %v1530 = vld [vmem:[%s6 + $0x758] sm:$0xff]
    %v1531 = vld [vmem:[%s6 + $0x760] sm:$0xff]
    %v1532 = vld [vmem:[%s6 + $0x768] sm:$0xff]
    %v1533 = vld [vmem:[%s6 + $0x770] sm:$0xff]
    %v1534 = vld [vmem:[%s6 + $0x778] sm:$0xff]
    %1535 = vmatprep.subr.mxu0 %v1296
    %1536 = vmatpush1.msra.mxu0 %v1295
    %1537 = vmatprep.subr.mxu0 %v1300
    %1538 = vmatpush1.msra.mxu0 %v1299
    %1539 = vmatprep.subr.mxu0 %v1304
    %1540 = vmatpush1.msra.mxu0 %v1303
    %1541 = vmatprep.subr.mxu0 %v1308
    %1542 = vmatpush1.msra.mxu0 %v1307
    %1543 = vmatprep.subr.mxu0 %v1312
    %1544 = vmatpush1.msra.mxu0 %v1311
    %1545 = vmatprep.subr.mxu0 %v1316
    %1546 = vmatpush1.msra.mxu0 %v1315
    %1547 = vmatprep.subr.mxu0 %v1320
    %1548 = vmatpush1.msra.mxu0 %v1319
    %1549 = vmatprep.subr.mxu0 %v1324
    %1550 = vmatpush1.msra.mxu0 %v1323
    %1551 = vmatprep.subr.mxu0 %v1328
    %1552 = vmatpush1.msra.mxu0 %v1327
    %1553 = vmatprep.subr.mxu0 %v1332
    %1554 = vmatpush1.msra.mxu0 %v1331
    %1555 = vmatprep.subr.mxu0 %v1336
    %1556 = vmatpush1.msra.mxu0 %v1335
    %1557 = vmatprep.subr.mxu0 %v1340
    %1558 = vmatpush1.msra.mxu0 %v1339
    %1559 = vmatprep.subr.mxu0 %v1344
    %1560 = vmatpush1.msra.mxu0 %v1343
    %1561 = vmatprep.subr.mxu0 %v1348
    %1562 = vmatpush1.msra.mxu0 %v1347
    %1563 = vmatprep.subr.mxu0 %v1352
    %1564 = vmatpush1.msra.mxu0 %v1351
    %1565 = vmatprep.subr.mxu0 %v1356
    %1566 = vmatpush1.msra.mxu0 %v1355
    %1567 = vmatprep.subr.mxu0 %v1360
    %1568 = vmatpush1.msra.mxu0 %v1359
    %1569 = vmatprep.subr.mxu0 %v1364
    %1570 = vmatpush1.msra.mxu0 %v1363
    %1571 = vmatprep.subr.mxu0 %v1368
    %1572 = vmatpush1.msra.mxu0 %v1367
    %1573 = vmatprep.subr.mxu0 %v1372
    %1574 = vmatpush1.msra.mxu0 %v1371
    %1575 = vmatprep.subr.mxu0 %v1376
    %1576 = vmatpush1.msra.mxu0 %v1375
    %1577 = vmatprep.subr.mxu0 %v1380
    %1578 = vmatpush1.msra.mxu0 %v1379
    %1579 = vmatprep.subr.mxu0 %v1384
    %1580 = vmatpush1.msra.mxu0 %v1383
    %1581 = vmatprep.subr.mxu0 %v1388
    %1582 = vmatpush1.msra.mxu0 %v1387
    %1583 = vmatprep.subr.mxu0 %v1392
    %1584 = vmatpush1.msra.mxu0 %v1391
    %1585 = vmatprep.subr.mxu0 %v1396
    %1586 = vmatpush1.msra.mxu0 %v1395
    %1587 = vmatprep.subr.mxu0 %v1400
    %1588 = vmatpush1.msra.mxu0 %v1399
    %1589 = vmatprep.subr.mxu0 %v1404
    %1590 = vmatpush1.msra.mxu0 %v1403
    %1591 = vmatprep.subr.mxu0 %v1408
    %1592 = vmatpush1.msra.mxu0 %v1407
    %1593 = vmatprep.subr.mxu0 %v1412
    %1594 = vmatpush1.msra.mxu0 %v1411
    %1595 = vmatprep.subr.mxu0 %v1416
    %1596 = vmatpush1.msra.mxu0 %v1415
    %1597 = vmatprep.subr.mxu0 %v1420
    %1598 = vmatpush1.msra.mxu0 %v1419
    %1599 = vmatprep.mubr.f32.mxu0 %v609
    %1600 = vmatmul.mubr.f32.gmra.mrb[0].mxu0 %v608
    %v1601 = vpop.f32.mrb[0].mxu0
    %v1602 = vadd.f32 0.0, %v1601
    %v1603 = vpop.f32.mrb[0].mxu0
    %v1604 = vadd.f32 0.0, %v1603
    %1605 = vmatprep.mubr.f32.mxu0 %v613
    %1606 = vmatmul.mubr.f32.gmra.mrb[0].mxu0 %v612
    %v1607 = vpop.f32.mrb[0].mxu0
    %v1608 = vadd.f32 0.0, %v1607
    %v1609 = vpop.f32.mrb[0].mxu0
    %v1610 = vadd.f32 0.0, %v1609
    %1611 = vmatprep.mubr.f32.mxu0 %v617
    %1612 = vmatmul.mubr.f32.gmra.mrb[0].mxu0 %v616
    %v1613 = vpop.f32.mrb[0].mxu0
    %v1614 = vadd.f32 0.0, %v1613
    %v1615 = vpop.f32.mrb[0].mxu0
    %v1616 = vadd.f32 0.0, %v1615
    %1617 = vmatprep.mubr.f32.mxu0 %v621
    %1618 = vmatmul.mubr.f32.gmra.mrb[0].mxu0 %v620
    %v1619 = vpop.f32.mrb[0].mxu0
    %v1620 = vadd.f32 0.0, %v1619
    %v1621 = vpop.f32.mrb[0].mxu0
    %v1622 = vadd.f32 0.0, %v1621
    %1623 = vmatprep.mubr.f32.mxu0 %v625
    %1624 = vmatmul.mubr.f32.gmra.mrb[0].mxu0 %v624
    %v1625 = vpop.f32.mrb[0].mxu0
    %v1626 = vadd.f32 0.0, %v1625
    %v1627 = vpop.f32.mrb[0].mxu0
    %v1628 = vadd.f32 0.0, %v1627
    %1629 = vmatprep.mubr.f32.mxu0 %v629
    %1630 = vmatmul.mubr.f32.gmra.mrb[0].mxu0 %v628
    %v1631 = vpop.f32.mrb[0].mxu0
    %v1632 = vadd.f32 0.0, %v1631
    %v1633 = vpop.f32.mrb[0].mxu0
    %v1634 = vadd.f32 0.0, %v1633
    %1635 = vdwg.mxu0
    %1636 = vmatprep.subr.mxu0 %v1424
    %1637 = vmatpush1.msra.mxu0 %v1423
    %1638 = vmatprep.subr.mxu0 %v1428
    %1639 = vmatpush1.msra.mxu0 %v1427
    %1640 = vmatprep.subr.mxu0 %v1432
    %1641 = vmatpush1.msra.mxu0 %v1431
    %1642 = vmatprep.subr.mxu0 %v1436
    %1643 = vmatpush1.msra.mxu0 %v1435
    %1644 = vmatprep.subr.mxu0 %v1440
    %1645 = vmatpush1.msra.mxu0 %v1439
    %1646 = vmatprep.subr.mxu0 %v1444
    %1647 = vmatpush1.msra.mxu0 %v1443
    %1648 = vmatprep.subr.mxu0 %v1448
    %1649 = vmatpush1.msra.mxu0 %v1447
    %1650 = vmatprep.subr.mxu0 %v1452
    %1651 = vmatpush1.msra.mxu0 %v1451
    %1652 = vmatprep.subr.mxu0 %v1456
    %1653 = vmatpush1.msra.mxu0 %v1455
    %1654 = vmatprep.subr.mxu0 %v1460
    %1655 = vmatpush1.msra.mxu0 %v1459
    %1656 = vmatprep.subr.mxu0 %v1464
    %1657 = vmatpush1.msra.mxu0 %v1463
    %1658 = vmatprep.subr.mxu0 %v1468
    %1659 = vmatpush1.msra.mxu0 %v1467
    %1660 = vmatprep.subr.mxu0 %v1472
    %1661 = vmatpush1.msra.mxu0 %v1471
    %1662 = vmatprep.subr.mxu0 %v1476
    %1663 = vmatpush1.msra.mxu0 %v1475
    %1664 = vmatprep.subr.mxu0 %v1480
    %1665 = vmatpush1.msra.mxu0 %v1479
    %1666 = vmatprep.subr.mxu0 %v1484
    %1667 = vmatpush1.msra.mxu0 %v1483
    %1668 = vmatprep.subr.mxu0 %v1488
    %1669 = vmatpush1.msra.mxu0 %v1487
    %1670 = vmatprep.subr.mxu0 %v1492
    %1671 = vmatpush1.msra.mxu0 %v1491
    %1672 = vmatprep.subr.mxu0 %v1496
    %1673 = vmatpush1.msra.mxu0 %v1495
    %1674 = vmatprep.subr.mxu0 %v1500
    %1675 = vmatpush1.msra.mxu0 %v1499
    %1676 = vmatprep.subr.mxu0 %v1504
    %1677 = vmatpush1.msra.mxu0 %v1503
    %1678 = vmatprep.subr.mxu0 %v1508
    %1679 = vmatpush1.msra.mxu0 %v1507
    %1680 = vmatprep.subr.mxu0 %v1512
    %1681 = vmatpush1.msra.mxu0 %v1511
    %1682 = vmatprep.subr.mxu0 %v1516
    %1683 = vmatpush1.msra.mxu0 %v1515
    %1684 = vmatprep.subr.mxu0 %v1520
    %1685 = vmatpush1.msra.mxu0 %v1519
    %1686 = vmatprep.subr.mxu0 %v1524
    %1687 = vmatpush1.msra.mxu0 %v1523
    %1688 = vmatprep.subr.mxu0 %v1528
    %1689 = vmatpush1.msra.mxu0 %v1527
    %1690 = vmatprep.subr.mxu0 %v1532
    %1691 = vmatpush1.msra.mxu0 %v1531
    %1692 = vmatprep.subr.mxu0 0.0
    %1693 = vmatpush1.msra.mxu0 0.0
    %1694 = vmatprep.subr.mxu0 0.0
    %1695 = vmatpush1.msra.mxu0 0.0
    %1696 = vmatprep.subr.mxu0 0.0
    %1697 = vmatpush1.msra.mxu0 0.0
    %1698 = vmatprep.subr.mxu0 0.0
    %1699 = vmatpush1.msra.mxu0 0.0
    %1700 = vmatprep.mubr.f32.mxu0 %v874
    %1701 = vmatmul.mubr.f32.gmra.mrb[0].mxu0 %v610
    %v1702 = vpop.f32.mrb[0].mxu0
    %v1703 = vadd.f32 %v1602, %v1702
    %v1704 = vpop.f32.mrb[0].mxu0
    %v1705 = vadd.f32 %v1604, %v1704
    %1706 = vmatprep.mubr.f32.mxu0 %v877
    %1707 = vmatmul.mubr.f32.gmra.mrb[0].mxu0 %v614
    %v1708 = vpop.f32.mrb[0].mxu0
    %v1709 = vadd.f32 %v1608, %v1708
    %v1710 = vpop.f32.mrb[0].mxu0
    %v1711 = vadd.f32 %v1610, %v1710
    %1712 = vmatprep.mubr.f32.mxu0 %v880
    %1713 = vmatmul.mubr.f32.gmra.mrb[0].mxu0 %v618
    %v1714 = vpop.f32.mrb[0].mxu0
    %v1715 = vadd.f32 %v1614, %v1714
    %v1716 = vpop.f32.mrb[0].mxu0
    %v1717 = vadd.f32 %v1616, %v1716
    %1718 = vmatprep.mubr.f32.mxu0 %v883
    %1719 = vmatmul.mubr.f32.gmra.mrb[0].mxu0 %v622
    %v1720 = vpop.f32.mrb[0].mxu0
    %v1721 = vadd.f32 %v1620, %v1720
    %v1722 = vpop.f32.mrb[0].mxu0
    %v1723 = vadd.f32 %v1622, %v1722
    %1724 = vmatprep.mubr.f32.mxu0 %v886
    %1725 = vmatmul.mubr.f32.gmra.mrb[0].mxu0 %v626
    %v1726 = vpop.f32.mrb[0].mxu0
    %v1727 = vadd.f32 %v1626, %v1726
    %v1728 = vpop.f32.mrb[0].mxu0
    %v1729 = vadd.f32 %v1628, %v1728
    %1730 = vmatprep.mubr.f32.mxu0 %v889
    %1731 = vmatmul.mubr.f32.gmra.mrb[0].mxu0 %v630
    %v1732 = vpop.f32.mrb[0].mxu0
    %v1733 = vadd.f32 %v1632, %v1732
    %v1734 = vpop.f32.mrb[0].mxu0
    %v1735 = vadd.f32 %v1634, %v1734
    %1736 = vdwg.mxu0
    %1737 = vmatprep.subr.mxu0 %v1298
    %1738 = vmatpush1.msra.mxu0 %v1297
    %1739 = vmatprep.subr.mxu0 %v1302
    %1740 = vmatpush1.msra.mxu0 %v1301
    %1741 = vmatprep.subr.mxu0 %v1306
    %1742 = vmatpush1.msra.mxu0 %v1305
    %1743 = vmatprep.subr.mxu0 %v1310
    %1744 = vmatpush1.msra.mxu0 %v1309
    %1745 = vmatprep.subr.mxu0 %v1314
    %1746 = vmatpush1.msra.mxu0 %v1313
    %1747 = vmatprep.subr.mxu0 %v1318
    %1748 = vmatpush1.msra.mxu0 %v1317
    %1749 = vmatprep.subr.mxu0 %v1322
    %1750 = vmatpush1.msra.mxu0 %v1321
    %1751 = vmatprep.subr.mxu0 %v1326
    %1752 = vmatpush1.msra.mxu0 %v1325
    %1753 = vmatprep.subr.mxu0 %v1330
    %1754 = vmatpush1.msra.mxu0 %v1329
    %1755 = vmatprep.subr.mxu0 %v1334
    %1756 = vmatpush1.msra.mxu0 %v1333
    %1757 = vmatprep.subr.mxu0 %v1338
    %1758 = vmatpush1.msra.mxu0 %v1337
    %1759 = vmatprep.subr.mxu0 %v1342
    %1760 = vmatpush1.msra.mxu0 %v1341
    %1761 = vmatprep.subr.mxu0 %v1346
    %1762 = vmatpush1.msra.mxu0 %v1345
    %1763 = vmatprep.subr.mxu0 %v1350
    %1764 = vmatpush1.msra.mxu0 %v1349
    %1765 = vmatprep.subr.mxu0 %v1354
    %1766 = vmatpush1.msra.mxu0 %v1353
    %1767 = vmatprep.subr.mxu0 %v1358
    %1768 = vmatpush1.msra.mxu0 %v1357
    %1769 = vmatprep.subr.mxu0 %v1362
    %1770 = vmatpush1.msra.mxu0 %v1361
    %1771 = vmatprep.subr.mxu0 %v1366
    %1772 = vmatpush1.msra.mxu0 %v1365
    %1773 = vmatprep.subr.mxu0 %v1370
    %1774 = vmatpush1.msra.mxu0 %v1369
    %1775 = vmatprep.subr.mxu0 %v1374
    %1776 = vmatpush1.msra.mxu0 %v1373
    %1777 = vmatprep.subr.mxu0 %v1378
    %1778 = vmatpush1.msra.mxu0 %v1377
    %1779 = vmatprep.subr.mxu0 %v1382
    %1780 = vmatpush1.msra.mxu0 %v1381
    %1781 = vmatprep.subr.mxu0 %v1386
    %1782 = vmatpush1.msra.mxu0 %v1385
    %1783 = vmatprep.subr.mxu0 %v1390
    %1784 = vmatpush1.msra.mxu0 %v1389
    %1785 = vmatprep.subr.mxu0 %v1394
    %1786 = vmatpush1.msra.mxu0 %v1393
    %1787 = vmatprep.subr.mxu0 %v1398
    %1788 = vmatpush1.msra.mxu0 %v1397
    %1789 = vmatprep.subr.mxu0 %v1402
    %1790 = vmatpush1.msra.mxu0 %v1401
    %1791 = vmatprep.subr.mxu0 %v1406
    %1792 = vmatpush1.msra.mxu0 %v1405
    %1793 = vmatprep.subr.mxu0 %v1410
    %1794 = vmatpush1.msra.mxu0 %v1409
    %1795 = vmatprep.subr.mxu0 %v1414
    %1796 = vmatpush1.msra.mxu0 %v1413
    %1797 = vmatprep.subr.mxu0 %v1418
    %1798 = vmatpush1.msra.mxu0 %v1417
    %1799 = vmatprep.subr.mxu0 %v1422
    %1800 = vmatpush1.msra.mxu0 %v1421
    %1801 = vmatprep.mubr.f32.mxu0 %v609
    %1802 = vmatmul.mubr.f32.gmra.mrb[0].mxu0 %v608
    %v1803 = vpop.f32.mrb[0].mxu0
    %v1804 = vadd.f32 0.0, %v1803
    %v1805 = vpop.f32.mrb[0].mxu0
    %v1806 = vadd.f32 0.0, %v1805
    %1807 = vmatprep.mubr.f32.mxu0 %v613
    %1808 = vmatmul.mubr.f32.gmra.mrb[0].mxu0 %v612
    %v1809 = vpop.f32.mrb[0].mxu0
    %v1810 = vadd.f32 0.0, %v1809
    %v1811 = vpop.f32.mrb[0].mxu0
    %v1812 = vadd.f32 0.0, %v1811
    %1813 = vmatprep.mubr.f32.mxu0 %v617
    %1814 = vmatmul.mubr.f32.gmra.mrb[0].mxu0 %v616
    %v1815 = vpop.f32.mrb[0].mxu0
    %v1816 = vadd.f32 0.0, %v1815
    %v1817 = vpop.f32.mrb[0].mxu0
    %v1818 = vadd.f32 0.0, %v1817
    %1819 = vmatprep.mubr.f32.mxu0 %v621
    %1820 = vmatmul.mubr.f32.gmra.mrb[0].mxu0 %v620
    %v1821 = vpop.f32.mrb[0].mxu0
    %v1822 = vadd.f32 0.0, %v1821
    %v1823 = vpop.f32.mrb[0].mxu0
    %v1824 = vadd.f32 0.0, %v1823
    %1825 = vmatprep.mubr.f32.mxu0 %v625
    %1826 = vmatmul.mubr.f32.gmra.mrb[0].mxu0 %v624
    %v1827 = vpop.f32.mrb[0].mxu0
    %v1828 = vadd.f32 0.0, %v1827
    %v1829 = vpop.f32.mrb[0].mxu0
    %v1830 = vadd.f32 0.0, %v1829
    %1831 = vmatprep.mubr.f32.mxu0 %v629
    %1832 = vmatmul.mubr.f32.gmra.mrb[0].mxu0 %v628
    %v1833 = vpop.f32.mrb[0].mxu0
    %v1834 = vadd.f32 0.0, %v1833
    %v1835 = vpop.f32.mrb[0].mxu0
    %v1836 = vadd.f32 0.0, %v1835
    %1837 = vdwg.mxu0
    %1838 = vmatprep.subr.mxu0 %v1426
    %1839 = vmatpush1.msra.mxu0 %v1425
    %1840 = vmatprep.subr.mxu0 %v1430
    %1841 = vmatpush1.msra.mxu0 %v1429
    %1842 = vmatprep.subr.mxu0 %v1434
    %1843 = vmatpush1.msra.mxu0 %v1433
    %1844 = vmatprep.subr.mxu0 %v1438
    %1845 = vmatpush1.msra.mxu0 %v1437
    %1846 = vmatprep.subr.mxu0 %v1442
    %1847 = vmatpush1.msra.mxu0 %v1441
    %1848 = vmatprep.subr.mxu0 %v1446
    %1849 = vmatpush1.msra.mxu0 %v1445
    %1850 = vmatprep.subr.mxu0 %v1450
    %1851 = vmatpush1.msra.mxu0 %v1449
    %1852 = vmatprep.subr.mxu0 %v1454
    %1853 = vmatpush1.msra.mxu0 %v1453
    %1854 = vmatprep.subr.mxu0 %v1458
    %1855 = vmatpush1.msra.mxu0 %v1457
    %1856 = vmatprep.subr.mxu0 %v1462
    %1857 = vmatpush1.msra.mxu0 %v1461
    %1858 = vmatprep.subr.mxu0 %v1466
    %1859 = vmatpush1.msra.mxu0 %v1465
    %1860 = vmatprep.subr.mxu0 %v1470
    %1861 = vmatpush1.msra.mxu0 %v1469
    %1862 = vmatprep.subr.mxu0 %v1474
    %1863 = vmatpush1.msra.mxu0 %v1473
    %1864 = vmatprep.subr.mxu0 %v1478
    %1865 = vmatpush1.msra.mxu0 %v1477
    %1866 = vmatprep.subr.mxu0 %v1482
    %1867 = vmatpush1.msra.mxu0 %v1481
    %1868 = vmatprep.subr.mxu0 %v1486
    %1869 = vmatpush1.msra.mxu0 %v1485
    %1870 = vmatprep.subr.mxu0 %v1490
    %1871 = vmatpush1.msra.mxu0 %v1489
    %1872 = vmatprep.subr.mxu0 %v1494
    %1873 = vmatpush1.msra.mxu0 %v1493
    %1874 = vmatprep.subr.mxu0 %v1498
    %1875 = vmatpush1.msra.mxu0 %v1497
    %1876 = vmatprep.subr.mxu0 %v1502
    %1877 = vmatpush1.msra.mxu0 %v1501
    %1878 = vmatprep.subr.mxu0 %v1506
    %1879 = vmatpush1.msra.mxu0 %v1505
    %1880 = vmatprep.subr.mxu0 %v1510
    %1881 = vmatpush1.msra.mxu0 %v1509
    %1882 = vmatprep.subr.mxu0 %v1514
    %1883 = vmatpush1.msra.mxu0 %v1513
    %1884 = vmatprep.subr.mxu0 %v1518
    %1885 = vmatpush1.msra.mxu0 %v1517
    %1886 = vmatprep.subr.mxu0 %v1522
    %1887 = vmatpush1.msra.mxu0 %v1521
    %1888 = vmatprep.subr.mxu0 %v1526
    %1889 = vmatpush1.msra.mxu0 %v1525
    %1890 = vmatprep.subr.mxu0 %v1530
    %1891 = vmatpush1.msra.mxu0 %v1529
    %1892 = vmatprep.subr.mxu0 %v1534
    %1893 = vmatpush1.msra.mxu0 %v1533
    %1894 = vmatprep.subr.mxu0 0.0
    %1895 = vmatpush1.msra.mxu0 0.0
    %1896 = vmatprep.subr.mxu0 0.0
    %1897 = vmatpush1.msra.mxu0 0.0
    %1898 = vmatprep.subr.mxu0 0.0
    %1899 = vmatpush1.msra.mxu0 0.0
    %1900 = vmatprep.subr.mxu0 0.0
    %1901 = vmatpush1.msra.mxu0 0.0
    %1902 = vmatprep.mubr.f32.mxu0 %v874
    %1903 = vmatmul.mubr.f32.gmra.mrb[0].mxu0 %v610
    %v1904 = vpop.f32.mrb[0].mxu0
    %v1905 = vadd.f32 %v1804, %v1904
    %v1906 = vpop.f32.mrb[0].mxu0
    %v1907 = vadd.f32 %v1806, %v1906
    %1908 = vmatprep.mubr.f32.mxu0 %v877
    %1909 = vmatmul.mubr.f32.gmra.mrb[0].mxu0 %v614
    %v1910 = vpop.f32.mrb[0].mxu0
    %v1911 = vadd.f32 %v1810, %v1910
    %v1912 = vpop.f32.mrb[0].mxu0
    %v1913 = vadd.f32 %v1812, %v1912
    %1914 = vmatprep.mubr.f32.mxu0 %v880
    %1915 = vmatmul.mubr.f32.gmra.mrb[0].mxu0 %v618
    %v1916 = vpop.f32.mrb[0].mxu0
    %v1917 = vadd.f32 %v1816, %v1916
    %v1918 = vpop.f32.mrb[0].mxu0
    %v1919 = vadd.f32 %v1818, %v1918
    %1920 = vmatprep.mubr.f32.mxu0 %v883
    %1921 = vmatmul.mubr.f32.gmra.mrb[0].mxu0 %v622
    %v1922 = vpop.f32.mrb[0].mxu0
    %v1923 = vadd.f32 %v1822, %v1922
    %v1924 = vpop.f32.mrb[0].mxu0
    %v1925 = vadd.f32 %v1824, %v1924
    %1926 = vmatprep.mubr.f32.mxu0 %v886
    %1927 = vmatmul.mubr.f32.gmra.mrb[0].mxu0 %v626
    %v1928 = vpop.f32.mrb[0].mxu0
    %v1929 = vadd.f32 %v1828, %v1928
    %v1930 = vpop.f32.mrb[0].mxu0
    %v1931 = vadd.f32 %v1830, %v1930
    %1932 = vmatprep.mubr.f32.mxu0 %v889
    %1933 = vmatmul.mubr.f32.gmra.mrb[0].mxu0 %v630
    %v1934 = vpop.f32.mrb[0].mxu0
    %v1935 = vadd.f32 %v1834, %v1934
    %v1936 = vpop.f32.mrb[0].mxu0
    %v1937 = vadd.f32 %v1836, %v1936
    %1938 = vdwg.mxu0
    %v1939 = vmax.f32 %v1059, %v1703
    %v1940 = vmax.f32 %v1061, %v1705
    %v1941 = vmax.f32 %v1261, %v1905
    %v1942 = vmax.f32 %v1263, %v1907
    %v1943 = vmax.f32 %v1065, %v1709
    %v1944 = vmax.f32 %v1067, %v1711
    %v1945 = vmax.f32 %v1267, %v1911
    %v1946 = vmax.f32 %v1269, %v1913
    %v1947 = vmax.f32 %v1071, %v1715
    %v1948 = vmax.f32 %v1073, %v1717
    %v1949 = vmax.f32 %v1273, %v1917
    %v1950 = vmax.f32 %v1275, %v1919
    %v1951 = vmax.f32 %v1077, %v1721
    %v1952 = vmax.f32 %v1079, %v1723
    %v1953 = vmax.f32 %v1279, %v1923
    %v1954 = vmax.f32 %v1281, %v1925
    %v1955 = vmax.f32 %v1083, %v1727
    %v1956 = vmax.f32 %v1085, %v1729
    %v1957 = vmax.f32 %v1285, %v1929
    %v1958 = vmax.f32 %v1287, %v1931
    %v1959 = vmax.f32 %v1089, %v1733
    %v1960 = vmax.f32 %v1091, %v1735
    %v1961 = vmax.f32 %v1291, %v1935
    %v1962 = vmax.f32 %v1293, %v1937
    %v1963 = vld [vmem:[%s7] sm:$0xf]
    %v1965 = vlaneseq
    %v1966 = vshrl.u32 %v1965, 7
    %v1967 = vsub.s32 0, %v1966
    %v1968 = vrot.slane %v1963, %v1967
    %v1969 = vlaneseq
    %v1970 = vshrl.u32 %v1969, 7
    %v1971 = vsub.s32 1, %v1970
    %v1972 = vrot.slane %v1963, %v1971
    %v1973 = vlaneseq
    %v1974 = vshrl.u32 %v1973, 7
    %v1975 = vsub.s32 2, %v1974
    %v1976 = vrot.slane %v1963, %v1975
    %v1977 = vlaneseq
    %v1978 = vshrl.u32 %v1977, 7
    %v1979 = vsub.s32 3, %v1978
    %v1980 = vrot.slane %v1963, %v1979
    %v1985 = vadd.f32 %v1939, %v1968
    %v1986 = vadd.f32 %v1940, %v1972
    %v1987 = vadd.f32 %v1941, %v1976
    %v1988 = vadd.f32 %v1942, %v1980
    %v1989 = vadd.f32 %v1943, %v1968
    %v1990 = vadd.f32 %v1944, %v1972
    %v1991 = vadd.f32 %v1945, %v1976
    %v1992 = vadd.f32 %v1946, %v1980
    %v1993 = vadd.f32 %v1947, %v1968
    %v1994 = vadd.f32 %v1948, %v1972
    %v1995 = vadd.f32 %v1949, %v1976
    %v1996 = vadd.f32 %v1950, %v1980
    %v1997 = vadd.f32 %v1951, %v1968
    %v1998 = vadd.f32 %v1952, %v1972
    %v1999 = vadd.f32 %v1953, %v1976
    %v2000 = vadd.f32 %v1954, %v1980
    %v2001 = vadd.f32 %v1955, %v1968
    %v2002 = vadd.f32 %v1956, %v1972
    %v2003 = vadd.f32 %v1957, %v1976
    %v2004 = vadd.f32 %v1958, %v1980
    %v2005 = vadd.f32 %v1959, %v1968
    %v2006 = vadd.f32 %v1960, %v1972
    %v2007 = vadd.f32 %v1961, %v1976
    %v2008 = vadd.f32 %v1962, %v1980
    %v2009 = vmax.f32 %v1985, 0.0
    %v2010 = vmax.f32 %v1986, 0.0
    %v2011 = vmax.f32 %v1987, 0.0
    %v2012 = vmax.f32 %v1988, 0.0
    %v2013 = vmax.f32 %v1989, 0.0
    %v2014 = vmax.f32 %v1990, 0.0
    %v2015 = vmax.f32 %v1991, 0.0
    %v2016 = vmax.f32 %v1992, 0.0
    %v2017 = vmax.f32 %v1993, 0.0
    %v2018 = vmax.f32 %v1994, 0.0
    %v2019 = vmax.f32 %v1995, 0.0
    %v2020 = vmax.f32 %v1996, 0.0
    %v2021 = vmax.f32 %v1997, 0.0
    %v2022 = vmax.f32 %v1998, 0.0
    %v2023 = vmax.f32 %v1999, 0.0
    %v2024 = vmax.f32 %v2000, 0.0
    %v2025 = vmax.f32 %v2001, 0.0
    %v2026 = vmax.f32 %v2002, 0.0
    %v2027 = vmax.f32 %v2003, 0.0
    %v2028 = vmax.f32 %v2004, 0.0
    %v2029 = vmax.f32 %v2005, 0.0
    %v2030 = vmax.f32 %v2006, 0.0
    %v2031 = vmax.f32 %v2007, 0.0
    %v2032 = vmax.f32 %v2008, 0.0
    %v2033 = vld [vmem:[%s8] sm:$0xff]
    %v2034 = vld [vmem:[%s8 + $0x8] sm:$0xff]
    %v2035 = vld [vmem:[%s8 + $0x10] sm:$0xff]
    %v2036 = vld [vmem:[%s8 + $0x18] sm:$0xff]
    %v2037 = vld [vmem:[%s8 + $0x20] sm:$0xff]
    %v2038 = vld [vmem:[%s8 + $0x28] sm:$0xff]
    %v2039 = vld [vmem:[%s8 + $0x30] sm:$0xff]
    %v2040 = vld [vmem:[%s8 + $0x38] sm:$0xff]
    %v2041 = vld [vmem:[%s8 + $0x40] sm:$0xff]
    %v2042 = vld [vmem:[%s8 + $0x48] sm:$0xff]
    %v2043 = vld [vmem:[%s8 + $0x50] sm:$0xff]
    %v2044 = vld [vmem:[%s8 + $0x58] sm:$0xff]
    %v2045 = vld [vmem:[%s8 + $0x60] sm:$0xff]
    %v2046 = vld [vmem:[%s8 + $0x68] sm:$0xff]
    %v2047 = vld [vmem:[%s8 + $0x70] sm:$0xff]
    %v2048 = vld [vmem:[%s8 + $0x78] sm:$0xff]
    %v2049 = vld [vmem:[%s8 + $0x80] sm:$0xff]
    %v2050 = vld [vmem:[%s8 + $0x88] sm:$0xff]
    %v2051 = vld [vmem:[%s8 + $0x90] sm:$0xff]
    %v2052 = vld [vmem:[%s8 + $0x98] sm:$0xff]
    %v2053 = vld [vmem:[%s8 + $0xa0] sm:$0xff]
    %v2054 = vld [vmem:[%s8 + $0xa8] sm:$0xff]
    %v2055 = vld [vmem:[%s8 + $0xb0] sm:$0xff]
    %v2056 = vld [vmem:[%s8 + $0xb8] sm:$0xff]
    %v2057 = vld [vmem:[%s8 + $0xc0] sm:$0xff]
    %v2058 = vld [vmem:[%s8 + $0xc8] sm:$0xff]
    %v2059 = vld [vmem:[%s8 + $0xd0] sm:$0xff]
    %v2060 = vld [vmem:[%s8 + $0xd8] sm:$0xff]
    %v2061 = vld [vmem:[%s8 + $0xe0] sm:$0xff]
    %v2062 = vld [vmem:[%s8 + $0xe8] sm:$0xff]
    %v2063 = vld [vmem:[%s8 + $0xf0] sm:$0xff]
    %v2064 = vld [vmem:[%s8 + $0xf8] sm:$0xff]
    %v2065 = vld [vmem:[%s8 + $0x100] sm:$0xff]
    %v2066 = vld [vmem:[%s8 + $0x108] sm:$0xff]
    %v2067 = vld [vmem:[%s8 + $0x110] sm:$0xff]
    %v2068 = vld [vmem:[%s8 + $0x118] sm:$0xff]
    %v2069 = vld [vmem:[%s8 + $0x120] sm:$0xff]
    %v2070 = vld [vmem:[%s8 + $0x128] sm:$0xff]
    %v2071 = vld [vmem:[%s8 + $0x130] sm:$0xff]
    %v2072 = vld [vmem:[%s8 + $0x138] sm:$0xff]
    %v2073 = vld [vmem:[%s8 + $0x140] sm:$0xff]
    %v2074 = vld [vmem:[%s8 + $0x148] sm:$0xff]
    %v2075 = vld [vmem:[%s8 + $0x150] sm:$0xff]
    %v2076 = vld [vmem:[%s8 + $0x158] sm:$0xff]
    %v2077 = vld [vmem:[%s8 + $0x160] sm:$0xff]
    %v2078 = vld [vmem:[%s8 + $0x168] sm:$0xff]
    %v2079 = vld [vmem:[%s8 + $0x170] sm:$0xff]
    %v2080 = vld [vmem:[%s8 + $0x178] sm:$0xff]
    %v2081 = vld [vmem:[%s8 + $0x180] sm:$0xff]
    %v2082 = vld [vmem:[%s8 + $0x188] sm:$0xff]
    %v2083 = vld [vmem:[%s8 + $0x190] sm:$0xff]
    %v2084 = vld [vmem:[%s8 + $0x198] sm:$0xff]
    %v2085 = vld [vmem:[%s8 + $0x1a0] sm:$0xff]
    %v2086 = vld [vmem:[%s8 + $0x1a8] sm:$0xff]
    %v2087 = vld [vmem:[%s8 + $0x1b0] sm:$0xff]
    %v2088 = vld [vmem:[%s8 + $0x1b8] sm:$0xff]
    %v2089 = vld [vmem:[%s8 + $0x1c0] sm:$0xff]
    %v2090 = vld [vmem:[%s8 + $0x1c8] sm:$0xff]
    %v2091 = vld [vmem:[%s8 + $0x1d0] sm:$0xff]
    %v2092 = vld [vmem:[%s8 + $0x1d8] sm:$0xff]
    %v2093 = vld [vmem:[%s8 + $0x1e0] sm:$0xff]
    %v2094 = vld [vmem:[%s8 + $0x1e8] sm:$0xff]
    %v2095 = vld [vmem:[%s8 + $0x1f0] sm:$0xff]
    %v2096 = vld [vmem:[%s8 + $0x1f8] sm:$0xff]
    %v2097 = vld [vmem:[%s8 + $0x200] sm:$0xff]
    %v2098 = vld [vmem:[%s8 + $0x208] sm:$0xff]
    %v2099 = vld [vmem:[%s8 + $0x210] sm:$0xff]
    %v2100 = vld [vmem:[%s8 + $0x218] sm:$0xff]
    %v2101 = vld [vmem:[%s8 + $0x220] sm:$0xff]
    %v2102 = vld [vmem:[%s8 + $0x228] sm:$0xff]
    %v2103 = vld [vmem:[%s8 + $0x230] sm:$0xff]
    %v2104 = vld [vmem:[%s8 + $0x238] sm:$0xff]
    %v2105 = vld [vmem:[%s8 + $0x240] sm:$0xff]
    %v2106 = vld [vmem:[%s8 + $0x248] sm:$0xff]
    %v2107 = vld [vmem:[%s8 + $0x250] sm:$0xff]
    %v2108 = vld [vmem:[%s8 + $0x258] sm:$0xff]
    %v2109 = vld [vmem:[%s8 + $0x260] sm:$0xff]
    %v2110 = vld [vmem:[%s8 + $0x268] sm:$0xff]
    %v2111 = vld [vmem:[%s8 + $0x270] sm:$0xff]
    %v2112 = vld [vmem:[%s8 + $0x278] sm:$0xff]
    %v2113 = vld [vmem:[%s8 + $0x280] sm:$0xff]
    %v2114 = vld [vmem:[%s8 + $0x288] sm:$0xff]
    %v2115 = vld [vmem:[%s8 + $0x290] sm:$0xff]
    %v2116 = vld [vmem:[%s8 + $0x298] sm:$0xff]
    %v2117 = vld [vmem:[%s8 + $0x2a0] sm:$0xff]
    %v2118 = vld [vmem:[%s8 + $0x2a8] sm:$0xff]
    %v2119 = vld [vmem:[%s8 + $0x2b0] sm:$0xff]
    %v2120 = vld [vmem:[%s8 + $0x2b8] sm:$0xff]
    %v2121 = vld [vmem:[%s8 + $0x2c0] sm:$0xff]
    %v2122 = vld [vmem:[%s8 + $0x2c8] sm:$0xff]
    %v2123 = vld [vmem:[%s8 + $0x2d0] sm:$0xff]
    %v2124 = vld [vmem:[%s8 + $0x2d8] sm:$0xff]
    %v2125 = vld [vmem:[%s8 + $0x2e0] sm:$0xff]
    %v2126 = vld [vmem:[%s8 + $0x2e8] sm:$0xff]
    %v2127 = vld [vmem:[%s8 + $0x2f0] sm:$0xff]
    %v2128 = vld [vmem:[%s8 + $0x2f8] sm:$0xff]
    %v2129 = vld [vmem:[%s8 + $0x300] sm:$0xff]
    %v2130 = vld [vmem:[%s8 + $0x308] sm:$0xff]
    %v2131 = vld [vmem:[%s8 + $0x310] sm:$0xff]
    %v2132 = vld [vmem:[%s8 + $0x318] sm:$0xff]
    %v2133 = vld [vmem:[%s8 + $0x320] sm:$0xff]
    %v2134 = vld [vmem:[%s8 + $0x328] sm:$0xff]
    %v2135 = vld [vmem:[%s8 + $0x330] sm:$0xff]
    %v2136 = vld [vmem:[%s8 + $0x338] sm:$0xff]
    %v2137 = vld [vmem:[%s8 + $0x340] sm:$0xff]
    %v2138 = vld [vmem:[%s8 + $0x348] sm:$0xff]
    %v2139 = vld [vmem:[%s8 + $0x350] sm:$0xff]
    %v2140 = vld [vmem:[%s8 + $0x358] sm:$0xff]
    %v2141 = vld [vmem:[%s8 + $0x360] sm:$0xff]
    %v2142 = vld [vmem:[%s8 + $0x368] sm:$0xff]
    %v2143 = vld [vmem:[%s8 + $0x370] sm:$0xff]
    %v2144 = vld [vmem:[%s8 + $0x378] sm:$0xff]
    %v2145 = vld [vmem:[%s8 + $0x380] sm:$0xff]
    %v2146 = vld [vmem:[%s8 + $0x388] sm:$0xff]
    %v2147 = vld [vmem:[%s8 + $0x390] sm:$0xff]
    %v2148 = vld [vmem:[%s8 + $0x398] sm:$0xff]
    %v2149 = vld [vmem:[%s8 + $0x3a0] sm:$0xff]
    %v2150 = vld [vmem:[%s8 + $0x3a8] sm:$0xff]
    %v2151 = vld [vmem:[%s8 + $0x3b0] sm:$0xff]
    %v2152 = vld [vmem:[%s8 + $0x3b8] sm:$0xff]
    %v2153 = vld [vmem:[%s8 + $0x3c0] sm:$0xff]
    %v2154 = vld [vmem:[%s8 + $0x3c8] sm:$0xff]
    %v2155 = vld [vmem:[%s8 + $0x3d0] sm:$0xff]
    %v2156 = vld [vmem:[%s8 + $0x3d8] sm:$0xff]
    %v2157 = vld [vmem:[%s8 + $0x3e0] sm:$0xff]
    %v2158 = vld [vmem:[%s8 + $0x3e8] sm:$0xff]
    %v2159 = vld [vmem:[%s8 + $0x3f0] sm:$0xff]
    %v2160 = vld [vmem:[%s8 + $0x3f8] sm:$0xff]
    %v2161 = vld [vmem:[%s8 + $0x400] sm:$0xff]
    %v2162 = vld [vmem:[%s8 + $0x408] sm:$0xff]
    %v2163 = vld [vmem:[%s8 + $0x410] sm:$0xff]
    %v2164 = vld [vmem:[%s8 + $0x418] sm:$0xff]
    %v2165 = vld [vmem:[%s8 + $0x420] sm:$0xff]
    %v2166 = vld [vmem:[%s8 + $0x428] sm:$0xff]
    %v2167 = vld [vmem:[%s8 + $0x430] sm:$0xff]
    %v2168 = vld [vmem:[%s8 + $0x438] sm:$0xff]
    %v2169 = vld [vmem:[%s8 + $0x440] sm:$0xff]
    %v2170 = vld [vmem:[%s8 + $0x448] sm:$0xff]
    %v2171 = vld [vmem:[%s8 + $0x450] sm:$0xff]
    %v2172 = vld [vmem:[%s8 + $0x458] sm:$0xff]
    %v2173 = vld [vmem:[%s8 + $0x460] sm:$0xff]
    %v2174 = vld [vmem:[%s8 + $0x468] sm:$0xff]
    %v2175 = vld [vmem:[%s8 + $0x470] sm:$0xff]
    %v2176 = vld [vmem:[%s8 + $0x478] sm:$0xff]
    %v2177 = vld [vmem:[%s8 + $0x480] sm:$0xff]
    %v2178 = vld [vmem:[%s8 + $0x488] sm:$0xff]
    %v2179 = vld [vmem:[%s8 + $0x490] sm:$0xff]
    %v2180 = vld [vmem:[%s8 + $0x498] sm:$0xff]
    %v2181 = vld [vmem:[%s8 + $0x4a0] sm:$0xff]
    %v2182 = vld [vmem:[%s8 + $0x4a8] sm:$0xff]
    %v2183 = vld [vmem:[%s8 + $0x4b0] sm:$0xff]
    %v2184 = vld [vmem:[%s8 + $0x4b8] sm:$0xff]
    %v2185 = vld [vmem:[%s8 + $0x4c0] sm:$0xff]
    %v2186 = vld [vmem:[%s8 + $0x4c8] sm:$0xff]
    %v2187 = vld [vmem:[%s8 + $0x4d0] sm:$0xff]
    %v2188 = vld [vmem:[%s8 + $0x4d8] sm:$0xff]
    %v2189 = vld [vmem:[%s8 + $0x4e0] sm:$0xff]
    %v2190 = vld [vmem:[%s8 + $0x4e8] sm:$0xff]
    %v2191 = vld [vmem:[%s8 + $0x4f0] sm:$0xff]
    %v2192 = vld [vmem:[%s8 + $0x4f8] sm:$0xff]
    %v2193 = vld [vmem:[%s8 + $0x500] sm:$0xff]
    %v2194 = vld [vmem:[%s8 + $0x508] sm:$0xff]
    %v2195 = vld [vmem:[%s8 + $0x510] sm:$0xff]
    %v2196 = vld [vmem:[%s8 + $0x518] sm:$0xff]
    %v2197 = vld [vmem:[%s8 + $0x520] sm:$0xff]
    %v2198 = vld [vmem:[%s8 + $0x528] sm:$0xff]
    %v2199 = vld [vmem:[%s8 + $0x530] sm:$0xff]
    %v2200 = vld [vmem:[%s8 + $0x538] sm:$0xff]
    %v2202 = vsel %vm83, %v2012, 0
    %v2205 = vsel %vm83, %v2016, 0
    %v2208 = vsel %vm83, %v2020, 0
    %v2211 = vsel %vm83, %v2024, 0
    %v2214 = vsel %vm83, %v2028, 0
    %v2217 = vsel %vm83, %v2032, 0
    %2219 = vmatprep.subr.mxu0 %v2034
    %2220 = vmatpush1.msra.mxu0 %v2033
    %2221 = vmatprep.subr.mxu0 %v2037
    %2222 = vmatpush1.msra.mxu0 %v2036
    %2223 = vmatprep.subr.mxu0 %v2040
    %2224 = vmatpush1.msra.mxu0 %v2039
    %2225 = vmatprep.subr.mxu0 %v2043
    %2226 = vmatpush1.msra.mxu0 %v2042
    %2227 = vmatprep.subr.mxu0 %v2046
    %2228 = vmatpush1.msra.mxu0 %v2045
    %2229 = vmatprep.subr.mxu0 %v2049
    %2230 = vmatpush1.msra.mxu0 %v2048
    %2231 = vmatprep.subr.mxu0 %v2052
    %2232 = vmatpush1.msra.mxu0 %v2051
    %2233 = vmatprep.subr.mxu0 %v2055
    %2234 = vmatpush1.msra.mxu0 %v2054
    %2235 = vmatprep.subr.mxu0 %v2058
    %2236 = vmatpush1.msra.mxu0 %v2057
    %2237 = vmatprep.subr.mxu0 %v2061
    %2238 = vmatpush1.msra.mxu0 %v2060
    %2239 = vmatprep.subr.mxu0 %v2064
    %2240 = vmatpush1.msra.mxu0 %v2063
    %2241 = vmatprep.subr.mxu0 %v2067
    %2242 = vmatpush1.msra.mxu0 %v2066
    %2243 = vmatprep.subr.mxu0 %v2070
    %2244 = vmatpush1.msra.mxu0 %v2069
    %2245 = vmatprep.subr.mxu0 %v2073
    %2246 = vmatpush1.msra.mxu0 %v2072
    %2247 = vmatprep.subr.mxu0 %v2076
    %2248 = vmatpush1.msra.mxu0 %v2075
    %2249 = vmatprep.subr.mxu0 %v2079
    %2250 = vmatpush1.msra.mxu0 %v2078
    %2251 = vmatprep.subr.mxu0 %v2082
    %2252 = vmatpush1.msra.mxu0 %v2081
    %2253 = vmatprep.subr.mxu0 %v2085
    %2254 = vmatpush1.msra.mxu0 %v2084
    %2255 = vmatprep.subr.mxu0 %v2088
    %2256 = vmatpush1.msra.mxu0 %v2087
    %2257 = vmatprep.subr.mxu0 %v2091
    %2258 = vmatpush1.msra.mxu0 %v2090
    %2259 = vmatprep.subr.mxu0 %v2094
    %2260 = vmatpush1.msra.mxu0 %v2093
    %2261 = vmatprep.subr.mxu0 %v2097
    %2262 = vmatpush1.msra.mxu0 %v2096
    %2263 = vmatprep.subr.mxu0 %v2100
    %2264 = vmatpush1.msra.mxu0 %v2099
    %2265 = vmatprep.subr.mxu0 %v2103
    %2266 = vmatpush1.msra.mxu0 %v2102
    %2267 = vmatprep.subr.mxu0 %v2106
    %2268 = vmatpush1.msra.mxu0 %v2105
    %2269 = vmatprep.subr.mxu0 %v2109
    %2270 = vmatpush1.msra.mxu0 %v2108
    %2271 = vmatprep.subr.mxu0 %v2112
    %2272 = vmatpush1.msra.mxu0 %v2111
    %2273 = vmatprep.subr.mxu0 %v2115
    %2274 = vmatpush1.msra.mxu0 %v2114
    %2275 = vmatprep.subr.mxu0 %v2118
    %2276 = vmatpush1.msra.mxu0 %v2117
    %2277 = vmatprep.subr.mxu0 %v2121
    %2278 = vmatpush1.msra.mxu0 %v2120
    %2279 = vmatprep.subr.mxu0 %v2124
    %2280 = vmatpush1.msra.mxu0 %v2123
    %2281 = vmatprep.subr.mxu0 %v2127
    %2282 = vmatpush1.msra.mxu0 %v2126
    %2283 = vmatprep.mubr.f32.mxu0 %v2010
    %2284 = vmatmul.mubr.f32.gmra.mrb[0].mxu0 %v2009
    %v2285 = vpop.f32.mrb[0].mxu0
    %v2286 = vadd.f32 0.0, %v2285
    %v2287 = vpop.f32.mrb[0].mxu0
    %v2288 = vadd.f32 0.0, %v2287
    %2289 = vmatprep.mubr.f32.mxu0 %v2014
    %2290 = vmatmul.mubr.f32.gmra.mrb[0].mxu0 %v2013
    %v2291 = vpop.f32.mrb[0].mxu0
    %v2292 = vadd.f32 0.0, %v2291
    %v2293 = vpop.f32.mrb[0].mxu0
    %v2294 = vadd.f32 0.0, %v2293
    %2295 = vmatprep.mubr.f32.mxu0 %v2018
    %2296 = vmatmul.mubr.f32.gmra.mrb[0].mxu0 %v2017
    %v2297 = vpop.f32.mrb[0].mxu0
    %v2298 = vadd.f32 0.0, %v2297
    %v2299 = vpop.f32.mrb[0].mxu0
    %v2300 = vadd.f32 0.0, %v2299
    %2301 = vmatprep.mubr.f32.mxu0 %v2022
    %2302 = vmatmul.mubr.f32.gmra.mrb[0].mxu0 %v2021
    %v2303 = vpop.f32.mrb[0].mxu0
    %v2304 = vadd.f32 0.0, %v2303
    %v2305 = vpop.f32.mrb[0].mxu0
    %v2306 = vadd.f32 0.0, %v2305
    %2307 = vmatprep.mubr.f32.mxu0 %v2026
    %2308 = vmatmul.mubr.f32.gmra.mrb[0].mxu0 %v2025
    %v2309 = vpop.f32.mrb[0].mxu0
    %v2310 = vadd.f32 0.0, %v2309
    %v2311 = vpop.f32.mrb[0].mxu0
    %v2312 = vadd.f32 0.0, %v2311
    %2313 = vmatprep.mubr.f32.mxu0 %v2030
    %2314 = vmatmul.mubr.f32.gmra.mrb[0].mxu0 %v2029
    %v2315 = vpop.f32.mrb[0].mxu0
    %v2316 = vadd.f32 0.0, %v2315
    %v2317 = vpop.f32.mrb[0].mxu0
    %v2318 = vadd.f32 0.0, %v2317
    %2319 = vdwg.mxu0
    %2320 = vmatprep.subr.mxu0 %v2130
    %2321 = vmatpush1.msra.mxu0 %v2129
    %2322 = vmatprep.subr.mxu0 %v2133
    %2323 = vmatpush1.msra.mxu0 %v2132
    %2324 = vmatprep.subr.mxu0 %v2136
    %2325 = vmatpush1.msra.mxu0 %v2135
    %2326 = vmatprep.subr.mxu0 %v2139
    %2327 = vmatpush1.msra.mxu0 %v2138
    %2328 = vmatprep.subr.mxu0 %v2142
    %2329 = vmatpush1.msra.mxu0 %v2141
    %2330 = vmatprep.subr.mxu0 %v2145
    %2331 = vmatpush1.msra.mxu0 %v2144
    %2332 = vmatprep.subr.mxu0 %v2148
    %2333 = vmatpush1.msra.mxu0 %v2147
    %2334 = vmatprep.subr.mxu0 %v2151
    %2335 = vmatpush1.msra.mxu0 %v2150
    %2336 = vmatprep.subr.mxu0 %v2154
    %2337 = vmatpush1.msra.mxu0 %v2153
    %2338 = vmatprep.subr.mxu0 %v2157
    %2339 = vmatpush1.msra.mxu0 %v2156
    %2340 = vmatprep.subr.mxu0 %v2160
    %2341 = vmatpush1.msra.mxu0 %v2159
    %2342 = vmatprep.subr.mxu0 %v2163
    %2343 = vmatpush1.msra.mxu0 %v2162
    %2344 = vmatprep.subr.mxu0 %v2166
    %2345 = vmatpush1.msra.mxu0 %v2165
    %2346 = vmatprep.subr.mxu0 %v2169
    %2347 = vmatpush1.msra.mxu0 %v2168
    %2348 = vmatprep.subr.mxu0 %v2172
    %2349 = vmatpush1.msra.mxu0 %v2171
    %2350 = vmatprep.subr.mxu0 %v2175
    %2351 = vmatpush1.msra.mxu0 %v2174
    %2352 = vmatprep.subr.mxu0 %v2178
    %2353 = vmatpush1.msra.mxu0 %v2177
    %2354 = vmatprep.subr.mxu0 %v2181
    %2355 = vmatpush1.msra.mxu0 %v2180
    %2356 = vmatprep.subr.mxu0 %v2184
    %2357 = vmatpush1.msra.mxu0 %v2183
    %2358 = vmatprep.subr.mxu0 %v2187
    %2359 = vmatpush1.msra.mxu0 %v2186
    %2360 = vmatprep.subr.mxu0 %v2190
    %2361 = vmatpush1.msra.mxu0 %v2189
    %2362 = vmatprep.subr.mxu0 %v2193
    %2363 = vmatpush1.msra.mxu0 %v2192
    %2364 = vmatprep.subr.mxu0 %v2196
    %2365 = vmatpush1.msra.mxu0 %v2195
    %2366 = vmatprep.subr.mxu0 %v2199
    %2367 = vmatpush1.msra.mxu0 %v2198
    %2368 = vmatprep.subr.mxu0 0.0
    %2369 = vmatpush1.msra.mxu0 0.0
    %2370 = vmatprep.subr.mxu0 0.0
    %2371 = vmatpush1.msra.mxu0 0.0
    %2372 = vmatprep.subr.mxu0 0.0
    %2373 = vmatpush1.msra.mxu0 0.0
    %2374 = vmatprep.subr.mxu0 0.0
    %2375 = vmatpush1.msra.mxu0 0.0
    %2376 = vmatprep.subr.mxu0 0.0
    %2377 = vmatpush1.msra.mxu0 0.0
    %2378 = vmatprep.subr.mxu0 0.0
    %2379 = vmatpush1.msra.mxu0 0.0
    %2380 = vmatprep.subr.mxu0 0.0
    %2381 = vmatpush1.msra.mxu0 0.0
    %2382 = vmatprep.subr.mxu0 0.0
    %2383 = vmatpush1.msra.mxu0 0.0
    %2384 = vmatprep.mubr.f32.mxu0 %v2202
    %2385 = vmatmul.mubr.f32.gmra.mrb[0].mxu0 %v2011
    %v2386 = vpop.f32.mrb[0].mxu0
    %v2387 = vadd.f32 %v2286, %v2386
    %v2388 = vpop.f32.mrb[0].mxu0
    %v2389 = vadd.f32 %v2288, %v2388
    %2390 = vmatprep.mubr.f32.mxu0 %v2205
    %2391 = vmatmul.mubr.f32.gmra.mrb[0].mxu0 %v2015
    %v2392 = vpop.f32.mrb[0].mxu0
    %v2393 = vadd.f32 %v2292, %v2392
    %v2394 = vpop.f32.mrb[0].mxu0
    %v2395 = vadd.f32 %v2294, %v2394
    %2396 = vmatprep.mubr.f32.mxu0 %v2208
    %2397 = vmatmul.mubr.f32.gmra.mrb[0].mxu0 %v2019
    %v2398 = vpop.f32.mrb[0].mxu0
    %v2399 = vadd.f32 %v2298, %v2398
    %v2400 = vpop.f32.mrb[0].mxu0
    %v2401 = vadd.f32 %v2300, %v2400
    %2402 = vmatprep.mubr.f32.mxu0 %v2211
    %2403 = vmatmul.mubr.f32.gmra.mrb[0].mxu0 %v2023
    %v2404 = vpop.f32.mrb[0].mxu0
    %v2405 = vadd.f32 %v2304, %v2404
    %v2406 = vpop.f32.mrb[0].mxu0
    %v2407 = vadd.f32 %v2306, %v2406
    %2408 = vmatprep.mubr.f32.mxu0 %v2214
    %2409 = vmatmul.mubr.f32.gmra.mrb[0].mxu0 %v2027
    %v2410 = vpop.f32.mrb[0].mxu0
    %v2411 = vadd.f32 %v2310, %v2410
    %v2412 = vpop.f32.mrb[0].mxu0
    %v2413 = vadd.f32 %v2312, %v2412
    %2414 = vmatprep.mubr.f32.mxu0 %v2217
    %2415 = vmatmul.mubr.f32.gmra.mrb[0].mxu0 %v2031
    %v2416 = vpop.f32.mrb[0].mxu0
    %v2417 = vadd.f32 %v2316, %v2416
    %v2418 = vpop.f32.mrb[0].mxu0
    %v2419 = vadd.f32 %v2318, %v2418
    %2420 = vdwg.mxu0
    %2421 = vmatprep.subr.mxu0 0.0
    %2422 = vmatpush1.msra.mxu0 %v2035
    %2423 = vmatprep.subr.mxu0 0.0
    %2424 = vmatpush1.msra.mxu0 %v2038
    %2425 = vmatprep.subr.mxu0 0.0
    %2426 = vmatpush1.msra.mxu0 %v2041
    %2427 = vmatprep.subr.mxu0 0.0
    %2428 = vmatpush1.msra.mxu0 %v2044
    %2429 = vmatprep.subr.mxu0 0.0
    %2430 = vmatpush1.msra.mxu0 %v2047
    %2431 = vmatprep.subr.mxu0 0.0
    %2432 = vmatpush1.msra.mxu0 %v2050
    %2433 = vmatprep.subr.mxu0 0.0
    %2434 = vmatpush1.msra.mxu0 %v2053
    %2435 = vmatprep.subr.mxu0 0.0
    %2436 = vmatpush1.msra.mxu0 %v2056
    %2437 = vmatprep.subr.mxu0 0.0
    %2438 = vmatpush1.msra.mxu0 %v2059
    %2439 = vmatprep.subr.mxu0 0.0
    %2440 = vmatpush1.msra.mxu0 %v2062
    %2441 = vmatprep.subr.mxu0 0.0
    %2442 = vmatpush1.msra.mxu0 %v2065
    %2443 = vmatprep.subr.mxu0 0.0
    %2444 = vmatpush1.msra.mxu0 %v2068
    %2445 = vmatprep.subr.mxu0 0.0
    %2446 = vmatpush1.msra.mxu0 %v2071
    %2447 = vmatprep.subr.mxu0 0.0
    %2448 = vmatpush1.msra.mxu0 %v2074
    %2449 = vmatprep.subr.mxu0 0.0
    %2450 = vmatpush1.msra.mxu0 %v2077
    %2451 = vmatprep.subr.mxu0 0.0
    %2452 = vmatpush1.msra.mxu0 %v2080
    %2453 = vmatprep.subr.mxu0 0.0
    %2454 = vmatpush1.msra.mxu0 %v2083
    %2455 = vmatprep.subr.mxu0 0.0
    %2456 = vmatpush1.msra.mxu0 %v2086
    %2457 = vmatprep.subr.mxu0 0.0
    %2458 = vmatpush1.msra.mxu0 %v2089
    %2459 = vmatprep.subr.mxu0 0.0
    %2460 = vmatpush1.msra.mxu0 %v2092
    %2461 = vmatprep.subr.mxu0 0.0
    %2462 = vmatpush1.msra.mxu0 %v2095
    %2463 = vmatprep.subr.mxu0 0.0
    %2464 = vmatpush1.msra.mxu0 %v2098
    %2465 = vmatprep.subr.mxu0 0.0
    %2466 = vmatpush1.msra.mxu0 %v2101
    %2467 = vmatprep.subr.mxu0 0.0
    %2468 = vmatpush1.msra.mxu0 %v2104
    %2469 = vmatprep.subr.mxu0 0.0
    %2470 = vmatpush1.msra.mxu0 %v2107
    %2471 = vmatprep.subr.mxu0 0.0
    %2472 = vmatpush1.msra.mxu0 %v2110
    %2473 = vmatprep.subr.mxu0 0.0
    %2474 = vmatpush1.msra.mxu0 %v2113
    %2475 = vmatprep.subr.mxu0 0.0
    %2476 = vmatpush1.msra.mxu0 %v2116
    %2477 = vmatprep.subr.mxu0 0.0
    %2478 = vmatpush1.msra.mxu0 %v2119
    %2479 = vmatprep.subr.mxu0 0.0
    %2480 = vmatpush1.msra.mxu0 %v2122
    %2481 = vmatprep.subr.mxu0 0.0
    %2482 = vmatpush1.msra.mxu0 %v2125
    %2483 = vmatprep.subr.mxu0 0.0
    %2484 = vmatpush1.msra.mxu0 %v2128
    %2485 = vmatprep.mubr.f32.mxu0 %v2010
    %2486 = vmatmul.mubr.f32.gmra.mrb[0].mxu0 %v2009
    %v2487 = vpop.f32.mrb[0].mxu0
    %v2488 = vadd.f32 0.0, %v2487
    %v2489 = vpop.f32.mrb[0].mxu0
    %2490 = vmatprep.mubr.f32.mxu0 %v2014
    %2491 = vmatmul.mubr.f32.gmra.mrb[0].mxu0 %v2013
    %v2492 = vpop.f32.mrb[0].mxu0
    %v2493 = vadd.f32 0.0, %v2492
    %v2494 = vpop.f32.mrb[0].mxu0
    %2495 = vmatprep.mubr.f32.mxu0 %v2018
    %2496 = vmatmul.mubr.f32.gmra.mrb[0].mxu0 %v2017
    %v2497 = vpop.f32.mrb[0].mxu0
    %v2498 = vadd.f32 0.0, %v2497
    %v2499 = vpop.f32.mrb[0].mxu0
    %2500 = vmatprep.mubr.f32.mxu0 %v2022
    %2501 = vmatmul.mubr.f32.gmra.mrb[0].mxu0 %v2021
    %v2502 = vpop.f32.mrb[0].mxu0
    %v2503 = vadd.f32 0.0, %v2502
    %v2504 = vpop.f32.mrb[0].mxu0
    %2505 = vmatprep.mubr.f32.mxu0 %v2026
    %2506 = vmatmul.mubr.f32.gmra.mrb[0].mxu0 %v2025
    %v2507 = vpop.f32.mrb[0].mxu0
    %v2508 = vadd.f32 0.0, %v2507
    %v2509 = vpop.f32.mrb[0].mxu0
    %2510 = vmatprep.mubr.f32.mxu0 %v2030
    %2511 = vmatmul.mubr.f32.gmra.mrb[0].mxu0 %v2029
    %v2512 = vpop.f32.mrb[0].mxu0
    %v2513 = vadd.f32 0.0, %v2512
    %v2514 = vpop.f32.mrb[0].mxu0
    %2515 = vdwg.mxu0
    %2516 = vmatprep.subr.mxu0 0.0
    %2517 = vmatpush1.msra.mxu0 %v2131
    %2518 = vmatprep.subr.mxu0 0.0
    %2519 = vmatpush1.msra.mxu0 %v2134
    %2520 = vmatprep.subr.mxu0 0.0
    %2521 = vmatpush1.msra.mxu0 %v2137
    %2522 = vmatprep.subr.mxu0 0.0
    %2523 = vmatpush1.msra.mxu0 %v2140
    %2524 = vmatprep.subr.mxu0 0.0
    %2525 = vmatpush1.msra.mxu0 %v2143
    %2526 = vmatprep.subr.mxu0 0.0
    %2527 = vmatpush1.msra.mxu0 %v2146
    %2528 = vmatprep.subr.mxu0 0.0
    %2529 = vmatpush1.msra.mxu0 %v2149
    %2530 = vmatprep.subr.mxu0 0.0
    %2531 = vmatpush1.msra.mxu0 %v2152
    %2532 = vmatprep.subr.mxu0 0.0
    %2533 = vmatpush1.msra.mxu0 %v2155
    %2534 = vmatprep.subr.mxu0 0.0
    %2535 = vmatpush1.msra.mxu0 %v2158
    %2536 = vmatprep.subr.mxu0 0.0
    %2537 = vmatpush1.msra.mxu0 %v2161
    %2538 = vmatprep.subr.mxu0 0.0
    %2539 = vmatpush1.msra.mxu0 %v2164
    %2540 = vmatprep.subr.mxu0 0.0
    %2541 = vmatpush1.msra.mxu0 %v2167
    %2542 = vmatprep.subr.mxu0 0.0
    %2543 = vmatpush1.msra.mxu0 %v2170
    %2544 = vmatprep.subr.mxu0 0.0
    %2545 = vmatpush1.msra.mxu0 %v2173
    %2546 = vmatprep.subr.mxu0 0.0
    %2547 = vmatpush1.msra.mxu0 %v2176
    %2548 = vmatprep.subr.mxu0 0.0
    %2549 = vmatpush1.msra.mxu0 %v2179
    %2550 = vmatprep.subr.mxu0 0.0
    %2551 = vmatpush1.msra.mxu0 %v2182
    %2552 = vmatprep.subr.mxu0 0.0
    %2553 = vmatpush1.msra.mxu0 %v2185
    %2554 = vmatprep.subr.mxu0 0.0
    %2555 = vmatpush1.msra.mxu0 %v2188
    %2556 = vmatprep.subr.mxu0 0.0
    %2557 = vmatpush1.msra.mxu0 %v2191
    %2558 = vmatprep.subr.mxu0 0.0
    %2559 = vmatpush1.msra.mxu0 %v2194
    %2560 = vmatprep.subr.mxu0 0.0
    %2561 = vmatpush1.msra.mxu0 %v2197
    %2562 = vmatprep.subr.mxu0 0.0
    %2563 = vmatpush1.msra.mxu0 %v2200
    %2564 = vmatprep.subr.mxu0 0.0
    %2565 = vmatpush1.msra.mxu0 0.0
    %2566 = vmatprep.subr.mxu0 0.0
    %2567 = vmatpush1.msra.mxu0 0.0
    %2568 = vmatprep.subr.mxu0 0.0
    %2569 = vmatpush1.msra.mxu0 0.0
    %2570 = vmatprep.subr.mxu0 0.0
    %2571 = vmatpush1.msra.mxu0 0.0
    %2572 = vmatprep.subr.mxu0 0.0
    %2573 = vmatpush1.msra.mxu0 0.0
    %2574 = vmatprep.subr.mxu0 0.0
    %2575 = vmatpush1.msra.mxu0 0.0
    %2576 = vmatprep.subr.mxu0 0.0
    %2577 = vmatpush1.msra.mxu0 0.0
    %2578 = vmatprep.subr.mxu0 0.0
    %2579 = vmatpush1.msra.mxu0 0.0
    %2580 = vmatprep.mubr.f32.mxu0 %v2202
    %2581 = vmatmul.mubr.f32.gmra.mrb[0].mxu0 %v2011
    %v2582 = vpop.f32.mrb[0].mxu0
    %v2583 = vadd.f32 %v2488, %v2582
    %v2584 = vpop.f32.mrb[0].mxu0
    %2585 = vmatprep.mubr.f32.mxu0 %v2205
    %2586 = vmatmul.mubr.f32.gmra.mrb[0].mxu0 %v2015
    %v2587 = vpop.f32.mrb[0].mxu0
    %v2588 = vadd.f32 %v2493, %v2587
    %v2589 = vpop.f32.mrb[0].mxu0
    %2590 = vmatprep.mubr.f32.mxu0 %v2208
    %2591 = vmatmul.mubr.f32.gmra.mrb[0].mxu0 %v2019
    %v2592 = vpop.f32.mrb[0].mxu0
    %v2593 = vadd.f32 %v2498, %v2592
    %v2594 = vpop.f32.mrb[0].mxu0
    %2595 = vmatprep.mubr.f32.mxu0 %v2211
    %2596 = vmatmul.mubr.f32.gmra.mrb[0].mxu0 %v2023
    %v2597 = vpop.f32.mrb[0].mxu0
    %v2598 = vadd.f32 %v2503, %v2597
    %v2599 = vpop.f32.mrb[0].mxu0
    %2600 = vmatprep.mubr.f32.mxu0 %v2214
    %2601 = vmatmul.mubr.f32.gmra.mrb[0].mxu0 %v2027
    %v2602 = vpop.f32.mrb[0].mxu0
    %v2603 = vadd.f32 %v2508, %v2602
    %v2604 = vpop.f32.mrb[0].mxu0
    %2605 = vmatprep.mubr.f32.mxu0 %v2217
    %2606 = vmatmul.mubr.f32.gmra.mrb[0].mxu0 %v2031
    %v2607 = vpop.f32.mrb[0].mxu0
    %v2608 = vadd.f32 %v2513, %v2607
    %v2609 = vpop.f32.mrb[0].mxu0
    %2610 = vdwg.mxu0
    %v2611 = vld [vmem:[%s9] sm:$0xff]
    %v2612 = vld [vmem:[%s9 + $0x8] sm:$0xff]
    %v2613 = vld [vmem:[%s9 + $0x10] sm:$0xff]
    %v2614 = vld [vmem:[%s9 + $0x18] sm:$0xff]
    %v2615 = vld [vmem:[%s9 + $0x20] sm:$0xff]
    %v2616 = vld [vmem:[%s9 + $0x28] sm:$0xff]
    %v2617 = vld [vmem:[%s9 + $0x30] sm:$0xff]
    %v2618 = vld [vmem:[%s9 + $0x38] sm:$0xff]
    %v2619 = vld [vmem:[%s9 + $0x40] sm:$0xff]
    %v2620 = vld [vmem:[%s9 + $0x48] sm:$0xff]
    %v2621 = vld [vmem:[%s9 + $0x50] sm:$0xff]
    %v2622 = vld [vmem:[%s9 + $0x58] sm:$0xff]
    %v2623 = vld [vmem:[%s9 + $0x60] sm:$0xff]
    %v2624 = vld [vmem:[%s9 + $0x68] sm:$0xff]
    %v2625 = vld [vmem:[%s9 + $0x70] sm:$0xff]
    %v2626 = vld [vmem:[%s9 + $0x78] sm:$0xff]
    %v2627 = vld [vmem:[%s9 + $0x80] sm:$0xff]
    %v2628 = vld [vmem:[%s9 + $0x88] sm:$0xff]
    %v2629 = vld [vmem:[%s9 + $0x90] sm:$0xff]
    %v2630 = vld [vmem:[%s9 + $0x98] sm:$0xff]
    %v2631 = vld [vmem:[%s9 + $0xa0] sm:$0xff]
    %v2632 = vld [vmem:[%s9 + $0xa8] sm:$0xff]
    %v2633 = vld [vmem:[%s9 + $0xb0] sm:$0xff]
    %v2634 = vld [vmem:[%s9 + $0xb8] sm:$0xff]
    %v2635 = vld [vmem:[%s9 + $0xc0] sm:$0xff]
    %v2636 = vld [vmem:[%s9 + $0xc8] sm:$0xff]
    %v2637 = vld [vmem:[%s9 + $0xd0] sm:$0xff]
    %v2638 = vld [vmem:[%s9 + $0xd8] sm:$0xff]
    %v2639 = vld [vmem:[%s9 + $0xe0] sm:$0xff]
    %v2640 = vld [vmem:[%s9 + $0xe8] sm:$0xff]
    %v2641 = vld [vmem:[%s9 + $0xf0] sm:$0xff]
    %v2642 = vld [vmem:[%s9 + $0xf8] sm:$0xff]
    %v2643 = vld [vmem:[%s9 + $0x100] sm:$0xff]
    %v2644 = vld [vmem:[%s9 + $0x108] sm:$0xff]
    %v2645 = vld [vmem:[%s9 + $0x110] sm:$0xff]
    %v2646 = vld [vmem:[%s9 + $0x118] sm:$0xff]
    %v2647 = vld [vmem:[%s9 + $0x120] sm:$0xff]
    %v2648 = vld [vmem:[%s9 + $0x128] sm:$0xff]
    %v2649 = vld [vmem:[%s9 + $0x130] sm:$0xff]
    %v2650 = vld [vmem:[%s9 + $0x138] sm:$0xff]
    %v2651 = vld [vmem:[%s9 + $0x140] sm:$0xff]
    %v2652 = vld [vmem:[%s9 + $0x148] sm:$0xff]
    %v2653 = vld [vmem:[%s9 + $0x150] sm:$0xff]
    %v2654 = vld [vmem:[%s9 + $0x158] sm:$0xff]
    %v2655 = vld [vmem:[%s9 + $0x160] sm:$0xff]
    %v2656 = vld [vmem:[%s9 + $0x168] sm:$0xff]
    %v2657 = vld [vmem:[%s9 + $0x170] sm:$0xff]
    %v2658 = vld [vmem:[%s9 + $0x178] sm:$0xff]
    %v2659 = vld [vmem:[%s9 + $0x180] sm:$0xff]
    %v2660 = vld [vmem:[%s9 + $0x188] sm:$0xff]
    %v2661 = vld [vmem:[%s9 + $0x190] sm:$0xff]
    %v2662 = vld [vmem:[%s9 + $0x198] sm:$0xff]
    %v2663 = vld [vmem:[%s9 + $0x1a0] sm:$0xff]
    %v2664 = vld [vmem:[%s9 + $0x1a8] sm:$0xff]
    %v2665 = vld [vmem:[%s9 + $0x1b0] sm:$0xff]
    %v2666 = vld [vmem:[%s9 + $0x1b8] sm:$0xff]
    %v2667 = vld [vmem:[%s9 + $0x1c0] sm:$0xff]
    %v2668 = vld [vmem:[%s9 + $0x1c8] sm:$0xff]
    %v2669 = vld [vmem:[%s9 + $0x1d0] sm:$0xff]
    %v2670 = vld [vmem:[%s9 + $0x1d8] sm:$0xff]
    %v2671 = vld [vmem:[%s9 + $0x1e0] sm:$0xff]
    %v2672 = vld [vmem:[%s9 + $0x1e8] sm:$0xff]
    %v2673 = vld [vmem:[%s9 + $0x1f0] sm:$0xff]
    %v2674 = vld [vmem:[%s9 + $0x1f8] sm:$0xff]
    %v2675 = vld [vmem:[%s9 + $0x200] sm:$0xff]
    %v2676 = vld [vmem:[%s9 + $0x208] sm:$0xff]
    %v2677 = vld [vmem:[%s9 + $0x210] sm:$0xff]
    %v2678 = vld [vmem:[%s9 + $0x218] sm:$0xff]
    %v2679 = vld [vmem:[%s9 + $0x220] sm:$0xff]
    %v2680 = vld [vmem:[%s9 + $0x228] sm:$0xff]
    %v2681 = vld [vmem:[%s9 + $0x230] sm:$0xff]
    %v2682 = vld [vmem:[%s9 + $0x238] sm:$0xff]
    %v2683 = vld [vmem:[%s9 + $0x240] sm:$0xff]
    %v2684 = vld [vmem:[%s9 + $0x248] sm:$0xff]
    %v2685 = vld [vmem:[%s9 + $0x250] sm:$0xff]
    %v2686 = vld [vmem:[%s9 + $0x258] sm:$0xff]
    %v2687 = vld [vmem:[%s9 + $0x260] sm:$0xff]
    %v2688 = vld [vmem:[%s9 + $0x268] sm:$0xff]
    %v2689 = vld [vmem:[%s9 + $0x270] sm:$0xff]
    %v2690 = vld [vmem:[%s9 + $0x278] sm:$0xff]
    %v2691 = vld [vmem:[%s9 + $0x280] sm:$0xff]
    %v2692 = vld [vmem:[%s9 + $0x288] sm:$0xff]
    %v2693 = vld [vmem:[%s9 + $0x290] sm:$0xff]
    %v2694 = vld [vmem:[%s9 + $0x298] sm:$0xff]
    %v2695 = vld [vmem:[%s9 + $0x2a0] sm:$0xff]
    %v2696 = vld [vmem:[%s9 + $0x2a8] sm:$0xff]
    %v2697 = vld [vmem:[%s9 + $0x2b0] sm:$0xff]
    %v2698 = vld [vmem:[%s9 + $0x2b8] sm:$0xff]
    %v2699 = vld [vmem:[%s9 + $0x2c0] sm:$0xff]
    %v2700 = vld [vmem:[%s9 + $0x2c8] sm:$0xff]
    %v2701 = vld [vmem:[%s9 + $0x2d0] sm:$0xff]
    %v2702 = vld [vmem:[%s9 + $0x2d8] sm:$0xff]
    %v2703 = vld [vmem:[%s9 + $0x2e0] sm:$0xff]
    %v2704 = vld [vmem:[%s9 + $0x2e8] sm:$0xff]
    %v2705 = vld [vmem:[%s9 + $0x2f0] sm:$0xff]
    %v2706 = vld [vmem:[%s9 + $0x2f8] sm:$0xff]
    %v2707 = vld [vmem:[%s9 + $0x300] sm:$0xff]
    %v2708 = vld [vmem:[%s9 + $0x308] sm:$0xff]
    %v2709 = vld [vmem:[%s9 + $0x310] sm:$0xff]
    %v2710 = vld [vmem:[%s9 + $0x318] sm:$0xff]
    %v2711 = vld [vmem:[%s9 + $0x320] sm:$0xff]
    %v2712 = vld [vmem:[%s9 + $0x328] sm:$0xff]
    %v2713 = vld [vmem:[%s9 + $0x330] sm:$0xff]
    %v2714 = vld [vmem:[%s9 + $0x338] sm:$0xff]
    %v2715 = vld [vmem:[%s9 + $0x340] sm:$0xff]
    %v2716 = vld [vmem:[%s9 + $0x348] sm:$0xff]
    %v2717 = vld [vmem:[%s9 + $0x350] sm:$0xff]
    %v2718 = vld [vmem:[%s9 + $0x358] sm:$0xff]
    %v2719 = vld [vmem:[%s9 + $0x360] sm:$0xff]
    %v2720 = vld [vmem:[%s9 + $0x368] sm:$0xff]
    %v2721 = vld [vmem:[%s9 + $0x370] sm:$0xff]
    %v2722 = vld [vmem:[%s9 + $0x378] sm:$0xff]
    %v2723 = vld [vmem:[%s9 + $0x380] sm:$0xff]
    %v2724 = vld [vmem:[%s9 + $0x388] sm:$0xff]
    %v2725 = vld [vmem:[%s9 + $0x390] sm:$0xff]
    %v2726 = vld [vmem:[%s9 + $0x398] sm:$0xff]
    %v2727 = vld [vmem:[%s9 + $0x3a0] sm:$0xff]
    %v2728 = vld [vmem:[%s9 + $0x3a8] sm:$0xff]
    %v2729 = vld [vmem:[%s9 + $0x3b0] sm:$0xff]
    %v2730 = vld [vmem:[%s9 + $0x3b8] sm:$0xff]
    %v2731 = vld [vmem:[%s9 + $0x3c0] sm:$0xff]
    %v2732 = vld [vmem:[%s9 + $0x3c8] sm:$0xff]
    %v2733 = vld [vmem:[%s9 + $0x3d0] sm:$0xff]
    %v2734 = vld [vmem:[%s9 + $0x3d8] sm:$0xff]
    %v2735 = vld [vmem:[%s9 + $0x3e0] sm:$0xff]
    %v2736 = vld [vmem:[%s9 + $0x3e8] sm:$0xff]
    %v2737 = vld [vmem:[%s9 + $0x3f0] sm:$0xff]
    %v2738 = vld [vmem:[%s9 + $0x3f8] sm:$0xff]
    %v2739 = vld [vmem:[%s9 + $0x400] sm:$0xff]
    %v2740 = vld [vmem:[%s9 + $0x408] sm:$0xff]
    %v2741 = vld [vmem:[%s9 + $0x410] sm:$0xff]
    %v2742 = vld [vmem:[%s9 + $0x418] sm:$0xff]
    %v2743 = vld [vmem:[%s9 + $0x420] sm:$0xff]
    %v2744 = vld [vmem:[%s9 + $0x428] sm:$0xff]
    %v2745 = vld [vmem:[%s9 + $0x430] sm:$0xff]
    %v2746 = vld [vmem:[%s9 + $0x438] sm:$0xff]
    %v2747 = vld [vmem:[%s9 + $0x440] sm:$0xff]
    %v2748 = vld [vmem:[%s9 + $0x448] sm:$0xff]
    %v2749 = vld [vmem:[%s9 + $0x450] sm:$0xff]
    %v2750 = vld [vmem:[%s9 + $0x458] sm:$0xff]
    %v2751 = vld [vmem:[%s9 + $0x460] sm:$0xff]
    %v2752 = vld [vmem:[%s9 + $0x468] sm:$0xff]
    %v2753 = vld [vmem:[%s9 + $0x470] sm:$0xff]
    %v2754 = vld [vmem:[%s9 + $0x478] sm:$0xff]
    %v2755 = vld [vmem:[%s9 + $0x480] sm:$0xff]
    %v2756 = vld [vmem:[%s9 + $0x488] sm:$0xff]
    %v2757 = vld [vmem:[%s9 + $0x490] sm:$0xff]
    %v2758 = vld [vmem:[%s9 + $0x498] sm:$0xff]
    %v2759 = vld [vmem:[%s9 + $0x4a0] sm:$0xff]
    %v2760 = vld [vmem:[%s9 + $0x4a8] sm:$0xff]
    %v2761 = vld [vmem:[%s9 + $0x4b0] sm:$0xff]
    %v2762 = vld [vmem:[%s9 + $0x4b8] sm:$0xff]
    %v2763 = vld [vmem:[%s9 + $0x4c0] sm:$0xff]
    %v2764 = vld [vmem:[%s9 + $0x4c8] sm:$0xff]
    %v2765 = vld [vmem:[%s9 + $0x4d0] sm:$0xff]
    %v2766 = vld [vmem:[%s9 + $0x4d8] sm:$0xff]
    %v2767 = vld [vmem:[%s9 + $0x4e0] sm:$0xff]
    %v2768 = vld [vmem:[%s9 + $0x4e8] sm:$0xff]
    %v2769 = vld [vmem:[%s9 + $0x4f0] sm:$0xff]
    %v2770 = vld [vmem:[%s9 + $0x4f8] sm:$0xff]
    %v2771 = vld [vmem:[%s9 + $0x500] sm:$0xff]
    %v2772 = vld [vmem:[%s9 + $0x508] sm:$0xff]
    %v2773 = vld [vmem:[%s9 + $0x510] sm:$0xff]
    %v2774 = vld [vmem:[%s9 + $0x518] sm:$0xff]
    %v2775 = vld [vmem:[%s9 + $0x520] sm:$0xff]
    %v2776 = vld [vmem:[%s9 + $0x528] sm:$0xff]
    %v2777 = vld [vmem:[%s9 + $0x530] sm:$0xff]
    %v2778 = vld [vmem:[%s9 + $0x538] sm:$0xff]
    %2779 = vmatprep.subr.mxu0 %v2612
    %2780 = vmatpush1.msra.mxu0 %v2611
    %2781 = vmatprep.subr.mxu0 %v2615
    %2782 = vmatpush1.msra.mxu0 %v2614
    %2783 = vmatprep.subr.mxu0 %v2618
    %2784 = vmatpush1.msra.mxu0 %v2617
    %2785 = vmatprep.subr.mxu0 %v2621
    %2786 = vmatpush1.msra.mxu0 %v2620
    %2787 = vmatprep.subr.mxu0 %v2624
    %2788 = vmatpush1.msra.mxu0 %v2623
    %2789 = vmatprep.subr.mxu0 %v2627
    %2790 = vmatpush1.msra.mxu0 %v2626
    %2791 = vmatprep.subr.mxu0 %v2630
    %2792 = vmatpush1.msra.mxu0 %v2629
    %2793 = vmatprep.subr.mxu0 %v2633
    %2794 = vmatpush1.msra.mxu0 %v2632
    %2795 = vmatprep.subr.mxu0 %v2636
    %2796 = vmatpush1.msra.mxu0 %v2635
    %2797 = vmatprep.subr.mxu0 %v2639
    %2798 = vmatpush1.msra.mxu0 %v2638
    %2799 = vmatprep.subr.mxu0 %v2642
    %2800 = vmatpush1.msra.mxu0 %v2641
    %2801 = vmatprep.subr.mxu0 %v2645
    %2802 = vmatpush1.msra.mxu0 %v2644
    %2803 = vmatprep.subr.mxu0 %v2648
    %2804 = vmatpush1.msra.mxu0 %v2647
    %2805 = vmatprep.subr.mxu0 %v2651
    %2806 = vmatpush1.msra.mxu0 %v2650
    %2807 = vmatprep.subr.mxu0 %v2654
    %2808 = vmatpush1.msra.mxu0 %v2653
    %2809 = vmatprep.subr.mxu0 %v2657
    %2810 = vmatpush1.msra.mxu0 %v2656
    %2811 = vmatprep.subr.mxu0 %v2660
    %2812 = vmatpush1.msra.mxu0 %v2659
    %2813 = vmatprep.subr.mxu0 %v2663
    %2814 = vmatpush1.msra.mxu0 %v2662
    %2815 = vmatprep.subr.mxu0 %v2666
    %2816 = vmatpush1.msra.mxu0 %v2665
    %2817 = vmatprep.subr.mxu0 %v2669
    %2818 = vmatpush1.msra.mxu0 %v2668
    %2819 = vmatprep.subr.mxu0 %v2672
    %2820 = vmatpush1.msra.mxu0 %v2671
    %2821 = vmatprep.subr.mxu0 %v2675
    %2822 = vmatpush1.msra.mxu0 %v2674
    %2823 = vmatprep.subr.mxu0 %v2678
    %2824 = vmatpush1.msra.mxu0 %v2677
    %2825 = vmatprep.subr.mxu0 %v2681
    %2826 = vmatpush1.msra.mxu0 %v2680
    %2827 = vmatprep.subr.mxu0 %v2684
    %2828 = vmatpush1.msra.mxu0 %v2683
    %2829 = vmatprep.subr.mxu0 %v2687
    %2830 = vmatpush1.msra.mxu0 %v2686
    %2831 = vmatprep.subr.mxu0 %v2690
    %2832 = vmatpush1.msra.mxu0 %v2689
    %2833 = vmatprep.subr.mxu0 %v2693
    %2834 = vmatpush1.msra.mxu0 %v2692
    %2835 = vmatprep.subr.mxu0 %v2696
    %2836 = vmatpush1.msra.mxu0 %v2695
    %2837 = vmatprep.subr.mxu0 %v2699
    %2838 = vmatpush1.msra.mxu0 %v2698
    %2839 = vmatprep.subr.mxu0 %v2702
    %2840 = vmatpush1.msra.mxu0 %v2701
    %2841 = vmatprep.subr.mxu0 %v2705
    %2842 = vmatpush1.msra.mxu0 %v2704
    %2843 = vmatprep.mubr.f32.mxu0 %v2010
    %2844 = vmatmul.mubr.f32.gmra.mrb[0].mxu0 %v2009
    %v2845 = vpop.f32.mrb[0].mxu0
    %v2846 = vadd.f32 0.0, %v2845
    %v2847 = vpop.f32.mrb[0].mxu0
    %v2848 = vadd.f32 0.0, %v2847
    %2849 = vmatprep.mubr.f32.mxu0 %v2014
    %2850 = vmatmul.mubr.f32.gmra.mrb[0].mxu0 %v2013
    %v2851 = vpop.f32.mrb[0].mxu0
    %v2852 = vadd.f32 0.0, %v2851
    %v2853 = vpop.f32.mrb[0].mxu0
    %v2854 = vadd.f32 0.0, %v2853
    %2855 = vmatprep.mubr.f32.mxu0 %v2018
    %2856 = vmatmul.mubr.f32.gmra.mrb[0].mxu0 %v2017
    %v2857 = vpop.f32.mrb[0].mxu0
    %v2858 = vadd.f32 0.0, %v2857
    %v2859 = vpop.f32.mrb[0].mxu0
    %v2860 = vadd.f32 0.0, %v2859
    %2861 = vmatprep.mubr.f32.mxu0 %v2022
    %2862 = vmatmul.mubr.f32.gmra.mrb[0].mxu0 %v2021
    %v2863 = vpop.f32.mrb[0].mxu0
    %v2864 = vadd.f32 0.0, %v2863
    %v2865 = vpop.f32.mrb[0].mxu0
    %v2866 = vadd.f32 0.0, %v2865
    %2867 = vmatprep.mubr.f32.mxu0 %v2026
    %2868 = vmatmul.mubr.f32.gmra.mrb[0].mxu0 %v2025
    %v2869 = vpop.f32.mrb[0].mxu0
    %v2870 = vadd.f32 0.0, %v2869
    %v2871 = vpop.f32.mrb[0].mxu0
    %v2872 = vadd.f32 0.0, %v2871
    %2873 = vmatprep.mubr.f32.mxu0 %v2030
    %2874 = vmatmul.mubr.f32.gmra.mrb[0].mxu0 %v2029
    %v2875 = vpop.f32.mrb[0].mxu0
    %v2876 = vadd.f32 0.0, %v2875
    %v2877 = vpop.f32.mrb[0].mxu0
    %v2878 = vadd.f32 0.0, %v2877
    %2879 = vdwg.mxu0
    %2880 = vmatprep.subr.mxu0 %v2708
    %2881 = vmatpush1.msra.mxu0 %v2707
    %2882 = vmatprep.subr.mxu0 %v2711
    %2883 = vmatpush1.msra.mxu0 %v2710
    %2884 = vmatprep.subr.mxu0 %v2714
    %2885 = vmatpush1.msra.mxu0 %v2713
    %2886 = vmatprep.subr.mxu0 %v2717
    %2887 = vmatpush1.msra.mxu0 %v2716
    %2888 = vmatprep.subr.mxu0 %v2720
    %2889 = vmatpush1.msra.mxu0 %v2719
    %2890 = vmatprep.subr.mxu0 %v2723
    %2891 = vmatpush1.msra.mxu0 %v2722
    %2892 = vmatprep.subr.mxu0 %v2726
    %2893 = vmatpush1.msra.mxu0 %v2725
    %2894 = vmatprep.subr.mxu0 %v2729
    %2895 = vmatpush1.msra.mxu0 %v2728
    %2896 = vmatprep.subr.mxu0 %v2732
    %2897 = vmatpush1.msra.mxu0 %v2731
    %2898 = vmatprep.subr.mxu0 %v2735
    %2899 = vmatpush1.msra.mxu0 %v2734
    %2900 = vmatprep.subr.mxu0 %v2738
    %2901 = vmatpush1.msra.mxu0 %v2737
    %2902 = vmatprep.subr.mxu0 %v2741
    %2903 = vmatpush1.msra.mxu0 %v2740
    %2904 = vmatprep.subr.mxu0 %v2744
    %2905 = vmatpush1.msra.mxu0 %v2743
    %2906 = vmatprep.subr.mxu0 %v2747
    %2907 = vmatpush1.msra.mxu0 %v2746
    %2908 = vmatprep.subr.mxu0 %v2750
    %2909 = vmatpush1.msra.mxu0 %v2749
    %2910 = vmatprep.subr.mxu0 %v2753
    %2911 = vmatpush1.msra.mxu0 %v2752
    %2912 = vmatprep.subr.mxu0 %v2756
    %2913 = vmatpush1.msra.mxu0 %v2755
    %2914 = vmatprep.subr.mxu0 %v2759
    %2915 = vmatpush1.msra.mxu0 %v2758
    %2916 = vmatprep.subr.mxu0 %v2762
    %2917 = vmatpush1.msra.mxu0 %v2761
    %2918 = vmatprep.subr.mxu0 %v2765
    %2919 = vmatpush1.msra.mxu0 %v2764
    %2920 = vmatprep.subr.mxu0 %v2768
    %2921 = vmatpush1.msra.mxu0 %v2767
    %2922 = vmatprep.subr.mxu0 %v2771
    %2923 = vmatpush1.msra.mxu0 %v2770
    %2924 = vmatprep.subr.mxu0 %v2774
    %2925 = vmatpush1.msra.mxu0 %v2773
    %2926 = vmatprep.subr.mxu0 %v2777
    %2927 = vmatpush1.msra.mxu0 %v2776
    %2928 = vmatprep.subr.mxu0 0.0
    %2929 = vmatpush1.msra.mxu0 0.0
    %2930 = vmatprep.subr.mxu0 0.0
    %2931 = vmatpush1.msra.mxu0 0.0
    %2932 = vmatprep.subr.mxu0 0.0
    %2933 = vmatpush1.msra.mxu0 0.0
    %2934 = vmatprep.subr.mxu0 0.0
    %2935 = vmatpush1.msra.mxu0 0.0
    %2936 = vmatprep.subr.mxu0 0.0
    %2937 = vmatpush1.msra.mxu0 0.0
    %2938 = vmatprep.subr.mxu0 0.0
    %2939 = vmatpush1.msra.mxu0 0.0
    %2940 = vmatprep.subr.mxu0 0.0
    %2941 = vmatpush1.msra.mxu0 0.0
    %2942 = vmatprep.subr.mxu0 0.0
    %2943 = vmatpush1.msra.mxu0 0.0
    %2944 = vmatprep.mubr.f32.mxu0 %v2202
    %2945 = vmatmul.mubr.f32.gmra.mrb[0].mxu0 %v2011
    %v2946 = vpop.f32.mrb[0].mxu0
    %v2947 = vadd.f32 %v2846, %v2946
    %v2948 = vpop.f32.mrb[0].mxu0
    %v2949 = vadd.f32 %v2848, %v2948
    %2950 = vmatprep.mubr.f32.mxu0 %v2205
    %2951 = vmatmul.mubr.f32.gmra.mrb[0].mxu0 %v2015
    %v2952 = vpop.f32.mrb[0].mxu0
    %v2953 = vadd.f32 %v2852, %v2952
    %v2954 = vpop.f32.mrb[0].mxu0
    %v2955 = vadd.f32 %v2854, %v2954
    %2956 = vmatprep.mubr.f32.mxu0 %v2208
    %2957 = vmatmul.mubr.f32.gmra.mrb[0].mxu0 %v2019
    %v2958 = vpop.f32.mrb[0].mxu0
    %v2959 = vadd.f32 %v2858, %v2958
    %v2960 = vpop.f32.mrb[0].mxu0
    %v2961 = vadd.f32 %v2860, %v2960
    %2962 = vmatprep.mubr.f32.mxu0 %v2211
    %2963 = vmatmul.mubr.f32.gmra.mrb[0].mxu0 %v2023
    %v2964 = vpop.f32.mrb[0].mxu0
    %v2965 = vadd.f32 %v2864, %v2964
    %v2966 = vpop.f32.mrb[0].mxu0
    %v2967 = vadd.f32 %v2866, %v2966
    %2968 = vmatprep.mubr.f32.mxu0 %v2214
    %2969 = vmatmul.mubr.f32.gmra.mrb[0].mxu0 %v2027
    %v2970 = vpop.f32.mrb[0].mxu0
    %v2971 = vadd.f32 %v2870, %v2970
    %v2972 = vpop.f32.mrb[0].mxu0
    %v2973 = vadd.f32 %v2872, %v2972
    %2974 = vmatprep.mubr.f32.mxu0 %v2217
    %2975 = vmatmul.mubr.f32.gmra.mrb[0].mxu0 %v2031
    %v2976 = vpop.f32.mrb[0].mxu0
    %v2977 = vadd.f32 %v2876, %v2976
    %v2978 = vpop.f32.mrb[0].mxu0
    %v2979 = vadd.f32 %v2878, %v2978
    %2980 = vdwg.mxu0
    %2981 = vmatprep.subr.mxu0 0.0
    %2982 = vmatpush1.msra.mxu0 %v2613
    %2983 = vmatprep.subr.mxu0 0.0
    %2984 = vmatpush1.msra.mxu0 %v2616
    %2985 = vmatprep.subr.mxu0 0.0
    %2986 = vmatpush1.msra.mxu0 %v2619
    %2987 = vmatprep.subr.mxu0 0.0
    %2988 = vmatpush1.msra.mxu0 %v2622
    %2989 = vmatprep.subr.mxu0 0.0
    %2990 = vmatpush1.msra.mxu0 %v2625
    %2991 = vmatprep.subr.mxu0 0.0
    %2992 = vmatpush1.msra.mxu0 %v2628
    %2993 = vmatprep.subr.mxu0 0.0
    %2994 = vmatpush1.msra.mxu0 %v2631
    %2995 = vmatprep.subr.mxu0 0.0
    %2996 = vmatpush1.msra.mxu0 %v2634
    %2997 = vmatprep.subr.mxu0 0.0
    %2998 = vmatpush1.msra.mxu0 %v2637
    %2999 = vmatprep.subr.mxu0 0.0
    %3000 = vmatpush1.msra.mxu0 %v2640
    %3001 = vmatprep.subr.mxu0 0.0
    %3002 = vmatpush1.msra.mxu0 %v2643
    %3003 = vmatprep.subr.mxu0 0.0
    %3004 = vmatpush1.msra.mxu0 %v2646
    %3005 = vmatprep.subr.mxu0 0.0
    %3006 = vmatpush1.msra.mxu0 %v2649
    %3007 = vmatprep.subr.mxu0 0.0
    %3008 = vmatpush1.msra.mxu0 %v2652
    %3009 = vmatprep.subr.mxu0 0.0
    %3010 = vmatpush1.msra.mxu0 %v2655
    %3011 = vmatprep.subr.mxu0 0.0
    %3012 = vmatpush1.msra.mxu0 %v2658
    %3013 = vmatprep.subr.mxu0 0.0
    %3014 = vmatpush1.msra.mxu0 %v2661
    %3015 = vmatprep.subr.mxu0 0.0
    %3016 = vmatpush1.msra.mxu0 %v2664
    %3017 = vmatprep.subr.mxu0 0.0
    %3018 = vmatpush1.msra.mxu0 %v2667
    %3019 = vmatprep.subr.mxu0 0.0
    %3020 = vmatpush1.msra.mxu0 %v2670
    %3021 = vmatprep.subr.mxu0 0.0
    %3022 = vmatpush1.msra.mxu0 %v2673
    %3023 = vmatprep.subr.mxu0 0.0
    %3024 = vmatpush1.msra.mxu0 %v2676
    %3025 = vmatprep.subr.mxu0 0.0
    %3026 = vmatpush1.msra.mxu0 %v2679
    %3027 = vmatprep.subr.mxu0 0.0
    %3028 = vmatpush1.msra.mxu0 %v2682
    %3029 = vmatprep.subr.mxu0 0.0
    %3030 = vmatpush1.msra.mxu0 %v2685
    %3031 = vmatprep.subr.mxu0 0.0
    %3032 = vmatpush1.msra.mxu0 %v2688
    %3033 = vmatprep.subr.mxu0 0.0
    %3034 = vmatpush1.msra.mxu0 %v2691
    %3035 = vmatprep.subr.mxu0 0.0
    %3036 = vmatpush1.msra.mxu0 %v2694
    %3037 = vmatprep.subr.mxu0 0.0
    %3038 = vmatpush1.msra.mxu0 %v2697
    %3039 = vmatprep.subr.mxu0 0.0
    %3040 = vmatpush1.msra.mxu0 %v2700
    %3041 = vmatprep.subr.mxu0 0.0
    %3042 = vmatpush1.msra.mxu0 %v2703
    %3043 = vmatprep.subr.mxu0 0.0
    %3044 = vmatpush1.msra.mxu0 %v2706
    %3045 = vmatprep.mubr.f32.mxu0 %v2010
    %3046 = vmatmul.mubr.f32.gmra.mrb[0].mxu0 %v2009
    %v3047 = vpop.f32.mrb[0].mxu0
    %v3048 = vadd.f32 0.0, %v3047
    %v3049 = vpop.f32.mrb[0].mxu0
    %3050 = vmatprep.mubr.f32.mxu0 %v2014
    %3051 = vmatmul.mubr.f32.gmra.mrb[0].mxu0 %v2013
    %v3052 = vpop.f32.mrb[0].mxu0
    %v3053 = vadd.f32 0.0, %v3052
    %v3054 = vpop.f32.mrb[0].mxu0
    %3055 = vmatprep.mubr.f32.mxu0 %v2018
    %3056 = vmatmul.mubr.f32.gmra.mrb[0].mxu0 %v2017
    %v3057 = vpop.f32.mrb[0].mxu0
    %v3058 = vadd.f32 0.0, %v3057
    %v3059 = vpop.f32.mrb[0].mxu0
    %3060 = vmatprep.mubr.f32.mxu0 %v2022
    %3061 = vmatmul.mubr.f32.gmra.mrb[0].mxu0 %v2021
    %v3062 = vpop.f32.mrb[0].mxu0
    %v3063 = vadd.f32 0.0, %v3062
    %v3064 = vpop.f32.mrb[0].mxu0
    %3065 = vmatprep.mubr.f32.mxu0 %v2026
    %3066 = vmatmul.mubr.f32.gmra.mrb[0].mxu0 %v2025
    %v3067 = vpop.f32.mrb[0].mxu0
    %v3068 = vadd.f32 0.0, %v3067
    %v3069 = vpop.f32.mrb[0].mxu0
    %3070 = vmatprep.mubr.f32.mxu0 %v2030
    %3071 = vmatmul.mubr.f32.gmra.mrb[0].mxu0 %v2029
    %v3072 = vpop.f32.mrb[0].mxu0
    %v3073 = vadd.f32 0.0, %v3072
    %v3074 = vpop.f32.mrb[0].mxu0
    %3075 = vdwg.mxu0
    %3076 = vmatprep.subr.mxu0 0.0
    %3077 = vmatpush1.msra.mxu0 %v2709
    %3078 = vmatprep.subr.mxu0 0.0
    %3079 = vmatpush1.msra.mxu0 %v2712
    %3080 = vmatprep.subr.mxu0 0.0
    %3081 = vmatpush1.msra.mxu0 %v2715
    %3082 = vmatprep.subr.mxu0 0.0
    %3083 = vmatpush1.msra.mxu0 %v2718
    %3084 = vmatprep.subr.mxu0 0.0
    %3085 = vmatpush1.msra.mxu0 %v2721
    %3086 = vmatprep.subr.mxu0 0.0
    %3087 = vmatpush1.msra.mxu0 %v2724
    %3088 = vmatprep.subr.mxu0 0.0
    %3089 = vmatpush1.msra.mxu0 %v2727
    %3090 = vmatprep.subr.mxu0 0.0
    %3091 = vmatpush1.msra.mxu0 %v2730
    %3092 = vmatprep.subr.mxu0 0.0
    %3093 = vmatpush1.msra.mxu0 %v2733
    %3094 = vmatprep.subr.mxu0 0.0
    %3095 = vmatpush1.msra.mxu0 %v2736
    %3096 = vmatprep.subr.mxu0 0.0
    %3097 = vmatpush1.msra.mxu0 %v2739
    %3098 = vmatprep.subr.mxu0 0.0
    %3099 = vmatpush1.msra.mxu0 %v2742
    %3100 = vmatprep.subr.mxu0 0.0
    %3101 = vmatpush1.msra.mxu0 %v2745
    %3102 = vmatprep.subr.mxu0 0.0
    %3103 = vmatpush1.msra.mxu0 %v2748
    %3104 = vmatprep.subr.mxu0 0.0
    %3105 = vmatpush1.msra.mxu0 %v2751
    %3106 = vmatprep.subr.mxu0 0.0
    %3107 = vmatpush1.msra.mxu0 %v2754
    %3108 = vmatprep.subr.mxu0 0.0
    %3109 = vmatpush1.msra.mxu0 %v2757
    %3110 = vmatprep.subr.mxu0 0.0
    %3111 = vmatpush1.msra.mxu0 %v2760
    %3112 = vmatprep.subr.mxu0 0.0
    %3113 = vmatpush1.msra.mxu0 %v2763
    %3114 = vmatprep.subr.mxu0 0.0
    %3115 = vmatpush1.msra.mxu0 %v2766
    %3116 = vmatprep.subr.mxu0 0.0
    %3117 = vmatpush1.msra.mxu0 %v2769
    %3118 = vmatprep.subr.mxu0 0.0
    %3119 = vmatpush1.msra.mxu0 %v2772
    %3120 = vmatprep.subr.mxu0 0.0
    %3121 = vmatpush1.msra.mxu0 %v2775
    %3122 = vmatprep.subr.mxu0 0.0
    %3123 = vmatpush1.msra.mxu0 %v2778
    %3124 = vmatprep.subr.mxu0 0.0
    %3125 = vmatpush1.msra.mxu0 0.0
    %3126 = vmatprep.subr.mxu0 0.0
    %3127 = vmatpush1.msra.mxu0 0.0
    %3128 = vmatprep.subr.mxu0 0.0
    %3129 = vmatpush1.msra.mxu0 0.0
    %3130 = vmatprep.subr.mxu0 0.0
    %3131 = vmatpush1.msra.mxu0 0.0
    %3132 = vmatprep.subr.mxu0 0.0
    %3133 = vmatpush1.msra.mxu0 0.0
    %3134 = vmatprep.subr.mxu0 0.0
    %3135 = vmatpush1.msra.mxu0 0.0
    %3136 = vmatprep.subr.mxu0 0.0
    %3137 = vmatpush1.msra.mxu0 0.0
    %3138 = vmatprep.subr.mxu0 0.0
    %3139 = vmatpush1.msra.mxu0 0.0
    %3140 = vmatprep.mubr.f32.mxu0 %v2202
    %3141 = vmatmul.mubr.f32.gmra.mrb[0].mxu0 %v2011
    %v3142 = vpop.f32.mrb[0].mxu0
    %v3143 = vadd.f32 %v3048, %v3142
    %v3144 = vpop.f32.mrb[0].mxu0
    %3145 = vmatprep.mubr.f32.mxu0 %v2205
    %3146 = vmatmul.mubr.f32.gmra.mrb[0].mxu0 %v2015
    %v3147 = vpop.f32.mrb[0].mxu0
    %v3148 = vadd.f32 %v3053, %v3147
    %v3149 = vpop.f32.mrb[0].mxu0
    %3150 = vmatprep.mubr.f32.mxu0 %v2208
    %3151 = vmatmul.mubr.f32.gmra.mrb[0].mxu0 %v2019
    %v3152 = vpop.f32.mrb[0].mxu0
    %v3153 = vadd.f32 %v3058, %v3152
    %v3154 = vpop.f32.mrb[0].mxu0
    %3155 = vmatprep.mubr.f32.mxu0 %v2211
    %3156 = vmatmul.mubr.f32.gmra.mrb[0].mxu0 %v2023
    %v3157 = vpop.f32.mrb[0].mxu0
    %v3158 = vadd.f32 %v3063, %v3157
    %v3159 = vpop.f32.mrb[0].mxu0
    %3160 = vmatprep.mubr.f32.mxu0 %v2214
    %3161 = vmatmul.mubr.f32.gmra.mrb[0].mxu0 %v2027
    %v3162 = vpop.f32.mrb[0].mxu0
    %v3163 = vadd.f32 %v3068, %v3162
    %v3164 = vpop.f32.mrb[0].mxu0
    %3165 = vmatprep.mubr.f32.mxu0 %v2217
    %3166 = vmatmul.mubr.f32.gmra.mrb[0].mxu0 %v2031
    %v3167 = vpop.f32.mrb[0].mxu0
    %v3168 = vadd.f32 %v3073, %v3167
    %v3169 = vpop.f32.mrb[0].mxu0
    %3170 = vdwg.mxu0
    %v3171 = vmax.f32 %v2387, %v2947
    %v3172 = vmax.f32 %v2389, %v2949
    %v3173 = vmax.f32 %v2583, %v3143
    %v3174 = vmax.f32 %v2393, %v2953
    %v3175 = vmax.f32 %v2395, %v2955
    %v3176 = vmax.f32 %v2588, %v3148
    %v3177 = vmax.f32 %v2399, %v2959
    %v3178 = vmax.f32 %v2401, %v2961
    %v3179 = vmax.f32 %v2593, %v3153
    %v3180 = vmax.f32 %v2405, %v2965
    %v3181 = vmax.f32 %v2407, %v2967
    %v3182 = vmax.f32 %v2598, %v3158
    %v3183 = vmax.f32 %v2411, %v2971
    %v3184 = vmax.f32 %v2413, %v2973
    %v3185 = vmax.f32 %v2603, %v3163
    %v3186 = vmax.f32 %v2417, %v2977
    %v3187 = vmax.f32 %v2419, %v2979
    %v3188 = vmax.f32 %v2608, %v3168
    %v3189 = vld [vmem:[%s10] sm:$0x7]
    %v3191 = vlaneseq
    %v3192 = vshrl.u32 %v3191, 7
    %v3193 = vsub.s32 0, %v3192
    %v3194 = vrot.slane %v3189, %v3193
    %v3195 = vlaneseq
    %v3196 = vshrl.u32 %v3195, 7
    %v3197 = vsub.s32 1, %v3196
    %v3198 = vrot.slane %v3189, %v3197
    %v3199 = vlaneseq
    %v3200 = vshrl.u32 %v3199, 7
    %v3201 = vsub.s32 2, %v3200
    %v3202 = vrot.slane %v3189, %v3201
    %v3206 = vadd.f32 %v3171, %v3194
    %v3207 = vadd.f32 %v3172, %v3198
    %v3208 = vadd.f32 %v3173, %v3202
    %v3209 = vadd.f32 %v3174, %v3194
    %v3210 = vadd.f32 %v3175, %v3198
    %v3211 = vadd.f32 %v3176, %v3202
    %v3212 = vadd.f32 %v3177, %v3194
    %v3213 = vadd.f32 %v3178, %v3198
    %v3214 = vadd.f32 %v3179, %v3202
    %v3215 = vadd.f32 %v3180, %v3194
    %v3216 = vadd.f32 %v3181, %v3198
    %v3217 = vadd.f32 %v3182, %v3202
    %v3218 = vadd.f32 %v3183, %v3194
    %v3219 = vadd.f32 %v3184, %v3198
    %v3220 = vadd.f32 %v3185, %v3202
    %v3221 = vadd.f32 %v3186, %v3194
    %v3222 = vadd.f32 %v3187, %v3198
    %v3223 = vadd.f32 %v3188, %v3202
    %v3224 = vmax.f32 %v3206, 0.0
    %v3225 = vmax.f32 %v3207, 0.0
    %v3226 = vmax.f32 %v3208, 0.0
    %v3227 = vmax.f32 %v3209, 0.0
    %v3228 = vmax.f32 %v3210, 0.0
    %v3229 = vmax.f32 %v3211, 0.0
    %v3230 = vmax.f32 %v3212, 0.0
    %v3231 = vmax.f32 %v3213, 0.0
    %v3232 = vmax.f32 %v3214, 0.0
    %v3233 = vmax.f32 %v3215, 0.0
    %v3234 = vmax.f32 %v3216, 0.0
    %v3235 = vmax.f32 %v3217, 0.0
    %v3236 = vmax.f32 %v3218, 0.0
    %v3237 = vmax.f32 %v3219, 0.0
    %v3238 = vmax.f32 %v3220, 0.0
    %v3239 = vmax.f32 %v3221, 0.0
    %v3240 = vmax.f32 %v3222, 0.0
    %v3241 = vmax.f32 %v3223, 0.0
    %v3242 = vld [vmem:[%s1] sm:$0x3]
    %vm3243 = vcmask 343040
    %v3245 = vsel %vm3243, %v3242, 0
    %vm3247 = vcmask 1041408
    %v3249 = vsel %vm3247, %v3239, 0
    %v3252 = vsel %vm3247, %v3240, 0
    %v3255 = vsel %vm3247, %v3241, 0
    %3257 = vmatprep.subr.mxu0 %v3225
    %3258 = vmatpush1.msra.mxu0 %v3224
    %3259 = vmatprep.subr.mxu0 %v3228
    %3260 = vmatpush1.msra.mxu0 %v3227
    %3261 = vmatprep.subr.mxu0 %v3231
    %3262 = vmatpush1.msra.mxu0 %v3230
    %3263 = vmatprep.subr.mxu0 %v3234
    %3264 = vmatpush1.msra.mxu0 %v3233
    %3265 = vmatprep.subr.mxu0 %v3237
    %3266 = vmatpush1.msra.mxu0 %v3236
    %3267 = vmatprep.subr.mxu0 %v3252
    %3268 = vmatpush1.msra.mxu0 %v3249
    %3269 = vmatprep.subr.mxu0 0.0
    %3270 = vmatpush1.msra.mxu0 0.0
    %3271 = vmatprep.subr.mxu0 0.0
    %3272 = vmatpush1.msra.mxu0 0.0
    %3273 = vmatprep.subr.mxu0 0.0
    %3274 = vmatpush1.msra.mxu0 0.0
    %3275 = vmatprep.subr.mxu0 0.0
    %3276 = vmatpush1.msra.mxu0 0.0
    %3277 = vmatprep.subr.mxu0 0.0
    %3278 = vmatpush1.msra.mxu0 0.0
    %3279 = vmatprep.subr.mxu0 0.0
    %3280 = vmatpush1.msra.mxu0 0.0
    %3281 = vmatprep.subr.mxu0 0.0
    %3282 = vmatpush1.msra.mxu0 0.0
    %3283 = vmatprep.subr.mxu0 0.0
    %3284 = vmatpush1.msra.mxu0 0.0
    %3285 = vmatprep.subr.mxu0 0.0
    %3286 = vmatpush1.msra.mxu0 0.0
    %3287 = vmatprep.subr.mxu0 0.0
    %3288 = vmatpush1.msra.mxu0 0.0
    %3289 = vmatprep.subr.mxu0 0.0
    %3290 = vmatpush1.msra.mxu0 0.0
    %3291 = vmatprep.subr.mxu0 0.0
    %3292 = vmatpush1.msra.mxu0 0.0
    %3293 = vmatprep.subr.mxu0 0.0
    %3294 = vmatpush1.msra.mxu0 0.0
    %3295 = vmatprep.subr.mxu0 0.0
    %3296 = vmatpush1.msra.mxu0 0.0
    %3297 = vmatprep.subr.mxu0 0.0
    %3298 = vmatpush1.msra.mxu0 0.0
    %3299 = vmatprep.subr.mxu0 0.0
    %3300 = vmatpush1.msra.mxu0 0.0
    %3301 = vmatprep.subr.mxu0 0.0
    %3302 = vmatpush1.msra.mxu0 0.0
    %3303 = vmatprep.subr.mxu0 0.0
    %3304 = vmatpush1.msra.mxu0 0.0
    %3305 = vmatprep.subr.mxu0 0.0
    %3306 = vmatpush1.msra.mxu0 0.0
    %3307 = vmatprep.subr.mxu0 0.0
    %3308 = vmatpush1.msra.mxu0 0.0
    %3309 = vmatprep.subr.mxu0 0.0
    %3310 = vmatpush1.msra.mxu0 0.0
    %3311 = vmatprep.subr.mxu0 0.0
    %3312 = vmatpush1.msra.mxu0 0.0
    %3313 = vmatprep.subr.mxu0 0.0
    %3314 = vmatpush1.msra.mxu0 0.0
    %3315 = vmatprep.subr.mxu0 0.0
    %3316 = vmatpush1.msra.mxu0 0.0
    %3317 = vmatprep.subr.mxu0 0.0
    %3318 = vmatpush1.msra.mxu0 0.0
    %3319 = vmatprep.subr.mxu0 0.0
    %3320 = vmatpush1.msra.mxu0 0.0
    %3321 = vmatprep.mubr.f32.mxu0 0.0
    %3322 = vmatmul.mubr.f32.gmra.mrb[0].mxu0 %v3245
    %v3323 = vpop.f32.mrb[0].mxu0
    %v3324 = vadd.f32 0.0, %v3323
    %v3325 = vpop.f32.mrb[0].mxu0
    %v3326 = vadd.f32 0.0, %v3325
    %3327 = vdwg.mxu0
    %3328 = vmatprep.subr.mxu0 0.0
    %3329 = vmatpush1.msra.mxu0 %v3226
    %3330 = vmatprep.subr.mxu0 0.0
    %3331 = vmatpush1.msra.mxu0 %v3229
    %3332 = vmatprep.subr.mxu0 0.0
    %3333 = vmatpush1.msra.mxu0 %v3232
    %3334 = vmatprep.subr.mxu0 0.0
    %3335 = vmatpush1.msra.mxu0 %v3235
    %3336 = vmatprep.subr.mxu0 0.0
    %3337 = vmatpush1.msra.mxu0 %v3238
    %3338 = vmatprep.subr.mxu0 0.0
    %3339 = vmatpush1.msra.mxu0 %v3255
    %3340 = vmatprep.subr.mxu0 0.0
    %3341 = vmatpush1.msra.mxu0 0.0
    %3342 = vmatprep.subr.mxu0 0.0
    %3343 = vmatpush1.msra.mxu0 0.0
    %3344 = vmatprep.subr.mxu0 0.0
    %3345 = vmatpush1.msra.mxu0 0.0
    %3346 = vmatprep.subr.mxu0 0.0
    %3347 = vmatpush1.msra.mxu0 0.0
    %3348 = vmatprep.subr.mxu0 0.0
    %3349 = vmatpush1.msra.mxu0 0.0
    %3350 = vmatprep.subr.mxu0 0.0
    %3351 = vmatpush1.msra.mxu0 0.0
    %3352 = vmatprep.subr.mxu0 0.0
    %3353 = vmatpush1.msra.mxu0 0.0
    %3354 = vmatprep.subr.mxu0 0.0
    %3355 = vmatpush1.msra.mxu0 0.0
    %3356 = vmatprep.subr.mxu0 0.0
    %3357 = vmatpush1.msra.mxu0 0.0
    %3358 = vmatprep.subr.mxu0 0.0
    %3359 = vmatpush1.msra.mxu0 0.0
    %3360 = vmatprep.subr.mxu0 0.0
    %3361 = vmatpush1.msra.mxu0 0.0
    %3362 = vmatprep.subr.mxu0 0.0
    %3363 = vmatpush1.msra.mxu0 0.0
    %3364 = vmatprep.subr.mxu0 0.0
    %3365 = vmatpush1.msra.mxu0 0.0
    %3366 = vmatprep.subr.mxu0 0.0
    %3367 = vmatpush1.msra.mxu0 0.0
    %3368 = vmatprep.subr.mxu0 0.0
    %3369 = vmatpush1.msra.mxu0 0.0
    %3370 = vmatprep.subr.mxu0 0.0
    %3371 = vmatpush1.msra.mxu0 0.0
    %3372 = vmatprep.subr.mxu0 0.0
    %3373 = vmatpush1.msra.mxu0 0.0
    %3374 = vmatprep.subr.mxu0 0.0
    %3375 = vmatpush1.msra.mxu0 0.0
    %3376 = vmatprep.subr.mxu0 0.0
    %3377 = vmatpush1.msra.mxu0 0.0
    %3378 = vmatprep.subr.mxu0 0.0
    %3379 = vmatpush1.msra.mxu0 0.0
    %3380 = vmatprep.subr.mxu0 0.0
    %3381 = vmatpush1.msra.mxu0 0.0
    %3382 = vmatprep.subr.mxu0 0.0
    %3383 = vmatpush1.msra.mxu0 0.0
    %3384 = vmatprep.subr.mxu0 0.0
    %3385 = vmatpush1.msra.mxu0 0.0
    %3386 = vmatprep.subr.mxu0 0.0
    %3387 = vmatpush1.msra.mxu0 0.0
    %3388 = vmatprep.subr.mxu0 0.0
    %3389 = vmatpush1.msra.mxu0 0.0
    %3390 = vmatprep.subr.mxu0 0.0
    %3391 = vmatpush1.msra.mxu0 0.0
    %3392 = vmatprep.mubr.f32.mxu0 0.0
    %3393 = vmatmul.mubr.f32.gmra.mrb[0].mxu0 %v3245
    %v3394 = vpop.f32.mrb[0].mxu0
    %v3395 = vadd.f32 0.0, %v3394
    %v3396 = vpop.f32.mrb[0].mxu0
    %3397 = vdwg.mxu0
    %v3398 = vld [vmem:[%s11] sm:$0xff]
    %v3399 = vld [vmem:[%s11 + $0x8] sm:$0xff]
    %v3400 = vld [vmem:[%s11 + $0x10] sm:$0xff]
    %v3401 = vld [vmem:[%s11 + $0x18] sm:$0xff]
    %v3402 = vld [vmem:[%s11 + $0x20] sm:$0xff]
    %v3403 = vld [vmem:[%s11 + $0x28] sm:$0xff]
    %v3404 = vld [vmem:[%s11 + $0x30] sm:$0xff]
    %v3405 = vld [vmem:[%s11 + $0x38] sm:$0xff]
    %v3406 = vld [vmem:[%s11 + $0x40] sm:$0xff]
    %v3407 = vld [vmem:[%s11 + $0x48] sm:$0xff]
    %v3408 = vld [vmem:[%s11 + $0x50] sm:$0xff]
    %v3409 = vld [vmem:[%s11 + $0x58] sm:$0xff]
    %v3410 = vld [vmem:[%s11 + $0x60] sm:$0xff]
    %v3411 = vld [vmem:[%s11 + $0x68] sm:$0xff]
    %v3412 = vld [vmem:[%s11 + $0x70] sm:$0xff]
    %v3413 = vld [vmem:[%s11 + $0x78] sm:$0xff]
    %v3414 = vld [vmem:[%s11 + $0x80] sm:$0xff]
    %v3415 = vld [vmem:[%s11 + $0x88] sm:$0xff]
    %v3416 = vld [vmem:[%s11 + $0x90] sm:$0xff]
    %v3417 = vld [vmem:[%s11 + $0x98] sm:$0xff]
    %v3418 = vld [vmem:[%s11 + $0xa0] sm:$0xff]
    %v3419 = vld [vmem:[%s11 + $0xa8] sm:$0xff]
    %v3420 = vld [vmem:[%s11 + $0xb0] sm:$0xff]
    %v3421 = vld [vmem:[%s11 + $0xb8] sm:$0xff]
    %v3422 = vld [vmem:[%s11 + $0xc0] sm:$0xff]
    %v3423 = vld [vmem:[%s11 + $0xc8] sm:$0xff]
    %v3424 = vld [vmem:[%s11 + $0xd0] sm:$0xff]
    %v3425 = vld [vmem:[%s11 + $0xd8] sm:$0xff]
    %v3426 = vld [vmem:[%s11 + $0xe0] sm:$0xff]
    %v3427 = vld [vmem:[%s11 + $0xe8] sm:$0xff]
    %v3428 = vld [vmem:[%s11 + $0xf0] sm:$0xff]
    %v3429 = vld [vmem:[%s11 + $0xf8] sm:$0xff]
    %v3430 = vld [vmem:[%s11 + $0x100] sm:$0xff]
    %v3431 = vld [vmem:[%s11 + $0x108] sm:$0xff]
    %v3432 = vld [vmem:[%s11 + $0x110] sm:$0xff]
    %v3433 = vld [vmem:[%s11 + $0x118] sm:$0xff]
    %v3434 = vld [vmem:[%s11 + $0x120] sm:$0xff]
    %v3435 = vld [vmem:[%s11 + $0x128] sm:$0xff]
    %v3436 = vld [vmem:[%s11 + $0x130] sm:$0xff]
    %v3437 = vld [vmem:[%s11 + $0x138] sm:$0xff]
    %v3438 = vld [vmem:[%s11 + $0x140] sm:$0xff]
    %v3439 = vld [vmem:[%s11 + $0x148] sm:$0xff]
    %v3440 = vld [vmem:[%s11 + $0x150] sm:$0xff]
    %v3441 = vld [vmem:[%s11 + $0x158] sm:$0xff]
    %v3442 = vld [vmem:[%s11 + $0x160] sm:$0xff]
    %v3443 = vld [vmem:[%s11 + $0x168] sm:$0xff]
    %v3444 = vld [vmem:[%s11 + $0x170] sm:$0xff]
    %v3445 = vld [vmem:[%s11 + $0x178] sm:$0xff]
    %v3446 = vld [vmem:[%s12] sm:$0x1]
    %v3448 = vlaneseq
    %v3449 = vshrl.u32 %v3448, 7
    %v3450 = vsub.s32 0, %v3449
    %v3451 = vrot.slane %v3446, %v3450
    %3453 = vmatprep.subr.mxu0 0.0
    %3454 = vmatpush1.msra.mxu0 %v3398
    %3455 = vmatprep.subr.mxu0 0.0
    %3456 = vmatpush1.msra.mxu0 %v3399
    %3457 = vmatprep.subr.mxu0 0.0
    %3458 = vmatpush1.msra.mxu0 %v3400
    %3459 = vmatprep.subr.mxu0 0.0
    %3460 = vmatpush1.msra.mxu0 %v3401
    %3461 = vmatprep.subr.mxu0 0.0
    %3462 = vmatpush1.msra.mxu0 %v3402
    %3463 = vmatprep.subr.mxu0 0.0
    %3464 = vmatpush1.msra.mxu0 %v3403
    %3465 = vmatprep.subr.mxu0 0.0
    %3466 = vmatpush1.msra.mxu0 %v3404
    %3467 = vmatprep.subr.mxu0 0.0
    %3468 = vmatpush1.msra.mxu0 %v3405
    %3469 = vmatprep.subr.mxu0 0.0
    %3470 = vmatpush1.msra.mxu0 %v3406
    %3471 = vmatprep.subr.mxu0 0.0
    %3472 = vmatpush1.msra.mxu0 %v3407
    %3473 = vmatprep.subr.mxu0 0.0
    %3474 = vmatpush1.msra.mxu0 %v3408
    %3475 = vmatprep.subr.mxu0 0.0
    %3476 = vmatpush1.msra.mxu0 %v3409
    %3477 = vmatprep.subr.mxu0 0.0
    %3478 = vmatpush1.msra.mxu0 %v3410
    %3479 = vmatprep.subr.mxu0 0.0
    %3480 = vmatpush1.msra.mxu0 %v3411
    %3481 = vmatprep.subr.mxu0 0.0
    %3482 = vmatpush1.msra.mxu0 %v3412
    %3483 = vmatprep.subr.mxu0 0.0
    %3484 = vmatpush1.msra.mxu0 %v3413
    %3485 = vmatprep.subr.mxu0 0.0
    %3486 = vmatpush1.msra.mxu0 %v3414
    %3487 = vmatprep.subr.mxu0 0.0
    %3488 = vmatpush1.msra.mxu0 %v3415
    %3489 = vmatprep.subr.mxu0 0.0
    %3490 = vmatpush1.msra.mxu0 %v3416
    %3491 = vmatprep.subr.mxu0 0.0
    %3492 = vmatpush1.msra.mxu0 %v3417
    %3493 = vmatprep.subr.mxu0 0.0
    %3494 = vmatpush1.msra.mxu0 %v3418
    %3495 = vmatprep.subr.mxu0 0.0
    %3496 = vmatpush1.msra.mxu0 %v3419
    %3497 = vmatprep.subr.mxu0 0.0
    %3498 = vmatpush1.msra.mxu0 %v3420
    %3499 = vmatprep.subr.mxu0 0.0
    %3500 = vmatpush1.msra.mxu0 %v3421
    %3501 = vmatprep.subr.mxu0 0.0
    %3502 = vmatpush1.msra.mxu0 %v3422
    %3503 = vmatprep.subr.mxu0 0.0
    %3504 = vmatpush1.msra.mxu0 %v3423
    %3505 = vmatprep.subr.mxu0 0.0
    %3506 = vmatpush1.msra.mxu0 %v3424
    %3507 = vmatprep.subr.mxu0 0.0
    %3508 = vmatpush1.msra.mxu0 %v3425
    %3509 = vmatprep.subr.mxu0 0.0
    %3510 = vmatpush1.msra.mxu0 %v3426
    %3511 = vmatprep.subr.mxu0 0.0
    %3512 = vmatpush1.msra.mxu0 %v3427
    %3513 = vmatprep.subr.mxu0 0.0
    %3514 = vmatpush1.msra.mxu0 %v3428
    %3515 = vmatprep.subr.mxu0 0.0
    %3516 = vmatpush1.msra.mxu0 %v3429
    %3517 = vmatprep.mubr.f32.mxu0 %v3326
    %3518 = vmatmul.mubr.f32.gmra.mrb[0].mxu0 %v3324
    %v3519 = vpop.f32.mrb[0].mxu0
    %v3520 = vadd.f32 %v3451, %v3519
    %v3521 = vpop.f32.mrb[0].mxu0
    %3522 = vdwg.mxu0
    %3523 = vmatprep.subr.mxu0 0.0
    %3524 = vmatpush1.msra.mxu0 %v3430
    %3525 = vmatprep.subr.mxu0 0.0
    %3526 = vmatpush1.msra.mxu0 %v3431
    %3527 = vmatprep.subr.mxu0 0.0
    %3528 = vmatpush1.msra.mxu0 %v3432
    %3529 = vmatprep.subr.mxu0 0.0
    %3530 = vmatpush1.msra.mxu0 %v3433
    %3531 = vmatprep.subr.mxu0 0.0
    %3532 = vmatpush1.msra.mxu0 %v3434
    %3533 = vmatprep.subr.mxu0 0.0
    %3534 = vmatpush1.msra.mxu0 %v3435
    %3535 = vmatprep.subr.mxu0 0.0
    %3536 = vmatpush1.msra.mxu0 %v3436
    %3537 = vmatprep.subr.mxu0 0.0
    %3538 = vmatpush1.msra.mxu0 %v3437
    %3539 = vmatprep.subr.mxu0 0.0
    %3540 = vmatpush1.msra.mxu0 %v3438
    %3541 = vmatprep.subr.mxu0 0.0
    %3542 = vmatpush1.msra.mxu0 %v3439
    %3543 = vmatprep.subr.mxu0 0.0
    %3544 = vmatpush1.msra.mxu0 %v3440
    %3545 = vmatprep.subr.mxu0 0.0
    %3546 = vmatpush1.msra.mxu0 %v3441
    %3547 = vmatprep.subr.mxu0 0.0
    %3548 = vmatpush1.msra.mxu0 %v3442
    %3549 = vmatprep.subr.mxu0 0.0
    %3550 = vmatpush1.msra.mxu0 %v3443
    %3551 = vmatprep.subr.mxu0 0.0
    %3552 = vmatpush1.msra.mxu0 %v3444
    %3553 = vmatprep.subr.mxu0 0.0
    %3554 = vmatpush1.msra.mxu0 %v3445
    %3555 = vmatprep.subr.mxu0 0.0
    %3556 = vmatpush1.msra.mxu0 0.0
    %3557 = vmatprep.subr.mxu0 0.0
    %3558 = vmatpush1.msra.mxu0 0.0
    %3559 = vmatprep.subr.mxu0 0.0
    %3560 = vmatpush1.msra.mxu0 0.0
    %3561 = vmatprep.subr.mxu0 0.0
    %3562 = vmatpush1.msra.mxu0 0.0
    %3563 = vmatprep.subr.mxu0 0.0
    %3564 = vmatpush1.msra.mxu0 0.0
    %3565 = vmatprep.subr.mxu0 0.0
    %3566 = vmatpush1.msra.mxu0 0.0
    %3567 = vmatprep.subr.mxu0 0.0
    %3568 = vmatpush1.msra.mxu0 0.0
    %3569 = vmatprep.subr.mxu0 0.0
    %3570 = vmatpush1.msra.mxu0 0.0
    %3571 = vmatprep.subr.mxu0 0.0
    %3572 = vmatpush1.msra.mxu0 0.0
    %3573 = vmatprep.subr.mxu0 0.0
    %3574 = vmatpush1.msra.mxu0 0.0
    %3575 = vmatprep.subr.mxu0 0.0
    %3576 = vmatpush1.msra.mxu0 0.0
    %3577 = vmatprep.subr.mxu0 0.0
    %3578 = vmatpush1.msra.mxu0 0.0
    %3579 = vmatprep.subr.mxu0 0.0
    %3580 = vmatpush1.msra.mxu0 0.0
    %3581 = vmatprep.subr.mxu0 0.0
    %3582 = vmatpush1.msra.mxu0 0.0
    %3583 = vmatprep.subr.mxu0 0.0
    %3584 = vmatpush1.msra.mxu0 0.0
    %3585 = vmatprep.subr.mxu0 0.0
    %3586 = vmatpush1.msra.mxu0 0.0
    %3587 = vmatprep.mubr.f32.mxu0 0.0
    %3588 = vmatmul.mubr.f32.gmra.mrb[0].mxu0 %v3395
    %v3589 = vpop.f32.mrb[0].mxu0
    %v3590 = vadd.f32 %v3520, %v3589
    %v3591 = vpop.f32.mrb[0].mxu0
    %3592 = vdwg.mxu0
    %3593 = vst [vmem:[#allocation2] sm:$0x3] %v3590
    // Predicated region
    $region54: #{_cnn_forward_impl.1} parent=1 // pred_check
      _
    $region55: #{_cnn_forward_impl.1} parent=1 // pred_check_branch
      %3595 = sbr.rel (0) target = $region57
    $region56: #{_cnn_forward_impl.1} parent=1 // pred_region
      %s3597 = ssub.s32 32, 32
      %3598 = vsyncadd [#allocation3], %s3597
      %s3600 = sshll.u32 [#allocation2], 4
      %s3601 = int_to_ptr.vmem [resolvable:$true] %s3600
      %3603 = dma.vmem_to_hbm [thread:$0]  %s3601, 32, %s13, [#allocation3]
    $region57: #{_cnn_forward_impl.1} parent=1 // pred_fallthru
      _
    // Predicated region
    $region58: #{_cnn_forward_impl.1} parent=1 // pred_check
      _
    $region59: #{_cnn_forward_impl.1} parent=1 // pred_check_branch
      %3605 = sbr.rel (0) target = $region61
    $region60: #{_cnn_forward_impl.1} parent=1 // pred_region
      %3606 = dma.done [#allocation3], 32
    $region61: #{_cnn_forward_impl.1} parent=1 // pred_fallthru
      _
    %3607 = vsyncpa [#allocation3], 1

// kernel: _cnn_forward_impl.1
$region0: #{_cnn_forward_impl.1}
  #allocation0 [shape = 'u32[]', space=smem, size = 0x4, offset = 0x4, fixed_abs, tag = 'smem constant byte address 0x4 - core index']
  #allocation1 [shape = 'u32[144,128]{1,0:T(1,128)}', space=vmem, size = 0x12000, scoped, tag = 'internal scratch']
  %s0 = inlined_call_operand.vmem [shape: f32[42,64], index: 0, kind: input, shape index: {}]
  %s1 = inlined_call_operand.vmem [shape: f32[2,42], index: 1, kind: input, shape index: {}]
  %s2 = inlined_call_operand.vmem [shape: f32[64,480], index: 2, kind: input, shape index: {}]
  %s3 = inlined_call_operand.vmem [shape: f32[64,480], index: 3, kind: input, shape index: {}]
  %s4 = inlined_call_operand.vmem [shape: f32[1,480], index: 4, kind: input, shape index: {}]
  %s5 = inlined_call_operand.vmem [shape: f32[480,448], index: 5, kind: input, shape index: {}]
  %s6 = inlined_call_operand.vmem [shape: f32[480,448], index: 6, kind: input, shape index: {}]
  %s7 = inlined_call_operand.vmem [shape: f32[1,448], index: 7, kind: input, shape index: {}]
  %s8 = inlined_call_operand.vmem [shape: f32[448,384], index: 8, kind: input, shape index: {}]
  %s9 = inlined_call_operand.vmem [shape: f32[448,384], index: 9, kind: input, shape index: {}]
  %s10 = inlined_call_operand.vmem [shape: f32[1,384], index: 10, kind: input, shape index: {}]
  %s11 = inlined_call_operand.vmem [shape: f32[384,128], index: 11, kind: input, shape index: {}]
  %s12 = inlined_call_operand.vmem [shape: f32[1,128], index: 12, kind: input, shape index: {}]
  %s13 = inlined_call_operand.hbm [shape: f32[2,128], index: 13, kind: output, shape index: {}]
  %s14 = sld [smem:[#allocation0]]
  $region62: #{_cnn_forward_impl.1} parent=0
    _
  %s16 = ssub.s32 1, %s14
  %s17 = scalar_select 0, %s16, %s14
  $region1: #{_cnn_forward_impl.1} parent=0
    #allocation2 [shape = 'u8[1024]{0}', space=vmem, size = 0x400, scoped, tag = 'output window, operand 0, single buffered']
    #allocation3 [shape = 's32[1]{0}', space=sflag, size = 0x4, scoped, tag = 'scoped memory for _cnn_forward_impl.1']
    %18 = vsyncpa [#allocation3], 0
    // Predicated region
    $region2: #{_cnn_forward_impl.1} parent=1 // pred_check
      _
    $region3: #{_cnn_forward_impl.1} parent=1 // pred_check_branch
      %20 = sbr.rel (0) target = $region5
    $region4: #{_cnn_forward_impl.1} parent=1 // pred_region
      _
    $region5: #{_cnn_forward_impl.1} parent=1 // pred_fallthru
      _
    // Predicated region
    $region6: #{_cnn_forward_impl.1} parent=1 // pred_check
      _
    $region7: #{_cnn_forward_impl.1} parent=1 // pred_check_branch
      %22 = sbr.rel (0) target = $region9
    $region8: #{_cnn_forward_impl.1} parent=1 // pred_region
      _
    $region9: #{_cnn_forward_impl.1} parent=1 // pred_fallthru
      _
    // Predicated region
    $region10: #{_cnn_forward_impl.1} parent=1 // pred_check
      _
    $region11: #{_cnn_forward_impl.1} parent=1 // pred_check_branch
      %24 = sbr.rel (0) target = $region13
    $region12: #{_cnn_forward_impl.1} parent=1 // pred_region
      _
    $region13: #{_cnn_forward_impl.1} parent=1 // pred_fallthru
      _
    // Predicated region
    $region14: #{_cnn_forward_impl.1} parent=1 // pred_check
      _
    $region15: #{_cnn_forward_impl.1} parent=1 // pred_check_branch
      %26 = sbr.rel (0) target = $region17
    $region16: #{_cnn_forward_impl.1} parent=1 // pred_region
      _
    $region17: #{_cnn_forward_impl.1} parent=1 // pred_fallthru
      _
    // Predicated region
    $region18: #{_cnn_forward_impl.1} parent=1 // pred_check
      _
    $region19: #{_cnn_forward_impl.1} parent=1 // pred_check_branch
      %28 = sbr.rel (0) target = $region21
    $region20: #{_cnn_forward_impl.1} parent=1 // pred_region
      _
    $region21: #{_cnn_forward_impl.1} parent=1 // pred_fallthru
      _
    // Predicated region
    $region22: #{_cnn_forward_impl.1} parent=1 // pred_check
      _
    $region23: #{_cnn_forward_impl.1} parent=1 // pred_check_branch
      %30 = sbr.rel (0) target = $region25
    $region24: #{_cnn_forward_impl.1} parent=1 // pred_region
      _
    $region25: #{_cnn_forward_impl.1} parent=1 // pred_fallthru
      _
    // Predicated region
    $region26: #{_cnn_forward_impl.1} parent=1 // pred_check
      _
    $region27: #{_cnn_forward_impl.1} parent=1 // pred_check_branch
      %32 = sbr.rel (0) target = $region29
    $region28: #{_cnn_forward_impl.1} parent=1 // pred_region
      _
    $region29: #{_cnn_forward_impl.1} parent=1 // pred_fallthru
      _
    // Predicated region
    $region30: #{_cnn_forward_impl.1} parent=1 // pred_check
      _
    $region31: #{_cnn_forward_impl.1} parent=1 // pred_check_branch
      %34 = sbr.rel (0) target = $region33
    $region32: #{_cnn_forward_impl.1} parent=1 // pred_region
      _
    $region33: #{_cnn_forward_impl.1} parent=1 // pred_fallthru
      _
    // Predicated region
    $region34: #{_cnn_forward_impl.1} parent=1 // pred_check
      _
    $region35: #{_cnn_forward_impl.1} parent=1 // pred_check_branch
      %36 = sbr.rel (0) target = $region37
    $region36: #{_cnn_forward_impl.1} parent=1 // pred_region
      _
    $region37: #{_cnn_forward_impl.1} parent=1 // pred_fallthru
      _
    // Predicated region
    $region38: #{_cnn_forward_impl.1} parent=1 // pred_check
      _
    $region39: #{_cnn_forward_impl.1} parent=1 // pred_check_branch
      %38 = sbr.rel (0) target = $region41
    $region40: #{_cnn_forward_impl.1} parent=1 // pred_region
      _
    $region41: #{_cnn_forward_impl.1} parent=1 // pred_fallthru
      _
    // Predicated region
    $region42: #{_cnn_forward_impl.1} parent=1 // pred_check
      _
    $region43: #{_cnn_forward_impl.1} parent=1 // pred_check_branch
      %40 = sbr.rel (0) target = $region45
    $region44: #{_cnn_forward_impl.1} parent=1 // pred_region
      _
    $region45: #{_cnn_forward_impl.1} parent=1 // pred_fallthru
      _
    // Predicated region
    $region46: #{_cnn_forward_impl.1} parent=1 // pred_check
      _
    $region47: #{_cnn_forward_impl.1} parent=1 // pred_check_branch
      %42 = sbr.rel (0) target = $region49
    $region48: #{_cnn_forward_impl.1} parent=1 // pred_region
      _
    $region49: #{_cnn_forward_impl.1} parent=1 // pred_fallthru
      _
    // Predicated region
    $region50: #{_cnn_forward_impl.1} parent=1 // pred_check
      _
    $region51: #{_cnn_forward_impl.1} parent=1 // pred_check_branch
      %44 = sbr.rel (0) target = $region53
    $region52: #{_cnn_forward_impl.1} parent=1 // pred_region
      _
    $region53: #{_cnn_forward_impl.1} parent=1 // pred_fallthru
      _
    %v45 = vld [vmem:[%s0] sm:$0xff]
    %v46 = vld [vmem:[%s0 + $0x8] sm:$0xff]
    %v47 = vld [vmem:[%s0 + $0x10] sm:$0xff]
    %v48 = vld [vmem:[%s0 + $0x18] sm:$0xff]
    %v49 = vld [vmem:[%s0 + $0x20] sm:$0xff]
    %v50 = vld [vmem:[%s0 + $0x28] sm:$0x3]
    %v51 = vld [vmem:[%s2] sm:$0xff]
    %v52 = vld [vmem:[%s2 + $0x8] sm:$0xff]
    %v53 = vld [vmem:[%s2 + $0x10] sm:$0xff]
    %v54 = vld [vmem:[%s2 + $0x18] sm:$0xff]
    %v55 = vld [vmem:[%s2 + $0x20] sm:$0xff]
    %v56 = vld [vmem:[%s2 + $0x28] sm:$0xff]
    %v57 = vld [vmem:[%s2 + $0x30] sm:$0xff]
    %v58 = vld [vmem:[%s2 + $0x38] sm:$0xff]
    %v59 = vld [vmem:[%s2 + $0x40] sm:$0xff]
    %v60 = vld [vmem:[%s2 + $0x48] sm:$0xff]
    %v61 = vld [vmem:[%s2 + $0x50] sm:$0xff]
    %v62 = vld [vmem:[%s2 + $0x58] sm:$0xff]
    %v63 = vld [vmem:[%s2 + $0x60] sm:$0xff]
    %v64 = vld [vmem:[%s2 + $0x68] sm:$0xff]
    %v65 = vld [vmem:[%s2 + $0x70] sm:$0xff]
    %v66 = vld [vmem:[%s2 + $0x78] sm:$0xff]
    %v67 = vld [vmem:[%s2 + $0x80] sm:$0xff]
    %v68 = vld [vmem:[%s2 + $0x88] sm:$0xff]
    %v69 = vld [vmem:[%s2 + $0x90] sm:$0xff]
    %v70 = vld [vmem:[%s2 + $0x98] sm:$0xff]
    %v71 = vld [vmem:[%s2 + $0xa0] sm:$0xff]
    %v72 = vld [vmem:[%s2 + $0xa8] sm:$0xff]
    %v73 = vld [vmem:[%s2 + $0xb0] sm:$0xff]
    %v74 = vld [vmem:[%s2 + $0xb8] sm:$0xff]
    %v75 = vld [vmem:[%s2 + $0xc0] sm:$0xff]
    %v76 = vld [vmem:[%s2 + $0xc8] sm:$0xff]
    %v77 = vld [vmem:[%s2 + $0xd0] sm:$0xff]
    %v78 = vld [vmem:[%s2 + $0xd8] sm:$0xff]
    %v79 = vld [vmem:[%s2 + $0xe0] sm:$0xff]
    %v80 = vld [vmem:[%s2 + $0xe8] sm:$0xff]
    %v81 = vld [vmem:[%s2 + $0xf0] sm:$0xff]
    %v82 = vld [vmem:[%s2 + $0xf8] sm:$0xff]
    %vm83 = vcmask 523264
    %v85 = vsel %vm83, %v45, 0
    %v88 = vsel %vm83, %v46, 0
    %v91 = vsel %vm83, %v47, 0
    %v94 = vsel %vm83, %v48, 0
    %v97 = vsel %vm83, %v49, 0
    %v100 = vsel %vm83, %v50, 0
    %102 = vmatprep.subr.mxu0 %v52
    %103 = vmatpush1.msra.mxu0 %v51
    %104 = vmatprep.subr.mxu0 %v56
    %105 = vmatpush1.msra.mxu0 %v55
    %106 = vmatprep.subr.mxu0 %v60
    %107 = vmatpush1.msra.mxu0 %v59
    %108 = vmatprep.subr.mxu0 %v64
    %109 = vmatpush1.msra.mxu0 %v63
    %110 = vmatprep.subr.mxu0 %v68
    %111 = vmatpush1.msra.mxu0 %v67
    %112 = vmatprep.subr.mxu0 %v72
    %113 = vmatpush1.msra.mxu0 %v71
    %114 = vmatprep.subr.mxu0 %v76
    %115 = vmatpush1.msra.mxu0 %v75
    %116 = vmatprep.subr.mxu0 %v80
    %117 = vmatpush1.msra.mxu0 %v79
    %118 = vmatprep.subr.mxu0 0.0
    %119 = vmatpush1.msra.mxu0 0.0
    %120 = vmatprep.subr.mxu0 0.0
    %121 = vmatpush1.msra.mxu0 0.0
    %122 = vmatprep.subr.mxu0 0.0
    %123 = vmatpush1.msra.mxu0 0.0
    %124 = vmatprep.subr.mxu0 0.0
    %125 = vmatpush1.msra.mxu0 0.0
    %126 = vmatprep.subr.mxu0 0.0
    %127 = vmatpush1.msra.mxu0 0.0
    %128 = vmatprep.subr.mxu0 0.0
    %129 = vmatpush1.msra.mxu0 0.0
    %130 = vmatprep.subr.mxu0 0.0
    %131 = vmatpush1.msra.mxu0 0.0
    %132 = vmatprep.subr.mxu0 0.0
    %133 = vmatpush1.msra.mxu0 0.0
    %134 = vmatprep.subr.mxu0 0.0
    %135 = vmatpush1.msra.mxu0 0.0
    %136 = vmatprep.subr.mxu0 0.0
    %137 = vmatpush1.msra.mxu0 0.0
    %138 = vmatprep.subr.mxu0 0.0
    %139 = vmatpush1.msra.mxu0 0.0
    %140 = vmatprep.subr.mxu0 0.0
    %141 = vmatpush1.msra.mxu0 0.0
    %142 = vmatprep.subr.mxu0 0.0
    %143 = vmatpush1.msra.mxu0 0.0
    %144 = vmatprep.subr.mxu0 0.0
    %145 = vmatpush1.msra.mxu0 0.0
    %146 = vmatprep.subr.mxu0 0.0
    %147 = vmatpush1.msra.mxu0 0.0
    %148 = vmatprep.subr.mxu0 0.0
    %149 = vmatpush1.msra.mxu0 0.0
    %150 = vmatprep.subr.mxu0 0.0
    %151 = vmatpush1.msra.mxu0 0.0
    %152 = vmatprep.subr.mxu0 0.0
    %153 = vmatpush1.msra.mxu0 0.0
    %154 = vmatprep.subr.mxu0 0.0
    %155 = vmatpush1.msra.mxu0 0.0
    %156 = vmatprep.subr.mxu0 0.0
    %157 = vmatpush1.msra.mxu0 0.0
    %158 = vmatprep.subr.mxu0 0.0
    %159 = vmatpush1.msra.mxu0 0.0
    %160 = vmatprep.subr.mxu0 0.0
    %161 = vmatpush1.msra.mxu0 0.0
    %162 = vmatprep.subr.mxu0 0.0
    %163 = vmatpush1.msra.mxu0 0.0
    %164 = vmatprep.subr.mxu0 0.0
    %165 = vmatpush1.msra.mxu0 0.0
    %166 = vmatprep.mubr.f32.mxu0 0.0
    %167 = vmatmul.mubr.f32.gmra.mrb[0].mxu0 %v85
    %v168 = vpop.f32.mrb[0].mxu0
    %v169 = vadd.f32 0.0, %v168
    %v170 = vpop.f32.mrb[0].mxu0
    %v171 = vadd.f32 0.0, %v170
    %172 = vmatprep.mubr.f32.mxu0 0.0
    %173 = vmatmul.mubr.f32.gmra.mrb[0].mxu0 %v88
    %v174 = vpop.f32.mrb[0].mxu0
    %v175 = vadd.f32 0.0, %v174
    %v176 = vpop.f32.mrb[0].mxu0
    %v177 = vadd.f32 0.0, %v176
    %178 = vmatprep.mubr.f32.mxu0 0.0
    %179 = vmatmul.mubr.f32.gmra.mrb[0].mxu0 %v91
    %v180 = vpop.f32.mrb[0].mxu0
    %v181 = vadd.f32 0.0, %v180
    %v182 = vpop.f32.mrb[0].mxu0
    %v183 = vadd.f32 0.0, %v182
    %184 = vmatprep.mubr.f32.mxu0 0.0
    %185 = vmatmul.mubr.f32.gmra.mrb[0].mxu0 %v94
    %v186 = vpop.f32.mrb[0].mxu0
    %v187 = vadd.f32 0.0, %v186
    %v188 = vpop.f32.mrb[0].mxu0
    %v189 = vadd.f32 0.0, %v188
    %190 = vmatprep.mubr.f32.mxu0 0.0
    %191 = vmatmul.mubr.f32.gmra.mrb[0].mxu0 %v97
    %v192 = vpop.f32.mrb[0].mxu0
    %v193 = vadd.f32 0.0, %v192
    %v194 = vpop.f32.mrb[0].mxu0
    %v195 = vadd.f32 0.0, %v194
    %196 = vmatprep.mubr.f32.mxu0 0.0
    %197 = vmatmul.mubr.f32.gmra.mrb[0].mxu0 %v100
    %v198 = vpop.f32.mrb[0].mxu0
    %v199 = vadd.f32 0.0, %v198
    %v200 = vpop.f32.mrb[0].mxu0
    %v201 = vadd.f32 0.0, %v200
    %202 = vdwg.mxu0
    %203 = vmatprep.subr.mxu0 %v54
    %204 = vmatpush1.msra.mxu0 %v53
    %205 = vmatprep.subr.mxu0 %v58
    %206 = vmatpush1.msra.mxu0 %v57
    %207 = vmatprep.subr.mxu0 %v62
    %208 = vmatpush1.msra.mxu0 %v61
    %209 = vmatprep.subr.mxu0 %v66
    %210 = vmatpush1.msra.mxu0 %v65
    %211 = vmatprep.subr.mxu0 %v70
    %212 = vmatpush1.msra.mxu0 %v69
    %213 = vmatprep.subr.mxu0 %v74
    %214 = vmatpush1.msra.mxu0 %v73
    %215 = vmatprep.subr.mxu0 %v78
    %216 = vmatpush1.msra.mxu0 %v77
    %217 = vmatprep.subr.mxu0 %v82
    %218 = vmatpush1.msra.mxu0 %v81
    %219 = vmatprep.subr.mxu0 0.0
    %220 = vmatpush1.msra.mxu0 0.0
    %221 = vmatprep.subr.mxu0 0.0
    %222 = vmatpush1.msra.mxu0 0.0
    %223 = vmatprep.subr.mxu0 0.0
    %224 = vmatpush1.msra.mxu0 0.0
    %225 = vmatprep.subr.mxu0 0.0
    %226 = vmatpush1.msra.mxu0 0.0
    %227 = vmatprep.subr.mxu0 0.0
    %228 = vmatpush1.msra.mxu0 0.0
    %229 = vmatprep.subr.mxu0 0.0
    %230 = vmatpush1.msra.mxu0 0.0
    %231 = vmatprep.subr.mxu0 0.0
    %232 = vmatpush1.msra.mxu0 0.0
    %233 = vmatprep.subr.mxu0 0.0
    %234 = vmatpush1.msra.mxu0 0.0
    %235 = vmatprep.subr.mxu0 0.0
    %236 = vmatpush1.msra.mxu0 0.0
    %237 = vmatprep.subr.mxu0 0.0
    %238 = vmatpush1.msra.mxu0 0.0
    %239 = vmatprep.subr.mxu0 0.0
    %240 = vmatpush1.msra.mxu0 0.0
    %241 = vmatprep.subr.mxu0 0.0
    %242 = vmatpush1.msra.mxu0 0.0
    %243 = vmatprep.subr.mxu0 0.0
    %244 = vmatpush1.msra.mxu0 0.0
    %245 = vmatprep.subr.mxu0 0.0
    %246 = vmatpush1.msra.mxu0 0.0
    %247 = vmatprep.subr.mxu0 0.0
    %248 = vmatpush1.msra.mxu0 0.0
    %249 = vmatprep.subr.mxu0 0.0
    %250 = vmatpush1.msra.mxu0 0.0
    %251 = vmatprep.subr.mxu0 0.0
    %252 = vmatpush1.msra.mxu0 0.0
    %253 = vmatprep.subr.mxu0 0.0
    %254 = vmatpush1.msra.mxu0 0.0
    %255 = vmatprep.subr.mxu0 0.0
    %256 = vmatpush1.msra.mxu0 0.0
    %257 = vmatprep.subr.mxu0 0.0
    %258 = vmatpush1.msra.mxu0 0.0
    %259 = vmatprep.subr.mxu0 0.0
    %260 = vmatpush1.msra.mxu0 0.0
    %261 = vmatprep.subr.mxu0 0.0
    %262 = vmatpush1.msra.mxu0 0.0
    %263 = vmatprep.subr.mxu0 0.0
    %264 = vmatpush1.msra.mxu0 0.0
    %265 = vmatprep.subr.mxu0 0.0
    %266 = vmatpush1.msra.mxu0 0.0
    %267 = vmatprep.mubr.f32.mxu0 0.0
    %268 = vmatmul.mubr.f32.gmra.mrb[0].mxu0 %v85
    %v269 = vpop.f32.mrb[0].mxu0
    %v270 = vadd.f32 0.0, %v269
    %v271 = vpop.f32.mrb[0].mxu0
    %v272 = vadd.f32 0.0, %v271
    %273 = vmatprep.mubr.f32.mxu0 0.0
    %274 = vmatmul.mubr.f32.gmra.mrb[0].mxu0 %v88
    %v275 = vpop.f32.mrb[0].mxu0
    %v276 = vadd.f32 0.0, %v275
    %v277 = vpop.f32.mrb[0].mxu0
    %v278 = vadd.f32 0.0, %v277
    %279 = vmatprep.mubr.f32.mxu0 0.0
    %280 = vmatmul.mubr.f32.gmra.mrb[0].mxu0 %v91
    %v281 = vpop.f32.mrb[0].mxu0
    %v282 = vadd.f32 0.0, %v281
    %v283 = vpop.f32.mrb[0].mxu0
    %v284 = vadd.f32 0.0, %v283
    %285 = vmatprep.mubr.f32.mxu0 0.0
    %286 = vmatmul.mubr.f32.gmra.mrb[0].mxu0 %v94
    %v287 = vpop.f32.mrb[0].mxu0
    %v288 = vadd.f32 0.0, %v287
    %v289 = vpop.f32.mrb[0].mxu0
    %v290 = vadd.f32 0.0, %v289
    %291 = vmatprep.mubr.f32.mxu0 0.0
    %292 = vmatmul.mubr.f32.gmra.mrb[0].mxu0 %v97
    %v293 = vpop.f32.mrb[0].mxu0
    %v294 = vadd.f32 0.0, %v293
    %v295 = vpop.f32.mrb[0].mxu0
    %v296 = vadd.f32 0.0, %v295
    %297 = vmatprep.mubr.f32.mxu0 0.0
    %298 = vmatmul.mubr.f32.gmra.mrb[0].mxu0 %v100
    %v299 = vpop.f32.mrb[0].mxu0
    %v300 = vadd.f32 0.0, %v299
    %v301 = vpop.f32.mrb[0].mxu0
    %v302 = vadd.f32 0.0, %v301
    %303 = vdwg.mxu0
    %v304 = vld [vmem:[%s3] sm:$0xff]
    %v305 = vld [vmem:[%s3 + $0x8] sm:$0xff]
    %v306 = vld [vmem:[%s3 + $0x10] sm:$0xff]
    %v307 = vld [vmem:[%s3 + $0x18] sm:$0xff]
    %v308 = vld [vmem:[%s3 + $0x20] sm:$0xff]
    %v309 = vld [vmem:[%s3 + $0x28] sm:$0xff]
    %v310 = vld [vmem:[%s3 + $0x30] sm:$0xff]
    %v311 = vld [vmem:[%s3 + $0x38] sm:$0xff]
    %v312 = vld [vmem:[%s3 + $0x40] sm:$0xff]
    %v313 = vld [vmem:[%s3 + $0x48] sm:$0xff]
    %v314 = vld [vmem:[%s3 + $0x50] sm:$0xff]
    %v315 = vld [vmem:[%s3 + $0x58] sm:$0xff]
    %v316 = vld [vmem:[%s3 + $0x60] sm:$0xff]
    %v317 = vld [vmem:[%s3 + $0x68] sm:$0xff]
    %v318 = vld [vmem:[%s3 + $0x70] sm:$0xff]
    %v319 = vld [vmem:[%s3 + $0x78] sm:$0xff]
    %v320 = vld [vmem:[%s3 + $0x80] sm:$0xff]
    %v321 = vld [vmem:[%s3 + $0x88] sm:$0xff]
    %v322 = vld [vmem:[%s3 + $0x90] sm:$0xff]
    %v323 = vld [vmem:[%s3 + $0x98] sm:$0xff]
    %v324 = vld [vmem:[%s3 + $0xa0] sm:$0xff]
    %v325 = vld [vmem:[%s3 + $0xa8] sm:$0xff]
    %v326 = vld [vmem:[%s3 + $0xb0] sm:$0xff]
    %v327 = vld [vmem:[%s3 + $0xb8] sm:$0xff]
    %v328 = vld [vmem:[%s3 + $0xc0] sm:$0xff]
    %v329 = vld [vmem:[%s3 + $0xc8] sm:$0xff]
    %v330 = vld [vmem:[%s3 + $0xd0] sm:$0xff]
    %v331 = vld [vmem:[%s3 + $0xd8] sm:$0xff]
    %v332 = vld [vmem:[%s3 + $0xe0] sm:$0xff]
    %v333 = vld [vmem:[%s3 + $0xe8] sm:$0xff]
    %v334 = vld [vmem:[%s3 + $0xf0] sm:$0xff]
    %v335 = vld [vmem:[%s3 + $0xf8] sm:$0xff]
    %336 = vmatprep.subr.mxu0 %v305
    %337 = vmatpush1.msra.mxu0 %v304
    %338 = vmatprep.subr.mxu0 %v309
    %339 = vmatpush1.msra.mxu0 %v308
    %340 = vmatprep.subr.mxu0 %v313
    %341 = vmatpush1.msra.mxu0 %v312
    %342 = vmatprep.subr.mxu0 %v317
    %343 = vmatpush1.msra.mxu0 %v316
    %344 = vmatprep.subr.mxu0 %v321
    %345 = vmatpush1.msra.mxu0 %v320
    %346 = vmatprep.subr.mxu0 %v325
    %347 = vmatpush1.msra.mxu0 %v324
    %348 = vmatprep.subr.mxu0 %v329
    %349 = vmatpush1.msra.mxu0 %v328
    %350 = vmatprep.subr.mxu0 %v333
    %351 = vmatpush1.msra.mxu0 %v332
    %352 = vmatprep.subr.mxu0 0.0
    %353 = vmatpush1.msra.mxu0 0.0
    %354 = vmatprep.subr.mxu0 0.0
    %355 = vmatpush1.msra.mxu0 0.0
    %356 = vmatprep.subr.mxu0 0.0
    %357 = vmatpush1.msra.mxu0 0.0
    %358 = vmatprep.subr.mxu0 0.0
    %359 = vmatpush1.msra.mxu0 0.0
    %360 = vmatprep.subr.mxu0 0.0
    %361 = vmatpush1.msra.mxu0 0.0
    %362 = vmatprep.subr.mxu0 0.0
    %363 = vmatpush1.msra.mxu0 0.0
    %364 = vmatprep.subr.mxu0 0.0
    %365 = vmatpush1.msra.mxu0 0.0
    %366 = vmatprep.subr.mxu0 0.0
    %367 = vmatpush1.msra.mxu0 0.0
    %368 = vmatprep.subr.mxu0 0.0
    %369 = vmatpush1.msra.mxu0 0.0
    %370 = vmatprep.subr.mxu0 0.0
    %371 = vmatpush1.msra.mxu0 0.0
    %372 = vmatprep.subr.mxu0 0.0
    %373 = vmatpush1.msra.mxu0 0.0
    %374 = vmatprep.subr.mxu0 0.0
    %375 = vmatpush1.msra.mxu0 0.0
    %376 = vmatprep.subr.mxu0 0.0
    %377 = vmatpush1.msra.mxu0 0.0
    %378 = vmatprep.subr.mxu0 0.0
    %379 = vmatpush1.msra.mxu0 0.0
    %380 = vmatprep.subr.mxu0 0.0
    %381 = vmatpush1.msra.mxu0 0.0
    %382 = vmatprep.subr.mxu0 0.0
    %383 = vmatpush1.msra.mxu0 0.0
    %384 = vmatprep.subr.mxu0 0.0
    %385 = vmatpush1.msra.mxu0 0.0
    %386 = vmatprep.subr.mxu0 0.0
    %387 = vmatpush1.msra.mxu0 0.0
    %388 = vmatprep.subr.mxu0 0.0
    %389 = vmatpush1.msra.mxu0 0.0
    %390 = vmatprep.subr.mxu0 0.0
    %391 = vmatpush1.msra.mxu0 0.0
    %392 = vmatprep.subr.mxu0 0.0
    %393 = vmatpush1.msra.mxu0 0.0
    %394 = vmatprep.subr.mxu0 0.0
    %395 = vmatpush1.msra.mxu0 0.0
    %396 = vmatprep.subr.mxu0 0.0
    %397 = vmatpush1.msra.mxu0 0.0
    %398 = vmatprep.subr.mxu0 0.0
    %399 = vmatpush1.msra.mxu0 0.0
    %400 = vmatprep.mubr.f32.mxu0 0.0
    %401 = vmatmul.mubr.f32.gmra.mrb[0].mxu0 %v85
    %v402 = vpop.f32.mrb[0].mxu0
    %v403 = vadd.f32 0.0, %v402
    %v404 = vpop.f32.mrb[0].mxu0
    %v405 = vadd.f32 0.0, %v404
    %406 = vmatprep.mubr.f32.mxu0 0.0
    %407 = vmatmul.mubr.f32.gmra.mrb[0].mxu0 %v88
    %v408 = vpop.f32.mrb[0].mxu0
    %v409 = vadd.f32 0.0, %v408
    %v410 = vpop.f32.mrb[0].mxu0
    %v411 = vadd.f32 0.0, %v410
    %412 = vmatprep.mubr.f32.mxu0 0.0
    %413 = vmatmul.mubr.f32.gmra.mrb[0].mxu0 %v91
    %v414 = vpop.f32.mrb[0].mxu0
    %v415 = vadd.f32 0.0, %v414
    %v416 = vpop.f32.mrb[0].mxu0
    %v417 = vadd.f32 0.0, %v416
    %418 = vmatprep.mubr.f32.mxu0 0.0
    %419 = vmatmul.mubr.f32.gmra.mrb[0].mxu0 %v94
    %v420 = vpop.f32.mrb[0].mxu0
    %v421 = vadd.f32 0.0, %v420
    %v422 = vpop.f32.mrb[0].mxu0
    %v423 = vadd.f32 0.0, %v422
    %424 = vmatprep.mubr.f32.mxu0 0.0
    %425 = vmatmul.mubr.f32.gmra.mrb[0].mxu0 %v97
    %v426 = vpop.f32.mrb[0].mxu0
    %v427 = vadd.f32 0.0, %v426
    %v428 = vpop.f32.mrb[0].mxu0
    %v429 = vadd.f32 0.0, %v428
    %430 = vmatprep.mubr.f32.mxu0 0.0
    %431 = vmatmul.mubr.f32.gmra.mrb[0].mxu0 %v100
    %v432 = vpop.f32.mrb[0].mxu0
    %v433 = vadd.f32 0.0, %v432
    %v434 = vpop.f32.mrb[0].mxu0
    %v435 = vadd.f32 0.0, %v434
    %436 = vdwg.mxu0
    %437 = vmatprep.subr.mxu0 %v307
    %438 = vmatpush1.msra.mxu0 %v306
    %439 = vmatprep.subr.mxu0 %v311
    %440 = vmatpush1.msra.mxu0 %v310
    %441 = vmatprep.subr.mxu0 %v315
    %442 = vmatpush1.msra.mxu0 %v314
    %443 = vmatprep.subr.mxu0 %v319
    %444 = vmatpush1.msra.mxu0 %v318
    %445 = vmatprep.subr.mxu0 %v323
    %446 = vmatpush1.msra.mxu0 %v322
    %447 = vmatprep.subr.mxu0 %v327
    %448 = vmatpush1.msra.mxu0 %v326
    %449 = vmatprep.subr.mxu0 %v331
    %450 = vmatpush1.msra.mxu0 %v330
    %451 = vmatprep.subr.mxu0 %v335
    %452 = vmatpush1.msra.mxu0 %v334
    %453 = vmatprep.subr.mxu0 0.0
    %454 = vmatpush1.msra.mxu0 0.0
    %455 = vmatprep.subr.mxu0 0.0
    %456 = vmatpush1.msra.mxu0 0.0
    %457 = vmatprep.subr.mxu0 0.0
    %458 = vmatpush1.msra.mxu0 0.0
    %459 = vmatprep.subr.mxu0 0.0
    %460 = vmatpush1.msra.mxu0 0.0
    %461 = vmatprep.subr.mxu0 0.0
    %462 = vmatpush1.msra.mxu0 0.0
    %463 = vmatprep.subr.mxu0 0.0
    %464 = vmatpush1.msra.mxu0 0.0
    %465 = vmatprep.subr.mxu0 0.0
    %466 = vmatpush1.msra.mxu0 0.0
    %467 = vmatprep.subr.mxu0 0.0
    %468 = vmatpush1.msra.mxu0 0.0
    %469 = vmatprep.subr.mxu0 0.0
    %470 = vmatpush1.msra.mxu0 0.0
    %471 = vmatprep.subr.mxu0 0.0
    %472 = vmatpush1.msra.mxu0 0.0
    %473 = vmatprep.subr.mxu0 0.0
    %474 = vmatpush1.msra.mxu0 0.0
    %475 = vmatprep.subr.mxu0 0.0
    %476 = vmatpush1.msra.mxu0 0.0
    %477 = vmatprep.subr.mxu0 0.0
    %478 = vmatpush1.msra.mxu0 0.0
    %479 = vmatprep.subr.mxu0 0.0
    %480 = vmatpush1.msra.mxu0 0.0
    %481 = vmatprep.subr.mxu0 0.0
    %482 = vmatpush1.msra.mxu0 0.0
    %483 = vmatprep.subr.mxu0 0.0
    %484 = vmatpush1.msra.mxu0 0.0
    %485 = vmatprep.subr.mxu0 0.0
    %486 = vmatpush1.msra.mxu0 0.0
    %487 = vmatprep.subr.mxu0 0.0
    %488 = vmatpush1.msra.mxu0 0.0
    %489 = vmatprep.subr.mxu0 0.0
    %490 = vmatpush1.msra.mxu0 0.0
    %491 = vmatprep.subr.mxu0 0.0
    %492 = vmatpush1.msra.mxu0 0.0
    %493 = vmatprep.subr.mxu0 0.0
    %494 = vmatpush1.msra.mxu0 0.0
    %495 = vmatprep.subr.mxu0 0.0
    %496 = vmatpush1.msra.mxu0 0.0
    %497 = vmatprep.subr.mxu0 0.0
    %498 = vmatpush1.msra.mxu0 0.0
    %499 = vmatprep.subr.mxu0 0.0
    %500 = vmatpush1.msra.mxu0 0.0
    %501 = vmatprep.mubr.f32.mxu0 0.0
    %502 = vmatmul.mubr.f32.gmra.mrb[0].mxu0 %v85
    %v503 = vpop.f32.mrb[0].mxu0
    %v504 = vadd.f32 0.0, %v503
    %v505 = vpop.f32.mrb[0].mxu0
    %v506 = vadd.f32 0.0, %v505
    %507 = vmatprep.mubr.f32.mxu0 0.0
    %508 = vmatmul.mubr.f32.gmra.mrb[0].mxu0 %v88
    %v509 = vpop.f32.mrb[0].mxu0
    %v510 = vadd.f32 0.0, %v509
    %v511 = vpop.f32.mrb[0].mxu0
    %v512 = vadd.f32 0.0, %v511
    %513 = vmatprep.mubr.f32.mxu0 0.0
    %514 = vmatmul.mubr.f32.gmra.mrb[0].mxu0 %v91
    %v515 = vpop.f32.mrb[0].mxu0
    %v516 = vadd.f32 0.0, %v515
    %v517 = vpop.f32.mrb[0].mxu0
    %v518 = vadd.f32 0.0, %v517
    %519 = vmatprep.mubr.f32.mxu0 0.0
    %520 = vmatmul.mubr.f32.gmra.mrb[0].mxu0 %v94
    %v521 = vpop.f32.mrb[0].mxu0
    %v522 = vadd.f32 0.0, %v521
    %v523 = vpop.f32.mrb[0].mxu0
    %v524 = vadd.f32 0.0, %v523
    %525 = vmatprep.mubr.f32.mxu0 0.0
    %526 = vmatmul.mubr.f32.gmra.mrb[0].mxu0 %v97
    %v527 = vpop.f32.mrb[0].mxu0
    %v528 = vadd.f32 0.0, %v527
    %v529 = vpop.f32.mrb[0].mxu0
    %v530 = vadd.f32 0.0, %v529
    %531 = vmatprep.mubr.f32.mxu0 0.0
    %532 = vmatmul.mubr.f32.gmra.mrb[0].mxu0 %v100
    %v533 = vpop.f32.mrb[0].mxu0
    %v534 = vadd.f32 0.0, %v533
    %v535 = vpop.f32.mrb[0].mxu0
    %v536 = vadd.f32 0.0, %v535
    %537 = vdwg.mxu0
    %v538 = vmax.f32 %v169, %v403
    %v539 = vmax.f32 %v171, %v405
    %v540 = vmax.f32 %v270, %v504
    %v541 = vmax.f32 %v272, %v506
    %v542 = vmax.f32 %v175, %v409
    %v543 = vmax.f32 %v177, %v411
    %v544 = vmax.f32 %v276, %v510
    %v545 = vmax.f32 %v278, %v512
    %v546 = vmax.f32 %v181, %v415
    %v547 = vmax.f32 %v183, %v417
    %v548 = vmax.f32 %v282, %v516
    %v549 = vmax.f32 %v284, %v518
    %v550 = vmax.f32 %v187, %v421
    %v551 = vmax.f32 %v189, %v423
    %v552 = vmax.f32 %v288, %v522
    %v553 = vmax.f32 %v290, %v524
    %v554 = vmax.f32 %v193, %v427
    %v555 = vmax.f32 %v195, %v429
    %v556 = vmax.f32 %v294, %v528
    %v557 = vmax.f32 %v296, %v530
    %v558 = vmax.f32 %v199, %v433
    %v559 = vmax.f32 %v201, %v435
    %v560 = vmax.f32 %v300, %v534
    %v561 = vmax.f32 %v302, %v536
    %v562 = vld [vmem:[%s4] sm:$0xf]
    %v564 = vlaneseq
    %v565 = vshrl.u32 %v564, 7
    %v566 = vsub.s32 0, %v565
    %v567 = vrot.slane %v562, %v566
    %v568 = vlaneseq
    %v569 = vshrl.u32 %v568, 7
    %v570 = vsub.s32 1, %v569
    %v571 = vrot.slane %v562, %v570
    %v572 = vlaneseq
    %v573 = vshrl.u32 %v572, 7
    %v574 = vsub.s32 2, %v573
    %v575 = vrot.slane %v562, %v574
    %v576 = vlaneseq
    %v577 = vshrl.u32 %v576, 7
    %v578 = vsub.s32 3, %v577
    %v579 = vrot.slane %v562, %v578
    %v584 = vadd.f32 %v538, %v567
    %v585 = vadd.f32 %v539, %v571
    %v586 = vadd.f32 %v540, %v575
    %v587 = vadd.f32 %v541, %v579
    %v588 = vadd.f32 %v542, %v567
    %v589 = vadd.f32 %v543, %v571
    %v590 = vadd.f32 %v544, %v575
    %v591 = vadd.f32 %v545, %v579
    %v592 = vadd.f32 %v546, %v567
    %v593 = vadd.f32 %v547, %v571
    %v594 = vadd.f32 %v548, %v575
    %v595 = vadd.f32 %v549, %v579
    %v596 = vadd.f32 %v550, %v567
    %v597 = vadd.f32 %v551, %v571
    %v598 = vadd.f32 %v552, %v575
    %v599 = vadd.f32 %v553, %v579
    %v600 = vadd.f32 %v554, %v567
    %v601 = vadd.f32 %v555, %v571
    %v602 = vadd.f32 %v556, %v575
    %v603 = vadd.f32 %v557, %v579
    %v604 = vadd.f32 %v558, %v567
    %v605 = vadd.f32 %v559, %v571
    %v606 = vadd.f32 %v560, %v575
    %v607 = vadd.f32 %v561, %v579
    %v608 = vmax.f32 %v584, 0.0
    %v609 = vmax.f32 %v585, 0.0
    %v610 = vmax.f32 %v586, 0.0
    %v611 = vmax.f32 %v587, 0.0
    %v612 = vmax.f32 %v588, 0.0
    %v613 = vmax.f32 %v589, 0.0
    %v614 = vmax.f32 %v590, 0.0
    %v615 = vmax.f32 %v591, 0.0
    %v616 = vmax.f32 %v592, 0.0
    %v617 = vmax.f32 %v593, 0.0
    %v618 = vmax.f32 %v594, 0.0
    %v619 = vmax.f32 %v595, 0.0
    %v620 = vmax.f32 %v596, 0.0
    %v621 = vmax.f32 %v597, 0.0
    %v622 = vmax.f32 %v598, 0.0
    %v623 = vmax.f32 %v599, 0.0
    %v624 = vmax.f32 %v600, 0.0
    %v625 = vmax.f32 %v601, 0.0
    %v626 = vmax.f32 %v602, 0.0
    %v627 = vmax.f32 %v603, 0.0
    %v628 = vmax.f32 %v604, 0.0
    %v629 = vmax.f32 %v605, 0.0
    %v630 = vmax.f32 %v606, 0.0
    %v631 = vmax.f32 %v607, 0.0
    %v632 = vld [vmem:[%s5] sm:$0xff]
    %v633 = vld [vmem:[%s5 + $0x8] sm:$0xff]
    %v634 = vld [vmem:[%s5 + $0x10] sm:$0xff]
    %v635 = vld [vmem:[%s5 + $0x18] sm:$0xff]
    %v636 = vld [vmem:[%s5 + $0x20] sm:$0xff]
    %v637 = vld [vmem:[%s5 + $0x28] sm:$0xff]
    %v638 = vld [vmem:[%s5 + $0x30] sm:$0xff]
    %v639 = vld [vmem:[%s5 + $0x38] sm:$0xff]
    %v640 = vld [vmem:[%s5 + $0x40] sm:$0xff]
    %v641 = vld [vmem:[%s5 + $0x48] sm:$0xff]
    %v642 = vld [vmem:[%s5 + $0x50] sm:$0xff]
    %v643 = vld [vmem:[%s5 + $0x58] sm:$0xff]
    %v644 = vld [vmem:[%s5 + $0x60] sm:$0xff]
    %v645 = vld [vmem:[%s5 + $0x68] sm:$0xff]
    %v646 = vld [vmem:[%s5 + $0x70] sm:$0xff]
    %v647 = vld [vmem:[%s5 + $0x78] sm:$0xff]
    %v648 = vld [vmem:[%s5 + $0x80] sm:$0xff]
    %v649 = vld [vmem:[%s5 + $0x88] sm:$0xff]
    %v650 = vld [vmem:[%s5 + $0x90] sm:$0xff]
    %v651 = vld [vmem:[%s5 + $0x98] sm:$0xff]
    %v652 = vld [vmem:[%s5 + $0xa0] sm:$0xff]
    %v653 = vld [vmem:[%s5 + $0xa8] sm:$0xff]
    %v654 = vld [vmem:[%s5 + $0xb0] sm:$0xff]
    %v655 = vld [vmem:[%s5 + $0xb8] sm:$0xff]
    %v656 = vld [vmem:[%s5 + $0xc0] sm:$0xff]
    %v657 = vld [vmem:[%s5 + $0xc8] sm:$0xff]
    %v658 = vld [vmem:[%s5 + $0xd0] sm:$0xff]
    %v659 = vld [vmem:[%s5 + $0xd8] sm:$0xff]
    %v660 = vld [vmem:[%s5 + $0xe0] sm:$0xff]
    %v661 = vld [vmem:[%s5 + $0xe8] sm:$0xff]
    %v662 = vld [vmem:[%s5 + $0xf0] sm:$0xff]
    %v663 = vld [vmem:[%s5 + $0xf8] sm:$0xff]
    %v664 = vld [vmem:[%s5 + $0x100] sm:$0xff]
    %v665 = vld [vmem:[%s5 + $0x108] sm:$0xff]
    %v666 = vld [vmem:[%s5 + $0x110] sm:$0xff]
    %v667 = vld [vmem:[%s5 + $0x118] sm:$0xff]
    %v668 = vld [vmem:[%s5 + $0x120] sm:$0xff]
    %v669 = vld [vmem:[%s5 + $0x128] sm:$0xff]
    %v670 = vld [vmem:[%s5 + $0x130] sm:$0xff]
    %v671 = vld [vmem:[%s5 + $0x138] sm:$0xff]
    %v672 = vld [vmem:[%s5 + $0x140] sm:$0xff]
    %v673 = vld [vmem:[%s5 + $0x148] sm:$0xff]
    %v674 = vld [vmem:[%s5 + $0x150] sm:$0xff]
    %v675 = vld [vmem:[%s5 + $0x158] sm:$0xff]
    %v676 = vld [vmem:[%s5 + $0x160] sm:$0xff]
    %v677 = vld [vmem:[%s5 + $0x168] sm:$0xff]
    %v678 = vld [vmem:[%s5 + $0x170] sm:$0xff]
    %v679 = vld [vmem:[%s5 + $0x178] sm:$0xff]
    %v680 = vld [vmem:[%s5 + $0x180] sm:$0xff]
    %v681 = vld [vmem:[%s5 + $0x188] sm:$0xff]
    %v682 = vld [vmem:[%s5 + $0x190] sm:$0xff]
    %v683 = vld [vmem:[%s5 + $0x198] sm:$0xff]
    %v684 = vld [vmem:[%s5 + $0x1a0] sm:$0xff]
    %v685 = vld [vmem:[%s5 + $0x1a8] sm:$0xff]
    %v686 = vld [vmem:[%s5 + $0x1b0] sm:$0xff]
    %v687 = vld [vmem:[%s5 + $0x1b8] sm:$0xff]
    %v688 = vld [vmem:[%s5 + $0x1c0] sm:$0xff]
    %v689 = vld [vmem:[%s5 + $0x1c8] sm:$0xff]
    %v690 = vld [vmem:[%s5 + $0x1d0] sm:$0xff]
    %v691 = vld [vmem:[%s5 + $0x1d8] sm:$0xff]
    %v692 = vld [vmem:[%s5 + $0x1e0] sm:$0xff]
    %v693 = vld [vmem:[%s5 + $0x1e8] sm:$0xff]
    %v694 = vld [vmem:[%s5 + $0x1f0] sm:$0xff]
    %v695 = vld [vmem:[%s5 + $0x1f8] sm:$0xff]
    %v696 = vld [vmem:[%s5 + $0x200] sm:$0xff]
    %v697 = vld [vmem:[%s5 + $0x208] sm:$0xff]
    %v698 = vld [vmem:[%s5 + $0x210] sm:$0xff]
    %v699 = vld [vmem:[%s5 + $0x218] sm:$0xff]
    %v700 = vld [vmem:[%s5 + $0x220] sm:$0xff]
    %v701 = vld [vmem:[%s5 + $0x228] sm:$0xff]
    %v702 = vld [vmem:[%s5 + $0x230] sm:$0xff]
    %v703 = vld [vmem:[%s5 + $0x238] sm:$0xff]
    %v704 = vld [vmem:[%s5 + $0x240] sm:$0xff]
    %v705 = vld [vmem:[%s5 + $0x248] sm:$0xff]
    %v706 = vld [vmem:[%s5 + $0x250] sm:$0xff]
    %v707 = vld [vmem:[%s5 + $0x258] sm:$0xff]
    %v708 = vld [vmem:[%s5 + $0x260] sm:$0xff]
    %v709 = vld [vmem:[%s5 + $0x268] sm:$0xff]
    %v710 = vld [vmem:[%s5 + $0x270] sm:$0xff]
    %v711 = vld [vmem:[%s5 + $0x278] sm:$0xff]
    %v712 = vld [vmem:[%s5 + $0x280] sm:$0xff]
    %v713 = vld [vmem:[%s5 + $0x288] sm:$0xff]
    %v714 = vld [vmem:[%s5 + $0x290] sm:$0xff]
    %v715 = vld [vmem:[%s5 + $0x298] sm:$0xff]
    %v716 = vld [vmem:[%s5 + $0x2a0] sm:$0xff]
    %v717 = vld [vmem:[%s5 + $0x2a8] sm:$0xff]
    %v718 = vld [vmem:[%s5 + $0x2b0] sm:$0xff]
    %v719 = vld [vmem:[%s5 + $0x2b8] sm:$0xff]
    %v720 = vld [vmem:[%s5 + $0x2c0] sm:$0xff]
    %v721 = vld [vmem:[%s5 + $0x2c8] sm:$0xff]
    %v722 = vld [vmem:[%s5 + $0x2d0] sm:$0xff]
    %v723 = vld [vmem:[%s5 + $0x2d8] sm:$0xff]
    %v724 = vld [vmem:[%s5 + $0x2e0] sm:$0xff]
    %v725 = vld [vmem:[%s5 + $0x2e8] sm:$0xff]
    %v726 = vld [vmem:[%s5 + $0x2f0] sm:$0xff]
    %v727 = vld [vmem:[%s5 + $0x2f8] sm:$0xff]
    %v728 = vld [vmem:[%s5 + $0x300] sm:$0xff]
    %v729 = vld [vmem:[%s5 + $0x308] sm:$0xff]
    %v730 = vld [vmem:[%s5 + $0x310] sm:$0xff]
    %v731 = vld [vmem:[%s5 + $0x318] sm:$0xff]
    %v732 = vld [vmem:[%s5 + $0x320] sm:$0xff]
    %v733 = vld [vmem:[%s5 + $0x328] sm:$0xff]
    %v734 = vld [vmem:[%s5 + $0x330] sm:$0xff]
    %v735 = vld [vmem:[%s5 + $0x338] sm:$0xff]
    %v736 = vld [vmem:[%s5 + $0x340] sm:$0xff]
    %v737 = vld [vmem:[%s5 + $0x348] sm:$0xff]
    %v738 = vld [vmem:[%s5 + $0x350] sm:$0xff]
    %v739 = vld [vmem:[%s5 + $0x358] sm:$0xff]
    %v740 = vld [vmem:[%s5 + $0x360] sm:$0xff]
    %v741 = vld [vmem:[%s5 + $0x368] sm:$0xff]
    %v742 = vld [vmem:[%s5 + $0x370] sm:$0xff]
    %v743 = vld [vmem:[%s5 + $0x378] sm:$0xff]
    %v744 = vld [vmem:[%s5 + $0x380] sm:$0xff]
    %v745 = vld [vmem:[%s5 + $0x388] sm:$0xff]
    %v746 = vld [vmem:[%s5 + $0x390] sm:$0xff]
    %v747 = vld [vmem:[%s5 + $0x398] sm:$0xff]
    %v748 = vld [vmem:[%s5 + $0x3a0] sm:$0xff]
    %v749 = vld [vmem:[%s5 + $0x3a8] sm:$0xff]
    %v750 = vld [vmem:[%s5 + $0x3b0] sm:$0xff]
    %v751 = vld [vmem:[%s5 + $0x3b8] sm:$0xff]
    %v752 = vld [vmem:[%s5 + $0x3c0] sm:$0xff]
    %v753 = vld [vmem:[%s5 + $0x3c8] sm:$0xff]
    %v754 = vld [vmem:[%s5 + $0x3d0] sm:$0xff]
    %v755 = vld [vmem:[%s5 + $0x3d8] sm:$0xff]
    %v756 = vld [vmem:[%s5 + $0x3e0] sm:$0xff]
    %v757 = vld [vmem:[%s5 + $0x3e8] sm:$0xff]
    %v758 = vld [vmem:[%s5 + $0x3f0] sm:$0xff]
    %v759 = vld [vmem:[%s5 + $0x3f8] sm:$0xff]
    %v760 = vld [vmem:[%s5 + $0x400] sm:$0xff]
    %v761 = vld [vmem:[%s5 + $0x408] sm:$0xff]
    %v762 = vld [vmem:[%s5 + $0x410] sm:$0xff]
    %v763 = vld [vmem:[%s5 + $0x418] sm:$0xff]
    %v764 = vld [vmem:[%s5 + $0x420] sm:$0xff]
    %v765 = vld [vmem:[%s5 + $0x428] sm:$0xff]
    %v766 = vld [vmem:[%s5 + $0x430] sm:$0xff]
    %v767 = vld [vmem:[%s5 + $0x438] sm:$0xff]
    %v768 = vld [vmem:[%s5 + $0x440] sm:$0xff]
    %v769 = vld [vmem:[%s5 + $0x448] sm:$0xff]
    %v770 = vld [vmem:[%s5 + $0x450] sm:$0xff]
    %v771 = vld [vmem:[%s5 + $0x458] sm:$0xff]
    %v772 = vld [vmem:[%s5 + $0x460] sm:$0xff]
    %v773 = vld [vmem:[%s5 + $0x468] sm:$0xff]
    %v774 = vld [vmem:[%s5 + $0x470] sm:$0xff]
    %v775 = vld [vmem:[%s5 + $0x478] sm:$0xff]
    %v776 = vld [vmem:[%s5 + $0x480] sm:$0xff]
    %v777 = vld [vmem:[%s5 + $0x488] sm:$0xff]
    %v778 = vld [vmem:[%s5 + $0x490] sm:$0xff]
    %v779 = vld [vmem:[%s5 + $0x498] sm:$0xff]
    %v780 = vld [vmem:[%s5 + $0x4a0] sm:$0xff]
    %v781 = vld [vmem:[%s5 + $0x4a8] sm:$0xff]
    %v782 = vld [vmem:[%s5 + $0x4b0] sm:$0xff]
    %v783 = vld [vmem:[%s5 + $0x4b8] sm:$0xff]
    %v784 = vld [vmem:[%s5 + $0x4c0] sm:$0xff]
    %v785 = vld [vmem:[%s5 + $0x4c8] sm:$0xff]
    %v786 = vld [vmem:[%s5 + $0x4d0] sm:$0xff]
    %v787 = vld [vmem:[%s5 + $0x4d8] sm:$0xff]
    %v788 = vld [vmem:[%s5 + $0x4e0] sm:$0xff]
    %v789 = vld [vmem:[%s5 + $0x4e8] sm:$0xff]
    %v790 = vld [vmem:[%s5 + $0x4f0] sm:$0xff]
    %v791 = vld [vmem:[%s5 + $0x4f8] sm:$0xff]
    %v792 = vld [vmem:[%s5 + $0x500] sm:$0xff]
    %v793 = vld [vmem:[%s5 + $0x508] sm:$0xff]
    %v794 = vld [vmem:[%s5 + $0x510] sm:$0xff]
    %v795 = vld [vmem:[%s5 + $0x518] sm:$0xff]
    %v796 = vld [vmem:[%s5 + $0x520] sm:$0xff]
    %v797 = vld [vmem:[%s5 + $0x528] sm:$0xff]
    %v798 = vld [vmem:[%s5 + $0x530] sm:$0xff]
    %v799 = vld [vmem:[%s5 + $0x538] sm:$0xff]
    %v800 = vld [vmem:[%s5 + $0x540] sm:$0xff]
    %v801 = vld [vmem:[%s5 + $0x548] sm:$0xff]
    %v802 = vld [vmem:[%s5 + $0x550] sm:$0xff]
    %v803 = vld [vmem:[%s5 + $0x558] sm:$0xff]
    %v804 = vld [vmem:[%s5 + $0x560] sm:$0xff]
    %v805 = vld [vmem:[%s5 + $0x568] sm:$0xff]
    %v806 = vld [vmem:[%s5 + $0x570] sm:$0xff]
    %v807 = vld [vmem:[%s5 + $0x578] sm:$0xff]
    %v808 = vld [vmem:[%s5 + $0x580] sm:$0xff]
    %v809 = vld [vmem:[%s5 + $0x588] sm:$0xff]
    %v810 = vld [vmem:[%s5 + $0x590] sm:$0xff]
    %v811 = vld [vmem:[%s5 + $0x598] sm:$0xff]
    %v812 = vld [vmem:[%s5 + $0x5a0] sm:$0xff]
    %v813 = vld [vmem:[%s5 + $0x5a8] sm:$0xff]
    %v814 = vld [vmem:[%s5 + $0x5b0] sm:$0xff]
    %v815 = vld [vmem:[%s5 + $0x5b8] sm:$0xff]
    %v816 = vld [vmem:[%s5 + $0x5c0] sm:$0xff]
    %v817 = vld [vmem:[%s5 + $0x5c8] sm:$0xff]
    %v818 = vld [vmem:[%s5 + $0x5d0] sm:$0xff]
    %v819 = vld [vmem:[%s5 + $0x5d8] sm:$0xff]
    %v820 = vld [vmem:[%s5 + $0x5e0] sm:$0xff]
    %v821 = vld [vmem:[%s5 + $0x5e8] sm:$0xff]
    %v822 = vld [vmem:[%s5 + $0x5f0] sm:$0xff]
    %v823 = vld [vmem:[%s5 + $0x5f8] sm:$0xff]
    %v824 = vld [vmem:[%s5 + $0x600] sm:$0xff]
    %v825 = vld [vmem:[%s5 + $0x608] sm:$0xff]
    %v826 = vld [vmem:[%s5 + $0x610] sm:$0xff]
    %v827 = vld [vmem:[%s5 + $0x618] sm:$0xff]
    %v828 = vld [vmem:[%s5 + $0x620] sm:$0xff]
    %v829 = vld [vmem:[%s5 + $0x628] sm:$0xff]
    %v830 = vld [vmem:[%s5 + $0x630] sm:$0xff]
    %v831 = vld [vmem:[%s5 + $0x638] sm:$0xff]
    %v832 = vld [vmem:[%s5 + $0x640] sm:$0xff]
    %v833 = vld [vmem:[%s5 + $0x648] sm:$0xff]
    %v834 = vld [vmem:[%s5 + $0x650] sm:$0xff]
    %v835 = vld [vmem:[%s5 + $0x658] sm:$0xff]
    %v836 = vld [vmem:[%s5 + $0x660] sm:$0xff]
    %v837 = vld [vmem:[%s5 + $0x668] sm:$0xff]
    %v838 = vld [vmem:[%s5 + $0x670] sm:$0xff]
    %v839 = vld [vmem:[%s5 + $0x678] sm:$0xff]
    %v840 = vld [vmem:[%s5 + $0x680] sm:$0xff]
    %v841 = vld [vmem:[%s5 + $0x688] sm:$0xff]
    %v842 = vld [vmem:[%s5 + $0x690] sm:$0xff]
    %v843 = vld [vmem:[%s5 + $0x698] sm:$0xff]
    %v844 = vld [vmem:[%s5 + $0x6a0] sm:$0xff]
    %v845 = vld [vmem:[%s5 + $0x6a8] sm:$0xff]
    %v846 = vld [vmem:[%s5 + $0x6b0] sm:$0xff]
    %v847 = vld [vmem:[%s5 + $0x6b8] sm:$0xff]
    %v848 = vld [vmem:[%s5 + $0x6c0] sm:$0xff]
    %v849 = vld [vmem:[%s5 + $0x6c8] sm:$0xff]
    %v850 = vld [vmem:[%s5 + $0x6d0] sm:$0xff]
    %v851 = vld [vmem:[%s5 + $0x6d8] sm:$0xff]
    %v852 = vld [vmem:[%s5 + $0x6e0] sm:$0xff]
    %v853 = vld [vmem:[%s5 + $0x6e8] sm:$0xff]
    %v854 = vld [vmem:[%s5 + $0x6f0] sm:$0xff]
    %v855 = vld [vmem:[%s5 + $0x6f8] sm:$0xff]
    %v856 = vld [vmem:[%s5 + $0x700] sm:$0xff]
    %v857 = vld [vmem:[%s5 + $0x708] sm:$0xff]
    %v858 = vld [vmem:[%s5 + $0x710] sm:$0xff]
    %v859 = vld [vmem:[%s5 + $0x718] sm:$0xff]
    %v860 = vld [vmem:[%s5 + $0x720] sm:$0xff]
    %v861 = vld [vmem:[%s5 + $0x728] sm:$0xff]
    %v862 = vld [vmem:[%s5 + $0x730] sm:$0xff]
    %v863 = vld [vmem:[%s5 + $0x738] sm:$0xff]
    %v864 = vld [vmem:[%s5 + $0x740] sm:$0xff]
    %v865 = vld [vmem:[%s5 + $0x748] sm:$0xff]
    %v866 = vld [vmem:[%s5 + $0x750] sm:$0xff]
    %v867 = vld [vmem:[%s5 + $0x758] sm:$0xff]
    %v868 = vld [vmem:[%s5 + $0x760] sm:$0xff]
    %v869 = vld [vmem:[%s5 + $0x768] sm:$0xff]
    %v870 = vld [vmem:[%s5 + $0x770] sm:$0xff]
    %v871 = vld [vmem:[%s5 + $0x778] sm:$0xff]
    %vm872 = vcmask 785408
    %v874 = vsel %vm872, %v611, 0
    %v877 = vsel %vm872, %v615, 0
    %v880 = vsel %vm872, %v619, 0
    %v883 = vsel %vm872, %v623, 0
    %v886 = vsel %vm872, %v627, 0
    %v889 = vsel %vm872, %v631, 0
    %891 = vmatprep.subr.mxu0 %v633
    %892 = vmatpush1.msra.mxu0 %v632
    %893 = vmatprep.subr.mxu0 %v637
    %894 = vmatpush1.msra.mxu0 %v636
    %895 = vmatprep.subr.mxu0 %v641
    %896 = vmatpush1.msra.mxu0 %v640
    %897 = vmatprep.subr.mxu0 %v645
    %898 = vmatpush1.msra.mxu0 %v644
    %899 = vmatprep.subr.mxu0 %v649
    %900 = vmatpush1.msra.mxu0 %v648
    %901 = vmatprep.subr.mxu0 %v653
    %902 = vmatpush1.msra.mxu0 %v652
    %903 = vmatprep.subr.mxu0 %v657
    %904 = vmatpush1.msra.mxu0 %v656
    %905 = vmatprep.subr.mxu0 %v661
    %906 = vmatpush1.msra.mxu0 %v660
    %907 = vmatprep.subr.mxu0 %v665
    %908 = vmatpush1.msra.mxu0 %v664
    %909 = vmatprep.subr.mxu0 %v669
    %910 = vmatpush1.msra.mxu0 %v668
    %911 = vmatprep.subr.mxu0 %v673
    %912 = vmatpush1.msra.mxu0 %v672
    %913 = vmatprep.subr.mxu0 %v677
    %914 = vmatpush1.msra.mxu0 %v676
    %915 = vmatprep.subr.mxu0 %v681
    %916 = vmatpush1.msra.mxu0 %v680
    %917 = vmatprep.subr.mxu0 %v685
    %918 = vmatpush1.msra.mxu0 %v684
    %919 = vmatprep.subr.mxu0 %v689
    %920 = vmatpush1.msra.mxu0 %v688
    %921 = vmatprep.subr.mxu0 %v693
    %922 = vmatpush1.msra.mxu0 %v692
    %923 = vmatprep.subr.mxu0 %v697
    %924 = vmatpush1.msra.mxu0 %v696
    %925 = vmatprep.subr.mxu0 %v701
    %926 = vmatpush1.msra.mxu0 %v700
    %927 = vmatprep.subr.mxu0 %v705
    %928 = vmatpush1.msra.mxu0 %v704
    %929 = vmatprep.subr.mxu0 %v709
    %930 = vmatpush1.msra.mxu0 %v708
    %931 = vmatprep.subr.mxu0 %v713
    %932 = vmatpush1.msra.mxu0 %v712
    %933 = vmatprep.subr.mxu0 %v717
    %934 = vmatpush1.msra.mxu0 %v716
    %935 = vmatprep.subr.mxu0 %v721
    %936 = vmatpush1.msra.mxu0 %v720
    %937 = vmatprep.subr.mxu0 %v725
    %938 = vmatpush1.msra.mxu0 %v724
    %939 = vmatprep.subr.mxu0 %v729
    %940 = vmatpush1.msra.mxu0 %v728
    %941 = vmatprep.subr.mxu0 %v733
    %942 = vmatpush1.msra.mxu0 %v732
    %943 = vmatprep.subr.mxu0 %v737
    %944 = vmatpush1.msra.mxu0 %v736
    %945 = vmatprep.subr.mxu0 %v741
    %946 = vmatpush1.msra.mxu0 %v740
    %947 = vmatprep.subr.mxu0 %v745
    %948 = vmatpush1.msra.mxu0 %v744
    %949 = vmatprep.subr.mxu0 %v749
    %950 = vmatpush1.msra.mxu0 %v748
    %951 = vmatprep.subr.mxu0 %v753
    %952 = vmatpush1.msra.mxu0 %v752
    %953 = vmatprep.subr.mxu0 %v757
    %954 = vmatpush1.msra.mxu0 %v756
    %955 = vmatprep.mubr.f32.mxu0 %v609
    %956 = vmatmul.mubr.f32.gmra.mrb[0].mxu0 %v608
    %v957 = vpop.f32.mrb[0].mxu0
    %v958 = vadd.f32 0.0, %v957
    %v959 = vpop.f32.mrb[0].mxu0
    %v960 = vadd.f32 0.0, %v959
    %961 = vmatprep.mubr.f32.mxu0 %v613
    %962 = vmatmul.mubr.f32.gmra.mrb[0].mxu0 %v612
    %v963 = vpop.f32.mrb[0].mxu0
    %v964 = vadd.f32 0.0, %v963
    %v965 = vpop.f32.mrb[0].mxu0
    %v966 = vadd.f32 0.0, %v965
    %967 = vmatprep.mubr.f32.mxu0 %v617
    %968 = vmatmul.mubr.f32.gmra.mrb[0].mxu0 %v616
    %v969 = vpop.f32.mrb[0].mxu0
    %v970 = vadd.f32 0.0, %v969
    %v971 = vpop.f32.mrb[0].mxu0
    %v972 = vadd.f32 0.0, %v971
    %973 = vmatprep.mubr.f32.mxu0 %v621
    %974 = vmatmul.mubr.f32.gmra.mrb[0].mxu0 %v620
    %v975 = vpop.f32.mrb[0].mxu0
    %v976 = vadd.f32 0.0, %v975
    %v977 = vpop.f32.mrb[0].mxu0
    %v978 = vadd.f32 0.0, %v977
    %979 = vmatprep.mubr.f32.mxu0 %v625
    %980 = vmatmul.mubr.f32.gmra.mrb[0].mxu0 %v624
    %v981 = vpop.f32.mrb[0].mxu0
    %v982 = vadd.f32 0.0, %v981
    %v983 = vpop.f32.mrb[0].mxu0
    %v984 = vadd.f32 0.0, %v983
    %985 = vmatprep.mubr.f32.mxu0 %v629
    %986 = vmatmul.mubr.f32.gmra.mrb[0].mxu0 %v628
    %v987 = vpop.f32.mrb[0].mxu0
    %v988 = vadd.f32 0.0, %v987
    %v989 = vpop.f32.mrb[0].mxu0
    %v990 = vadd.f32 0.0, %v989
    %991 = vdwg.mxu0
    %992 = vmatprep.subr.mxu0 %v761
    %993 = vmatpush1.msra.mxu0 %v760
    %994 = vmatprep.subr.mxu0 %v765
    %995 = vmatpush1.msra.mxu0 %v764
    %996 = vmatprep.subr.mxu0 %v769
    %997 = vmatpush1.msra.mxu0 %v768
    %998 = vmatprep.subr.mxu0 %v773
    %999 = vmatpush1.msra.mxu0 %v772
    %1000 = vmatprep.subr.mxu0 %v777
    %1001 = vmatpush1.msra.mxu0 %v776
    %1002 = vmatprep.subr.mxu0 %v781
    %1003 = vmatpush1.msra.mxu0 %v780
    %1004 = vmatprep.subr.mxu0 %v785
    %1005 = vmatpush1.msra.mxu0 %v784
    %1006 = vmatprep.subr.mxu0 %v789
    %1007 = vmatpush1.msra.mxu0 %v788
    %1008 = vmatprep.subr.mxu0 %v793
    %1009 = vmatpush1.msra.mxu0 %v792
    %1010 = vmatprep.subr.mxu0 %v797
    %1011 = vmatpush1.msra.mxu0 %v796
    %1012 = vmatprep.subr.mxu0 %v801
    %1013 = vmatpush1.msra.mxu0 %v800
    %1014 = vmatprep.subr.mxu0 %v805
    %1015 = vmatpush1.msra.mxu0 %v804
    %1016 = vmatprep.subr.mxu0 %v809
    %1017 = vmatpush1.msra.mxu0 %v808
    %1018 = vmatprep.subr.mxu0 %v813
    %1019 = vmatpush1.msra.mxu0 %v812
    %1020 = vmatprep.subr.mxu0 %v817
    %1021 = vmatpush1.msra.mxu0 %v816
    %1022 = vmatprep.subr.mxu0 %v821
    %1023 = vmatpush1.msra.mxu0 %v820
    %1024 = vmatprep.subr.mxu0 %v825
    %1025 = vmatpush1.msra.mxu0 %v824
    %1026 = vmatprep.subr.mxu0 %v829
    %1027 = vmatpush1.msra.mxu0 %v828
    %1028 = vmatprep.subr.mxu0 %v833
    %1029 = vmatpush1.msra.mxu0 %v832
    %1030 = vmatprep.subr.mxu0 %v837
    %1031 = vmatpush1.msra.mxu0 %v836
    %1032 = vmatprep.subr.mxu0 %v841
    %1033 = vmatpush1.msra.mxu0 %v840
    %1034 = vmatprep.subr.mxu0 %v845
    %1035 = vmatpush1.msra.mxu0 %v844
    %1036 = vmatprep.subr.mxu0 %v849
    %1037 = vmatpush1.msra.mxu0 %v848
    %1038 = vmatprep.subr.mxu0 %v853
    %1039 = vmatpush1.msra.mxu0 %v852
    %1040 = vmatprep.subr.mxu0 %v857
    %1041 = vmatpush1.msra.mxu0 %v856
    %1042 = vmatprep.subr.mxu0 %v861
    %1043 = vmatpush1.msra.mxu0 %v860
    %1044 = vmatprep.subr.mxu0 %v865
    %1045 = vmatpush1.msra.mxu0 %v864
    %1046 = vmatprep.subr.mxu0 %v869
    %1047 = vmatpush1.msra.mxu0 %v868
    %1048 = vmatprep.subr.mxu0 0.0
    %1049 = vmatpush1.msra.mxu0 0.0
    %1050 = vmatprep.subr.mxu0 0.0
    %1051 = vmatpush1.msra.mxu0 0.0
    %1052 = vmatprep.subr.mxu0 0.0
    %1053 = vmatpush1.msra.mxu0 0.0
    %1054 = vmatprep.subr.mxu0 0.0
    %1055 = vmatpush1.msra.mxu0 0.0
    %1056 = vmatprep.mubr.f32.mxu0 %v874
    %1057 = vmatmul.mubr.f32.gmra.mrb[0].mxu0 %v610
    %v1058 = vpop.f32.mrb[0].mxu0
    %v1059 = vadd.f32 %v958, %v1058
    %v1060 = vpop.f32.mrb[0].mxu0
    %v1061 = vadd.f32 %v960, %v1060
    %1062 = vmatprep.mubr.f32.mxu0 %v877
    %1063 = vmatmul.mubr.f32.gmra.mrb[0].mxu0 %v614
    %v1064 = vpop.f32.mrb[0].mxu0
    %v1065 = vadd.f32 %v964, %v1064
    %v1066 = vpop.f32.mrb[0].mxu0
    %v1067 = vadd.f32 %v966, %v1066
    %1068 = vmatprep.mubr.f32.mxu0 %v880
    %1069 = vmatmul.mubr.f32.gmra.mrb[0].mxu0 %v618
    %v1070 = vpop.f32.mrb[0].mxu0
    %v1071 = vadd.f32 %v970, %v1070
    %v1072 = vpop.f32.mrb[0].mxu0
    %v1073 = vadd.f32 %v972, %v1072
    %1074 = vmatprep.mubr.f32.mxu0 %v883
    %1075 = vmatmul.mubr.f32.gmra.mrb[0].mxu0 %v622
    %v1076 = vpop.f32.mrb[0].mxu0
    %v1077 = vadd.f32 %v976, %v1076
    %v1078 = vpop.f32.mrb[0].mxu0
    %v1079 = vadd.f32 %v978, %v1078
    %1080 = vmatprep.mubr.f32.mxu0 %v886
    %1081 = vmatmul.mubr.f32.gmra.mrb[0].mxu0 %v626
    %v1082 = vpop.f32.mrb[0].mxu0
    %v1083 = vadd.f32 %v982, %v1082
    %v1084 = vpop.f32.mrb[0].mxu0
    %v1085 = vadd.f32 %v984, %v1084
    %1086 = vmatprep.mubr.f32.mxu0 %v889
    %1087 = vmatmul.mubr.f32.gmra.mrb[0].mxu0 %v630
    %v1088 = vpop.f32.mrb[0].mxu0
    %v1089 = vadd.f32 %v988, %v1088
    %v1090 = vpop.f32.mrb[0].mxu0
    %v1091 = vadd.f32 %v990, %v1090
    %1092 = vdwg.mxu0
    %1093 = vmatprep.subr.mxu0 %v635
    %1094 = vmatpush1.msra.mxu0 %v634
    %1095 = vmatprep.subr.mxu0 %v639
    %1096 = vmatpush1.msra.mxu0 %v638
    %1097 = vmatprep.subr.mxu0 %v643
    %1098 = vmatpush1.msra.mxu0 %v642
    %1099 = vmatprep.subr.mxu0 %v647
    %1100 = vmatpush1.msra.mxu0 %v646
    %1101 = vmatprep.subr.mxu0 %v651
    %1102 = vmatpush1.msra.mxu0 %v650
    %1103 = vmatprep.subr.mxu0 %v655
    %1104 = vmatpush1.msra.mxu0 %v654
    %1105 = vmatprep.subr.mxu0 %v659
    %1106 = vmatpush1.msra.mxu0 %v658
    %1107 = vmatprep.subr.mxu0 %v663
    %1108 = vmatpush1.msra.mxu0 %v662
    %1109 = vmatprep.subr.mxu0 %v667
    %1110 = vmatpush1.msra.mxu0 %v666
    %1111 = vmatprep.subr.mxu0 %v671
    %1112 = vmatpush1.msra.mxu0 %v670
    %1113 = vmatprep.subr.mxu0 %v675
    %1114 = vmatpush1.msra.mxu0 %v674
    %1115 = vmatprep.subr.mxu0 %v679
    %1116 = vmatpush1.msra.mxu0 %v678
    %1117 = vmatprep.subr.mxu0 %v683
    %1118 = vmatpush1.msra.mxu0 %v682
    %1119 = vmatprep.subr.mxu0 %v687
    %1120 = vmatpush1.msra.mxu0 %v686
    %1121 = vmatprep.subr.mxu0 %v691
    %1122 = vmatpush1.msra.mxu0 %v690
    %1123 = vmatprep.subr.mxu0 %v695
    %1124 = vmatpush1.msra.mxu0 %v694
    %1125 = vmatprep.subr.mxu0 %v699
    %1126 = vmatpush1.msra.mxu0 %v698
    %1127 = vmatprep.subr.mxu0 %v703
    %1128 = vmatpush1.msra.mxu0 %v702
    %1129 = vmatprep.subr.mxu0 %v707
    %1130 = vmatpush1.msra.mxu0 %v706
    %1131 = vmatprep.subr.mxu0 %v711
    %1132 = vmatpush1.msra.mxu0 %v710
    %1133 = vmatprep.subr.mxu0 %v715
    %1134 = vmatpush1.msra.mxu0 %v714
    %1135 = vmatprep.subr.mxu0 %v719
    %1136 = vmatpush1.msra.mxu0 %v718
    %1137 = vmatprep.subr.mxu0 %v723
    %1138 = vmatpush1.msra.mxu0 %v722
    %1139 = vmatprep.subr.mxu0 %v727
    %1140 = vmatpush1.msra.mxu0 %v726
    %1141 = vmatprep.subr.mxu0 %v731
    %1142 = vmatpush1.msra.mxu0 %v730
    %1143 = vmatprep.subr.mxu0 %v735
    %1144 = vmatpush1.msra.mxu0 %v734
    %1145 = vmatprep.subr.mxu0 %v739
    %1146 = vmatpush1.msra.mxu0 %v738
    %1147 = vmatprep.subr.mxu0 %v743
    %1148 = vmatpush1.msra.mxu0 %v742
    %1149 = vmatprep.subr.mxu0 %v747
    %1150 = vmatpush1.msra.mxu0 %v746
    %1151 = vmatprep.subr.mxu0 %v751
    %1152 = vmatpush1.msra.mxu0 %v750
    %1153 = vmatprep.subr.mxu0 %v755
    %1154 = vmatpush1.msra.mxu0 %v754
    %1155 = vmatprep.subr.mxu0 %v759
    %1156 = vmatpush1.msra.mxu0 %v758
    %1157 = vmatprep.mubr.f32.mxu0 %v609
    %1158 = vmatmul.mubr.f32.gmra.mrb[0].mxu0 %v608
    %v1159 = vpop.f32.mrb[0].mxu0
    %v1160 = vadd.f32 0.0, %v1159
    %v1161 = vpop.f32.mrb[0].mxu0
    %v1162 = vadd.f32 0.0, %v1161
    %1163 = vmatprep.mubr.f32.mxu0 %v613
    %1164 = vmatmul.mubr.f32.gmra.mrb[0].mxu0 %v612
    %v1165 = vpop.f32.mrb[0].mxu0
    %v1166 = vadd.f32 0.0, %v1165
    %v1167 = vpop.f32.mrb[0].mxu0
    %v1168 = vadd.f32 0.0, %v1167
    %1169 = vmatprep.mubr.f32.mxu0 %v617
    %1170 = vmatmul.mubr.f32.gmra.mrb[0].mxu0 %v616
    %v1171 = vpop.f32.mrb[0].mxu0
    %v1172 = vadd.f32 0.0, %v1171
    %v1173 = vpop.f32.mrb[0].mxu0
    %v1174 = vadd.f32 0.0, %v1173
    %1175 = vmatprep.mubr.f32.mxu0 %v621
    %1176 = vmatmul.mubr.f32.gmra.mrb[0].mxu0 %v620
    %v1177 = vpop.f32.mrb[0].mxu0
    %v1178 = vadd.f32 0.0, %v1177
    %v1179 = vpop.f32.mrb[0].mxu0
    %v1180 = vadd.f32 0.0, %v1179
    %1181 = vmatprep.mubr.f32.mxu0 %v625
    %1182 = vmatmul.mubr.f32.gmra.mrb[0].mxu0 %v624
    %v1183 = vpop.f32.mrb[0].mxu0
    %v1184 = vadd.f32 0.0, %v1183
    %v1185 = vpop.f32.mrb[0].mxu0
    %v1186 = vadd.f32 0.0, %v1185
    %1187 = vmatprep.mubr.f32.mxu0 %v629
    %1188 = vmatmul.mubr.f32.gmra.mrb[0].mxu0 %v628
    %v1189 = vpop.f32.mrb[0].mxu0
    %v1190 = vadd.f32 0.0, %v1189
    %v1191 = vpop.f32.mrb[0].mxu0
    %v1192 = vadd.f32 0.0, %v1191
    %1193 = vdwg.mxu0
    %1194 = vmatprep.subr.mxu0 %v763
    %1195 = vmatpush1.msra.mxu0 %v762
    %1196 = vmatprep.subr.mxu0 %v767
    %1197 = vmatpush1.msra.mxu0 %v766
    %1198 = vmatprep.subr.mxu0 %v771
    %1199 = vmatpush1.msra.mxu0 %v770
    %1200 = vmatprep.subr.mxu0 %v775
    %1201 = vmatpush1.msra.mxu0 %v774
    %1202 = vmatprep.subr.mxu0 %v779
    %1203 = vmatpush1.msra.mxu0 %v778
    %1204 = vmatprep.subr.mxu0 %v783
    %1205 = vmatpush1.msra.mxu0 %v782
    %1206 = vmatprep.subr.mxu0 %v787
    %1207 = vmatpush1.msra.mxu0 %v786
    %1208 = vmatprep.subr.mxu0 %v791
    %1209 = vmatpush1.msra.mxu0 %v790
    %1210 = vmatprep.subr.mxu0 %v795
    %1211 = vmatpush1.msra.mxu0 %v794
    %1212 = vmatprep.subr.mxu0 %v799
    %1213 = vmatpush1.msra.mxu0 %v798
    %1214 = vmatprep.subr.mxu0 %v803
    %1215 = vmatpush1.msra.mxu0 %v802
    %1216 = vmatprep.subr.mxu0 %v807
    %1217 = vmatpush1.msra.mxu0 %v806
    %1218 = vmatprep.subr.mxu0 %v811
    %1219 = vmatpush1.msra.mxu0 %v810
    %1220 = vmatprep.subr.mxu0 %v815
    %1221 = vmatpush1.msra.mxu0 %v814
    %1222 = vmatprep.subr.mxu0 %v819
    %1223 = vmatpush1.msra.mxu0 %v818
    %1224 = vmatprep.subr.mxu0 %v823
    %1225 = vmatpush1.msra.mxu0 %v822
    %1226 = vmatprep.subr.mxu0 %v827
    %1227 = vmatpush1.msra.mxu0 %v826
    %1228 = vmatprep.subr.mxu0 %v831
    %1229 = vmatpush1.msra.mxu0 %v830
    %1230 = vmatprep.subr.mxu0 %v835
    %1231 = vmatpush1.msra.mxu0 %v834
    %1232 = vmatprep.subr.mxu0 %v839
    %1233 = vmatpush1.msra.mxu0 %v838
    %1234 = vmatprep.subr.mxu0 %v843
    %1235 = vmatpush1.msra.mxu0 %v842
    %1236 = vmatprep.subr.mxu0 %v847
    %1237 = vmatpush1.msra.mxu0 %v846
    %1238 = vmatprep.subr.mxu0 %v851
    %1239 = vmatpush1.msra.mxu0 %v850
    %1240 = vmatprep.subr.mxu0 %v855
    %1241 = vmatpush1.msra.mxu0 %v854
    %1242 = vmatprep.subr.mxu0 %v859
    %1243 = vmatpush1.msra.mxu0 %v858
    %1244 = vmatprep.subr.mxu0 %v863
    %1245 = vmatpush1.msra.mxu0 %v862
    %1246 = vmatprep.subr.mxu0 %v867
    %1247 = vmatpush1.msra.mxu0 %v866
    %1248 = vmatprep.subr.mxu0 %v871
    %1249 = vmatpush1.msra.mxu0 %v870
    %1250 = vmatprep.subr.mxu0 0.0
    %1251 = vmatpush1.msra.mxu0 0.0
    %1252 = vmatprep.subr.mxu0 0.0
    %1253 = vmatpush1.msra.mxu0 0.0
    %1254 = vmatprep.subr.mxu0 0.0
    %1255 = vmatpush1.msra.mxu0 0.0
    %1256 = vmatprep.subr.mxu0 0.0
    %1257 = vmatpush1.msra.mxu0 0.0
    %1258 = vmatprep.mubr.f32.mxu0 %v874
    %1259 = vmatmul.mubr.f32.gmra.mrb[0].mxu0 %v610
    %v1260 = vpop.f32.mrb[0].mxu0
    %v1261 = vadd.f32 %v1160, %v1260
    %v1262 = vpop.f32.mrb[0].mxu0
    %v1263 = vadd.f32 %v1162, %v1262
    %1264 = vmatprep.mubr.f32.mxu0 %v877
    %1265 = vmatmul.mubr.f32.gmra.mrb[0].mxu0 %v614
    %v1266 = vpop.f32.mrb[0].mxu0
    %v1267 = vadd.f32 %v1166, %v1266
    %v1268 = vpop.f32.mrb[0].mxu0
    %v1269 = vadd.f32 %v1168, %v1268
    %1270 = vmatprep.mubr.f32.mxu0 %v880
    %1271 = vmatmul.mubr.f32.gmra.mrb[0].mxu0 %v618
    %v1272 = vpop.f32.mrb[0].mxu0
    %v1273 = vadd.f32 %v1172, %v1272
    %v1274 = vpop.f32.mrb[0].mxu0
    %v1275 = vadd.f32 %v1174, %v1274
    %1276 = vmatprep.mubr.f32.mxu0 %v883
    %1277 = vmatmul.mubr.f32.gmra.mrb[0].mxu0 %v622
    %v1278 = vpop.f32.mrb[0].mxu0
    %v1279 = vadd.f32 %v1178, %v1278
    %v1280 = vpop.f32.mrb[0].mxu0
    %v1281 = vadd.f32 %v1180, %v1280
    %1282 = vmatprep.mubr.f32.mxu0 %v886
    %1283 = vmatmul.mubr.f32.gmra.mrb[0].mxu0 %v626
    %v1284 = vpop.f32.mrb[0].mxu0
    %v1285 = vadd.f32 %v1184, %v1284
    %v1286 = vpop.f32.mrb[0].mxu0
    %v1287 = vadd.f32 %v1186, %v1286
    %1288 = vmatprep.mubr.f32.mxu0 %v889
    %1289 = vmatmul.mubr.f32.gmra.mrb[0].mxu0 %v630
    %v1290 = vpop.f32.mrb[0].mxu0
    %v1291 = vadd.f32 %v1190, %v1290
    %v1292 = vpop.f32.mrb[0].mxu0
    %v1293 = vadd.f32 %v1192, %v1292
    %1294 = vdwg.mxu0
    %v1295 = vld [vmem:[%s6] sm:$0xff]
    %v1296 = vld [vmem:[%s6 + $0x8] sm:$0xff]
    %v1297 = vld [vmem:[%s6 + $0x10] sm:$0xff]
    %v1298 = vld [vmem:[%s6 + $0x18] sm:$0xff]
    %v1299 = vld [vmem:[%s6 + $0x20] sm:$0xff]
    %v1300 = vld [vmem:[%s6 + $0x28] sm:$0xff]
    %v1301 = vld [vmem:[%s6 + $0x30] sm:$0xff]
    %v1302 = vld [vmem:[%s6 + $0x38] sm:$0xff]
    %v1303 = vld [vmem:[%s6 + $0x40] sm:$0xff]
    %v1304 = vld [vmem:[%s6 + $0x48] sm:$0xff]
    %v1305 = vld [vmem:[%s6 + $0x50] sm:$0xff]
    %v1306 = vld [vmem:[%s6 + $0x58] sm:$0xff]
    %v1307 = vld [vmem:[%s6 + $0x60] sm:$0xff]
    %v1308 = vld [vmem:[%s6 + $0x68] sm:$0xff]
    %v1309 = vld [vmem:[%s6 + $0x70] sm:$0xff]
    %v1310 = vld [vmem:[%s6 + $0x78] sm:$0xff]
    %v1311 = vld [vmem:[%s6 + $0x80] sm:$0xff]
    %v1312 = vld [vmem:[%s6 + $0x88] sm:$0xff]
    %v1313 = vld [vmem:[%s6 + $0x90] sm:$0xff]
    %v1314 = vld [vmem:[%s6 + $0x98] sm:$0xff]
    %v1315 = vld [vmem:[%s6 + $0xa0] sm:$0xff]
    %v1316 = vld [vmem:[%s6 + $0xa8] sm:$0xff]
    %v1317 = vld [vmem:[%s6 + $0xb0] sm:$0xff]
    %v1318 = vld [vmem:[%s6 + $0xb8] sm:$0xff]
    %v1319 = vld [vmem:[%s6 + $0xc0] sm:$0xff]
    %v1320 = vld [vmem:[%s6 + $0xc8] sm:$0xff]
    %v1321 = vld [vmem:[%s6 + $0xd0] sm:$0xff]
    %v1322 = vld [vmem:[%s6 + $0xd8] sm:$0xff]
    %v1323 = vld [vmem:[%s6 + $0xe0] sm:$0xff]
    %v1324 = vld [vmem:[%s6 + $0xe8] sm:$0xff]
    %v1325 = vld [vmem:[%s6 + $0xf0] sm:$0xff]
    %v1326 = vld [vmem:[%s6 + $0xf8] sm:$0xff]
    %v1327 = vld [vmem:[%s6 + $0x100] sm:$0xff]
    %v1328 = vld [vmem:[%s6 + $0x108] sm:$0xff]
    %v1329 = vld [vmem:[%s6 + $0x110] sm:$0xff]
    %v1330 = vld [vmem:[%s6 + $0x118] sm:$0xff]
    %v1331 = vld [vmem:[%s6 + $0x120] sm:$0xff]
    %v1332 = vld [vmem:[%s6 + $0x128] sm:$0xff]
    %v1333 = vld [vmem:[%s6 + $0x130] sm:$0xff]
    %v1334 = vld [vmem:[%s6 + $0x138] sm:$0xff]
    %v1335 = vld [vmem:[%s6 + $0x140] sm:$0xff]
    %v1336 = vld [vmem:[%s6 + $0x148] sm:$0xff]
    %v1337 = vld [vmem:[%s6 + $0x150] sm:$0xff]
    %v1338 = vld [vmem:[%s6 + $0x158] sm:$0xff]
    %v1339 = vld [vmem:[%s6 + $0x160] sm:$0xff]
    %v1340 = vld [vmem:[%s6 + $0x168] sm:$0xff]
    %v1341 = vld [vmem:[%s6 + $0x170] sm:$0xff]
    %v1342 = vld [vmem:[%s6 + $0x178] sm:$0xff]
    %v1343 = vld [vmem:[%s6 + $0x180] sm:$0xff]
    %v1344 = vld [vmem:[%s6 + $0x188] sm:$0xff]
    %v1345 = vld [vmem:[%s6 + $0x190] sm:$0xff]
    %v1346 = vld [vmem:[%s6 + $0x198] sm:$0xff]
    %v1347 = vld [vmem:[%s6 + $0x1a0] sm:$0xff]
    %v1348 = vld [vmem:[%s6 + $0x1a8] sm:$0xff]
    %v1349 = vld [vmem:[%s6 + $0x1b0] sm:$0xff]
    %v1350 = vld [vmem:[%s6 + $0x1b8] sm:$0xff]
    %v1351 = vld [vmem:[%s6 + $0x1c0] sm:$0xff]
    %v1352 = vld [vmem:[%s6 + $0x1c8] sm:$0xff]
    %v1353 = vld [vmem:[%s6 + $0x1d0] sm:$0xff]
    %v1354 = vld [vmem:[%s6 + $0x1d8] sm:$0xff]
    %v1355 = vld [vmem:[%s6 + $0x1e0] sm:$0xff]
    %v1356 = vld [vmem:[%s6 + $0x1e8] sm:$0xff]
    %v1357 = vld [vmem:[%s6 + $0x1f0] sm:$0xff]
    %v1358 = vld [vmem:[%s6 + $0x1f8] sm:$0xff]
    %v1359 = vld [vmem:[%s6 + $0x200] sm:$0xff]
    %v1360 = vld [vmem:[%s6 + $0x208] sm:$0xff]
    %v1361 = vld [vmem:[%s6 + $0x210] sm:$0xff]
    %v1362 = vld [vmem:[%s6 + $0x218] sm:$0xff]
    %v1363 = vld [vmem:[%s6 + $0x220] sm:$0xff]
    %v1364 = vld [vmem:[%s6 + $0x228] sm:$0xff]
    %v1365 = vld [vmem:[%s6 + $0x230] sm:$0xff]
    %v1366 = vld [vmem:[%s6 + $0x238] sm:$0xff]
    %v1367 = vld [vmem:[%s6 + $0x240] sm:$0xff]
    %v1368 = vld [vmem:[%s6 + $0x248] sm:$0xff]
    %v1369 = vld [vmem:[%s6 + $0x250] sm:$0xff]
    %v1370 = vld [vmem:[%s6 + $0x258] sm:$0xff]
    %v1371 = vld [vmem:[%s6 + $0x260] sm:$0xff]
    %v1372 = vld [vmem:[%s6 + $0x268] sm:$0xff]
    %v1373 = vld [vmem:[%s6 + $0x270] sm:$0xff]
    %v1374 = vld [vmem:[%s6 + $0x278] sm:$0xff]
    %v1375 = vld [vmem:[%s6 + $0x280] sm:$0xff]
    %v1376 = vld [vmem:[%s6 + $0x288] sm:$0xff]
    %v1377 = vld [vmem:[%s6 + $0x290] sm:$0xff]
    %v1378 = vld [vmem:[%s6 + $0x298] sm:$0xff]
    %v1379 = vld [vmem:[%s6 + $0x2a0] sm:$0xff]
    %v1380 = vld [vmem:[%s6 + $0x2a8] sm:$0xff]
    %v1381 = vld [vmem:[%s6 + $0x2b0] sm:$0xff]
    %v1382 = vld [vmem:[%s6 + $0x2b8] sm:$0xff]
    %v1383 = vld [vmem:[%s6 + $0x2c0] sm:$0xff]
    %v1384 = vld [vmem:[%s6 + $0x2c8] sm:$0xff]
    %v1385 = vld [vmem:[%s6 + $0x2d0] sm:$0xff]
    %v1386 = vld [vmem:[%s6 + $0x2d8] sm:$0xff]
    %v1387 = vld [vmem:[%s6 + $0x2e0] sm:$0xff]
    %v1388 = vld [vmem:[%s6 + $0x2e8] sm:$0xff]
    %v1389 = vld [vmem:[%s6 + $0x2f0] sm:$0xff]
    %v1390 = vld [vmem:[%s6 + $0x2f8] sm:$0xff]
    %v1391 = vld [vmem:[%s6 + $0x300] sm:$0xff]
    %v1392 = vld [vmem:[%s6 + $0x308] sm:$0xff]
    %v1393 = vld [vmem:[%s6 + $0x310] sm:$0xff]
    %v1394 = vld [vmem:[%s6 + $0x318] sm:$0xff]
    %v1395 = vld [vmem:[%s6 + $0x320] sm:$0xff]
    %v1396 = vld [vmem:[%s6 + $0x328] sm:$0xff]
    %v1397 = vld [vmem:[%s6 + $0x330] sm:$0xff]
    %v1398 = vld [vmem:[%s6 + $0x338] sm:$0xff]
    %v1399 = vld [vmem:[%s6 + $0x340] sm:$0xff]
    %v1400 = vld [vmem:[%s6 + $0x348] sm:$0xff]
    %v1401 = vld [vmem:[%s6 + $0x350] sm:$0xff]
    %v1402 = vld [vmem:[%s6 + $0x358] sm:$0xff]
    %v1403 = vld [vmem:[%s6 + $0x360] sm:$0xff]
    %v1404 = vld [vmem:[%s6 + $0x368] sm:$0xff]
    %v1405 = vld [vmem:[%s6 + $0x370] sm:$0xff]
    %v1406 = vld [vmem:[%s6 + $0x378] sm:$0xff]
    %v1407 = vld [vmem:[%s6 + $0x380] sm:$0xff]
    %v1408 = vld [vmem:[%s6 + $0x388] sm:$0xff]
    %v1409 = vld [vmem:[%s6 + $0x390] sm:$0xff]
    %v1410 = vld [vmem:[%s6 + $0x398] sm:$0xff]
    %v1411 = vld [vmem:[%s6 + $0x3a0] sm:$0xff]
    %v1412 = vld [vmem:[%s6 + $0x3a8] sm:$0xff]
    %v1413 = vld [vmem:[%s6 + $0x3b0] sm:$0xff]
    %v1414 = vld [vmem:[%s6 + $0x3b8] sm:$0xff]
    %v1415 = vld [vmem:[%s6 + $0x3c0] sm:$0xff]
    %v1416 = vld [vmem:[%s6 + $0x3c8] sm:$0xff]
    %v1417 = vld [vmem:[%s6 + $0x3d0] sm:$0xff]
    %v1418 = vld [vmem:[%s6 + $0x3d8] sm:$0xff]
    %v1419 = vld [vmem:[%s6 + $0x3e0] sm:$0xff]
    %v1420 = vld [vmem:[%s6 + $0x3e8] sm:$0xff]
    %v1421 = vld [vmem:[%s6 + $0x3f0] sm:$0xff]
    %v1422 = vld [vmem:[%s6 + $0x3f8] sm:$0xff]
    %v1423 = vld [vmem:[%s6 + $0x400] sm:$0xff]
    %v1424 = vld [vmem:[%s6 + $0x408] sm:$0xff]
    %v1425 = vld [vmem:[%s6 + $0x410] sm:$0xff]
    %v1426 = vld [vmem:[%s6 + $0x418] sm:$0xff]
    %v1427 = vld [vmem:[%s6 + $0x420] sm:$0xff]
    %v1428 = vld [vmem:[%s6 + $0x428] sm:$0xff]
    %v1429 = vld [vmem:[%s6 + $0x430] sm:$0xff]
    %v1430 = vld [vmem:[%s6 + $0x438] sm:$0xff]
    %v1431 = vld [vmem:[%s6 + $0x440] sm:$0xff]
    %v1432 = vld [vmem:[%s6 + $0x448] sm:$0xff]
    %v1433 = vld [vmem:[%s6 + $0x450] sm:$0xff]
    %v1434 = vld [vmem:[%s6 + $0x458] sm:$0xff]
    %v1435 = vld [vmem:[%s6 + $0x460] sm:$0xff]
    %v1436 = vld [vmem:[%s6 + $0x468] sm:$0xff]
    %v1437 = vld [vmem:[%s6 + $0x470] sm:$0xff]
    %v1438 = vld [vmem:[%s6 + $0x478] sm:$0xff]
    %v1439 = vld [vmem:[%s6 + $0x480] sm:$0xff]
    %v1440 = vld [vmem:[%s6 + $0x488] sm:$0xff]
    %v1441 = vld [vmem:[%s6 + $0x490] sm:$0xff]
    %v1442 = vld [vmem:[%s6 + $0x498] sm:$0xff]
    %v1443 = vld [vmem:[%s6 + $0x4a0] sm:$0xff]
    %v1444 = vld [vmem:[%s6 + $0x4a8] sm:$0xff]
    %v1445 = vld [vmem:[%s6 + $0x4b0] sm:$0xff]
    %v1446 = vld [vmem:[%s6 + $0x4b8] sm:$0xff]
    %v1447 = vld [vmem:[%s6 + $0x4c0] sm:$0xff]
    %v1448 = vld [vmem:[%s6 + $0x4c8] sm:$0xff]
    %v1449 = vld [vmem:[%s6 + $0x4d0] sm:$0xff]
    %v1450 = vld [vmem:[%s6 + $0x4d8] sm:$0xff]
    %v1451 = vld [vmem:[%s6 + $0x4e0] sm:$0xff]
    %v1452 = vld [vmem:[%s6 + $0x4e8] sm:$0xff]
    %v1453 = vld [vmem:[%s6 + $0x4f0] sm:$0xff]
    %v1454 = vld [vmem:[%s6 + $0x4f8] sm:$0xff]
    %v1455 = vld [vmem:[%s6 + $0x500] sm:$0xff]
    %v1456 = vld [vmem:[%s6 + $0x508] sm:$0xff]
    %v1457 = vld [vmem:[%s6 + $0x510] sm:$0xff]
    %v1458 = vld [vmem:[%s6 + $0x518] sm:$0xff]
    %v1459 = vld [vmem:[%s6 + $0x520] sm:$0xff]
    %v1460 = vld [vmem:[%s6 + $0x528] sm:$0xff]
    %v1461 = vld [vmem:[%s6 + $0x530] sm:$0xff]
    %v1462 = vld [vmem:[%s6 + $0x538] sm:$0xff]
    %v1463 = vld [vmem:[%s6 + $0x540] sm:$0xff]
    %v1464 = vld [vmem:[%s6 + $0x548] sm:$0xff]
    %v1465 = vld [vmem:[%s6 + $0x550] sm:$0xff]
    %v1466 = vld [vmem:[%s6 + $0x558] sm:$0xff]
    %v1467 = vld [vmem:[%s6 + $0x560] sm:$0xff]
    %v1468 = vld [vmem:[%s6 + $0x568] sm:$0xff]
    %v1469 = vld [vmem:[%s6 + $0x570] sm:$0xff]
    %v1470 = vld [vmem:[%s6 + $0x578] sm:$0xff]
    %v1471 = vld [vmem:[%s6 + $0x580] sm:$0xff]
    %v1472 = vld [vmem:[%s6 + $0x588] sm:$0xff]
    %v1473 = vld [vmem:[%s6 + $0x590] sm:$0xff]
    %v1474 = vld [vmem:[%s6 + $0x598] sm:$0xff]
    %v1475 = vld [vmem:[%s6 + $0x5a0] sm:$0xff]
    %v1476 = vld [vmem:[%s6 + $0x5a8] sm:$0xff]
    %v1477 = vld [vmem:[%s6 + $0x5b0] sm:$0xff]
    %v1478 = vld [vmem:[%s6 + $0x5b8] sm:$0xff]
    %v1479 = vld [vmem:[%s6 + $0x5c0] sm:$0xff]
    %v1480 = vld [vmem:[%s6 + $0x5c8] sm:$0xff]
    %v1481 = vld [vmem:[%s6 + $0x5d0] sm:$0xff]
    %v1482 = vld [vmem:[%s6 + $0x5d8] sm:$0xff]
    %v1483 = vld [vmem:[%s6 + $0x5e0] sm:$0xff]
    %v1484 = vld [vmem:[%s6 + $0x5e8] sm:$0xff]
    %v1485 = vld [vmem:[%s6 + $0x5f0] sm:$0xff]
    %v1486 = vld [vmem:[%s6 + $0x5f8] sm:$0xff]
    %v1487 = vld [vmem:[%s6 + $0x600] sm:$0xff]
    %v1488 = vld [vmem:[%s6 + $0x608] sm:$0xff]
    %v1489 = vld [vmem:[%s6 + $0x610] sm:$0xff]
    %v1490 = vld [vmem:[%s6 + $0x618] sm:$0xff]
    %v1491 = vld [vmem:[%s6 + $0x620] sm:$0xff]
    %v1492 = vld [vmem:[%s6 + $0x628] sm:$0xff]
    %v1493 = vld [vmem:[%s6 + $0x630] sm:$0xff]
    %v1494 = vld [vmem:[%s6 + $0x638] sm:$0xff]
    %v1495 = vld [vmem:[%s6 + $0x640] sm:$0xff]
    %v1496 = vld [vmem:[%s6 + $0x648] sm:$0xff]
    %v1497 = vld [vmem:[%s6 + $0x650] sm:$0xff]
    %v1498 = vld [vmem:[%s6 + $0x658] sm:$0xff]
    %v1499 = vld [vmem:[%s6 + $0x660] sm:$0xff]
    %v1500 = vld [vmem:[%s6 + $0x668] sm:$0xff]
    %v1501 = vld [vmem:[%s6 + $0x670] sm:$0xff]
    %v1502 = vld [vmem:[%s6 + $0x678] sm:$0xff]
    %v1503 = vld [vmem:[%s6 + $0x680] sm:$0xff]
    %v1504 = vld [vmem:[%s6 + $0x688] sm:$0xff]
    %v1505 = vld [vmem:[%s6 + $0x690] sm:$0xff]
    %v1506 = vld [vmem:[%s6 + $0x698] sm:$0xff]
    %v1507 = vld [vmem:[%s6 + $0x6a0] sm:$0xff]
    %v1508 = vld [vmem:[%s6 + $0x6a8] sm:$0xff]
    %v1509 = vld [vmem:[%s6 + $0x6b0] sm:$0xff]
    %v1510 = vld [vmem:[%s6 + $0x6b8] sm:$0xff]
    %v1511 = vld [vmem:[%s6 + $0x6c0] sm:$0xff]
    %v1512 = vld [vmem:[%s6 + $0x6c8] sm:$0xff]
    %v1513 = vld [vmem:[%s6 + $0x6d0] sm:$0xff]
    %v1514 = vld [vmem:[%s6 + $0x6d8] sm:$0xff]
    %v1515 = vld [vmem:[%s6 + $0x6e0] sm:$0xff]
    %v1516 = vld [vmem:[%s6 + $0x6e8] sm:$0xff]
    %v1517 = vld [vmem:[%s6 + $0x6f0] sm:$0xff]
    %v1518 = vld [vmem:[%s6 + $0x6f8] sm:$0xff]
    %v1519 = vld [vmem:[%s6 + $0x700] sm:$0xff]
    %v1520 = vld [vmem:[%s6 + $0x708] sm:$0xff]
    %v1521 = vld [vmem:[%s6 + $0x710] sm:$0xff]
    %v1522 = vld [vmem:[%s6 + $0x718] sm:$0xff]
    %v1523 = vld [vmem:[%s6 + $0x720] sm:$0xff]
    %v1524 = vld [vmem:[%s6 + $0x728] sm:$0xff]
    %v1525 = vld [vmem:[%s6 + $0x730] sm:$0xff]
    %v1526 = vld [vmem:[%s6 + $0x738] sm:$0xff]
    %v1527 = vld [vmem:[%s6 + $0x740] sm:$0xff]
    %v1528 = vld [vmem:[%s6 + $0x748] sm:$0xff]
    %v1529 = vld [vmem:[%s6 + $0x750] sm:$0xff]
    %v1530 = vld [vmem:[%s6 + $0x758] sm:$0xff]
    %v1531 = vld [vmem:[%s6 + $0x760] sm:$0xff]
    %v1532 = vld [vmem:[%s6 + $0x768] sm:$0xff]
    %v1533 = vld [vmem:[%s6 + $0x770] sm:$0xff]
    %v1534 = vld [vmem:[%s6 + $0x778] sm:$0xff]
    %1535 = vmatprep.subr.mxu0 %v1296
    %1536 = vmatpush1.msra.mxu0 %v1295
    %1537 = vmatprep.subr.mxu0 %v1300
    %1538 = vmatpush1.msra.mxu0 %v1299
    %1539 = vmatprep.subr.mxu0 %v1304
    %1540 = vmatpush1.msra.mxu0 %v1303
    %1541 = vmatprep.subr.mxu0 %v1308
    %1542 = vmatpush1.msra.mxu0 %v1307
    %1543 = vmatprep.subr.mxu0 %v1312
    %1544 = vmatpush1.msra.mxu0 %v1311
    %1545 = vmatprep.subr.mxu0 %v1316
    %1546 = vmatpush1.msra.mxu0 %v1315
    %1547 = vmatprep.subr.mxu0 %v1320
    %1548 = vmatpush1.msra.mxu0 %v1319
    %1549 = vmatprep.subr.mxu0 %v1324
    %1550 = vmatpush1.msra.mxu0 %v1323
    %1551 = vmatprep.subr.mxu0 %v1328
    %1552 = vmatpush1.msra.mxu0 %v1327
    %1553 = vmatprep.subr.mxu0 %v1332
    %1554 = vmatpush1.msra.mxu0 %v1331
    %1555 = vmatprep.subr.mxu0 %v1336
    %1556 = vmatpush1.msra.mxu0 %v1335
    %1557 = vmatprep.subr.mxu0 %v1340
    %1558 = vmatpush1.msra.mxu0 %v1339
    %1559 = vmatprep.subr.mxu0 %v1344
    %1560 = vmatpush1.msra.mxu0 %v1343
    %1561 = vmatprep.subr.mxu0 %v1348
    %1562 = vmatpush1.msra.mxu0 %v1347
    %1563 = vmatprep.subr.mxu0 %v1352
    %1564 = vmatpush1.msra.mxu0 %v1351
    %1565 = vmatprep.subr.mxu0 %v1356
    %1566 = vmatpush1.msra.mxu0 %v1355
    %1567 = vmatprep.subr.mxu0 %v1360
    %1568 = vmatpush1.msra.mxu0 %v1359
    %1569 = vmatprep.subr.mxu0 %v1364
    %1570 = vmatpush1.msra.mxu0 %v1363
    %1571 = vmatprep.subr.mxu0 %v1368
    %1572 = vmatpush1.msra.mxu0 %v1367
    %1573 = vmatprep.subr.mxu0 %v1372
    %1574 = vmatpush1.msra.mxu0 %v1371
    %1575 = vmatprep.subr.mxu0 %v1376
    %1576 = vmatpush1.msra.mxu0 %v1375
    %1577 = vmatprep.subr.mxu0 %v1380
    %1578 = vmatpush1.msra.mxu0 %v1379
    %1579 = vmatprep.subr.mxu0 %v1384
    %1580 = vmatpush1.msra.mxu0 %v1383
    %1581 = vmatprep.subr.mxu0 %v1388
    %1582 = vmatpush1.msra.mxu0 %v1387
    %1583 = vmatprep.subr.mxu0 %v1392
    %1584 = vmatpush1.msra.mxu0 %v1391
    %1585 = vmatprep.subr.mxu0 %v1396
    %1586 = vmatpush1.msra.mxu0 %v1395
    %1587 = vmatprep.subr.mxu0 %v1400
    %1588 = vmatpush1.msra.mxu0 %v1399
    %1589 = vmatprep.subr.mxu0 %v1404
    %1590 = vmatpush1.msra.mxu0 %v1403
    %1591 = vmatprep.subr.mxu0 %v1408
    %1592 = vmatpush1.msra.mxu0 %v1407
    %1593 = vmatprep.subr.mxu0 %v1412
    %1594 = vmatpush1.msra.mxu0 %v1411
    %1595 = vmatprep.subr.mxu0 %v1416
    %1596 = vmatpush1.msra.mxu0 %v1415
    %1597 = vmatprep.subr.mxu0 %v1420
    %1598 = vmatpush1.msra.mxu0 %v1419
    %1599 = vmatprep.mubr.f32.mxu0 %v609
    %1600 = vmatmul.mubr.f32.gmra.mrb[0].mxu0 %v608
    %v1601 = vpop.f32.mrb[0].mxu0
    %v1602 = vadd.f32 0.0, %v1601
    %v1603 = vpop.f32.mrb[0].mxu0
    %v1604 = vadd.f32 0.0, %v1603
    %1605 = vmatprep.mubr.f32.mxu0 %v613
    %1606 = vmatmul.mubr.f32.gmra.mrb[0].mxu0 %v612
    %v1607 = vpop.f32.mrb[0].mxu0
    %v1608 = vadd.f32 0.0, %v1607
    %v1609 = vpop.f32.mrb[0].mxu0
    %v1610 = vadd.f32 0.0, %v1609
    %1611 = vmatprep.mubr.f32.mxu0 %v617
    %1612 = vmatmul.mubr.f32.gmra.mrb[0].mxu0 %v616
    %v1613 = vpop.f32.mrb[0].mxu0
    %v1614 = vadd.f32 0.0, %v1613
    %v1615 = vpop.f32.mrb[0].mxu0
    %v1616 = vadd.f32 0.0, %v1615
    %1617 = vmatprep.mubr.f32.mxu0 %v621
    %1618 = vmatmul.mubr.f32.gmra.mrb[0].mxu0 %v620
    %v1619 = vpop.f32.mrb[0].mxu0
    %v1620 = vadd.f32 0.0, %v1619
    %v1621 = vpop.f32.mrb[0].mxu0
    %v1622 = vadd.f32 0.0, %v1621
    %1623 = vmatprep.mubr.f32.mxu0 %v625
    %1624 = vmatmul.mubr.f32.gmra.mrb[0].mxu0 %v624
    %v1625 = vpop.f32.mrb[0].mxu0
    %v1626 = vadd.f32 0.0, %v1625
    %v1627 = vpop.f32.mrb[0].mxu0
    %v1628 = vadd.f32 0.0, %v1627
    %1629 = vmatprep.mubr.f32.mxu0 %v629
    %1630 = vmatmul.mubr.f32.gmra.mrb[0].mxu0 %v628
    %v1631 = vpop.f32.mrb[0].mxu0
    %v1632 = vadd.f32 0.0, %v1631
    %v1633 = vpop.f32.mrb[0].mxu0
    %v1634 = vadd.f32 0.0, %v1633
    %1635 = vdwg.mxu0
    %1636 = vmatprep.subr.mxu0 %v1424
    %1637 = vmatpush1.msra.mxu0 %v1423
    %1638 = vmatprep.subr.mxu0 %v1428
    %1639 = vmatpush1.msra.mxu0 %v1427
    %1640 = vmatprep.subr.mxu0 %v1432
    %1641 = vmatpush1.msra.mxu0 %v1431
    %1642 = vmatprep.subr.mxu0 %v1436
    %1643 = vmatpush1.msra.mxu0 %v1435
    %1644 = vmatprep.subr.mxu0 %v1440
    %1645 = vmatpush1.msra.mxu0 %v1439
    %1646 = vmatprep.subr.mxu0 %v1444
    %1647 = vmatpush1.msra.mxu0 %v1443
    %1648 = vmatprep.subr.mxu0 %v1448
    %1649 = vmatpush1.msra.mxu0 %v1447
    %1650 = vmatprep.subr.mxu0 %v1452
    %1651 = vmatpush1.msra.mxu0 %v1451
    %1652 = vmatprep.subr.mxu0 %v1456
    %1653 = vmatpush1.msra.mxu0 %v1455
    %1654 = vmatprep.subr.mxu0 %v1460
    %1655 = vmatpush1.msra.mxu0 %v1459
    %1656 = vmatprep.subr.mxu0 %v1464
    %1657 = vmatpush1.msra.mxu0 %v1463
    %1658 = vmatprep.subr.mxu0 %v1468
    %1659 = vmatpush1.msra.mxu0 %v1467
    %1660 = vmatprep.subr.mxu0 %v1472
    %1661 = vmatpush1.msra.mxu0 %v1471
    %1662 = vmatprep.subr.mxu0 %v1476
    %1663 = vmatpush1.msra.mxu0 %v1475
    %1664 = vmatprep.subr.mxu0 %v1480
    %1665 = vmatpush1.msra.mxu0 %v1479
    %1666 = vmatprep.subr.mxu0 %v1484
    %1667 = vmatpush1.msra.mxu0 %v1483
    %1668 = vmatprep.subr.mxu0 %v1488
    %1669 = vmatpush1.msra.mxu0 %v1487
    %1670 = vmatprep.subr.mxu0 %v1492
    %1671 = vmatpush1.msra.mxu0 %v1491
    %1672 = vmatprep.subr.mxu0 %v1496
    %1673 = vmatpush1.msra.mxu0 %v1495
    %1674 = vmatprep.subr.mxu0 %v1500
    %1675 = vmatpush1.msra.mxu0 %v1499
    %1676 = vmatprep.subr.mxu0 %v1504
    %1677 = vmatpush1.msra.mxu0 %v1503
    %1678 = vmatprep.subr.mxu0 %v1508
    %1679 = vmatpush1.msra.mxu0 %v1507
    %1680 = vmatprep.subr.mxu0 %v1512
    %1681 = vmatpush1.msra.mxu0 %v1511
    %1682 = vmatprep.subr.mxu0 %v1516
    %1683 = vmatpush1.msra.mxu0 %v1515
    %1684 = vmatprep.subr.mxu0 %v1520
    %1685 = vmatpush1.msra.mxu0 %v1519
    %1686 = vmatprep.subr.mxu0 %v1524
    %1687 = vmatpush1.msra.mxu0 %v1523
    %1688 = vmatprep.subr.mxu0 %v1528
    %1689 = vmatpush1.msra.mxu0 %v1527
    %1690 = vmatprep.subr.mxu0 %v1532
    %1691 = vmatpush1.msra.mxu0 %v1531
    %1692 = vmatprep.subr.mxu0 0.0
    %1693 = vmatpush1.msra.mxu0 0.0
    %1694 = vmatprep.subr.mxu0 0.0
    %1695 = vmatpush1.msra.mxu0 0.0
    %1696 = vmatprep.subr.mxu0 0.0
    %1697 = vmatpush1.msra.mxu0 0.0
    %1698 = vmatprep.subr.mxu0 0.0
    %1699 = vmatpush1.msra.mxu0 0.0
    %1700 = vmatprep.mubr.f32.mxu0 %v874
    %1701 = vmatmul.mubr.f32.gmra.mrb[0].mxu0 %v610
    %v1702 = vpop.f32.mrb[0].mxu0
    %v1703 = vadd.f32 %v1602, %v1702
    %v1704 = vpop.f32.mrb[0].mxu0
    %v1705 = vadd.f32 %v1604, %v1704
    %1706 = vmatprep.mubr.f32.mxu0 %v877
    %1707 = vmatmul.mubr.f32.gmra.mrb[0].mxu0 %v614
    %v1708 = vpop.f32.mrb[0].mxu0
    %v1709 = vadd.f32 %v1608, %v1708
    %v1710 = vpop.f32.mrb[0].mxu0
    %v1711 = vadd.f32 %v1610, %v1710
    %1712 = vmatprep.mubr.f32.mxu0 %v880
    %1713 = vmatmul.mubr.f32.gmra.mrb[0].mxu0 %v618
    %v1714 = vpop.f32.mrb[0].mxu0
    %v1715 = vadd.f32 %v1614, %v1714
    %v1716 = vpop.f32.mrb[0].mxu0
    %v1717 = vadd.f32 %v1616, %v1716
    %1718 = vmatprep.mubr.f32.mxu0 %v883
    %1719 = vmatmul.mubr.f32.gmra.mrb[0].mxu0 %v622
    %v1720 = vpop.f32.mrb[0].mxu0
    %v1721 = vadd.f32 %v1620, %v1720
    %v1722 = vpop.f32.mrb[0].mxu0
    %v1723 = vadd.f32 %v1622, %v1722
    %1724 = vmatprep.mubr.f32.mxu0 %v886
    %1725 = vmatmul.mubr.f32.gmra.mrb[0].mxu0 %v626
    %v1726 = vpop.f32.mrb[0].mxu0
    %v1727 = vadd.f32 %v1626, %v1726
    %v1728 = vpop.f32.mrb[0].mxu0
    %v1729 = vadd.f32 %v1628, %v1728
    %1730 = vmatprep.mubr.f32.mxu0 %v889
    %1731 = vmatmul.mubr.f32.gmra.mrb[0].mxu0 %v630
    %v1732 = vpop.f32.mrb[0].mxu0
    %v1733 = vadd.f32 %v1632, %v1732
    %v1734 = vpop.f32.mrb[0].mxu0
    %v1735 = vadd.f32 %v1634, %v1734
    %1736 = vdwg.mxu0
    %1737 = vmatprep.subr.mxu0 %v1298
    %1738 = vmatpush1.msra.mxu0 %v1297
    %1739 = vmatprep.subr.mxu0 %v1302
    %1740 = vmatpush1.msra.mxu0 %v1301
    %1741 = vmatprep.subr.mxu0 %v1306
    %1742 = vmatpush1.msra.mxu0 %v1305
    %1743 = vmatprep.subr.mxu0 %v1310
    %1744 = vmatpush1.msra.mxu0 %v1309
    %1745 = vmatprep.subr.mxu0 %v1314
    %1746 = vmatpush1.msra.mxu0 %v1313
    %1747 = vmatprep.subr.mxu0 %v1318
    %1748 = vmatpush1.msra.mxu0 %v1317
    %1749 = vmatprep.subr.mxu0 %v1322
    %1750 = vmatpush1.msra.mxu0 %v1321
    %1751 = vmatprep.subr.mxu0 %v1326
    %1752 = vmatpush1.msra.mxu0 %v1325
    %1753 = vmatprep.subr.mxu0 %v1330
    %1754 = vmatpush1.msra.mxu0 %v1329
    %1755 = vmatprep.subr.mxu0 %v1334
    %1756 = vmatpush1.msra.mxu0 %v1333
    %1757 = vmatprep.subr.mxu0 %v1338
    %1758 = vmatpush1.msra.mxu0 %v1337
    %1759 = vmatprep.subr.mxu0 %v1342
    %1760 = vmatpush1.msra.mxu0 %v1341
    %1761 = vmatprep.subr.mxu0 %v1346
    %1762 = vmatpush1.msra.mxu0 %v1345
    %1763 = vmatprep.subr.mxu0 %v1350
    %1764 = vmatpush1.msra.mxu0 %v1349
    %1765 = vmatprep.subr.mxu0 %v1354
    %1766 = vmatpush1.msra.mxu0 %v1353
    %1767 = vmatprep.subr.mxu0 %v1358
    %1768 = vmatpush1.msra.mxu0 %v1357
    %1769 = vmatprep.subr.mxu0 %v1362
    %1770 = vmatpush1.msra.mxu0 %v1361
    %1771 = vmatprep.subr.mxu0 %v1366
    %1772 = vmatpush1.msra.mxu0 %v1365
    %1773 = vmatprep.subr.mxu0 %v1370
    %1774 = vmatpush1.msra.mxu0 %v1369
    %1775 = vmatprep.subr.mxu0 %v1374
    %1776 = vmatpush1.msra.mxu0 %v1373
    %1777 = vmatprep.subr.mxu0 %v1378
    %1778 = vmatpush1.msra.mxu0 %v1377
    %1779 = vmatprep.subr.mxu0 %v1382
    %1780 = vmatpush1.msra.mxu0 %v1381
    %1781 = vmatprep.subr.mxu0 %v1386
    %1782 = vmatpush1.msra.mxu0 %v1385
    %1783 = vmatprep.subr.mxu0 %v1390
    %1784 = vmatpush1.msra.mxu0 %v1389
    %1785 = vmatprep.subr.mxu0 %v1394
    %1786 = vmatpush1.msra.mxu0 %v1393
    %1787 = vmatprep.subr.mxu0 %v1398
    %1788 = vmatpush1.msra.mxu0 %v1397
    %1789 = vmatprep.subr.mxu0 %v1402
    %1790 = vmatpush1.msra.mxu0 %v1401
    %1791 = vmatprep.subr.mxu0 %v1406
    %1792 = vmatpush1.msra.mxu0 %v1405
    %1793 = vmatprep.subr.mxu0 %v1410
    %1794 = vmatpush1.msra.mxu0 %v1409
    %1795 = vmatprep.subr.mxu0 %v1414
    %1796 = vmatpush1.msra.mxu0 %v1413
    %1797 = vmatprep.subr.mxu0 %v1418
    %1798 = vmatpush1.msra.mxu0 %v1417
    %1799 = vmatprep.subr.mxu0 %v1422
    %1800 = vmatpush1.msra.mxu0 %v1421
    %1801 = vmatprep.mubr.f32.mxu0 %v609
    %1802 = vmatmul.mubr.f32.gmra.mrb[0].mxu0 %v608
    %v1803 = vpop.f32.mrb[0].mxu0
    %v1804 = vadd.f32 0.0, %v1803
    %v1805 = vpop.f32.mrb[0].mxu0
    %v1806 = vadd.f32 0.0, %v1805
    %1807 = vmatprep.mubr.f32.mxu0 %v613
    %1808 = vmatmul.mubr.f32.gmra.mrb[0].mxu0 %v612
    %v1809 = vpop.f32.mrb[0].mxu0
    %v1810 = vadd.f32 0.0, %v1809
    %v1811 = vpop.f32.mrb[0].mxu0
    %v1812 = vadd.f32 0.0, %v1811
    %1813 = vmatprep.mubr.f32.mxu0 %v617
    %1814 = vmatmul.mubr.f32.gmra.mrb[0].mxu0 %v616
    %v1815 = vpop.f32.mrb[0].mxu0
    %v1816 = vadd.f32 0.0, %v1815
    %v1817 = vpop.f32.mrb[0].mxu0
    %v1818 = vadd.f32 0.0, %v1817
    %1819 = vmatprep.mubr.f32.mxu0 %v621
    %1820 = vmatmul.mubr.f32.gmra.mrb[0].mxu0 %v620
    %v1821 = vpop.f32.mrb[0].mxu0
    %v1822 = vadd.f32 0.0, %v1821
    %v1823 = vpop.f32.mrb[0].mxu0
    %v1824 = vadd.f32 0.0, %v1823
    %1825 = vmatprep.mubr.f32.mxu0 %v625
    %1826 = vmatmul.mubr.f32.gmra.mrb[0].mxu0 %v624
    %v1827 = vpop.f32.mrb[0].mxu0
    %v1828 = vadd.f32 0.0, %v1827
    %v1829 = vpop.f32.mrb[0].mxu0
    %v1830 = vadd.f32 0.0, %v1829
    %1831 = vmatprep.mubr.f32.mxu0 %v629
    %1832 = vmatmul.mubr.f32.gmra.mrb[0].mxu0 %v628
    %v1833 = vpop.f32.mrb[0].mxu0
    %v1834 = vadd.f32 0.0, %v1833
    %v1835 = vpop.f32.mrb[0].mxu0
    %v1836 = vadd.f32 0.0, %v1835
    %1837 = vdwg.mxu0
    %1838 = vmatprep.subr.mxu0 %v1426
    %1839 = vmatpush1.msra.mxu0 %v1425
    %1840 = vmatprep.subr.mxu0 %v1430
    %1841 = vmatpush1.msra.mxu0 %v1429
    %1842 = vmatprep.subr.mxu0 %v1434
    %1843 = vmatpush1.msra.mxu0 %v1433
    %1844 = vmatprep.subr.mxu0 %v1438
    %1845 = vmatpush1.msra.mxu0 %v1437
    %1846 = vmatprep.subr.mxu0 %v1442
    %1847 = vmatpush1.msra.mxu0 %v1441
    %1848 = vmatprep.subr.mxu0 %v1446
    %1849 = vmatpush1.msra.mxu0 %v1445
    %1850 = vmatprep.subr.mxu0 %v1450
    %1851 = vmatpush1.msra.mxu0 %v1449
    %1852 = vmatprep.subr.mxu0 %v1454
    %1853 = vmatpush1.msra.mxu0 %v1453
    %1854 = vmatprep.subr.mxu0 %v1458
    %1855 = vmatpush1.msra.mxu0 %v1457
    %1856 = vmatprep.subr.mxu0 %v1462
    %1857 = vmatpush1.msra.mxu0 %v1461
    %1858 = vmatprep.subr.mxu0 %v1466
    %1859 = vmatpush1.msra.mxu0 %v1465
    %1860 = vmatprep.subr.mxu0 %v1470
    %1861 = vmatpush1.msra.mxu0 %v1469
    %1862 = vmatprep.subr.mxu0 %v1474
    %1863 = vmatpush1.msra.mxu0 %v1473
    %1864 = vmatprep.subr.mxu0 %v1478
    %1865 = vmatpush1.msra.mxu0 %v1477
    %1866 = vmatprep.subr.mxu0 %v1482
    %1867 = vmatpush1.msra.mxu0 %v1481
    %1868 = vmatprep.subr.mxu0 %v1486
    %1869 = vmatpush1.msra.mxu0 %v1485
    %1870 = vmatprep.subr.mxu0 %v1490
    %1871 = vmatpush1.msra.mxu0 %v1489
    %1872 = vmatprep.subr.mxu0 %v1494
    %1873 = vmatpush1.msra.mxu0 %v1493
    %1874 = vmatprep.subr.mxu0 %v1498
    %1875 = vmatpush1.msra.mxu0 %v1497
    %1876 = vmatprep.subr.mxu0 %v1502
    %1877 = vmatpush1.msra.mxu0 %v1501
    %1878 = vmatprep.subr.mxu0 %v1506
    %1879 = vmatpush1.msra.mxu0 %v1505
    %1880 = vmatprep.subr.mxu0 %v1510
    %1881 = vmatpush1.msra.mxu0 %v1509
    %1882 = vmatprep.subr.mxu0 %v1514
    %1883 = vmatpush1.msra.mxu0 %v1513
    %1884 = vmatprep.subr.mxu0 %v1518
    %1885 = vmatpush1.msra.mxu0 %v1517
    %1886 = vmatprep.subr.mxu0 %v1522
    %1887 = vmatpush1.msra.mxu0 %v1521
    %1888 = vmatprep.subr.mxu0 %v1526
    %1889 = vmatpush1.msra.mxu0 %v1525
    %1890 = vmatprep.subr.mxu0 %v1530
    %1891 = vmatpush1.msra.mxu0 %v1529
    %1892 = vmatprep.subr.mxu0 %v1534
    %1893 = vmatpush1.msra.mxu0 %v1533
    %1894 = vmatprep.subr.mxu0 0.0
    %1895 = vmatpush1.msra.mxu0 0.0
    %1896 = vmatprep.subr.mxu0 0.0
    %1897 = vmatpush1.msra.mxu0 0.0
    %1898 = vmatprep.subr.mxu0 0.0
    %1899 = vmatpush1.msra.mxu0 0.0
    %1900 = vmatprep.subr.mxu0 0.0
    %1901 = vmatpush1.msra.mxu0 0.0
    %1902 = vmatprep.mubr.f32.mxu0 %v874
    %1903 = vmatmul.mubr.f32.gmra.mrb[0].mxu0 %v610
    %v1904 = vpop.f32.mrb[0].mxu0
    %v1905 = vadd.f32 %v1804, %v1904
    %v1906 = vpop.f32.mrb[0].mxu0
    %v1907 = vadd.f32 %v1806, %v1906
    %1908 = vmatprep.mubr.f32.mxu0 %v877
    %1909 = vmatmul.mubr.f32.gmra.mrb[0].mxu0 %v614
    %v1910 = vpop.f32.mrb[0].mxu0
    %v1911 = vadd.f32 %v1810, %v1910
    %v1912 = vpop.f32.mrb[0].mxu0
    %v1913 = vadd.f32 %v1812, %v1912
    %1914 = vmatprep.mubr.f32.mxu0 %v880
    %1915 = vmatmul.mubr.f32.gmra.mrb[0].mxu0 %v618
    %v1916 = vpop.f32.mrb[0].mxu0
    %v1917 = vadd.f32 %v1816, %v1916
    %v1918 = vpop.f32.mrb[0].mxu0
    %v1919 = vadd.f32 %v1818, %v1918
    %1920 = vmatprep.mubr.f32.mxu0 %v883
    %1921 = vmatmul.mubr.f32.gmra.mrb[0].mxu0 %v622
    %v1922 = vpop.f32.mrb[0].mxu0
    %v1923 = vadd.f32 %v1822, %v1922
    %v1924 = vpop.f32.mrb[0].mxu0
    %v1925 = vadd.f32 %v1824, %v1924
    %1926 = vmatprep.mubr.f32.mxu0 %v886
    %1927 = vmatmul.mubr.f32.gmra.mrb[0].mxu0 %v626
    %v1928 = vpop.f32.mrb[0].mxu0
    %v1929 = vadd.f32 %v1828, %v1928
    %v1930 = vpop.f32.mrb[0].mxu0
    %v1931 = vadd.f32 %v1830, %v1930
    %1932 = vmatprep.mubr.f32.mxu0 %v889
    %1933 = vmatmul.mubr.f32.gmra.mrb[0].mxu0 %v630
    %v1934 = vpop.f32.mrb[0].mxu0
    %v1935 = vadd.f32 %v1834, %v1934
    %v1936 = vpop.f32.mrb[0].mxu0
    %v1937 = vadd.f32 %v1836, %v1936
    %1938 = vdwg.mxu0
    %v1939 = vmax.f32 %v1059, %v1703
    %v1940 = vmax.f32 %v1061, %v1705
    %v1941 = vmax.f32 %v1261, %v1905
    %v1942 = vmax.f32 %v1263, %v1907
    %v1943 = vmax.f32 %v1065, %v1709
    %v1944 = vmax.f32 %v1067, %v1711
    %v1945 = vmax.f32 %v1267, %v1911
    %v1946 = vmax.f32 %v1269, %v1913
    %v1947 = vmax.f32 %v1071, %v1715
    %v1948 = vmax.f32 %v1073, %v1717
    %v1949 = vmax.f32 %v1273, %v1917
    %v1950 = vmax.f32 %v1275, %v1919
    %v1951 = vmax.f32 %v1077, %v1721
    %v1952 = vmax.f32 %v1079, %v1723
    %v1953 = vmax.f32 %v1279, %v1923
    %v1954 = vmax.f32 %v1281, %v1925
    %v1955 = vmax.f32 %v1083, %v1727
    %v1956 = vmax.f32 %v1085, %v1729
    %v1957 = vmax.f32 %v1285, %v1929
    %v1958 = vmax.f32 %v1287, %v1931
    %v1959 = vmax.f32 %v1089, %v1733
    %v1960 = vmax.f32 %v1091, %v1735
    %v1961 = vmax.f32 %v1291, %v1935
    %v1962 = vmax.f32 %v1293, %v1937
    %v1963 = vld [vmem:[%s7] sm:$0xf]
    %v1965 = vlaneseq
    %v1966 = vshrl.u32 %v1965, 7
    %v1967 = vsub.s32 0, %v1966
    %v1968 = vrot.slane %v1963, %v1967
    %v1969 = vlaneseq
    %v1970 = vshrl.u32 %v1969, 7
    %v1971 = vsub.s32 1, %v1970
    %v1972 = vrot.slane %v1963, %v1971
    %v1973 = vlaneseq
    %v1974 = vshrl.u32 %v1973, 7
    %v1975 = vsub.s32 2, %v1974
    %v1976 = vrot.slane %v1963, %v1975
    %v1977 = vlaneseq
    %v1978 = vshrl.u32 %v1977, 7
    %v1979 = vsub.s32 3, %v1978
    %v1980 = vrot.slane %v1963, %v1979
    %v1985 = vadd.f32 %v1939, %v1968
    %v1986 = vadd.f32 %v1940, %v1972
    %v1987 = vadd.f32 %v1941, %v1976
    %v1988 = vadd.f32 %v1942, %v1980
    %v1989 = vadd.f32 %v1943, %v1968
    %v1990 = vadd.f32 %v1944, %v1972
    %v1991 = vadd.f32 %v1945, %v1976
    %v1992 = vadd.f32 %v1946, %v1980
    %v1993 = vadd.f32 %v1947, %v1968
    %v1994 = vadd.f32 %v1948, %v1972
    %v1995 = vadd.f32 %v1949, %v1976
    %v1996 = vadd.f32 %v1950, %v1980
    %v1997 = vadd.f32 %v1951, %v1968
    %v1998 = vadd.f32 %v1952, %v1972
    %v1999 = vadd.f32 %v1953, %v1976
    %v2000 = vadd.f32 %v1954, %v1980
    %v2001 = vadd.f32 %v1955, %v1968
    %v2002 = vadd.f32 %v1956, %v1972
    %v2003 = vadd.f32 %v1957, %v1976
    %v2004 = vadd.f32 %v1958, %v1980
    %v2005 = vadd.f32 %v1959, %v1968
    %v2006 = vadd.f32 %v1960, %v1972
    %v2007 = vadd.f32 %v1961, %v1976
    %v2008 = vadd.f32 %v1962, %v1980
    %v2009 = vmax.f32 %v1985, 0.0
    %v2010 = vmax.f32 %v1986, 0.0
    %v2011 = vmax.f32 %v1987, 0.0
    %v2012 = vmax.f32 %v1988, 0.0
    %v2013 = vmax.f32 %v1989, 0.0
    %v2014 = vmax.f32 %v1990, 0.0
    %v2015 = vmax.f32 %v1991, 0.0
    %v2016 = vmax.f32 %v1992, 0.0
    %v2017 = vmax.f32 %v1993, 0.0
    %v2018 = vmax.f32 %v1994, 0.0
    %v2019 = vmax.f32 %v1995, 0.0
    %v2020 = vmax.f32 %v1996, 0.0
    %v2021 = vmax.f32 %v1997, 0.0
    %v2022 = vmax.f32 %v1998, 0.0
    %v2023 = vmax.f32 %v1999, 0.0
    %v2024 = vmax.f32 %v2000, 0.0
    %v2025 = vmax.f32 %v2001, 0.0
    %v2026 = vmax.f32 %v2002, 0.0
    %v2027 = vmax.f32 %v2003, 0.0
    %v2028 = vmax.f32 %v2004, 0.0
    %v2029 = vmax.f32 %v2005, 0.0
    %v2030 = vmax.f32 %v2006, 0.0
    %v2031 = vmax.f32 %v2007, 0.0
    %v2032 = vmax.f32 %v2008, 0.0
    %v2033 = vld [vmem:[%s8] sm:$0xff]
    %v2034 = vld [vmem:[%s8 + $0x8] sm:$0xff]
    %v2035 = vld [vmem:[%s8 + $0x10] sm:$0xff]
    %v2036 = vld [vmem:[%s8 + $0x18] sm:$0xff]
    %v2037 = vld [vmem:[%s8 + $0x20] sm:$0xff]
    %v2038 = vld [vmem:[%s8 + $0x28] sm:$0xff]
    %v2039 = vld [vmem:[%s8 + $0x30] sm:$0xff]
    %v2040 = vld [vmem:[%s8 + $0x38] sm:$0xff]
    %v2041 = vld [vmem:[%s8 + $0x40] sm:$0xff]
    %v2042 = vld [vmem:[%s8 + $0x48] sm:$0xff]
    %v2043 = vld [vmem:[%s8 + $0x50] sm:$0xff]
    %v2044 = vld [vmem:[%s8 + $0x58] sm:$0xff]
    %v2045 = vld [vmem:[%s8 + $0x60] sm:$0xff]
    %v2046 = vld [vmem:[%s8 + $0x68] sm:$0xff]
    %v2047 = vld [vmem:[%s8 + $0x70] sm:$0xff]
    %v2048 = vld [vmem:[%s8 + $0x78] sm:$0xff]
    %v2049 = vld [vmem:[%s8 + $0x80] sm:$0xff]
    %v2050 = vld [vmem:[%s8 + $0x88] sm:$0xff]
    %v2051 = vld [vmem:[%s8 + $0x90] sm:$0xff]
    %v2052 = vld [vmem:[%s8 + $0x98] sm:$0xff]
    %v2053 = vld [vmem:[%s8 + $0xa0] sm:$0xff]
    %v2054 = vld [vmem:[%s8 + $0xa8] sm:$0xff]
    %v2055 = vld [vmem:[%s8 + $0xb0] sm:$0xff]
    %v2056 = vld [vmem:[%s8 + $0xb8] sm:$0xff]
    %v2057 = vld [vmem:[%s8 + $0xc0] sm:$0xff]
    %v2058 = vld [vmem:[%s8 + $0xc8] sm:$0xff]
    %v2059 = vld [vmem:[%s8 + $0xd0] sm:$0xff]
    %v2060 = vld [vmem:[%s8 + $0xd8] sm:$0xff]
    %v2061 = vld [vmem:[%s8 + $0xe0] sm:$0xff]
    %v2062 = vld [vmem:[%s8 + $0xe8] sm:$0xff]
    %v2063 = vld [vmem:[%s8 + $0xf0] sm:$0xff]
    %v2064 = vld [vmem:[%s8 + $0xf8] sm:$0xff]
    %v2065 = vld [vmem:[%s8 + $0x100] sm:$0xff]
    %v2066 = vld [vmem:[%s8 + $0x108] sm:$0xff]
    %v2067 = vld [vmem:[%s8 + $0x110] sm:$0xff]
    %v2068 = vld [vmem:[%s8 + $0x118] sm:$0xff]
    %v2069 = vld [vmem:[%s8 + $0x120] sm:$0xff]
    %v2070 = vld [vmem:[%s8 + $0x128] sm:$0xff]
    %v2071 = vld [vmem:[%s8 + $0x130] sm:$0xff]
    %v2072 = vld [vmem:[%s8 + $0x138] sm:$0xff]
    %v2073 = vld [vmem:[%s8 + $0x140] sm:$0xff]
    %v2074 = vld [vmem:[%s8 + $0x148] sm:$0xff]
    %v2075 = vld [vmem:[%s8 + $0x150] sm:$0xff]
    %v2076 = vld [vmem:[%s8 + $0x158] sm:$0xff]
    %v2077 = vld [vmem:[%s8 + $0x160] sm:$0xff]
    %v2078 = vld [vmem:[%s8 + $0x168] sm:$0xff]
    %v2079 = vld [vmem:[%s8 + $0x170] sm:$0xff]
    %v2080 = vld [vmem:[%s8 + $0x178] sm:$0xff]
    %v2081 = vld [vmem:[%s8 + $0x180] sm:$0xff]
    %v2082 = vld [vmem:[%s8 + $0x188] sm:$0xff]
    %v2083 = vld [vmem:[%s8 + $0x190] sm:$0xff]
    %v2084 = vld [vmem:[%s8 + $0x198] sm:$0xff]
    %v2085 = vld [vmem:[%s8 + $0x1a0] sm:$0xff]
    %v2086 = vld [vmem:[%s8 + $0x1a8] sm:$0xff]
    %v2087 = vld [vmem:[%s8 + $0x1b0] sm:$0xff]
    %v2088 = vld [vmem:[%s8 + $0x1b8] sm:$0xff]
    %v2089 = vld [vmem:[%s8 + $0x1c0] sm:$0xff]
    %v2090 = vld [vmem:[%s8 + $0x1c8] sm:$0xff]
    %v2091 = vld [vmem:[%s8 + $0x1d0] sm:$0xff]
    %v2092 = vld [vmem:[%s8 + $0x1d8] sm:$0xff]
    %v2093 = vld [vmem:[%s8 + $0x1e0] sm:$0xff]
    %v2094 = vld [vmem:[%s8 + $0x1e8] sm:$0xff]
    %v2095 = vld [vmem:[%s8 + $0x1f0] sm:$0xff]
    %v2096 = vld [vmem:[%s8 + $0x1f8] sm:$0xff]
    %v2097 = vld [vmem:[%s8 + $0x200] sm:$0xff]
    %v2098 = vld [vmem:[%s8 + $0x208] sm:$0xff]
    %v2099 = vld [vmem:[%s8 + $0x210] sm:$0xff]
    %v2100 = vld [vmem:[%s8 + $0x218] sm:$0xff]
    %v2101 = vld [vmem:[%s8 + $0x220] sm:$0xff]
    %v2102 = vld [vmem:[%s8 + $0x228] sm:$0xff]
    %v2103 = vld [vmem:[%s8 + $0x230] sm:$0xff]
    %v2104 = vld [vmem:[%s8 + $0x238] sm:$0xff]
    %v2105 = vld [vmem:[%s8 + $0x240] sm:$0xff]
    %v2106 = vld [vmem:[%s8 + $0x248] sm:$0xff]
    %v2107 = vld [vmem:[%s8 + $0x250] sm:$0xff]
    %v2108 = vld [vmem:[%s8 + $0x258] sm:$0xff]
    %v2109 = vld [vmem:[%s8 + $0x260] sm:$0xff]
    %v2110 = vld [vmem:[%s8 + $0x268] sm:$0xff]
    %v2111 = vld [vmem:[%s8 + $0x270] sm:$0xff]
    %v2112 = vld [vmem:[%s8 + $0x278] sm:$0xff]
    %v2113 = vld [vmem:[%s8 + $0x280] sm:$0xff]
    %v2114 = vld [vmem:[%s8 + $0x288] sm:$0xff]
    %v2115 = vld [vmem:[%s8 + $0x290] sm:$0xff]
    %v2116 = vld [vmem:[%s8 + $0x298] sm:$0xff]
    %v2117 = vld [vmem:[%s8 + $0x2a0] sm:$0xff]
    %v2118 = vld [vmem:[%s8 + $0x2a8] sm:$0xff]
    %v2119 = vld [vmem:[%s8 + $0x2b0] sm:$0xff]
    %v2120 = vld [vmem:[%s8 + $0x2b8] sm:$0xff]
    %v2121 = vld [vmem:[%s8 + $0x2c0] sm:$0xff]
    %v2122 = vld [vmem:[%s8 + $0x2c8] sm:$0xff]
    %v2123 = vld [vmem:[%s8 + $0x2d0] sm:$0xff]
    %v2124 = vld [vmem:[%s8 + $0x2d8] sm:$0xff]
    %v2125 = vld [vmem:[%s8 + $0x2e0] sm:$0xff]
    %v2126 = vld [vmem:[%s8 + $0x2e8] sm:$0xff]
    %v2127 = vld [vmem:[%s8 + $0x2f0] sm:$0xff]
    %v2128 = vld [vmem:[%s8 + $0x2f8] sm:$0xff]
    %v2129 = vld [vmem:[%s8 + $0x300] sm:$0xff]
    %v2130 = vld [vmem:[%s8 + $0x308] sm:$0xff]
    %v2131 = vld [vmem:[%s8 + $0x310] sm:$0xff]
    %v2132 = vld [vmem:[%s8 + $0x318] sm:$0xff]
    %v2133 = vld [vmem:[%s8 + $0x320] sm:$0xff]
    %v2134 = vld [vmem:[%s8 + $0x328] sm:$0xff]
    %v2135 = vld [vmem:[%s8 + $0x330] sm:$0xff]
    %v2136 = vld [vmem:[%s8 + $0x338] sm:$0xff]
    %v2137 = vld [vmem:[%s8 + $0x340] sm:$0xff]
    %v2138 = vld [vmem:[%s8 + $0x348] sm:$0xff]
    %v2139 = vld [vmem:[%s8 + $0x350] sm:$0xff]
    %v2140 = vld [vmem:[%s8 + $0x358] sm:$0xff]
    %v2141 = vld [vmem:[%s8 + $0x360] sm:$0xff]
    %v2142 = vld [vmem:[%s8 + $0x368] sm:$0xff]
    %v2143 = vld [vmem:[%s8 + $0x370] sm:$0xff]
    %v2144 = vld [vmem:[%s8 + $0x378] sm:$0xff]
    %v2145 = vld [vmem:[%s8 + $0x380] sm:$0xff]
    %v2146 = vld [vmem:[%s8 + $0x388] sm:$0xff]
    %v2147 = vld [vmem:[%s8 + $0x390] sm:$0xff]
    %v2148 = vld [vmem:[%s8 + $0x398] sm:$0xff]
    %v2149 = vld [vmem:[%s8 + $0x3a0] sm:$0xff]
    %v2150 = vld [vmem:[%s8 + $0x3a8] sm:$0xff]
    %v2151 = vld [vmem:[%s8 + $0x3b0] sm:$0xff]
    %v2152 = vld [vmem:[%s8 + $0x3b8] sm:$0xff]
    %v2153 = vld [vmem:[%s8 + $0x3c0] sm:$0xff]
    %v2154 = vld [vmem:[%s8 + $0x3c8] sm:$0xff]
    %v2155 = vld [vmem:[%s8 + $0x3d0] sm:$0xff]
    %v2156 = vld [vmem:[%s8 + $0x3d8] sm:$0xff]
    %v2157 = vld [vmem:[%s8 + $0x3e0] sm:$0xff]
    %v2158 = vld [vmem:[%s8 + $0x3e8] sm:$0xff]
    %v2159 = vld [vmem:[%s8 + $0x3f0] sm:$0xff]
    %v2160 = vld [vmem:[%s8 + $0x3f8] sm:$0xff]
    %v2161 = vld [vmem:[%s8 + $0x400] sm:$0xff]
    %v2162 = vld [vmem:[%s8 + $0x408] sm:$0xff]
    %v2163 = vld [vmem:[%s8 + $0x410] sm:$0xff]
    %v2164 = vld [vmem:[%s8 + $0x418] sm:$0xff]
    %v2165 = vld [vmem:[%s8 + $0x420] sm:$0xff]
    %v2166 = vld [vmem:[%s8 + $0x428] sm:$0xff]
    %v2167 = vld [vmem:[%s8 + $0x430] sm:$0xff]
    %v2168 = vld [vmem:[%s8 + $0x438] sm:$0xff]
    %v2169 = vld [vmem:[%s8 + $0x440] sm:$0xff]
    %v2170 = vld [vmem:[%s8 + $0x448] sm:$0xff]
    %v2171 = vld [vmem:[%s8 + $0x450] sm:$0xff]
    %v2172 = vld [vmem:[%s8 + $0x458] sm:$0xff]
    %v2173 = vld [vmem:[%s8 + $0x460] sm:$0xff]
    %v2174 = vld [vmem:[%s8 + $0x468] sm:$0xff]
    %v2175 = vld [vmem:[%s8 + $0x470] sm:$0xff]
    %v2176 = vld [vmem:[%s8 + $0x478] sm:$0xff]
    %v2177 = vld [vmem:[%s8 + $0x480] sm:$0xff]
    %v2178 = vld [vmem:[%s8 + $0x488] sm:$0xff]
    %v2179 = vld [vmem:[%s8 + $0x490] sm:$0xff]
    %v2180 = vld [vmem:[%s8 + $0x498] sm:$0xff]
    %v2181 = vld [vmem:[%s8 + $0x4a0] sm:$0xff]
    %v2182 = vld [vmem:[%s8 + $0x4a8] sm:$0xff]
    %v2183 = vld [vmem:[%s8 + $0x4b0] sm:$0xff]
    %v2184 = vld [vmem:[%s8 + $0x4b8] sm:$0xff]
    %v2185 = vld [vmem:[%s8 + $0x4c0] sm:$0xff]
    %v2186 = vld [vmem:[%s8 + $0x4c8] sm:$0xff]
    %v2187 = vld [vmem:[%s8 + $0x4d0] sm:$0xff]
    %v2188 = vld [vmem:[%s8 + $0x4d8] sm:$0xff]
    %v2189 = vld [vmem:[%s8 + $0x4e0] sm:$0xff]
    %v2190 = vld [vmem:[%s8 + $0x4e8] sm:$0xff]
    %v2191 = vld [vmem:[%s8 + $0x4f0] sm:$0xff]
    %v2192 = vld [vmem:[%s8 + $0x4f8] sm:$0xff]
    %v2193 = vld [vmem:[%s8 + $0x500] sm:$0xff]
    %v2194 = vld [vmem:[%s8 + $0x508] sm:$0xff]
    %v2195 = vld [vmem:[%s8 + $0x510] sm:$0xff]
    %v2196 = vld [vmem:[%s8 + $0x518] sm:$0xff]
    %v2197 = vld [vmem:[%s8 + $0x520] sm:$0xff]
    %v2198 = vld [vmem:[%s8 + $0x528] sm:$0xff]
    %v2199 = vld [vmem:[%s8 + $0x530] sm:$0xff]
    %v2200 = vld [vmem:[%s8 + $0x538] sm:$0xff]
    %v2202 = vsel %vm83, %v2012, 0
    %v2205 = vsel %vm83, %v2016, 0
    %v2208 = vsel %vm83, %v2020, 0
    %v2211 = vsel %vm83, %v2024, 0
    %v2214 = vsel %vm83, %v2028, 0
    %v2217 = vsel %vm83, %v2032, 0
    %2219 = vmatprep.subr.mxu0 %v2034
    %2220 = vmatpush1.msra.mxu0 %v2033
    %2221 = vmatprep.subr.mxu0 %v2037
    %2222 = vmatpush1.msra.mxu0 %v2036
    %2223 = vmatprep.subr.mxu0 %v2040
    %2224 = vmatpush1.msra.mxu0 %v2039
    %2225 = vmatprep.subr.mxu0 %v2043
    %2226 = vmatpush1.msra.mxu0 %v2042
    %2227 = vmatprep.subr.mxu0 %v2046
    %2228 = vmatpush1.msra.mxu0 %v2045
    %2229 = vmatprep.subr.mxu0 %v2049
    %2230 = vmatpush1.msra.mxu0 %v2048
    %2231 = vmatprep.subr.mxu0 %v2052
    %2232 = vmatpush1.msra.mxu0 %v2051
    %2233 = vmatprep.subr.mxu0 %v2055
    %2234 = vmatpush1.msra.mxu0 %v2054
    %2235 = vmatprep.subr.mxu0 %v2058
    %2236 = vmatpush1.msra.mxu0 %v2057
    %2237 = vmatprep.subr.mxu0 %v2061
    %2238 = vmatpush1.msra.mxu0 %v2060
    %2239 = vmatprep.subr.mxu0 %v2064
    %2240 = vmatpush1.msra.mxu0 %v2063
    %2241 = vmatprep.subr.mxu0 %v2067
    %2242 = vmatpush1.msra.mxu0 %v2066
    %2243 = vmatprep.subr.mxu0 %v2070
    %2244 = vmatpush1.msra.mxu0 %v2069
    %2245 = vmatprep.subr.mxu0 %v2073
    %2246 = vmatpush1.msra.mxu0 %v2072
    %2247 = vmatprep.subr.mxu0 %v2076
    %2248 = vmatpush1.msra.mxu0 %v2075
    %2249 = vmatprep.subr.mxu0 %v2079
    %2250 = vmatpush1.msra.mxu0 %v2078
    %2251 = vmatprep.subr.mxu0 %v2082
    %2252 = vmatpush1.msra.mxu0 %v2081
    %2253 = vmatprep.subr.mxu0 %v2085
    %2254 = vmatpush1.msra.mxu0 %v2084
    %2255 = vmatprep.subr.mxu0 %v2088
    %2256 = vmatpush1.msra.mxu0 %v2087
    %2257 = vmatprep.subr.mxu0 %v2091
    %2258 = vmatpush1.msra.mxu0 %v2090
    %2259 = vmatprep.subr.mxu0 %v2094
    %2260 = vmatpush1.msra.mxu0 %v2093
    %2261 = vmatprep.subr.mxu0 %v2097
    %2262 = vmatpush1.msra.mxu0 %v2096
    %2263 = vmatprep.subr.mxu0 %v2100
    %2264 = vmatpush1.msra.mxu0 %v2099
    %2265 = vmatprep.subr.mxu0 %v2103
    %2266 = vmatpush1.msra.mxu0 %v2102
    %2267 = vmatprep.subr.mxu0 %v2106
    %2268 = vmatpush1.msra.mxu0 %v2105
    %2269 = vmatprep.subr.mxu0 %v2109
    %2270 = vmatpush1.msra.mxu0 %v2108
    %2271 = vmatprep.subr.mxu0 %v2112
    %2272 = vmatpush1.msra.mxu0 %v2111
    %2273 = vmatprep.subr.mxu0 %v2115
    %2274 = vmatpush1.msra.mxu0 %v2114
    %2275 = vmatprep.subr.mxu0 %v2118
    %2276 = vmatpush1.msra.mxu0 %v2117
    %2277 = vmatprep.subr.mxu0 %v2121
    %2278 = vmatpush1.msra.mxu0 %v2120
    %2279 = vmatprep.subr.mxu0 %v2124
    %2280 = vmatpush1.msra.mxu0 %v2123
    %2281 = vmatprep.subr.mxu0 %v2127
    %2282 = vmatpush1.msra.mxu0 %v2126
    %2283 = vmatprep.mubr.f32.mxu0 %v2010
    %2284 = vmatmul.mubr.f32.gmra.mrb[0].mxu0 %v2009
    %v2285 = vpop.f32.mrb[0].mxu0
    %v2286 = vadd.f32 0.0, %v2285
    %v2287 = vpop.f32.mrb[0].mxu0
    %v2288 = vadd.f32 0.0, %v2287
    %2289 = vmatprep.mubr.f32.mxu0 %v2014
    %2290 = vmatmul.mubr.f32.gmra.mrb[0].mxu0 %v2013
    %v2291 = vpop.f32.mrb[0].mxu0
    %v2292 = vadd.f32 0.0, %v2291
    %v2293 = vpop.f32.mrb[0].mxu0
    %v2294 = vadd.f32 0.0, %v2293
    %2295 = vmatprep.mubr.f32.mxu0 %v2018
    %2296 = vmatmul.mubr.f32.gmra.mrb[0].mxu0 %v2017
    %v2297 = vpop.f32.mrb[0].mxu0
    %v2298 = vadd.f32 0.0, %v2297
    %v2299 = vpop.f32.mrb[0].mxu0
    %v2300 = vadd.f32 0.0, %v2299
    %2301 = vmatprep.mubr.f32.mxu0 %v2022
    %2302 = vmatmul.mubr.f32.gmra.mrb[0].mxu0 %v2021
    %v2303 = vpop.f32.mrb[0].mxu0
    %v2304 = vadd.f32 0.0, %v2303
    %v2305 = vpop.f32.mrb[0].mxu0
    %v2306 = vadd.f32 0.0, %v2305
    %2307 = vmatprep.mubr.f32.mxu0 %v2026
    %2308 = vmatmul.mubr.f32.gmra.mrb[0].mxu0 %v2025
    %v2309 = vpop.f32.mrb[0].mxu0
    %v2310 = vadd.f32 0.0, %v2309
    %v2311 = vpop.f32.mrb[0].mxu0
    %v2312 = vadd.f32 0.0, %v2311
    %2313 = vmatprep.mubr.f32.mxu0 %v2030
    %2314 = vmatmul.mubr.f32.gmra.mrb[0].mxu0 %v2029
    %v2315 = vpop.f32.mrb[0].mxu0
    %v2316 = vadd.f32 0.0, %v2315
    %v2317 = vpop.f32.mrb[0].mxu0
    %v2318 = vadd.f32 0.0, %v2317
    %2319 = vdwg.mxu0
    %2320 = vmatprep.subr.mxu0 %v2130
    %2321 = vmatpush1.msra.mxu0 %v2129
    %2322 = vmatprep.subr.mxu0 %v2133
    %2323 = vmatpush1.msra.mxu0 %v2132
    %2324 = vmatprep.subr.mxu0 %v2136
    %2325 = vmatpush1.msra.mxu0 %v2135
    %2326 = vmatprep.subr.mxu0 %v2139
    %2327 = vmatpush1.msra.mxu0 %v2138
    %2328 = vmatprep.subr.mxu0 %v2142
    %2329 = vmatpush1.msra.mxu0 %v2141
    %2330 = vmatprep.subr.mxu0 %v2145
    %2331 = vmatpush1.msra.mxu0 %v2144
    %2332 = vmatprep.subr.mxu0 %v2148
    %2333 = vmatpush1.msra.mxu0 %v2147
    %2334 = vmatprep.subr.mxu0 %v2151
    %2335 = vmatpush1.msra.mxu0 %v2150
    %2336 = vmatprep.subr.mxu0 %v2154
    %2337 = vmatpush1.msra.mxu0 %v2153
    %2338 = vmatprep.subr.mxu0 %v2157
    %2339 = vmatpush1.msra.mxu0 %v2156
    %2340 = vmatprep.subr.mxu0 %v2160
    %2341 = vmatpush1.msra.mxu0 %v2159
    %2342 = vmatprep.subr.mxu0 %v2163
    %2343 = vmatpush1.msra.mxu0 %v2162
    %2344 = vmatprep.subr.mxu0 %v2166
    %2345 = vmatpush1.msra.mxu0 %v2165
    %2346 = vmatprep.subr.mxu0 %v2169
    %2347 = vmatpush1.msra.mxu0 %v2168
    %2348 = vmatprep.subr.mxu0 %v2172
    %2349 = vmatpush1.msra.mxu0 %v2171
    %2350 = vmatprep.subr.mxu0 %v2175
    %2351 = vmatpush1.msra.mxu0 %v2174
    %2352 = vmatprep.subr.mxu0 %v2178
    %2353 = vmatpush1.msra.mxu0 %v2177
    %2354 = vmatprep.subr.mxu0 %v2181
    %2355 = vmatpush1.msra.mxu0 %v2180
    %2356 = vmatprep.subr.mxu0 %v2184
    %2357 = vmatpush1.msra.mxu0 %v2183
    %2358 = vmatprep.subr.mxu0 %v2187
    %2359 = vmatpush1.msra.mxu0 %v2186
    %2360 = vmatprep.subr.mxu0 %v2190
    %2361 = vmatpush1.msra.mxu0 %v2189
    %2362 = vmatprep.subr.mxu0 %v2193
    %2363 = vmatpush1.msra.mxu0 %v2192
    %2364 = vmatprep.subr.mxu0 %v2196
    %2365 = vmatpush1.msra.mxu0 %v2195
    %2366 = vmatprep.subr.mxu0 %v2199
    %2367 = vmatpush1.msra.mxu0 %v2198
    %2368 = vmatprep.subr.mxu0 0.0
    %2369 = vmatpush1.msra.mxu0 0.0
    %2370 = vmatprep.subr.mxu0 0.0
    %2371 = vmatpush1.msra.mxu0 0.0
    %2372 = vmatprep.subr.mxu0 0.0
    %2373 = vmatpush1.msra.mxu0 0.0
    %2374 = vmatprep.subr.mxu0 0.0
    %2375 = vmatpush1.msra.mxu0 0.0
    %2376 = vmatprep.subr.mxu0 0.0
    %2377 = vmatpush1.msra.mxu0 0.0
    %2378 = vmatprep.subr.mxu0 0.0
    %2379 = vmatpush1.msra.mxu0 0.0
    %2380 = vmatprep.subr.mxu0 0.0
    %2381 = vmatpush1.msra.mxu0 0.0
    %2382 = vmatprep.subr.mxu0 0.0
    %2383 = vmatpush1.msra.mxu0 0.0
    %2384 = vmatprep.mubr.f32.mxu0 %v2202
    %2385 = vmatmul.mubr.f32.gmra.mrb[0].mxu0 %v2011
    %v2386 = vpop.f32.mrb[0].mxu0
    %v2387 = vadd.f32 %v2286, %v2386
    %v2388 = vpop.f32.mrb[0].mxu0
    %v2389 = vadd.f32 %v2288, %v2388
    %2390 = vmatprep.mubr.f32.mxu0 %v2205
    %2391 = vmatmul.mubr.f32.gmra.mrb[0].mxu0 %v2015
    %v2392 = vpop.f32.mrb[0].mxu0
    %v2393 = vadd.f32 %v2292, %v2392
    %v2394 = vpop.f32.mrb[0].mxu0
    %v2395 = vadd.f32 %v2294, %v2394
    %2396 = vmatprep.mubr.f32.mxu0 %v2208
    %2397 = vmatmul.mubr.f32.gmra.mrb[0].mxu0 %v2019
    %v2398 = vpop.f32.mrb[0].mxu0
    %v2399 = vadd.f32 %v2298, %v2398
    %v2400 = vpop.f32.mrb[0].mxu0
    %v2401 = vadd.f32 %v2300, %v2400
    %2402 = vmatprep.mubr.f32.mxu0 %v2211
    %2403 = vmatmul.mubr.f32.gmra.mrb[0].mxu0 %v2023
    %v2404 = vpop.f32.mrb[0].mxu0
    %v2405 = vadd.f32 %v2304, %v2404
    %v2406 = vpop.f32.mrb[0].mxu0
    %v2407 = vadd.f32 %v2306, %v2406
    %2408 = vmatprep.mubr.f32.mxu0 %v2214
    %2409 = vmatmul.mubr.f32.gmra.mrb[0].mxu0 %v2027
    %v2410 = vpop.f32.mrb[0].mxu0
    %v2411 = vadd.f32 %v2310, %v2410
    %v2412 = vpop.f32.mrb[0].mxu0
    %v2413 = vadd.f32 %v2312, %v2412
    %2414 = vmatprep.mubr.f32.mxu0 %v2217
    %2415 = vmatmul.mubr.f32.gmra.mrb[0].mxu0 %v2031
    %v2416 = vpop.f32.mrb[0].mxu0
    %v2417 = vadd.f32 %v2316, %v2416
    %v2418 = vpop.f32.mrb[0].mxu0
    %v2419 = vadd.f32 %v2318, %v2418
    %2420 = vdwg.mxu0
    %2421 = vmatprep.subr.mxu0 0.0
    %2422 = vmatpush1.msra.mxu0 %v2035
    %2423 = vmatprep.subr.mxu0 0.0
    %2424 = vmatpush1.msra.mxu0 %v2038
    %2425 = vmatprep.subr.mxu0 0.0
    %2426 = vmatpush1.msra.mxu0 %v2041
    %2427 = vmatprep.subr.mxu0 0.0
    %2428 = vmatpush1.msra.mxu0 %v2044
    %2429 = vmatprep.subr.mxu0 0.0
    %2430 = vmatpush1.msra.mxu0 %v2047
    %2431 = vmatprep.subr.mxu0 0.0
    %2432 = vmatpush1.msra.mxu0 %v2050
    %2433 = vmatprep.subr.mxu0 0.0
    %2434 = vmatpush1.msra.mxu0 %v2053
    %2435 = vmatprep.subr.mxu0 0.0
    %2436 = vmatpush1.msra.mxu0 %v2056
    %2437 = vmatprep.subr.mxu0 0.0
    %2438 = vmatpush1.msra.mxu0 %v2059
    %2439 = vmatprep.subr.mxu0 0.0
    %2440 = vmatpush1.msra.mxu0 %v2062
    %2441 = vmatprep.subr.mxu0 0.0
    %2442 = vmatpush1.msra.mxu0 %v2065
    %2443 = vmatprep.subr.mxu0 0.0
    %2444 = vmatpush1.msra.mxu0 %v2068
    %2445 = vmatprep.subr.mxu0 0.0
    %2446 = vmatpush1.msra.mxu0 %v2071
    %2447 = vmatprep.subr.mxu0 0.0
    %2448 = vmatpush1.msra.mxu0 %v2074
    %2449 = vmatprep.subr.mxu0 0.0
    %2450 = vmatpush1.msra.mxu0 %v2077
    %2451 = vmatprep.subr.mxu0 0.0
    %2452 = vmatpush1.msra.mxu0 %v2080
    %2453 = vmatprep.subr.mxu0 0.0
    %2454 = vmatpush1.msra.mxu0 %v2083
    %2455 = vmatprep.subr.mxu0 0.0
    %2456 = vmatpush1.msra.mxu0 %v2086
    %2457 = vmatprep.subr.mxu0 0.0
    %2458 = vmatpush1.msra.mxu0 %v2089
    %2459 = vmatprep.subr.mxu0 0.0
    %2460 = vmatpush1.msra.mxu0 %v2092
    %2461 = vmatprep.subr.mxu0 0.0
    %2462 = vmatpush1.msra.mxu0 %v2095
    %2463 = vmatprep.subr.mxu0 0.0
    %2464 = vmatpush1.msra.mxu0 %v2098
    %2465 = vmatprep.subr.mxu0 0.0
    %2466 = vmatpush1.msra.mxu0 %v2101
    %2467 = vmatprep.subr.mxu0 0.0
    %2468 = vmatpush1.msra.mxu0 %v2104
    %2469 = vmatprep.subr.mxu0 0.0
    %2470 = vmatpush1.msra.mxu0 %v2107
    %2471 = vmatprep.subr.mxu0 0.0
    %2472 = vmatpush1.msra.mxu0 %v2110
    %2473 = vmatprep.subr.mxu0 0.0
    %2474 = vmatpush1.msra.mxu0 %v2113
    %2475 = vmatprep.subr.mxu0 0.0
    %2476 = vmatpush1.msra.mxu0 %v2116
    %2477 = vmatprep.subr.mxu0 0.0
    %2478 = vmatpush1.msra.mxu0 %v2119
    %2479 = vmatprep.subr.mxu0 0.0
    %2480 = vmatpush1.msra.mxu0 %v2122
    %2481 = vmatprep.subr.mxu0 0.0
    %2482 = vmatpush1.msra.mxu0 %v2125
    %2483 = vmatprep.subr.mxu0 0.0
    %2484 = vmatpush1.msra.mxu0 %v2128
    %2485 = vmatprep.mubr.f32.mxu0 %v2010
    %2486 = vmatmul.mubr.f32.gmra.mrb[0].mxu0 %v2009
    %v2487 = vpop.f32.mrb[0].mxu0
    %v2488 = vadd.f32 0.0, %v2487
    %v2489 = vpop.f32.mrb[0].mxu0
    %2490 = vmatprep.mubr.f32.mxu0 %v2014
    %2491 = vmatmul.mubr.f32.gmra.mrb[0].mxu0 %v2013
    %v2492 = vpop.f32.mrb[0].mxu0
    %v2493 = vadd.f32 0.0, %v2492
    %v2494 = vpop.f32.mrb[0].mxu0
    %2495 = vmatprep.mubr.f32.mxu0 %v2018
    %2496 = vmatmul.mubr.f32.gmra.mrb[0].mxu0 %v2017
    %v2497 = vpop.f32.mrb[0].mxu0
    %v2498 = vadd.f32 0.0, %v2497
    %v2499 = vpop.f32.mrb[0].mxu0
    %2500 = vmatprep.mubr.f32.mxu0 %v2022
    %2501 = vmatmul.mubr.f32.gmra.mrb[0].mxu0 %v2021
    %v2502 = vpop.f32.mrb[0].mxu0
    %v2503 = vadd.f32 0.0, %v2502
    %v2504 = vpop.f32.mrb[0].mxu0
    %2505 = vmatprep.mubr.f32.mxu0 %v2026
    %2506 = vmatmul.mubr.f32.gmra.mrb[0].mxu0 %v2025
    %v2507 = vpop.f32.mrb[0].mxu0
    %v2508 = vadd.f32 0.0, %v2507
    %v2509 = vpop.f32.mrb[0].mxu0
    %2510 = vmatprep.mubr.f32.mxu0 %v2030
    %2511 = vmatmul.mubr.f32.gmra.mrb[0].mxu0 %v2029
    %v2512 = vpop.f32.mrb[0].mxu0
    %v2513 = vadd.f32 0.0, %v2512
    %v2514 = vpop.f32.mrb[0].mxu0
    %2515 = vdwg.mxu0
    %2516 = vmatprep.subr.mxu0 0.0
    %2517 = vmatpush1.msra.mxu0 %v2131
    %2518 = vmatprep.subr.mxu0 0.0
    %2519 = vmatpush1.msra.mxu0 %v2134
    %2520 = vmatprep.subr.mxu0 0.0
    %2521 = vmatpush1.msra.mxu0 %v2137
    %2522 = vmatprep.subr.mxu0 0.0
    %2523 = vmatpush1.msra.mxu0 %v2140
    %2524 = vmatprep.subr.mxu0 0.0
    %2525 = vmatpush1.msra.mxu0 %v2143
    %2526 = vmatprep.subr.mxu0 0.0
    %2527 = vmatpush1.msra.mxu0 %v2146
    %2528 = vmatprep.subr.mxu0 0.0
    %2529 = vmatpush1.msra.mxu0 %v2149
    %2530 = vmatprep.subr.mxu0 0.0
    %2531 = vmatpush1.msra.mxu0 %v2152
    %2532 = vmatprep.subr.mxu0 0.0
    %2533 = vmatpush1.msra.mxu0 %v2155
    %2534 = vmatprep.subr.mxu0 0.0
    %2535 = vmatpush1.msra.mxu0 %v2158
    %2536 = vmatprep.subr.mxu0 0.0
    %2537 = vmatpush1.msra.mxu0 %v2161
    %2538 = vmatprep.subr.mxu0 0.0
    %2539 = vmatpush1.msra.mxu0 %v2164
    %2540 = vmatprep.subr.mxu0 0.0
    %2541 = vmatpush1.msra.mxu0 %v2167
    %2542 = vmatprep.subr.mxu0 0.0
    %2543 = vmatpush1.msra.mxu0 %v2170
    %2544 = vmatprep.subr.mxu0 0.0
    %2545 = vmatpush1.msra.mxu0 %v2173
    %2546 = vmatprep.subr.mxu0 0.0
    %2547 = vmatpush1.msra.mxu0 %v2176
    %2548 = vmatprep.subr.mxu0 0.0
    %2549 = vmatpush1.msra.mxu0 %v2179
    %2550 = vmatprep.subr.mxu0 0.0
    %2551 = vmatpush1.msra.mxu0 %v2182
    %2552 = vmatprep.subr.mxu0 0.0
    %2553 = vmatpush1.msra.mxu0 %v2185
    %2554 = vmatprep.subr.mxu0 0.0
    %2555 = vmatpush1.msra.mxu0 %v2188
    %2556 = vmatprep.subr.mxu0 0.0
    %2557 = vmatpush1.msra.mxu0 %v2191
    %2558 = vmatprep.subr.mxu0 0.0
    %2559 = vmatpush1.msra.mxu0 %v2194
    %2560 = vmatprep.subr.mxu0 0.0
    %2561 = vmatpush1.msra.mxu0 %v2197
    %2562 = vmatprep.subr.mxu0 0.0
    %2563 = vmatpush1.msra.mxu0 %v2200
    %2564 = vmatprep.subr.mxu0 0.0
    %2565 = vmatpush1.msra.mxu0 0.0
    %2566 = vmatprep.subr.mxu0 0.0
    %2567 = vmatpush1.msra.mxu0 0.0
    %2568 = vmatprep.subr.mxu0 0.0
    %2569 = vmatpush1.msra.mxu0 0.0
    %2570 = vmatprep.subr.mxu0 0.0
    %2571 = vmatpush1.msra.mxu0 0.0
    %2572 = vmatprep.subr.mxu0 0.0
    %2573 = vmatpush1.msra.mxu0 0.0
    %2574 = vmatprep.subr.mxu0 0.0
    %2575 = vmatpush1.msra.mxu0 0.0
    %2576 = vmatprep.subr.mxu0 0.0
    %2577 = vmatpush1.msra.mxu0 0.0
    %2578 = vmatprep.subr.mxu0 0.0
    %2579 = vmatpush1.msra.mxu0 0.0
    %2580 = vmatprep.mubr.f32.mxu0 %v2202
    %2581 = vmatmul.mubr.f32.gmra.mrb[0].mxu0 %v2011
    %v2582 = vpop.f32.mrb[0].mxu0
    %v2583 = vadd.f32 %v2488, %v2582
    %v2584 = vpop.f32.mrb[0].mxu0
    %2585 = vmatprep.mubr.f32.mxu0 %v2205
    %2586 = vmatmul.mubr.f32.gmra.mrb[0].mxu0 %v2015
    %v2587 = vpop.f32.mrb[0].mxu0
    %v2588 = vadd.f32 %v2493, %v2587
    %v2589 = vpop.f32.mrb[0].mxu0
    %2590 = vmatprep.mubr.f32.mxu0 %v2208
    %2591 = vmatmul.mubr.f32.gmra.mrb[0].mxu0 %v2019
    %v2592 = vpop.f32.mrb[0].mxu0
    %v2593 = vadd.f32 %v2498, %v2592
    %v2594 = vpop.f32.mrb[0].mxu0
    %2595 = vmatprep.mubr.f32.mxu0 %v2211
    %2596 = vmatmul.mubr.f32.gmra.mrb[0].mxu0 %v2023
    %v2597 = vpop.f32.mrb[0].mxu0
    %v2598 = vadd.f32 %v2503, %v2597
    %v2599 = vpop.f32.mrb[0].mxu0
    %2600 = vmatprep.mubr.f32.mxu0 %v2214
    %2601 = vmatmul.mubr.f32.gmra.mrb[0].mxu0 %v2027
    %v2602 = vpop.f32.mrb[0].mxu0
    %v2603 = vadd.f32 %v2508, %v2602
    %v2604 = vpop.f32.mrb[0].mxu0
    %2605 = vmatprep.mubr.f32.mxu0 %v2217
    %2606 = vmatmul.mubr.f32.gmra.mrb[0].mxu0 %v2031
    %v2607 = vpop.f32.mrb[0].mxu0
    %v2608 = vadd.f32 %v2513, %v2607
    %v2609 = vpop.f32.mrb[0].mxu0
    %2610 = vdwg.mxu0
    %v2611 = vld [vmem:[%s9] sm:$0xff]
    %v2612 = vld [vmem:[%s9 + $0x8] sm:$0xff]
    %v2613 = vld [vmem:[%s9 + $0x10] sm:$0xff]
    %v2614 = vld [vmem:[%s9 + $0x18] sm:$0xff]
    %v2615 = vld [vmem:[%s9 + $0x20] sm:$0xff]
    %v2616 = vld [vmem:[%s9 + $0x28] sm:$0xff]
    %v2617 = vld [vmem:[%s9 + $0x30] sm:$0xff]
    %v2618 = vld [vmem:[%s9 + $0x38] sm:$0xff]
    %v2619 = vld [vmem:[%s9 + $0x40] sm:$0xff]
    %v2620 = vld [vmem:[%s9 + $0x48] sm:$0xff]
    %v2621 = vld [vmem:[%s9 + $0x50] sm:$0xff]
    %v2622 = vld [vmem:[%s9 + $0x58] sm:$0xff]
    %v2623 = vld [vmem:[%s9 + $0x60] sm:$0xff]
    %v2624 = vld [vmem:[%s9 + $0x68] sm:$0xff]
    %v2625 = vld [vmem:[%s9 + $0x70] sm:$0xff]
    %v2626 = vld [vmem:[%s9 + $0x78] sm:$0xff]
    %v2627 = vld [vmem:[%s9 + $0x80] sm:$0xff]
    %v2628 = vld [vmem:[%s9 + $0x88] sm:$0xff]
    %v2629 = vld [vmem:[%s9 + $0x90] sm:$0xff]
    %v2630 = vld [vmem:[%s9 + $0x98] sm:$0xff]
    %v2631 = vld [vmem:[%s9 + $0xa0] sm:$0xff]
    %v2632 = vld [vmem:[%s9 + $0xa8] sm:$0xff]
    %v2633 = vld [vmem:[%s9 + $0xb0] sm:$0xff]
    %v2634 = vld [vmem:[%s9 + $0xb8] sm:$0xff]
    %v2635 = vld [vmem:[%s9 + $0xc0] sm:$0xff]
    %v2636 = vld [vmem:[%s9 + $0xc8] sm:$0xff]
    %v2637 = vld [vmem:[%s9 + $0xd0] sm:$0xff]
    %v2638 = vld [vmem:[%s9 + $0xd8] sm:$0xff]
    %v2639 = vld [vmem:[%s9 + $0xe0] sm:$0xff]
    %v2640 = vld [vmem:[%s9 + $0xe8] sm:$0xff]
    %v2641 = vld [vmem:[%s9 + $0xf0] sm:$0xff]
    %v2642 = vld [vmem:[%s9 + $0xf8] sm:$0xff]
    %v2643 = vld [vmem:[%s9 + $0x100] sm:$0xff]
    %v2644 = vld [vmem:[%s9 + $0x108] sm:$0xff]
    %v2645 = vld [vmem:[%s9 + $0x110] sm:$0xff]
    %v2646 = vld [vmem:[%s9 + $0x118] sm:$0xff]
    %v2647 = vld [vmem:[%s9 + $0x120] sm:$0xff]
    %v2648 = vld [vmem:[%s9 + $0x128] sm:$0xff]
    %v2649 = vld [vmem:[%s9 + $0x130] sm:$0xff]
    %v2650 = vld [vmem:[%s9 + $0x138] sm:$0xff]
    %v2651 = vld [vmem:[%s9 + $0x140] sm:$0xff]
    %v2652 = vld [vmem:[%s9 + $0x148] sm:$0xff]
    %v2653 = vld [vmem:[%s9 + $0x150] sm:$0xff]
    %v2654 = vld [vmem:[%s9 + $0x158] sm:$0xff]
    %v2655 = vld [vmem:[%s9 + $0x160] sm:$0xff]
    %v2656 = vld [vmem:[%s9 + $0x168] sm:$0xff]
    %v2657 = vld [vmem:[%s9 + $0x170] sm:$0xff]
    %v2658 = vld [vmem:[%s9 + $0x178] sm:$0xff]
    %v2659 = vld [vmem:[%s9 + $0x180] sm:$0xff]
    %v2660 = vld [vmem:[%s9 + $0x188] sm:$0xff]
    %v2661 = vld [vmem:[%s9 + $0x190] sm:$0xff]
    %v2662 = vld [vmem:[%s9 + $0x198] sm:$0xff]
    %v2663 = vld [vmem:[%s9 + $0x1a0] sm:$0xff]
    %v2664 = vld [vmem:[%s9 + $0x1a8] sm:$0xff]
    %v2665 = vld [vmem:[%s9 + $0x1b0] sm:$0xff]
    %v2666 = vld [vmem:[%s9 + $0x1b8] sm:$0xff]
    %v2667 = vld [vmem:[%s9 + $0x1c0] sm:$0xff]
    %v2668 = vld [vmem:[%s9 + $0x1c8] sm:$0xff]
    %v2669 = vld [vmem:[%s9 + $0x1d0] sm:$0xff]
    %v2670 = vld [vmem:[%s9 + $0x1d8] sm:$0xff]
    %v2671 = vld [vmem:[%s9 + $0x1e0] sm:$0xff]
    %v2672 = vld [vmem:[%s9 + $0x1e8] sm:$0xff]
    %v2673 = vld [vmem:[%s9 + $0x1f0] sm:$0xff]
    %v2674 = vld [vmem:[%s9 + $0x1f8] sm:$0xff]
    %v2675 = vld [vmem:[%s9 + $0x200] sm:$0xff]
    %v2676 = vld [vmem:[%s9 + $0x208] sm:$0xff]
    %v2677 = vld [vmem:[%s9 + $0x210] sm:$0xff]
    %v2678 = vld [vmem:[%s9 + $0x218] sm:$0xff]
    %v2679 = vld [vmem:[%s9 + $0x220] sm:$0xff]
    %v2680 = vld [vmem:[%s9 + $0x228] sm:$0xff]
    %v2681 = vld [vmem:[%s9 + $0x230] sm:$0xff]
    %v2682 = vld [vmem:[%s9 + $0x238] sm:$0xff]
    %v2683 = vld [vmem:[%s9 + $0x240] sm:$0xff]
    %v2684 = vld [vmem:[%s9 + $0x248] sm:$0xff]
    %v2685 = vld [vmem:[%s9 + $0x250] sm:$0xff]
    %v2686 = vld [vmem:[%s9 + $0x258] sm:$0xff]
    %v2687 = vld [vmem:[%s9 + $0x260] sm:$0xff]
    %v2688 = vld [vmem:[%s9 + $0x268] sm:$0xff]
    %v2689 = vld [vmem:[%s9 + $0x270] sm:$0xff]
    %v2690 = vld [vmem:[%s9 + $0x278] sm:$0xff]
    %v2691 = vld [vmem:[%s9 + $0x280] sm:$0xff]
    %v2692 = vld [vmem:[%s9 + $0x288] sm:$0xff]
    %v2693 = vld [vmem:[%s9 + $0x290] sm:$0xff]
    %v2694 = vld [vmem:[%s9 + $0x298] sm:$0xff]
    %v2695 = vld [vmem:[%s9 + $0x2a0] sm:$0xff]
    %v2696 = vld [vmem:[%s9 + $0x2a8] sm:$0xff]
    %v2697 = vld [vmem:[%s9 + $0x2b0] sm:$0xff]
    %v2698 = vld [vmem:[%s9 + $0x2b8] sm:$0xff]
    %v2699 = vld [vmem:[%s9 + $0x2c0] sm:$0xff]
    %v2700 = vld [vmem:[%s9 + $0x2c8] sm:$0xff]
    %v2701 = vld [vmem:[%s9 + $0x2d0] sm:$0xff]
    %v2702 = vld [vmem:[%s9 + $0x2d8] sm:$0xff]
    %v2703 = vld [vmem:[%s9 + $0x2e0] sm:$0xff]
    %v2704 = vld [vmem:[%s9 + $0x2e8] sm:$0xff]
    %v2705 = vld [vmem:[%s9 + $0x2f0] sm:$0xff]
    %v2706 = vld [vmem:[%s9 + $0x2f8] sm:$0xff]
    %v2707 = vld [vmem:[%s9 + $0x300] sm:$0xff]
    %v2708 = vld [vmem:[%s9 + $0x308] sm:$0xff]
    %v2709 = vld [vmem:[%s9 + $0x310] sm:$0xff]
    %v2710 = vld [vmem:[%s9 + $0x318] sm:$0xff]
    %v2711 = vld [vmem:[%s9 + $0x320] sm:$0xff]
    %v2712 = vld [vmem:[%s9 + $0x328] sm:$0xff]
    %v2713 = vld [vmem:[%s9 + $0x330] sm:$0xff]
    %v2714 = vld [vmem:[%s9 + $0x338] sm:$0xff]
    %v2715 = vld [vmem:[%s9 + $0x340] sm:$0xff]
    %v2716 = vld [vmem:[%s9 + $0x348] sm:$0xff]
    %v2717 = vld [vmem:[%s9 + $0x350] sm:$0xff]
    %v2718 = vld [vmem:[%s9 + $0x358] sm:$0xff]
    %v2719 = vld [vmem:[%s9 + $0x360] sm:$0xff]
    %v2720 = vld [vmem:[%s9 + $0x368] sm:$0xff]
    %v2721 = vld [vmem:[%s9 + $0x370] sm:$0xff]
    %v2722 = vld [vmem:[%s9 + $0x378] sm:$0xff]
    %v2723 = vld [vmem:[%s9 + $0x380] sm:$0xff]
    %v2724 = vld [vmem:[%s9 + $0x388] sm:$0xff]
    %v2725 = vld [vmem:[%s9 + $0x390] sm:$0xff]
    %v2726 = vld [vmem:[%s9 + $0x398] sm:$0xff]
    %v2727 = vld [vmem:[%s9 + $0x3a0] sm:$0xff]
    %v2728 = vld [vmem:[%s9 + $0x3a8] sm:$0xff]
    %v2729 = vld [vmem:[%s9 + $0x3b0] sm:$0xff]
    %v2730 = vld [vmem:[%s9 + $0x3b8] sm:$0xff]
    %v2731 = vld [vmem:[%s9 + $0x3c0] sm:$0xff]
    %v2732 = vld [vmem:[%s9 + $0x3c8] sm:$0xff]
    %v2733 = vld [vmem:[%s9 + $0x3d0] sm:$0xff]
    %v2734 = vld [vmem:[%s9 + $0x3d8] sm:$0xff]
    %v2735 = vld [vmem:[%s9 + $0x3e0] sm:$0xff]
    %v2736 = vld [vmem:[%s9 + $0x3e8] sm:$0xff]
    %v2737 = vld [vmem:[%s9 + $0x3f0] sm:$0xff]
    %v2738 = vld [vmem:[%s9 + $0x3f8] sm:$0xff]
    %v2739 = vld [vmem:[%s9 + $0x400] sm:$0xff]
    %v2740 = vld [vmem:[%s9 + $0x408] sm:$0xff]
    %v2741 = vld [vmem:[%s9 + $0x410] sm:$0xff]
    %v2742 = vld [vmem:[%s9 + $0x418] sm:$0xff]
    %v2743 = vld [vmem:[%s9 + $0x420] sm:$0xff]
    %v2744 = vld [vmem:[%s9 + $0x428] sm:$0xff]
    %v2745 = vld [vmem:[%s9 + $0x430] sm:$0xff]
    %v2746 = vld [vmem:[%s9 + $0x438] sm:$0xff]
    %v2747 = vld [vmem:[%s9 + $0x440] sm:$0xff]
    %v2748 = vld [vmem:[%s9 + $0x448] sm:$0xff]
    %v2749 = vld [vmem:[%s9 + $0x450] sm:$0xff]
    %v2750 = vld [vmem:[%s9 + $0x458] sm:$0xff]
    %v2751 = vld [vmem:[%s9 + $0x460] sm:$0xff]
    %v2752 = vld [vmem:[%s9 + $0x468] sm:$0xff]
    %v2753 = vld [vmem:[%s9 + $0x470] sm:$0xff]
    %v2754 = vld [vmem:[%s9 + $0x478] sm:$0xff]
    %v2755 = vld [vmem:[%s9 + $0x480] sm:$0xff]
    %v2756 = vld [vmem:[%s9 + $0x488] sm:$0xff]
    %v2757 = vld [vmem:[%s9 + $0x490] sm:$0xff]
    %v2758 = vld [vmem:[%s9 + $0x498] sm:$0xff]
    %v2759 = vld [vmem:[%s9 + $0x4a0] sm:$0xff]
    %v2760 = vld [vmem:[%s9 + $0x4a8] sm:$0xff]
    %v2761 = vld [vmem:[%s9 + $0x4b0] sm:$0xff]
    %v2762 = vld [vmem:[%s9 + $0x4b8] sm:$0xff]
    %v2763 = vld [vmem:[%s9 + $0x4c0] sm:$0xff]
    %v2764 = vld [vmem:[%s9 + $0x4c8] sm:$0xff]
    %v2765 = vld [vmem:[%s9 + $0x4d0] sm:$0xff]
    %v2766 = vld [vmem:[%s9 + $0x4d8] sm:$0xff]
    %v2767 = vld [vmem:[%s9 + $0x4e0] sm:$0xff]
    %v2768 = vld [vmem:[%s9 + $0x4e8] sm:$0xff]
    %v2769 = vld [vmem:[%s9 + $0x4f0] sm:$0xff]
    %v2770 = vld [vmem:[%s9 + $0x4f8] sm:$0xff]
    %v2771 = vld [vmem:[%s9 + $0x500] sm:$0xff]
    %v2772 = vld [vmem:[%s9 + $0x508] sm:$0xff]
    %v2773 = vld [vmem:[%s9 + $0x510] sm:$0xff]
    %v2774 = vld [vmem:[%s9 + $0x518] sm:$0xff]
    %v2775 = vld [vmem:[%s9 + $0x520] sm:$0xff]
    %v2776 = vld [vmem:[%s9 + $0x528] sm:$0xff]
    %v2777 = vld [vmem:[%s9 + $0x530] sm:$0xff]
    %v2778 = vld [vmem:[%s9 + $0x538] sm:$0xff]
    %2779 = vmatprep.subr.mxu0 %v2612
    %2780 = vmatpush1.msra.mxu0 %v2611
    %2781 = vmatprep.subr.mxu0 %v2615
    %2782 = vmatpush1.msra.mxu0 %v2614
    %2783 = vmatprep.subr.mxu0 %v2618
    %2784 = vmatpush1.msra.mxu0 %v2617
    %2785 = vmatprep.subr.mxu0 %v2621
    %2786 = vmatpush1.msra.mxu0 %v2620
    %2787 = vmatprep.subr.mxu0 %v2624
    %2788 = vmatpush1.msra.mxu0 %v2623
    %2789 = vmatprep.subr.mxu0 %v2627
    %2790 = vmatpush1.msra.mxu0 %v2626
    %2791 = vmatprep.subr.mxu0 %v2630
    %2792 = vmatpush1.msra.mxu0 %v2629
    %2793 = vmatprep.subr.mxu0 %v2633
    %2794 = vmatpush1.msra.mxu0 %v2632
    %2795 = vmatprep.subr.mxu0 %v2636
    %2796 = vmatpush1.msra.mxu0 %v2635
    %2797 = vmatprep.subr.mxu0 %v2639
    %2798 = vmatpush1.msra.mxu0 %v2638
    %2799 = vmatprep.subr.mxu0 %v2642
    %2800 = vmatpush1.msra.mxu0 %v2641
    %2801 = vmatprep.subr.mxu0 %v2645
    %2802 = vmatpush1.msra.mxu0 %v2644
    %2803 = vmatprep.subr.mxu0 %v2648
    %2804 = vmatpush1.msra.mxu0 %v2647
    %2805 = vmatprep.subr.mxu0 %v2651
    %2806 = vmatpush1.msra.mxu0 %v2650
    %2807 = vmatprep.subr.mxu0 %v2654
    %2808 = vmatpush1.msra.mxu0 %v2653
    %2809 = vmatprep.subr.mxu0 %v2657
    %2810 = vmatpush1.msra.mxu0 %v2656
    %2811 = vmatprep.subr.mxu0 %v2660
    %2812 = vmatpush1.msra.mxu0 %v2659
    %2813 = vmatprep.subr.mxu0 %v2663
    %2814 = vmatpush1.msra.mxu0 %v2662
    %2815 = vmatprep.subr.mxu0 %v2666
    %2816 = vmatpush1.msra.mxu0 %v2665
    %2817 = vmatprep.subr.mxu0 %v2669
    %2818 = vmatpush1.msra.mxu0 %v2668
    %2819 = vmatprep.subr.mxu0 %v2672
    %2820 = vmatpush1.msra.mxu0 %v2671
    %2821 = vmatprep.subr.mxu0 %v2675
    %2822 = vmatpush1.msra.mxu0 %v2674
    %2823 = vmatprep.subr.mxu0 %v2678
    %2824 = vmatpush1.msra.mxu0 %v2677
    %2825 = vmatprep.subr.mxu0 %v2681
    %2826 = vmatpush1.msra.mxu0 %v2680
    %2827 = vmatprep.subr.mxu0 %v2684
    %2828 = vmatpush1.msra.mxu0 %v2683
    %2829 = vmatprep.subr.mxu0 %v2687
    %2830 = vmatpush1.msra.mxu0 %v2686
    %2831 = vmatprep.subr.mxu0 %v2690
    %2832 = vmatpush1.msra.mxu0 %v2689
    %2833 = vmatprep.subr.mxu0 %v2693
    %2834 = vmatpush1.msra.mxu0 %v2692
    %2835 = vmatprep.subr.mxu0 %v2696
    %2836 = vmatpush1.msra.mxu0 %v2695
    %2837 = vmatprep.subr.mxu0 %v2699
    %2838 = vmatpush1.msra.mxu0 %v2698
    %2839 = vmatprep.subr.mxu0 %v2702
    %2840 = vmatpush1.msra.mxu0 %v2701
    %2841 = vmatprep.subr.mxu0 %v2705
    %2842 = vmatpush1.msra.mxu0 %v2704
    %2843 = vmatprep.mubr.f32.mxu0 %v2010
    %2844 = vmatmul.mubr.f32.gmra.mrb[0].mxu0 %v2009
    %v2845 = vpop.f32.mrb[0].mxu0
    %v2846 = vadd.f32 0.0, %v2845
    %v2847 = vpop.f32.mrb[0].mxu0
    %v2848 = vadd.f32 0.0, %v2847
    %2849 = vmatprep.mubr.f32.mxu0 %v2014
    %2850 = vmatmul.mubr.f32.gmra.mrb[0].mxu0 %v2013
    %v2851 = vpop.f32.mrb[0].mxu0
    %v2852 = vadd.f32 0.0, %v2851
    %v2853 = vpop.f32.mrb[0].mxu0
    %v2854 = vadd.f32 0.0, %v2853
    %2855 = vmatprep.mubr.f32.mxu0 %v2018
    %2856 = vmatmul.mubr.f32.gmra.mrb[0].mxu0 %v2017
    %v2857 = vpop.f32.mrb[0].mxu0
    %v2858 = vadd.f32 0.0, %v2857
    %v2859 = vpop.f32.mrb[0].mxu0
    %v2860 = vadd.f32 0.0, %v2859
    %2861 = vmatprep.mubr.f32.mxu0 %v2022
    %2862 = vmatmul.mubr.f32.gmra.mrb[0].mxu0 %v2021
    %v2863 = vpop.f32.mrb[0].mxu0
    %v2864 = vadd.f32 0.0, %v2863
    %v2865 = vpop.f32.mrb[0].mxu0
    %v2866 = vadd.f32 0.0, %v2865
    %2867 = vmatprep.mubr.f32.mxu0 %v2026
    %2868 = vmatmul.mubr.f32.gmra.mrb[0].mxu0 %v2025
    %v2869 = vpop.f32.mrb[0].mxu0
    %v2870 = vadd.f32 0.0, %v2869
    %v2871 = vpop.f32.mrb[0].mxu0
    %v2872 = vadd.f32 0.0, %v2871
    %2873 = vmatprep.mubr.f32.mxu0 %v2030
    %2874 = vmatmul.mubr.f32.gmra.mrb[0].mxu0 %v2029
    %v2875 = vpop.f32.mrb[0].mxu0
    %v2876 = vadd.f32 0.0, %v2875
    %v2877 = vpop.f32.mrb[0].mxu0
    %v2878 = vadd.f32 0.0, %v2877
    %2879 = vdwg.mxu0
    %2880 = vmatprep.subr.mxu0 %v2708
    %2881 = vmatpush1.msra.mxu0 %v2707
    %2882 = vmatprep.subr.mxu0 %v2711
    %2883 = vmatpush1.msra.mxu0 %v2710
    %2884 = vmatprep.subr.mxu0 %v2714
    %2885 = vmatpush1.msra.mxu0 %v2713
    %2886 = vmatprep.subr.mxu0 %v2717
    %2887 = vmatpush1.msra.mxu0 %v2716
    %2888 = vmatprep.subr.mxu0 %v2720
    %2889 = vmatpush1.msra.mxu0 %v2719
    %2890 = vmatprep.subr.mxu0 %v2723
    %2891 = vmatpush1.msra.mxu0 %v2722
    %2892 = vmatprep.subr.mxu0 %v2726
    %2893 = vmatpush1.msra.mxu0 %v2725
    %2894 = vmatprep.subr.mxu0 %v2729
    %2895 = vmatpush1.msra.mxu0 %v2728
    %2896 = vmatprep.subr.mxu0 %v2732
    %2897 = vmatpush1.msra.mxu0 %v2731
    %2898 = vmatprep.subr.mxu0 %v2735
    %2899 = vmatpush1.msra.mxu0 %v2734
    %2900 = vmatprep.subr.mxu0 %v2738
    %2901 = vmatpush1.msra.mxu0 %v2737
    %2902 = vmatprep.subr.mxu0 %v2741
    %2903 = vmatpush1.msra.mxu0 %v2740
    %2904 = vmatprep.subr.mxu0 %v2744
    %2905 = vmatpush1.msra.mxu0 %v2743
    %2906 = vmatprep.subr.mxu0 %v2747
    %2907 = vmatpush1.msra.mxu0 %v2746
    %2908 = vmatprep.subr.mxu0 %v2750
    %2909 = vmatpush1.msra.mxu0 %v2749
    %2910 = vmatprep.subr.mxu0 %v2753
    %2911 = vmatpush1.msra.mxu0 %v2752
    %2912 = vmatprep.subr.mxu0 %v2756
    %2913 = vmatpush1.msra.mxu0 %v2755
    %2914 = vmatprep.subr.mxu0 %v2759
    %2915 = vmatpush1.msra.mxu0 %v2758
    %2916 = vmatprep.subr.mxu0 %v2762
    %2917 = vmatpush1.msra.mxu0 %v2761
    %2918 = vmatprep.subr.mxu0 %v2765
    %2919 = vmatpush1.msra.mxu0 %v2764
    %2920 = vmatprep.subr.mxu0 %v2768
    %2921 = vmatpush1.msra.mxu0 %v2767
    %2922 = vmatprep.subr.mxu0 %v2771
    %2923 = vmatpush1.msra.mxu0 %v2770
    %2924 = vmatprep.subr.mxu0 %v2774
    %2925 = vmatpush1.msra.mxu0 %v2773
    %2926 = vmatprep.subr.mxu0 %v2777
    %2927 = vmatpush1.msra.mxu0 %v2776
    %2928 = vmatprep.subr.mxu0 0.0
    %2929 = vmatpush1.msra.mxu0 0.0
    %2930 = vmatprep.subr.mxu0 0.0
    %2931 = vmatpush1.msra.mxu0 0.0
    %2932 = vmatprep.subr.mxu0 0.0
    %2933 = vmatpush1.msra.mxu0 0.0
    %2934 = vmatprep.subr.mxu0 0.0
    %2935 = vmatpush1.msra.mxu0 0.0
    %2936 = vmatprep.subr.mxu0 0.0
    %2937 = vmatpush1.msra.mxu0 0.0
    %2938 = vmatprep.subr.mxu0 0.0
    %2939 = vmatpush1.msra.mxu0 0.0
    %2940 = vmatprep.subr.mxu0 0.0
    %2941 = vmatpush1.msra.mxu0 0.0
    %2942 = vmatprep.subr.mxu0 0.0
    %2943 = vmatpush1.msra.mxu0 0.0
    %2944 = vmatprep.mubr.f32.mxu0 %v2202
    %2945 = vmatmul.mubr.f32.gmra.mrb[0].mxu0 %v2011
    %v2946 = vpop.f32.mrb[0].mxu0
    %v2947 = vadd.f32 %v2846, %v2946
    %v2948 = vpop.f32.mrb[0].mxu0
    %v2949 = vadd.f32 %v2848, %v2948
    %2950 = vmatprep.mubr.f32.mxu0 %v2205
    %2951 = vmatmul.mubr.f32.gmra.mrb[0].mxu0 %v2015
    %v2952 = vpop.f32.mrb[0].mxu0
    %v2953 = vadd.f32 %v2852, %v2952
    %v2954 = vpop.f32.mrb[0].mxu0
    %v2955 = vadd.f32 %v2854, %v2954
    %2956 = vmatprep.mubr.f32.mxu0 %v2208
    %2957 = vmatmul.mubr.f32.gmra.mrb[0].mxu0 %v2019
    %v2958 = vpop.f32.mrb[0].mxu0
    %v2959 = vadd.f32 %v2858, %v2958
    %v2960 = vpop.f32.mrb[0].mxu0
    %v2961 = vadd.f32 %v2860, %v2960
    %2962 = vmatprep.mubr.f32.mxu0 %v2211
    %2963 = vmatmul.mubr.f32.gmra.mrb[0].mxu0 %v2023
    %v2964 = vpop.f32.mrb[0].mxu0
    %v2965 = vadd.f32 %v2864, %v2964
    %v2966 = vpop.f32.mrb[0].mxu0
    %v2967 = vadd.f32 %v2866, %v2966
    %2968 = vmatprep.mubr.f32.mxu0 %v2214
    %2969 = vmatmul.mubr.f32.gmra.mrb[0].mxu0 %v2027
    %v2970 = vpop.f32.mrb[0].mxu0
    %v2971 = vadd.f32 %v2870, %v2970
    %v2972 = vpop.f32.mrb[0].mxu0
    %v2973 = vadd.f32 %v2872, %v2972
    %2974 = vmatprep.mubr.f32.mxu0 %v2217
    %2975 = vmatmul.mubr.f32.gmra.mrb[0].mxu0 %v2031
    %v2976 = vpop.f32.mrb[0].mxu0
    %v2977 = vadd.f32 %v2876, %v2976
    %v2978 = vpop.f32.mrb[0].mxu0
    %v2979 = vadd.f32 %v2878, %v2978
    %2980 = vdwg.mxu0
    %2981 = vmatprep.subr.mxu0 0.0
    %2982 = vmatpush1.msra.mxu0 %v2613
    %2983 = vmatprep.subr.mxu0 0.0
    %2984 = vmatpush1.msra.mxu0 %v2616
    %2985 = vmatprep.subr.mxu0 0.0
    %2986 = vmatpush1.msra.mxu0 %v2619
    %2987 = vmatprep.subr.mxu0 0.0
    %2988 = vmatpush1.msra.mxu0 %v2622
    %2989 = vmatprep.subr.mxu0 0.0
    %2990 = vmatpush1.msra.mxu0 %v2625
    %2991 = vmatprep.subr.mxu0 0.0
    %2992 = vmatpush1.msra.mxu0 %v2628
    %2993 = vmatprep.subr.mxu0 0.0
    %2994 = vmatpush1.msra.mxu0 %v2631
    %2995 = vmatprep.subr.mxu0 0.0
    %2996 = vmatpush1.msra.mxu0 %v2634
    %2997 = vmatprep.subr.mxu0 0.0
    %2998 = vmatpush1.msra.mxu0 %v2637
    %2999 = vmatprep.subr.mxu0 0.0
    %3000 = vmatpush1.msra.mxu0 %v2640
    %3001 = vmatprep.subr.mxu0 0.0
    %3002 = vmatpush1.msra.mxu0 %v2643
    %3003 = vmatprep.subr.mxu0 0.0
    %3004 = vmatpush1.msra.mxu0 %v2646
    %3005 = vmatprep.subr.mxu0 0.0
    %3006 = vmatpush1.msra.mxu0 %v2649
    %3007 = vmatprep.subr.mxu0 0.0
    %3008 = vmatpush1.msra.mxu0 %v2652
    %3009 = vmatprep.subr.mxu0 0.0
    %3010 = vmatpush1.msra.mxu0 %v2655
    %3011 = vmatprep.subr.mxu0 0.0
    %3012 = vmatpush1.msra.mxu0 %v2658
    %3013 = vmatprep.subr.mxu0 0.0
    %3014 = vmatpush1.msra.mxu0 %v2661
    %3015 = vmatprep.subr.mxu0 0.0
    %3016 = vmatpush1.msra.mxu0 %v2664
    %3017 = vmatprep.subr.mxu0 0.0
    %3018 = vmatpush1.msra.mxu0 %v2667
    %3019 = vmatprep.subr.mxu0 0.0
    %3020 = vmatpush1.msra.mxu0 %v2670
    %3021 = vmatprep.subr.mxu0 0.0
    %3022 = vmatpush1.msra.mxu0 %v2673
    %3023 = vmatprep.subr.mxu0 0.0
    %3024 = vmatpush1.msra.mxu0 %v2676
    %3025 = vmatprep.subr.mxu0 0.0
    %3026 = vmatpush1.msra.mxu0 %v2679
    %3027 = vmatprep.subr.mxu0 0.0
    %3028 = vmatpush1.msra.mxu0 %v2682
    %3029 = vmatprep.subr.mxu0 0.0
    %3030 = vmatpush1.msra.mxu0 %v2685
    %3031 = vmatprep.subr.mxu0 0.0
    %3032 = vmatpush1.msra.mxu0 %v2688
    %3033 = vmatprep.subr.mxu0 0.0
    %3034 = vmatpush1.msra.mxu0 %v2691
    %3035 = vmatprep.subr.mxu0 0.0
    %3036 = vmatpush1.msra.mxu0 %v2694
    %3037 = vmatprep.subr.mxu0 0.0
    %3038 = vmatpush1.msra.mxu0 %v2697
    %3039 = vmatprep.subr.mxu0 0.0
    %3040 = vmatpush1.msra.mxu0 %v2700
    %3041 = vmatprep.subr.mxu0 0.0
    %3042 = vmatpush1.msra.mxu0 %v2703
    %3043 = vmatprep.subr.mxu0 0.0
    %3044 = vmatpush1.msra.mxu0 %v2706
    %3045 = vmatprep.mubr.f32.mxu0 %v2010
    %3046 = vmatmul.mubr.f32.gmra.mrb[0].mxu0 %v2009
    %v3047 = vpop.f32.mrb[0].mxu0
    %v3048 = vadd.f32 0.0, %v3047
    %v3049 = vpop.f32.mrb[0].mxu0
    %3050 = vmatprep.mubr.f32.mxu0 %v2014
    %3051 = vmatmul.mubr.f32.gmra.mrb[0].mxu0 %v2013
    %v3052 = vpop.f32.mrb[0].mxu0
    %v3053 = vadd.f32 0.0, %v3052
    %v3054 = vpop.f32.mrb[0].mxu0
    %3055 = vmatprep.mubr.f32.mxu0 %v2018
    %3056 = vmatmul.mubr.f32.gmra.mrb[0].mxu0 %v2017
    %v3057 = vpop.f32.mrb[0].mxu0
    %v3058 = vadd.f32 0.0, %v3057
    %v3059 = vpop.f32.mrb[0].mxu0
    %3060 = vmatprep.mubr.f32.mxu0 %v2022
    %3061 = vmatmul.mubr.f32.gmra.mrb[0].mxu0 %v2021
    %v3062 = vpop.f32.mrb[0].mxu0
    %v3063 = vadd.f32 0.0, %v3062
    %v3064 = vpop.f32.mrb[0].mxu0
    %3065 = vmatprep.mubr.f32.mxu0 %v2026
    %3066 = vmatmul.mubr.f32.gmra.mrb[0].mxu0 %v2025
    %v3067 = vpop.f32.mrb[0].mxu0
    %v3068 = vadd.f32 0.0, %v3067
    %v3069 = vpop.f32.mrb[0].mxu0
    %3070 = vmatprep.mubr.f32.mxu0 %v2030
    %3071 = vmatmul.mubr.f32.gmra.mrb[0].mxu0 %v2029
    %v3072 = vpop.f32.mrb[0].mxu0
    %v3073 = vadd.f32 0.0, %v3072
    %v3074 = vpop.f32.mrb[0].mxu0
    %3075 = vdwg.mxu0
    %3076 = vmatprep.subr.mxu0 0.0
    %3077 = vmatpush1.msra.mxu0 %v2709
    %3078 = vmatprep.subr.mxu0 0.0
    %3079 = vmatpush1.msra.mxu0 %v2712
    %3080 = vmatprep.subr.mxu0 0.0
    %3081 = vmatpush1.msra.mxu0 %v2715
    %3082 = vmatprep.subr.mxu0 0.0
    %3083 = vmatpush1.msra.mxu0 %v2718
    %3084 = vmatprep.subr.mxu0 0.0
    %3085 = vmatpush1.msra.mxu0 %v2721
    %3086 = vmatprep.subr.mxu0 0.0
    %3087 = vmatpush1.msra.mxu0 %v2724
    %3088 = vmatprep.subr.mxu0 0.0
    %3089 = vmatpush1.msra.mxu0 %v2727
    %3090 = vmatprep.subr.mxu0 0.0
    %3091 = vmatpush1.msra.mxu0 %v2730
    %3092 = vmatprep.subr.mxu0 0.0
    %3093 = vmatpush1.msra.mxu0 %v2733
    %3094 = vmatprep.subr.mxu0 0.0
    %3095 = vmatpush1.msra.mxu0 %v2736
    %3096 = vmatprep.subr.mxu0 0.0
    %3097 = vmatpush1.msra.mxu0 %v2739
    %3098 = vmatprep.subr.mxu0 0.0
    %3099 = vmatpush1.msra.mxu0 %v2742
    %3100 = vmatprep.subr.mxu0 0.0
    %3101 = vmatpush1.msra.mxu0 %v2745
    %3102 = vmatprep.subr.mxu0 0.0
    %3103 = vmatpush1.msra.mxu0 %v2748
    %3104 = vmatprep.subr.mxu0 0.0
    %3105 = vmatpush1.msra.mxu0 %v2751
    %3106 = vmatprep.subr.mxu0 0.0
    %3107 = vmatpush1.msra.mxu0 %v2754
    %3108 = vmatprep.subr.mxu0 0.0
    %3109 = vmatpush1.msra.mxu0 %v2757
    %3110 = vmatprep.subr.mxu0 0.0
    %3111 = vmatpush1.msra.mxu0 %v2760
    %3112 = vmatprep.subr.mxu0 0.0
    %3113 = vmatpush1.msra.mxu0 %v2763
    %3114 = vmatprep.subr.mxu0 0.0
    %3115 = vmatpush1.msra.mxu0 %v2766
    %3116 = vmatprep.subr.mxu0 0.0
    %3117 = vmatpush1.msra.mxu0 %v2769
    %3118 = vmatprep.subr.mxu0 0.0
    %3119 = vmatpush1.msra.mxu0 %v2772
    %3120 = vmatprep.subr.mxu0 0.0
    %3121 = vmatpush1.msra.mxu0 %v2775
    %3122 = vmatprep.subr.mxu0 0.0
    %3123 = vmatpush1.msra.mxu0 %v2778
    %3124 = vmatprep.subr.mxu0 0.0
    %3125 = vmatpush1.msra.mxu0 0.0
    %3126 = vmatprep.subr.mxu0 0.0
    %3127 = vmatpush1.msra.mxu0 0.0
    %3128 = vmatprep.subr.mxu0 0.0
    %3129 = vmatpush1.msra.mxu0 0.0
    %3130 = vmatprep.subr.mxu0 0.0
    %3131 = vmatpush1.msra.mxu0 0.0
    %3132 = vmatprep.subr.mxu0 0.0
    %3133 = vmatpush1.msra.mxu0 0.0
    %3134 = vmatprep.subr.mxu0 0.0
    %3135 = vmatpush1.msra.mxu0 0.0
    %3136 = vmatprep.subr.mxu0 0.0
    %3137 = vmatpush1.msra.mxu0 0.0
    %3138 = vmatprep.subr.mxu0 0.0
    %3139 = vmatpush1.msra.mxu0 0.0
    %3140 = vmatprep.mubr.f32.mxu0 %v2202
    %3141 = vmatmul.mubr.f32.gmra.mrb[0].mxu0 %v2011
    %v3142 = vpop.f32.mrb[0].mxu0
    %v3143 = vadd.f32 %v3048, %v3142
    %v3144 = vpop.f32.mrb[0].mxu0
    %3145 = vmatprep.mubr.f32.mxu0 %v2205
    %3146 = vmatmul.mubr.f32.gmra.mrb[0].mxu0 %v2015
    %v3147 = vpop.f32.mrb[0].mxu0
    %v3148 = vadd.f32 %v3053, %v3147
    %v3149 = vpop.f32.mrb[0].mxu0
    %3150 = vmatprep.mubr.f32.mxu0 %v2208
    %3151 = vmatmul.mubr.f32.gmra.mrb[0].mxu0 %v2019
    %v3152 = vpop.f32.mrb[0].mxu0
    %v3153 = vadd.f32 %v3058, %v3152
    %v3154 = vpop.f32.mrb[0].mxu0
    %3155 = vmatprep.mubr.f32.mxu0 %v2211
    %3156 = vmatmul.mubr.f32.gmra.mrb[0].mxu0 %v2023
    %v3157 = vpop.f32.mrb[0].mxu0
    %v3158 = vadd.f32 %v3063, %v3157
    %v3159 = vpop.f32.mrb[0].mxu0
    %3160 = vmatprep.mubr.f32.mxu0 %v2214
    %3161 = vmatmul.mubr.f32.gmra.mrb[0].mxu0 %v2027
    %v3162 = vpop.f32.mrb[0].mxu0
    %v3163 = vadd.f32 %v3068, %v3162
    %v3164 = vpop.f32.mrb[0].mxu0
    %3165 = vmatprep.mubr.f32.mxu0 %v2217
    %3166 = vmatmul.mubr.f32.gmra.mrb[0].mxu0 %v2031
    %v3167 = vpop.f32.mrb[0].mxu0
    %v3168 = vadd.f32 %v3073, %v3167
    %v3169 = vpop.f32.mrb[0].mxu0
    %3170 = vdwg.mxu0
    %v3171 = vmax.f32 %v2387, %v2947
    %v3172 = vmax.f32 %v2389, %v2949
    %v3173 = vmax.f32 %v2583, %v3143
    %v3174 = vmax.f32 %v2393, %v2953
    %v3175 = vmax.f32 %v2395, %v2955
    %v3176 = vmax.f32 %v2588, %v3148
    %v3177 = vmax.f32 %v2399, %v2959
    %v3178 = vmax.f32 %v2401, %v2961
    %v3179 = vmax.f32 %v2593, %v3153
    %v3180 = vmax.f32 %v2405, %v2965
    %v3181 = vmax.f32 %v2407, %v2967
    %v3182 = vmax.f32 %v2598, %v3158
    %v3183 = vmax.f32 %v2411, %v2971
    %v3184 = vmax.f32 %v2413, %v2973
    %v3185 = vmax.f32 %v2603, %v3163
    %v3186 = vmax.f32 %v2417, %v2977
    %v3187 = vmax.f32 %v2419, %v2979
    %v3188 = vmax.f32 %v2608, %v3168
    %v3189 = vld [vmem:[%s10] sm:$0x7]
    %v3191 = vlaneseq
    %v3192 = vshrl.u32 %v3191, 7
    %v3193 = vsub.s32 0, %v3192
    %v3194 = vrot.slane %v3189, %v3193
    %v3195 = vlaneseq
    %v3196 = vshrl.u32 %v3195, 7
    %v3197 = vsub.s32 1, %v3196
    %v3198 = vrot.slane %v3189, %v3197
    %v3199 = vlaneseq
    %v3200 = vshrl.u32 %v3199, 7
    %v3201 = vsub.s32 2, %v3200
    %v3202 = vrot.slane %v3189, %v3201
    %v3206 = vadd.f32 %v3171, %v3194
    %v3207 = vadd.f32 %v3172, %v3198
    %v3208 = vadd.f32 %v3173, %v3202
    %v3209 = vadd.f32 %v3174, %v3194
    %v3210 = vadd.f32 %v3175, %v3198
    %v3211 = vadd.f32 %v3176, %v3202
    %v3212 = vadd.f32 %v3177, %v3194
    %v3213 = vadd.f32 %v3178, %v3198
    %v3214 = vadd.f32 %v3179, %v3202
    %v3215 = vadd.f32 %v3180, %v3194
    %v3216 = vadd.f32 %v3181, %v3198
    %v3217 = vadd.f32 %v3182, %v3202
    %v3218 = vadd.f32 %v3183, %v3194
    %v3219 = vadd.f32 %v3184, %v3198
    %v3220 = vadd.f32 %v3185, %v3202
    %v3221 = vadd.f32 %v3186, %v3194
    %v3222 = vadd.f32 %v3187, %v3198
    %v3223 = vadd.f32 %v3188, %v3202
    %v3224 = vmax.f32 %v3206, 0.0
    %v3225 = vmax.f32 %v3207, 0.0
    %v3226 = vmax.f32 %v3208, 0.0
    %v3227 = vmax.f32 %v3209, 0.0
    %v3228 = vmax.f32 %v3210, 0.0
    %v3229 = vmax.f32 %v3211, 0.0
    %v3230 = vmax.f32 %v3212, 0.0
    %v3231 = vmax.f32 %v3213, 0.0
    %v3232 = vmax.f32 %v3214, 0.0
    %v3233 = vmax.f32 %v3215, 0.0
    %v3234 = vmax.f32 %v3216, 0.0
    %v3235 = vmax.f32 %v3217, 0.0
    %v3236 = vmax.f32 %v3218, 0.0
    %v3237 = vmax.f32 %v3219, 0.0
    %v3238 = vmax.f32 %v3220, 0.0
    %v3239 = vmax.f32 %v3221, 0.0
    %v3240 = vmax.f32 %v3222, 0.0
    %v3241 = vmax.f32 %v3223, 0.0
    %v3242 = vld [vmem:[%s1] sm:$0x3]
    %vm3243 = vcmask 343040
    %v3245 = vsel %vm3243, %v3242, 0
    %vm3247 = vcmask 1041408
    %v3249 = vsel %vm3247, %v3239, 0
    %v3252 = vsel %vm3247, %v3240, 0
    %v3255 = vsel %vm3247, %v3241, 0
    %3257 = vmatprep.subr.mxu0 %v3225
    %3258 = vmatpush1.msra.mxu0 %v3224
    %3259 = vmatprep.subr.mxu0 %v3228
    %3260 = vmatpush1.msra.mxu0 %v3227
    %3261 = vmatprep.subr.mxu0 %v3231
    %3262 = vmatpush1.msra.mxu0 %v3230
    %3263 = vmatprep.subr.mxu0 %v3234
    %3264 = vmatpush1.msra.mxu0 %v3233
    %3265 = vmatprep.subr.mxu0 %v3237
    %3266 = vmatpush1.msra.mxu0 %v3236
    %3267 = vmatprep.subr.mxu0 %v3252
    %3268 = vmatpush1.msra.mxu0 %v3249
    %3269 = vmatprep.subr.mxu0 0.0
    %3270 = vmatpush1.msra.mxu0 0.0
    %3271 = vmatprep.subr.mxu0 0.0
    %3272 = vmatpush1.msra.mxu0 0.0
    %3273 = vmatprep.subr.mxu0 0.0
    %3274 = vmatpush1.msra.mxu0 0.0
    %3275 = vmatprep.subr.mxu0 0.0
    %3276 = vmatpush1.msra.mxu0 0.0
    %3277 = vmatprep.subr.mxu0 0.0
    %3278 = vmatpush1.msra.mxu0 0.0
    %3279 = vmatprep.subr.mxu0 0.0
    %3280 = vmatpush1.msra.mxu0 0.0
    %3281 = vmatprep.subr.mxu0 0.0
    %3282 = vmatpush1.msra.mxu0 0.0
    %3283 = vmatprep.subr.mxu0 0.0
    %3284 = vmatpush1.msra.mxu0 0.0
    %3285 = vmatprep.subr.mxu0 0.0
    %3286 = vmatpush1.msra.mxu0 0.0
    %3287 = vmatprep.subr.mxu0 0.0
    %3288 = vmatpush1.msra.mxu0 0.0
    %3289 = vmatprep.subr.mxu0 0.0
    %3290 = vmatpush1.msra.mxu0 0.0
    %3291 = vmatprep.subr.mxu0 0.0
    %3292 = vmatpush1.msra.mxu0 0.0
    %3293 = vmatprep.subr.mxu0 0.0
    %3294 = vmatpush1.msra.mxu0 0.0
    %3295 = vmatprep.subr.mxu0 0.0
    %3296 = vmatpush1.msra.mxu0 0.0
    %3297 = vmatprep.subr.mxu0 0.0
    %3298 = vmatpush1.msra.mxu0 0.0
    %3299 = vmatprep.subr.mxu0 0.0
    %3300 = vmatpush1.msra.mxu0 0.0
    %3301 = vmatprep.subr.mxu0 0.0
    %3302 = vmatpush1.msra.mxu0 0.0
    %3303 = vmatprep.subr.mxu0 0.0
    %3304 = vmatpush1.msra.mxu0 0.0
    %3305 = vmatprep.subr.mxu0 0.0
    %3306 = vmatpush1.msra.mxu0 0.0
    %3307 = vmatprep.subr.mxu0 0.0
    %3308 = vmatpush1.msra.mxu0 0.0
    %3309 = vmatprep.subr.mxu0 0.0
    %3310 = vmatpush1.msra.mxu0 0.0
    %3311 = vmatprep.subr.mxu0 0.0
    %3312 = vmatpush1.msra.mxu0 0.0
    %3313 = vmatprep.subr.mxu0 0.0
    %3314 = vmatpush1.msra.mxu0 0.0
    %3315 = vmatprep.subr.mxu0 0.0
    %3316 = vmatpush1.msra.mxu0 0.0
    %3317 = vmatprep.subr.mxu0 0.0
    %3318 = vmatpush1.msra.mxu0 0.0
    %3319 = vmatprep.subr.mxu0 0.0
    %3320 = vmatpush1.msra.mxu0 0.0
    %3321 = vmatprep.mubr.f32.mxu0 0.0
    %3322 = vmatmul.mubr.f32.gmra.mrb[0].mxu0 %v3245
    %v3323 = vpop.f32.mrb[0].mxu0
    %v3324 = vadd.f32 0.0, %v3323
    %v3325 = vpop.f32.mrb[0].mxu0
    %v3326 = vadd.f32 0.0, %v3325
    %3327 = vdwg.mxu0
    %3328 = vmatprep.subr.mxu0 0.0
    %3329 = vmatpush1.msra.mxu0 %v3226
    %3330 = vmatprep.subr.mxu0 0.0
    %3331 = vmatpush1.msra.mxu0 %v3229
    %3332 = vmatprep.subr.mxu0 0.0
    %3333 = vmatpush1.msra.mxu0 %v3232
    %3334 = vmatprep.subr.mxu0 0.0
    %3335 = vmatpush1.msra.mxu0 %v3235
    %3336 = vmatprep.subr.mxu0 0.0
    %3337 = vmatpush1.msra.mxu0 %v3238
    %3338 = vmatprep.subr.mxu0 0.0
    %3339 = vmatpush1.msra.mxu0 %v3255
    %3340 = vmatprep.subr.mxu0 0.0
    %3341 = vmatpush1.msra.mxu0 0.0
    %3342 = vmatprep.subr.mxu0 0.0
    %3343 = vmatpush1.msra.mxu0 0.0
    %3344 = vmatprep.subr.mxu0 0.0
    %3345 = vmatpush1.msra.mxu0 0.0
    %3346 = vmatprep.subr.mxu0 0.0
    %3347 = vmatpush1.msra.mxu0 0.0
    %3348 = vmatprep.subr.mxu0 0.0
    %3349 = vmatpush1.msra.mxu0 0.0
    %3350 = vmatprep.subr.mxu0 0.0
    %3351 = vmatpush1.msra.mxu0 0.0
    %3352 = vmatprep.subr.mxu0 0.0
    %3353 = vmatpush1.msra.mxu0 0.0
    %3354 = vmatprep.subr.mxu0 0.0
    %3355 = vmatpush1.msra.mxu0 0.0
    %3356 = vmatprep.subr.mxu0 0.0
    %3357 = vmatpush1.msra.mxu0 0.0
    %3358 = vmatprep.subr.mxu0 0.0
    %3359 = vmatpush1.msra.mxu0 0.0
    %3360 = vmatprep.subr.mxu0 0.0
    %3361 = vmatpush1.msra.mxu0 0.0
    %3362 = vmatprep.subr.mxu0 0.0
    %3363 = vmatpush1.msra.mxu0 0.0
    %3364 = vmatprep.subr.mxu0 0.0
    %3365 = vmatpush1.msra.mxu0 0.0
    %3366 = vmatprep.subr.mxu0 0.0
    %3367 = vmatpush1.msra.mxu0 0.0
    %3368 = vmatprep.subr.mxu0 0.0
    %3369 = vmatpush1.msra.mxu0 0.0
    %3370 = vmatprep.subr.mxu0 0.0
    %3371 = vmatpush1.msra.mxu0 0.0
    %3372 = vmatprep.subr.mxu0 0.0
    %3373 = vmatpush1.msra.mxu0 0.0
    %3374 = vmatprep.subr.mxu0 0.0
    %3375 = vmatpush1.msra.mxu0 0.0
    %3376 = vmatprep.subr.mxu0 0.0
    %3377 = vmatpush1.msra.mxu0 0.0
    %3378 = vmatprep.subr.mxu0 0.0
    %3379 = vmatpush1.msra.mxu0 0.0
    %3380 = vmatprep.subr.mxu0 0.0
    %3381 = vmatpush1.msra.mxu0 0.0
    %3382 = vmatprep.subr.mxu0 0.0
    %3383 = vmatpush1.msra.mxu0 0.0
    %3384 = vmatprep.subr.mxu0 0.0
    %3385 = vmatpush1.msra.mxu0 0.0
    %3386 = vmatprep.subr.mxu0 0.0
    %3387 = vmatpush1.msra.mxu0 0.0
    %3388 = vmatprep.subr.mxu0 0.0
    %3389 = vmatpush1.msra.mxu0 0.0
    %3390 = vmatprep.subr.mxu0 0.0
    %3391 = vmatpush1.msra.mxu0 0.0
    %3392 = vmatprep.mubr.f32.mxu0 0.0
    %3393 = vmatmul.mubr.f32.gmra.mrb[0].mxu0 %v3245
    %v3394 = vpop.f32.mrb[0].mxu0
    %v3395 = vadd.f32 0.0, %v3394
    %v3396 = vpop.f32.mrb[0].mxu0
    %3397 = vdwg.mxu0
    %v3398 = vld [vmem:[%s11] sm:$0xff]
    %v3399 = vld [vmem:[%s11 + $0x8] sm:$0xff]
    %v3400 = vld [vmem:[%s11 + $0x10] sm:$0xff]
    %v3401 = vld [vmem:[%s11 + $0x18] sm:$0xff]
    %v3402 = vld [vmem:[%s11 + $0x20] sm:$0xff]
    %v3403 = vld [vmem:[%s11 + $0x28] sm:$0xff]
    %v3404 = vld [vmem:[%s11 + $0x30] sm:$0xff]
    %v3405 = vld [vmem:[%s11 + $0x38] sm:$0xff]
    %v3406 = vld [vmem:[%s11 + $0x40] sm:$0xff]
    %v3407 = vld [vmem:[%s11 + $0x48] sm:$0xff]
    %v3408 = vld [vmem:[%s11 + $0x50] sm:$0xff]
    %v3409 = vld [vmem:[%s11 + $0x58] sm:$0xff]
    %v3410 = vld [vmem:[%s11 + $0x60] sm:$0xff]
    %v3411 = vld [vmem:[%s11 + $0x68] sm:$0xff]
    %v3412 = vld [vmem:[%s11 + $0x70] sm:$0xff]
    %v3413 = vld [vmem:[%s11 + $0x78] sm:$0xff]
    %v3414 = vld [vmem:[%s11 + $0x80] sm:$0xff]
    %v3415 = vld [vmem:[%s11 + $0x88] sm:$0xff]
    %v3416 = vld [vmem:[%s11 + $0x90] sm:$0xff]
    %v3417 = vld [vmem:[%s11 + $0x98] sm:$0xff]
    %v3418 = vld [vmem:[%s11 + $0xa0] sm:$0xff]
    %v3419 = vld [vmem:[%s11 + $0xa8] sm:$0xff]
    %v3420 = vld [vmem:[%s11 + $0xb0] sm:$0xff]
    %v3421 = vld [vmem:[%s11 + $0xb8] sm:$0xff]
    %v3422 = vld [vmem:[%s11 + $0xc0] sm:$0xff]
    %v3423 = vld [vmem:[%s11 + $0xc8] sm:$0xff]
    %v3424 = vld [vmem:[%s11 + $0xd0] sm:$0xff]
    %v3425 = vld [vmem:[%s11 + $0xd8] sm:$0xff]
    %v3426 = vld [vmem:[%s11 + $0xe0] sm:$0xff]
    %v3427 = vld [vmem:[%s11 + $0xe8] sm:$0xff]
    %v3428 = vld [vmem:[%s11 + $0xf0] sm:$0xff]
    %v3429 = vld [vmem:[%s11 + $0xf8] sm:$0xff]
    %v3430 = vld [vmem:[%s11 + $0x100] sm:$0xff]
    %v3431 = vld [vmem:[%s11 + $0x108] sm:$0xff]
    %v3432 = vld [vmem:[%s11 + $0x110] sm:$0xff]
    %v3433 = vld [vmem:[%s11 + $0x118] sm:$0xff]
    %v3434 = vld [vmem:[%s11 + $0x120] sm:$0xff]
    %v3435 = vld [vmem:[%s11 + $0x128] sm:$0xff]
    %v3436 = vld [vmem:[%s11 + $0x130] sm:$0xff]
    %v3437 = vld [vmem:[%s11 + $0x138] sm:$0xff]
    %v3438 = vld [vmem:[%s11 + $0x140] sm:$0xff]
    %v3439 = vld [vmem:[%s11 + $0x148] sm:$0xff]
    %v3440 = vld [vmem:[%s11 + $0x150] sm:$0xff]
    %v3441 = vld [vmem:[%s11 + $0x158] sm:$0xff]
    %v3442 = vld [vmem:[%s11 + $0x160] sm:$0xff]
    %v3443 = vld [vmem:[%s11 + $0x168] sm:$0xff]
    %v3444 = vld [vmem:[%s11 + $0x170] sm:$0xff]
    %v3445 = vld [vmem:[%s11 + $0x178] sm:$0xff]
    %v3446 = vld [vmem:[%s12] sm:$0x1]
    %v3448 = vlaneseq
    %v3449 = vshrl.u32 %v3448, 7
    %v3450 = vsub.s32 0, %v3449
    %v3451 = vrot.slane %v3446, %v3450
    %3453 = vmatprep.subr.mxu0 0.0
    %3454 = vmatpush1.msra.mxu0 %v3398
    %3455 = vmatprep.subr.mxu0 0.0
    %3456 = vmatpush1.msra.mxu0 %v3399
    %3457 = vmatprep.subr.mxu0 0.0
    %3458 = vmatpush1.msra.mxu0 %v3400
    %3459 = vmatprep.subr.mxu0 0.0
    %3460 = vmatpush1.msra.mxu0 %v3401
    %3461 = vmatprep.subr.mxu0 0.0
    %3462 = vmatpush1.msra.mxu0 %v3402
    %3463 = vmatprep.subr.mxu0 0.0
    %3464 = vmatpush1.msra.mxu0 %v3403
    %3465 = vmatprep.subr.mxu0 0.0
    %3466 = vmatpush1.msra.mxu0 %v3404
    %3467 = vmatprep.subr.mxu0 0.0
    %3468 = vmatpush1.msra.mxu0 %v3405
    %3469 = vmatprep.subr.mxu0 0.0
    %3470 = vmatpush1.msra.mxu0 %v3406
    %3471 = vmatprep.subr.mxu0 0.0
    %3472 = vmatpush1.msra.mxu0 %v3407
    %3473 = vmatprep.subr.mxu0 0.0
    %3474 = vmatpush1.msra.mxu0 %v3408
    %3475 = vmatprep.subr.mxu0 0.0
    %3476 = vmatpush1.msra.mxu0 %v3409
    %3477 = vmatprep.subr.mxu0 0.0
    %3478 = vmatpush1.msra.mxu0 %v3410
    %3479 = vmatprep.subr.mxu0 0.0
    %3480 = vmatpush1.msra.mxu0 %v3411
    %3481 = vmatprep.subr.mxu0 0.0
    %3482 = vmatpush1.msra.mxu0 %v3412
    %3483 = vmatprep.subr.mxu0 0.0
    %3484 = vmatpush1.msra.mxu0 %v3413
    %3485 = vmatprep.subr.mxu0 0.0
    %3486 = vmatpush1.msra.mxu0 %v3414
    %3487 = vmatprep.subr.mxu0 0.0
    %3488 = vmatpush1.msra.mxu0 %v3415
    %3489 = vmatprep.subr.mxu0 0.0
    %3490 = vmatpush1.msra.mxu0 %v3416
    %3491 = vmatprep.subr.mxu0 0.0
    %3492 = vmatpush1.msra.mxu0 %v3417
    %3493 = vmatprep.subr.mxu0 0.0
    %3494 = vmatpush1.msra.mxu0 %v3418
    %3495 = vmatprep.subr.mxu0 0.0
    %3496 = vmatpush1.msra.mxu0 %v3419
    %3497 = vmatprep.subr.mxu0 0.0
    %3498 = vmatpush1.msra.mxu0 %v3420
    %3499 = vmatprep.subr.mxu0 0.0
    %3500 = vmatpush1.msra.mxu0 %v3421
    %3501 = vmatprep.subr.mxu0 0.0
    %3502 = vmatpush1.msra.mxu0 %v3422
    %3503 = vmatprep.subr.mxu0 0.0
    %3504 = vmatpush1.msra.mxu0 %v3423
    %3505 = vmatprep.subr.mxu0 0.0
    %3506 = vmatpush1.msra.mxu0 %v3424
    %3507 = vmatprep.subr.mxu0 0.0
    %3508 = vmatpush1.msra.mxu0 %v3425
    %3509 = vmatprep.subr.mxu0 0.0
    %3510 = vmatpush1.msra.mxu0 %v3426
    %3511 = vmatprep.subr.mxu0 0.0
    %3512 = vmatpush1.msra.mxu0 %v3427
    %3513 = vmatprep.subr.mxu0 0.0
    %3514 = vmatpush1.msra.mxu0 %v3428
    %3515 = vmatprep.subr.mxu0 0.0
    %3516 = vmatpush1.msra.mxu0 %v3429
    %3517 = vmatprep.mubr.f32.mxu0 %v3326
    %3518 = vmatmul.mubr.f32.gmra.mrb[0].mxu0 %v3324
    %v3519 = vpop.f32.mrb[0].mxu0
    %v3520 = vadd.f32 %v3451, %v3519
    %v3521 = vpop.f32.mrb[0].mxu0
    %3522 = vdwg.mxu0
    %3523 = vmatprep.subr.mxu0 0.0
    %3524 = vmatpush1.msra.mxu0 %v3430
    %3525 = vmatprep.subr.mxu0 0.0
    %3526 = vmatpush1.msra.mxu0 %v3431
    %3527 = vmatprep.subr.mxu0 0.0
    %3528 = vmatpush1.msra.mxu0 %v3432
    %3529 = vmatprep.subr.mxu0 0.0
    %3530 = vmatpush1.msra.mxu0 %v3433
    %3531 = vmatprep.subr.mxu0 0.0
    %3532 = vmatpush1.msra.mxu0 %v3434
    %3533 = vmatprep.subr.mxu0 0.0
    %3534 = vmatpush1.msra.mxu0 %v3435
    %3535 = vmatprep.subr.mxu0 0.0
    %3536 = vmatpush1.msra.mxu0 %v3436
    %3537 = vmatprep.subr.mxu0 0.0
    %3538 = vmatpush1.msra.mxu0 %v3437
    %3539 = vmatprep.subr.mxu0 0.0
    %3540 = vmatpush1.msra.mxu0 %v3438
    %3541 = vmatprep.subr.mxu0 0.0
    %3542 = vmatpush1.msra.mxu0 %v3439
    %3543 = vmatprep.subr.mxu0 0.0
    %3544 = vmatpush1.msra.mxu0 %v3440
    %3545 = vmatprep.subr.mxu0 0.0
    %3546 = vmatpush1.msra.mxu0 %v3441
    %3547 = vmatprep.subr.mxu0 0.0
    %3548 = vmatpush1.msra.mxu0 %v3442
    %3549 = vmatprep.subr.mxu0 0.0
    %3550 = vmatpush1.msra.mxu0 %v3443
    %3551 = vmatprep.subr.mxu0 0.0
    %3552 = vmatpush1.msra.mxu0 %v3444
    %3553 = vmatprep.subr.mxu0 0.0
    %3554 = vmatpush1.msra.mxu0 %v3445
    %3555 = vmatprep.subr.mxu0 0.0
    %3556 = vmatpush1.msra.mxu0 0.0
    %3557 = vmatprep.subr.mxu0 0.0
    %3558 = vmatpush1.msra.mxu0 0.0
    %3559 = vmatprep.subr.mxu0 0.0
    %3560 = vmatpush1.msra.mxu0 0.0
    %3561 = vmatprep.subr.mxu0 0.0
    %3562 = vmatpush1.msra.mxu0 0.0
    %3563 = vmatprep.subr.mxu0 0.0
    %3564 = vmatpush1.msra.mxu0 0.0
    %3565 = vmatprep.subr.mxu0 0.0
    %3566 = vmatpush1.msra.mxu0 0.0
    %3567 = vmatprep.subr.mxu0 0.0
    %3568 = vmatpush1.msra.mxu0 0.0
    %3569 = vmatprep.subr.mxu0 0.0
    %3570 = vmatpush1.msra.mxu0 0.0
    %3571 = vmatprep.subr.mxu0 0.0
    %3572 = vmatpush1.msra.mxu0 0.0
    %3573 = vmatprep.subr.mxu0 0.0
    %3574 = vmatpush1.msra.mxu0 0.0
    %3575 = vmatprep.subr.mxu0 0.0
    %3576 = vmatpush1.msra.mxu0 0.0
    %3577 = vmatprep.subr.mxu0 0.0
    %3578 = vmatpush1.msra.mxu0 0.0
    %3579 = vmatprep.subr.mxu0 0.0
    %3580 = vmatpush1.msra.mxu0 0.0
    %3581 = vmatprep.subr.mxu0 0.0
    %3582 = vmatpush1.msra.mxu0 0.0
    %3583 = vmatprep.subr.mxu0 0.0
    %3584 = vmatpush1.msra.mxu0 0.0
    %3585 = vmatprep.subr.mxu0 0.0
    %3586 = vmatpush1.msra.mxu0 0.0
    %3587 = vmatprep.mubr.f32.mxu0 0.0
    %3588 = vmatmul.mubr.f32.gmra.mrb[0].mxu0 %v3395
    %v3589 = vpop.f32.mrb[0].mxu0
    %v3590 = vadd.f32 %v3520, %v3589
    %v3591 = vpop.f32.mrb[0].mxu0
    %3592 = vdwg.mxu0
    %3593 = vst [vmem:[#allocation2] sm:$0x3] %v3590
    // Predicated region
    $region54: #{_cnn_forward_impl.1} parent=1 // pred_check
      _
    $region55: #{_cnn_forward_impl.1} parent=1 // pred_check_branch
      %3595 = sbr.rel (0) target = $region57
    $region56: #{_cnn_forward_impl.1} parent=1 // pred_region
      %s3597 = ssub.s32 32, 32
      %3598 = vsyncadd [#allocation3], %s3597
      %s3600 = sshll.u32 [#allocation2], 4
      %s3601 = int_to_ptr.vmem [resolvable:$true] %s3600
      %3603 = dma.vmem_to_hbm [thread:$0]  %s3601, 32, %s13, [#allocation3]
    $region57: #{_cnn_forward_impl.1} parent=1 // pred_fallthru
      _
    // Predicated region
    $region58: #{_cnn_forward_impl.1} parent=1 // pred_check
      _
    $region59: #{_cnn_forward_impl.1} parent=1 // pred_check_branch
      %3605 = sbr.rel (0) target = $region61
    $region60: #{_cnn_forward_impl.1} parent=1 // pred_region
      %3606 = dma.done [#allocation3], 32
    $region61: #{_cnn_forward_impl.1} parent=1 // pred_fallthru
      _
    %3607 = vsyncpa [#allocation3], 1

</llo_original>
